<compile_context>
chip_gen: v6e
topology: v6e:2x2x1
jax: 0.10.0
libtpu: 0.0.40
codegen_flags: <defaults>
</compile_context>

<pallas_src>
import jax
import jax.numpy as jnp
from jax import lax
from jax.experimental import pallas as pl
from jax.experimental.pallas import tpu as pltpu

# ---- problem sizes (small, consistent with the module) ----------------------
B = 2            # graphs per Siamese branch
N = 268          # nodes per graph (classifier Linear(268, 100) forces this)
N_PAD = 272      # node axis padded to a multiple of 8 (sublane-aligned)
NFEAT = 16       # input node features
NHID = 32        # hidden channels
NCLASS = 8       # gc4 output channels (row dim fed to the classifier)
K = 3            # Chebyshev order
H1 = 100         # classifier hidden
H1_PAD = 128     # lane-dense classifier hidden
OUT = 60         # classifier output
OUT_PAD = 128    # lane-dense output store (sliced back to 60 in the wrapper)
GPS = 2          # graphs per grid step


# ---------------------------------------------------------------------------
# Pallas kernel: TWO graphs per grid step (both Siamese branches share grid).
# ---------------------------------------------------------------------------
def _siamese_graph_kernel(x_ref, l_ref, w1_ref, b1_ref, w4_ref, b4_ref,
                          wc1_ref, bc1_ref, wc2_ref, bc2_ref, out_ref):
    f32 = jnp.float32
    bf16 = jnp.bfloat16

    # ---- gc1: per-graph Chebyshev recurrence (L differs per graph), then ONE
    # fused weight contraction across both graphs and all K=3 terms.
    t_rows = []
    for g in range(GPS):
        Lg = l_ref[g]                                            # [N_PAD, N_PAD] bf16
        t0 = x_ref[g]                                            # [N_PAD, NFEAT] bf16
        t1 = jnp.dot(Lg, t0, preferred_element_type=f32).astype(bf16)
        t2 = (2.0 * jnp.dot(Lg, t1, preferred_element_type=f32)
              - t0.astype(f32)).astype(bf16)
        t_rows.append(jnp.concatenate([t0, t1, t2], axis=-1))    # [N_PAD, 3*NFEAT]
    T = jnp.concatenate(t_rows, axis=0)                          # [2*N_PAD, 48] bf16

    h = jnp.dot(T, w1_ref[...], preferred_element_type=f32) + b1_ref[...]
    hb = h.astype(bf16)                                          # [2*N_PAD, NHID]
    # (relu output is dead code in the original module; dropout = id at eval)

    # ---- gc4: apply stacked [32, 3*8] weights BEFORE the Laplacian ---------
    #   conv = u0 + L@u1 + 2*L@(L@u2) - u2 + b4,  [u0|u1|u2] = h @ W4cat
    U = jnp.dot(hb, w4_ref[...], preferred_element_type=f32)     # [2*N_PAD, 24]

    conv_cols = []
    for g in range(GPS):
        Lg = l_ref[g]
        Ug = U[g * N_PAD:(g + 1) * N_PAD]                        # [N_PAD, 24] f32
        u0 = Ug[:, :NCLASS]
        u2 = Ug[:, 2 * NCLASS:]
        u12 = Ug[:, NCLASS:].astype(bf16)                        # [N_PAD, 16] = [u1|u2]
        lv = jnp.dot(Lg, u12, preferred_element_type=f32)        # L@u1 | L@u2
        lu1 = lv[:, :NCLASS]
        lu2 = lv[:, NCLASS:]
        llu2 = jnp.dot(Lg, lu2.astype(bf16), preferred_element_type=f32)
        conv_g = u0 + lu1 + 2.0 * llu2 - u2 + b4_ref[...]        # [N_PAD, NCLASS] f32
        conv_cols.append(conv_g.astype(bf16))
    conv_cat = jnp.concatenate(conv_cols, axis=-1)               # [N_PAD, 2*NCLASS]

    # ---- classifier(conv.T) for BOTH graphs at once: contract the node axis
    # directly (no transpose). Padded node rows 268..271 of conv are nonzero
    # (bias broadcast) but are annihilated by the zero-padded rows of wc1.
    h1 = lax.dot_general(conv_cat, wc1_ref[...],
                         dimension_numbers=(((0,), (0,)), ((), ())),
                         preferred_element_type=f32) + bc1_ref[...]   # [16, H1_PAD]
    h1 = jnp.maximum(h1, 0.0)
    out = jnp.dot(h1.astype(bf16), wc2_ref[...],
                  preferred_element_type=f32) + bc2_ref[...]          # [16, OUT_PAD]
    out_ref[...] = out.reshape(GPS, NCLASS, OUT_PAD)


def _pad_to(a, shape):
    return jnp.pad(a, [(0, t - s) for s, t in zip(a.shape, shape)])


# ---------------------------------------------------------------------------
# One-time parameter preparation (hoisted out of the per-call hot path).
# ---------------------------------------------------------------------------
def prepare_params(params):
    w1, b1, w4, b4, wc1, bc1, wc2, bc2 = params
    # Stack gc1 weights along the contraction axis: [K, NFEAT, NHID] -> [K*NFEAT, NHID]
    w1stk = jnp.reshape(w1, (K * NFEAT, NHID)).astype(jnp.bfloat16)          # [48, 32]
    # Concatenate gc4 weights along the output axis: [K, NHID, NCLASS] -> [NHID, K*NCLASS]
    w4cat = jnp.transpose(w4, (1, 0, 2)).reshape(NHID, K * NCLASS).astype(jnp.bfloat16)  # [32, 24]
    wc1p = _pad_to(wc1, (N_PAD, H1_PAD)).astype(jnp.bfloat16)
    bc1p = _pad_to(bc1, (1, H1_PAD)).astype(jnp.float32)
    wc2p = _pad_to(wc2, (H1_PAD, OUT_PAD)).astype(jnp.bfloat16)
    bc2p = _pad_to(bc2, (1, OUT_PAD)).astype(jnp.float32)
    return (w1stk, b1.astype(jnp.float32), w4cat, b4.astype(jnp.float32),
            wc1p, bc1p, wc2p, bc2p)


# ---------------------------------------------------------------------------
# Wrapper: both Siamese branches in ONE pallas_call (shared weights).
# ---------------------------------------------------------------------------
@jax.jit
def siamese_geo_cheby_forward(x1, L1, x2, L2, prep):
    w1stk, b1, w4cat, b4, wc1p, bc1p, wc2p, bc2p = prep
    nb = x1.shape[0]
    total = nb + x2.shape[0]
    assert total % GPS == 0

    # Merge the two branches on the batch axis -> one custom call.
    x = jnp.concatenate([x1, x2], axis=0)                 # [2B, N, NFEAT]
    Lh = jnp.concatenate([L1, L2], axis=0)                # [2B, N, N]

    # Per-call glue kept minimal: pad node axis to 272 + bf16 cast of the two
    # data operands (parameters are pre-padded/cast once in prepare_params).
    xb = _pad_to(x, (total, N_PAD, NFEAT)).astype(jnp.bfloat16)
    Lb = _pad_to(Lh, (total, N_PAD, N_PAD)).astype(jnp.bfloat16)

    grid = (total // GPS,)

    out = pl.pallas_call(
        _siamese_graph_kernel,
        out_shape=jax.ShapeDtypeStruct((total, NCLASS, OUT_PAD), jnp.float32),
        grid=grid,
        in_specs=[
            pl.BlockSpec((GPS, N_PAD, NFEAT), lambda b: (b, 0, 0)),   # x (bf16)
            pl.BlockSpec((GPS, N_PAD, N_PAD), lambda b: (b, 0, 0)),   # L_hat (bf16)
            pl.BlockSpec((K * NFEAT, NHID), lambda b: (0, 0)),        # gc1 weight (stacked)
            pl.BlockSpec((1, NHID), lambda b: (0, 0)),                # gc1 bias
            pl.BlockSpec((NHID, K * NCLASS), lambda b: (0, 0)),       # gc4 weight (concat)
            pl.BlockSpec((1, NCLASS), lambda b: (0, 0)),              # gc4 bias
            pl.BlockSpec((N_PAD, H1_PAD), lambda b: (0, 0)),          # classifier W1^T (padded)
            pl.BlockSpec((1, H1_PAD), lambda b: (0, 0)),              # classifier b1 (padded)
            pl.BlockSpec((H1_PAD, OUT_PAD), lambda b: (0, 0)),        # classifier W2^T (padded)
            pl.BlockSpec((1, OUT_PAD), lambda b: (0, 0)),             # classifier b2 (padded)
        ],
        out_specs=pl.BlockSpec((GPS, NCLASS, OUT_PAD), lambda b: (b, 0, 0)),
        compiler_params=pltpu.CompilerParams(
            dimension_semantics=("parallel",)),
    )(xb, Lb, w1stk, b1, w4cat, b4, wc1p, bc1p, wc2p, bc2p)

    out = out[:, :, :OUT]                                  # drop lane padding
    return out[:nb], out[nb:]


# ---------------------------------------------------------------------------
# Plain-JAX reference (f32 math, same structure) for a sanity check.
# ---------------------------------------------------------------------------
def _ref_single(x, L, params):
    w1, b1, w4, b4, wc1, bc1, wc2, bc2 = params

    def cheb(X, W, b):
        t0 = X
        t1 = L @ X
        t2 = 2.0 * (L @ t1) - t0
        return t0 @ W[0] + t1 @ W[1] + t2 @ W[2] + b

    h = cheb(x, w1, b1)
    conv = cheb(h, w4, b4)
    h1 = jnp.maximum(conv.T @ wc1 + bc1, 0.0)
    return h1 @ wc2 + bc2


def _ref_forward(x1, L1, x2, L2, params):
    f = jax.vmap(lambda x, L: _ref_single(x, L, params))
    return f(x1, L1), f(x2, L2)


# ---------------------------------------------------------------------------
# Deterministic synthetic data / parameters.
# ---------------------------------------------------------------------------
def _make_laplacian(key):
    """Dense scaled Laplacian L_hat = -D^{-1/2} A D^{-1/2} per graph (PyG
    ChebConv sym-normalization with default lambda_max=2)."""
    a = jax.random.uniform(key, (B, N, N), dtype=jnp.float32)
    a = 0.5 * (a + jnp.swapaxes(a, -1, -2))              # symmetric
    a = a * (1.0 - jnp.eye(N, dtype=jnp.float32))        # no self loops
    deg = jnp.sum(a, axis=-1)                            # [B, N]
    d_inv_sqrt = 1.0 / jnp.sqrt(deg)
    return -a * d_inv_sqrt[:, :, None] * d_inv_sqrt[:, None, :]


def _make_params(key):
    ks = jax.random.split(key, 8)
    scale = 0.1
    w1 = scale * jax.random.normal(ks[0], (K, NFEAT, NHID), jnp.float32)
    b1 = scale * jax.random.normal(ks[1], (1, NHID), jnp.float32)
    w4 = scale * jax.random.normal(ks[2], (K, NHID, NCLASS), jnp.float32)
    b4 = scale * jax.random.normal(ks[3], (1, NCLASS), jnp.float32)
    wc1 = scale * jax.random.normal(ks[4], (N, H1), jnp.float32)    # Linear(268,100), stored transposed
    bc1 = scale * jax.random.normal(ks[5], (1, H1), jnp.float32)
    wc2 = scale * jax.random.normal(ks[6], (H1, OUT), jnp.float32)  # Linear(100,60), stored transposed
    bc2 = scale * jax.random.normal(ks[7], (1, OUT), jnp.float32)
    return (w1, b1, w4, b4, wc1, bc1, wc2, bc2)


if __name__ == "__main__":
    root = jax.random.PRNGKey(0)
    k_x1, k_x2, k_l1, k_l2, k_p = jax.random.split(root, 5)

    x1 = jax.random.normal(k_x1, (B, N, NFEAT), jnp.float32)
    x2 = jax.random.normal(k_x2, (B, N, NFEAT), jnp.float32)
    L1 = _make_laplacian(k_l1)
    L2 = _make_laplacian(k_l2)
    params = _make_params(k_p)

    # One-time parameter prep (padding / casting / stacking) outside the hot path.
    prep = jax.tree_util.tree_map(jax.block_until_ready, prepare_params(params))

    out1, out2 = siamese_geo_cheby_forward(x1, L1, x2, L2, prep)
    jax.block_until_ready((out1, out2))
    assert out1.shape == (B, NCLASS, OUT) and out2.shape == (B, NCLASS, OUT)

    # Reference mirrors the kernel's bf16 operand rounding (weights/inputs) but
    # runs the same math in f32 — validates the kernel structure; the remaining
    # difference is only intermediate bf16 rounding (well inside 2e-2).
    def _rt(a):
        return a.astype(jnp.bfloat16).astype(jnp.float32)

    w1, b1, w4, b4, wc1, bc1, wc2, bc2 = params
    params_rt = (_rt(w1), b1, _rt(w4), b4, _rt(wc1), bc1, _rt(wc2), bc2)
    ref1, ref2 = _ref_forward(_rt(x1), _rt(L1), _rt(x2), _rt(L2), params_rt)

    assert jnp.allclose(out1, ref1, rtol=2e-2, atol=2e-2)
    assert jnp.allclose(out2, ref2, rtol=2e-2, atol=2e-2)

    print("KERNEL_OK")
</pallas_src>

<mosaic_0001>
module attributes {stable_mosaic.version = 11 : i64} {
  func.func @_siamese_graph_kernel(%arg0: i32, %arg1: memref<2x272x16xbf16, #tpu.memory_space<vmem>>, %arg2: memref<2x272x272xbf16, #tpu.memory_space<vmem>>, %arg3: memref<48x32xbf16, #tpu.memory_space<vmem>>, %arg4: memref<1x32xf32, #tpu.memory_space<vmem>>, %arg5: memref<32x24xbf16, #tpu.memory_space<vmem>>, %arg6: memref<1x8xf32, #tpu.memory_space<vmem>>, %arg7: memref<272x128xbf16, #tpu.memory_space<vmem>>, %arg8: memref<1x128xf32, #tpu.memory_space<vmem>>, %arg9: memref<128x128xbf16, #tpu.memory_space<vmem>>, %arg10: memref<1x128xf32, #tpu.memory_space<vmem>>, %arg11: memref<2x8x128xf32, #tpu.memory_space<vmem>>) attributes {dimension_semantics = [#tpu.dimension_semantics<parallel>], iteration_bounds = array<i64: 2>, scalar_prefetch = 0 : i64, scratch_operands = 0 : i64, tpu.core_type = #tpu.core_type<tc>, window_params = [{transform_indices = @transform_0, window_bounds = array<i64: 2, 272, 16>}, {transform_indices = @transform_1, window_bounds = array<i64: 2, 272, 272>}, {pipeline_mode = #tpu.pipeline_mode<synchronous>, transform_indices = @transform_2, window_bounds = array<i64: 48, 32>}, {pipeline_mode = #tpu.pipeline_mode<synchronous>, transform_indices = @transform_3, window_bounds = array<i64: 1, 32>}, {pipeline_mode = #tpu.pipeline_mode<synchronous>, transform_indices = @transform_4, window_bounds = array<i64: 32, 24>}, {pipeline_mode = #tpu.pipeline_mode<synchronous>, transform_indices = @transform_5, window_bounds = array<i64: 1, 8>}, {pipeline_mode = #tpu.pipeline_mode<synchronous>, transform_indices = @transform_6, window_bounds = array<i64: 272, 128>}, {pipeline_mode = #tpu.pipeline_mode<synchronous>, transform_indices = @transform_7, window_bounds = array<i64: 1, 128>}, {pipeline_mode = #tpu.pipeline_mode<synchronous>, transform_indices = @transform_8, window_bounds = array<i64: 128, 128>}, {pipeline_mode = #tpu.pipeline_mode<synchronous>, transform_indices = @transform_9, window_bounds = array<i64: 1, 128>}, {transform_indices = @transform_10, window_bounds = array<i64: 2, 8, 128>}]} {
    %c0 = arith.constant 0 : index
    %c0_0 = arith.constant 0 : index
    %c0_1 = arith.constant 0 : index
    %0 = vector.load %arg2[%c0, %c0_0, %c0_1] : memref<2x272x272xbf16, #tpu.memory_space<vmem>>, vector<1x272x272xbf16>
    %1 = vector.shape_cast %0 : vector<1x272x272xbf16> to vector<272x272xbf16>
    %c0_2 = arith.constant 0 : index
    %c0_3 = arith.constant 0 : index
    %c0_4 = arith.constant 0 : index
    %2 = vector.load %arg1[%c0_2, %c0_3, %c0_4] : memref<2x272x16xbf16, #tpu.memory_space<vmem>>, vector<1x272x16xbf16>
    %3 = vector.shape_cast %2 : vector<1x272x16xbf16> to vector<272x16xbf16>
    %cst = arith.constant dense<0.000000e+00> : vector<272x16xf32>
    %4 = tpu.matmul %1, %3, %cst {dimension_numbers = #tpu.dot_dimension_numbers<[1], [0], [0], [1], [0, 0, 1, 1], [], []>} : vector<272x272xbf16>, vector<272x16xbf16>, vector<272x16xf32> -> vector<272x16xf32>
    %5 = arith.truncf %4 : vector<272x16xf32> to vector<272x16xbf16>
    %cst_5 = arith.constant dense<0.000000e+00> : vector<272x16xf32>
    %6 = tpu.matmul %1, %5, %cst_5 {dimension_numbers = #tpu.dot_dimension_numbers<[1], [0], [0], [1], [0, 0, 1, 1], [], []>} : vector<272x272xbf16>, vector<272x16xbf16>, vector<272x16xf32> -> vector<272x16xf32>
    %cst_6 = arith.constant 2.000000e+00 : f32
    %7 = vector.broadcast %cst_6 : f32 to vector<272x16xf32>
    %8 = arith.mulf %7, %6 : vector<272x16xf32>
    %9 = arith.extf %3 : vector<272x16xbf16> to vector<272x16xf32>
    %10 = arith.subf %8, %9 : vector<272x16xf32>
    %11 = arith.truncf %10 : vector<272x16xf32> to vector<272x16xbf16>
    %12 = tpu.concatenate %3, %5, %11 in 1 : vector<272x16xbf16>, vector<272x16xbf16>, vector<272x16xbf16> -> vector<272x48xbf16>
    %c1 = arith.constant 1 : index
    %c0_7 = arith.constant 0 : index
    %c0_8 = arith.constant 0 : index
    %13 = vector.load %arg2[%c1, %c0_7, %c0_8] : memref<2x272x272xbf16, #tpu.memory_space<vmem>>, vector<1x272x272xbf16>
    %14 = vector.shape_cast %13 : vector<1x272x272xbf16> to vector<272x272xbf16>
    %c1_9 = arith.constant 1 : index
    %c0_10 = arith.constant 0 : index
    %c0_11 = arith.constant 0 : index
    %15 = vector.load %arg1[%c1_9, %c0_10, %c0_11] : memref<2x272x16xbf16, #tpu.memory_space<vmem>>, vector<1x272x16xbf16>
    %16 = vector.shape_cast %15 : vector<1x272x16xbf16> to vector<272x16xbf16>
    %cst_12 = arith.constant dense<0.000000e+00> : vector<272x16xf32>
    %17 = tpu.matmul %14, %16, %cst_12 {dimension_numbers = #tpu.dot_dimension_numbers<[1], [0], [0], [1], [0, 0, 1, 1], [], []>} : vector<272x272xbf16>, vector<272x16xbf16>, vector<272x16xf32> -> vector<272x16xf32>
    %18 = arith.truncf %17 : vector<272x16xf32> to vector<272x16xbf16>
    %cst_13 = arith.constant dense<0.000000e+00> : vector<272x16xf32>
    %19 = tpu.matmul %14, %18, %cst_13 {dimension_numbers = #tpu.dot_dimension_numbers<[1], [0], [0], [1], [0, 0, 1, 1], [], []>} : vector<272x272xbf16>, vector<272x16xbf16>, vector<272x16xf32> -> vector<272x16xf32>
    %cst_14 = arith.constant 2.000000e+00 : f32
    %20 = vector.broadcast %cst_14 : f32 to vector<272x16xf32>
    %21 = arith.mulf %20, %19 : vector<272x16xf32>
    %22 = arith.extf %16 : vector<272x16xbf16> to vector<272x16xf32>
    %23 = arith.subf %21, %22 : vector<272x16xf32>
    %24 = arith.truncf %23 : vector<272x16xf32> to vector<272x16xbf16>
    %25 = tpu.concatenate %16, %18, %24 in 1 : vector<272x16xbf16>, vector<272x16xbf16>, vector<272x16xbf16> -> vector<272x48xbf16>
    %26 = tpu.concatenate %12, %25 in 0 : vector<272x48xbf16>, vector<272x48xbf16> -> vector<544x48xbf16>
    %c0_15 = arith.constant 0 : index
    %c0_16 = arith.constant 0 : index
    %27 = vector.load %arg3[%c0_15, %c0_16] : memref<48x32xbf16, #tpu.memory_space<vmem>>, vector<48x32xbf16>
    %cst_17 = arith.constant dense<0.000000e+00> : vector<544x32xf32>
    %28 = tpu.matmul %26, %27, %cst_17 {dimension_numbers = #tpu.dot_dimension_numbers<[1], [0], [0], [1], [0, 0, 1, 1], [], []>} : vector<544x48xbf16>, vector<48x32xbf16>, vector<544x32xf32> -> vector<544x32xf32>
    %c0_18 = arith.constant 0 : index
    %c0_19 = arith.constant 0 : index
    %29 = vector.load %arg4[%c0_18, %c0_19] : memref<1x32xf32, #tpu.memory_space<vmem>>, vector<1x32xf32>
    %30 = vector.broadcast %29 : vector<1x32xf32> to vector<544x32xf32>
    %31 = arith.addf %28, %30 : vector<544x32xf32>
    %32 = arith.truncf %31 : vector<544x32xf32> to vector<544x32xbf16>
    %c0_20 = arith.constant 0 : index
    %c0_21 = arith.constant 0 : index
    %33 = vector.load %arg5[%c0_20, %c0_21] : memref<32x24xbf16, #tpu.memory_space<vmem>>, vector<32x24xbf16>
    %cst_22 = arith.constant dense<0.000000e+00> : vector<544x24xf32>
    %34 = tpu.matmul %32, %33, %cst_22 {dimension_numbers = #tpu.dot_dimension_numbers<[1], [0], [0], [1], [0, 0, 1, 1], [], []>} : vector<544x32xbf16>, vector<32x24xbf16>, vector<544x24xf32> -> vector<544x24xf32>
    %c0_23 = arith.constant 0 : index
    %c0_24 = arith.constant 0 : index
    %c0_25 = arith.constant 0 : index
    %35 = vector.load %arg2[%c0_23, %c0_24, %c0_25] : memref<2x272x272xbf16, #tpu.memory_space<vmem>>, vector<1x272x272xbf16>
    %36 = vector.shape_cast %35 : vector<1x272x272xbf16> to vector<272x272xbf16>
    %37 = vector.extract_strided_slice %34 {offsets = [0, 0], sizes = [272, 24], strides = [1, 1]} : vector<544x24xf32> to vector<272x24xf32>
    %38 = vector.extract_strided_slice %37 {offsets = [0, 0], sizes = [272, 8], strides = [1, 1]} : vector<272x24xf32> to vector<272x8xf32>
    %39 = vector.extract_strided_slice %37 {offsets = [0, 16], sizes = [272, 8], strides = [1, 1]} : vector<272x24xf32> to vector<272x8xf32>
    %40 = vector.extract_strided_slice %37 {offsets = [0, 8], sizes = [272, 16], strides = [1, 1]} : vector<272x24xf32> to vector<272x16xf32>
    %41 = arith.truncf %40 : vector<272x16xf32> to vector<272x16xbf16>
    %cst_26 = arith.constant dense<0.000000e+00> : vector<272x16xf32>
    %42 = tpu.matmul %36, %41, %cst_26 {dimension_numbers = #tpu.dot_dimension_numbers<[1], [0], [0], [1], [0, 0, 1, 1], [], []>} : vector<272x272xbf16>, vector<272x16xbf16>, vector<272x16xf32> -> vector<272x16xf32>
    %43 = vector.extract_strided_slice %42 {offsets = [0, 0], sizes = [272, 8], strides = [1, 1]} : vector<272x16xf32> to vector<272x8xf32>
    %44 = vector.extract_strided_slice %42 {offsets = [0, 8], sizes = [272, 8], strides = [1, 1]} : vector<272x16xf32> to vector<272x8xf32>
    %45 = arith.truncf %44 : vector<272x8xf32> to vector<272x8xbf16>
    %cst_27 = arith.constant dense<0.000000e+00> : vector<272x8xf32>
    %46 = tpu.matmul %36, %45, %cst_27 {dimension_numbers = #tpu.dot_dimension_numbers<[1], [0], [0], [1], [0, 0, 1, 1], [], []>} : vector<272x272xbf16>, vector<272x8xbf16>, vector<272x8xf32> -> vector<272x8xf32>
    %47 = arith.addf %38, %43 : vector<272x8xf32>
    %cst_28 = arith.constant 2.000000e+00 : f32
    %48 = vector.broadcast %cst_28 : f32 to vector<272x8xf32>
    %49 = arith.mulf %48, %46 : vector<272x8xf32>
    %50 = arith.addf %47, %49 : vector<272x8xf32>
    %51 = arith.subf %50, %39 : vector<272x8xf32>
    %c0_29 = arith.constant 0 : index
    %c0_30 = arith.constant 0 : index
    %52 = vector.load %arg6[%c0_29, %c0_30] : memref<1x8xf32, #tpu.memory_space<vmem>>, vector<1x8xf32>
    %53 = vector.broadcast %52 : vector<1x8xf32> to vector<272x8xf32>
    %54 = arith.addf %51, %53 : vector<272x8xf32>
    %55 = arith.truncf %54 : vector<272x8xf32> to vector<272x8xbf16>
    %c1_31 = arith.constant 1 : index
    %c0_32 = arith.constant 0 : index
    %c0_33 = arith.constant 0 : index
    %56 = vector.load %arg2[%c1_31, %c0_32, %c0_33] : memref<2x272x272xbf16, #tpu.memory_space<vmem>>, vector<1x272x272xbf16>
    %57 = vector.shape_cast %56 : vector<1x272x272xbf16> to vector<272x272xbf16>
    %58 = vector.extract_strided_slice %34 {offsets = [272, 0], sizes = [272, 24], strides = [1, 1]} : vector<544x24xf32> to vector<272x24xf32>
    %59 = vector.extract_strided_slice %58 {offsets = [0, 0], sizes = [272, 8], strides = [1, 1]} : vector<272x24xf32> to vector<272x8xf32>
    %60 = vector.extract_strided_slice %58 {offsets = [0, 16], sizes = [272, 8], strides = [1, 1]} : vector<272x24xf32> to vector<272x8xf32>
    %61 = vector.extract_strided_slice %58 {offsets = [0, 8], sizes = [272, 16], strides = [1, 1]} : vector<272x24xf32> to vector<272x16xf32>
    %62 = arith.truncf %61 : vector<272x16xf32> to vector<272x16xbf16>
    %cst_34 = arith.constant dense<0.000000e+00> : vector<272x16xf32>
    %63 = tpu.matmul %57, %62, %cst_34 {dimension_numbers = #tpu.dot_dimension_numbers<[1], [0], [0], [1], [0, 0, 1, 1], [], []>} : vector<272x272xbf16>, vector<272x16xbf16>, vector<272x16xf32> -> vector<272x16xf32>
    %64 = vector.extract_strided_slice %63 {offsets = [0, 0], sizes = [272, 8], strides = [1, 1]} : vector<272x16xf32> to vector<272x8xf32>
    %65 = vector.extract_strided_slice %63 {offsets = [0, 8], sizes = [272, 8], strides = [1, 1]} : vector<272x16xf32> to vector<272x8xf32>
    %66 = arith.truncf %65 : vector<272x8xf32> to vector<272x8xbf16>
    %cst_35 = arith.constant dense<0.000000e+00> : vector<272x8xf32>
    %67 = tpu.matmul %57, %66, %cst_35 {dimension_numbers = #tpu.dot_dimension_numbers<[1], [0], [0], [1], [0, 0, 1, 1], [], []>} : vector<272x272xbf16>, vector<272x8xbf16>, vector<272x8xf32> -> vector<272x8xf32>
    %68 = arith.addf %59, %64 : vector<272x8xf32>
    %cst_36 = arith.constant 2.000000e+00 : f32
    %69 = vector.broadcast %cst_36 : f32 to vector<272x8xf32>
    %70 = arith.mulf %69, %67 : vector<272x8xf32>
    %71 = arith.addf %68, %70 : vector<272x8xf32>
    %72 = arith.subf %71, %60 : vector<272x8xf32>
    %c0_37 = arith.constant 0 : index
    %c0_38 = arith.constant 0 : index
    %73 = vector.load %arg6[%c0_37, %c0_38] : memref<1x8xf32, #tpu.memory_space<vmem>>, vector<1x8xf32>
    %74 = vector.broadcast %73 : vector<1x8xf32> to vector<272x8xf32>
    %75 = arith.addf %72, %74 : vector<272x8xf32>
    %76 = arith.truncf %75 : vector<272x8xf32> to vector<272x8xbf16>
    %77 = tpu.concatenate %55, %76 in 1 : vector<272x8xbf16>, vector<272x8xbf16> -> vector<272x16xbf16>
    %c0_39 = arith.constant 0 : index
    %c0_40 = arith.constant 0 : index
    %78 = vector.load %arg7[%c0_39, %c0_40] : memref<272x128xbf16, #tpu.memory_space<vmem>>, vector<272x128xbf16>
    %cst_41 = arith.constant dense<0.000000e+00> : vector<16x128xf32>
    %79 = tpu.matmul %77, %78, %cst_41 {dimension_numbers = #tpu.dot_dimension_numbers<[0], [0], [1], [1], [0, 1, 1, 1], [], []>} : vector<272x16xbf16>, vector<272x128xbf16>, vector<16x128xf32> -> vector<16x128xf32>
    %c0_42 = arith.constant 0 : index
    %c0_43 = arith.constant 0 : index
    %80 = vector.load %arg8[%c0_42, %c0_43] : memref<1x128xf32, #tpu.memory_space<vmem>>, vector<1x128xf32>
    %81 = vector.broadcast %80 : vector<1x128xf32> to vector<16x128xf32>
    %82 = arith.addf %79, %81 : vector<16x128xf32>
    %cst_44 = arith.constant 0.000000e+00 : f32
    %83 = vector.broadcast %cst_44 : f32 to vector<16x128xf32>
    %84 = arith.maximumf %82, %83 : vector<16x128xf32>
    %85 = arith.truncf %84 : vector<16x128xf32> to vector<16x128xbf16>
    %c0_45 = arith.constant 0 : index
    %c0_46 = arith.constant 0 : index
    %86 = vector.load %arg9[%c0_45, %c0_46] : memref<128x128xbf16, #tpu.memory_space<vmem>>, vector<128x128xbf16>
    %cst_47 = arith.constant dense<0.000000e+00> : vector<16x128xf32>
    %87 = tpu.matmul %85, %86, %cst_47 {dimension_numbers = #tpu.dot_dimension_numbers<[1], [0], [0], [1], [0, 0, 1, 1], [], []>} : vector<16x128xbf16>, vector<128x128xbf16>, vector<16x128xf32> -> vector<16x128xf32>
    %c0_48 = arith.constant 0 : index
    %c0_49 = arith.constant 0 : index
    %88 = vector.load %arg10[%c0_48, %c0_49] : memref<1x128xf32, #tpu.memory_space<vmem>>, vector<1x128xf32>
    %89 = vector.broadcast %88 : vector<1x128xf32> to vector<16x128xf32>
    %90 = arith.addf %87, %89 : vector<16x128xf32>
    %91 = vector.shape_cast %90 : vector<16x128xf32> to vector<2x8x128xf32>
    %c0_50 = arith.constant 0 : index
    %c0_51 = arith.constant 0 : index
    %c0_52 = arith.constant 0 : index
    %92 = vector.load %arg11[%c0_50, %c0_51, %c0_52] : memref<2x8x128xf32, #tpu.memory_space<vmem>>, vector<2x8x128xf32>
    tpu.vector_store %arg11[%c0_50, %c0_51, %c0_52], %91 {strides = array<i32>} : memref<2x8x128xf32, #tpu.memory_space<vmem>>, vector<2x8x128xf32>,
    return
  }
  func.func @transform_0(%arg0: i32) -> (i32, i32, i32) {
    %c0_i32 = arith.constant 0 : i32
    %c0_i32_0 = arith.constant 0 : i32
    %c0_i32_1 = arith.constant 0 : i32
    return %arg0, %c0_i32, %c0_i32_0 : i32, i32, i32
  }
  func.func @transform_1(%arg0: i32) -> (i32, i32, i32) {
    %c0_i32 = arith.constant 0 : i32
    %c0_i32_0 = arith.constant 0 : i32
    %c0_i32_1 = arith.constant 0 : i32
    return %arg0, %c0_i32, %c0_i32_0 : i32, i32, i32
  }
  func.func @transform_2(%arg0: i32) -> (i32, i32) {
    %c0_i32 = arith.constant 0 : i32
    %c0_i32_0 = arith.constant 0 : i32
    %c0_i32_1 = arith.constant 0 : i32
    return %c0_i32, %c0_i32_0 : i32, i32
  }
  func.func @transform_3(%arg0: i32) -> (i32, i32) {
    %c0_i32 = arith.constant 0 : i32
    %c0_i32_0 = arith.constant 0 : i32
    %c0_i32_1 = arith.constant 0 : i32
    return %c0_i32, %c0_i32_0 : i32, i32
  }
  func.func @transform_4(%arg0: i32) -> (i32, i32) {
    %c0_i32 = arith.constant 0 : i32
    %c0_i32_0 = arith.constant 0 : i32
    %c0_i32_1 = arith.constant 0 : i32
    return %c0_i32, %c0_i32_0 : i32, i32
  }
  func.func @transform_5(%arg0: i32) -> (i32, i32) {
    %c0_i32 = arith.constant 0 : i32
    %c0_i32_0 = arith.constant 0 : i32
    %c0_i32_1 = arith.constant 0 : i32
    return %c0_i32, %c0_i32_0 : i32, i32
  }
  func.func @transform_6(%arg0: i32) -> (i32, i32) {
    %c0_i32 = arith.constant 0 : i32
    %c0_i32_0 = arith.constant 0 : i32
    %c0_i32_1 = arith.constant 0 : i32
    return %c0_i32, %c0_i32_0 : i32, i32
  }
  func.func @transform_7(%arg0: i32) -> (i32, i32) {
    %c0_i32 = arith.constant 0 : i32
    %c0_i32_0 = arith.constant 0 : i32
    %c0_i32_1 = arith.constant 0 : i32
    return %c0_i32, %c0_i32_0 : i32, i32
  }
  func.func @transform_8(%arg0: i32) -> (i32, i32) {
    %c0_i32 = arith.constant 0 : i32
    %c0_i32_0 = arith.constant 0 : i32
    %c0_i32_1 = arith.constant 0 : i32
    return %c0_i32, %c0_i32_0 : i32, i32
  }
  func.func @transform_9(%arg0: i32) -> (i32, i32) {
    %c0_i32 = arith.constant 0 : i32
    %c0_i32_0 = arith.constant 0 : i32
    %c0_i32_1 = arith.constant 0 : i32
    return %c0_i32, %c0_i32_0 : i32, i32
  }
  func.func @transform_10(%arg0: i32) -> (i32, i32, i32) {
    %c0_i32 = arith.constant 0 : i32
    %c0_i32_0 = arith.constant 0 : i32
    %c0_i32_1 = arith.constant 0 : i32
    return %arg0, %c0_i32, %c0_i32_0 : i32, i32, i32
  }
}

</mosaic_0001>

<llo_original>
// kernel: siamese_geo_cheby_forward.1
$region0: #{siamese_geo_cheby_forward.1}
  #allocation0 [shape = 'u32[]', space=smem, size = 0x4, offset = 0x4, fixed_abs, tag = 'smem constant byte address 0x4 - core index']
  #allocation1 [shape = 'u32[144,128]{1,0:T(1,128)}', space=vmem, size = 0x12000, scoped, tag = 'internal scratch']
  %s0 = inlined_call_operand.vmem [shape: bf16[4,272,16], index: 0, kind: input, shape index: {}]
  %s1 = inlined_call_operand.vmem [shape: bf16[4,272,272], index: 1, kind: input, shape index: {}]
  %s2 = inlined_call_operand.vmem [shape: bf16[48,32], index: 2, kind: input, shape index: {}]
  %s3 = inlined_call_operand.vmem [shape: f32[1,32], index: 3, kind: input, shape index: {}]
  %s4 = inlined_call_operand.vmem [shape: bf16[32,24], index: 4, kind: input, shape index: {}]
  %s5 = inlined_call_operand.vmem [shape: f32[1,8], index: 5, kind: input, shape index: {}]
  %s6 = inlined_call_operand.vmem [shape: bf16[272,128], index: 6, kind: input, shape index: {}]
  %s7 = inlined_call_operand.vmem [shape: f32[1,128], index: 7, kind: input, shape index: {}]
  %s8 = inlined_call_operand.vmem [shape: bf16[128,128], index: 8, kind: input, shape index: {}]
  %s9 = inlined_call_operand.vmem [shape: f32[1,128], index: 9, kind: input, shape index: {}]
  %s10 = inlined_call_operand.vmem [shape: f32[4,8,128], index: 10, kind: output, shape index: {}]
  %s11 = sld [smem:[#allocation0]]
  $region73: #{siamese_geo_cheby_forward.1} parent=0
    _
  %s13 = ssub.s32 1, %s11
  %s14 = scalar_select 0, %s13, %s11
  loop: start=0, step=1, limit=4
  $region2: #{siamese_geo_cheby_forward.1} parent=0 // loop_pre_header
    _
  $region3: #{siamese_geo_cheby_forward.1} parent=0 // loop_header
    %s16 = sphi 0, %s20
    %p17 = scmp.ge.s32.totalorder %s16, 4
    %s26 = sphi 0, %s28
    %s29 = sphi 0, %s26
    %s30 = sphi 0, %s29
    %s46 = sphi 0, %s30
    %s52 = sphi 0, %s54
    %s55 = sphi 0, %s52
    %s56 = sphi 0, %s55
    %s72 = sphi 0, %s56
    %s76 = sphi 0, %s76
    %s78 = sphi 0, %s76
    %s79 = sphi 0, %s78
    %s93 = sphi 0, %s79
    %s97 = sphi 0, %s97
    %s99 = sphi 0, %s97
    %s100 = sphi 0, %s99
    %s114 = sphi 0, %s100
    %s118 = sphi 0, %s118
    %s120 = sphi 0, %s118
    %s121 = sphi 0, %s120
    %s135 = sphi 0, %s121
    %s139 = sphi 0, %s139
    %s141 = sphi 0, %s139
    %s142 = sphi 0, %s141
    %s156 = sphi 0, %s142
    %s160 = sphi 0, %s160
    %s162 = sphi 0, %s160
    %s163 = sphi 0, %s162
    %s177 = sphi 0, %s163
    %s181 = sphi 0, %s181
    %s183 = sphi 0, %s181
    %s184 = sphi 0, %s183
    %s198 = sphi 0, %s184
    %s202 = sphi 0, %s202
    %s204 = sphi 0, %s202
    %s205 = sphi 0, %s204
    %s219 = sphi 0, %s205
    %s223 = sphi 0, %s223
    %s225 = sphi 0, %s223
    %s226 = sphi 0, %s225
    %s240 = sphi 0, %s226
    %s246 = sphi 0, %s248
    %s249 = sphi 0, %s246
    %s250 = sphi 0, %s249
    %s266 = sphi 0, %s250
  $region4: #{siamese_geo_cheby_forward.1} parent=0 // loop_header_branch
    %19 = sbr.rel (%p17) target = $region8
  $region5: #{siamese_geo_cheby_forward.1} parent=0 // loop_body
    %s21 = ssub.s32 %s16, 1
    %s22 = ssub.s32 %s16, 2
    %s23 = sadd.s32 %s16, 1
    %s24 = ssub.s32 %s16, %s23
    %p25 = scmp.eq.s32.totalorder %s24, 0
    %s27 = sadd.s32 %s26, 1
    %s28 = scalar_select %p25, %s26, %s27
    %p31 = pneg %p25
    %p32 = scmp.eq.s32.totalorder %s16, 1
    %p33 = por %p31, %p32
    %p34 = scmp.ne.s32.totalorder %s26, %s29
    %p35 = scmp.eq.s32.totalorder %s16, 0
    %p36 = por %p34, %p35
    %p37 = scmp.ne.s32.totalorder %s26, %s29
    %p38 = scmp.eq.s32.totalorder %s21, 1
    %p39 = por %p37, %p38
    %p40 = scmp.ne.s32.totalorder %s29, %s30
    %p41 = scmp.eq.s32.totalorder %s21, 0
    %p42 = por %p40, %p41
    %p43 = scmp.ne.s32.totalorder %s29, %s30
    %p44 = scmp.eq.s32.totalorder %s22, 1
    %p45 = por %p43, %p44
    %p47 = scmp.ne.s32.totalorder %s30, %s46
    %p48 = scmp.eq.s32.totalorder %s22, 0
    %p49 = por %p47, %p48
    %s50 = ssub.s32 %s16, %s23
    %p51 = scmp.eq.s32.totalorder %s50, 0
    %s53 = sadd.s32 %s52, 1
    %s54 = scalar_select %p51, %s52, %s53
    %p57 = pneg %p51
    %p58 = scmp.eq.s32.totalorder %s16, 1
    %p59 = por %p57, %p58
    %p60 = scmp.ne.s32.totalorder %s52, %s55
    %p61 = scmp.eq.s32.totalorder %s16, 0
    %p62 = por %p60, %p61
    %p63 = scmp.ne.s32.totalorder %s52, %s55
    %p64 = scmp.eq.s32.totalorder %s21, 1
    %p65 = por %p63, %p64
    %p66 = scmp.ne.s32.totalorder %s55, %s56
    %p67 = scmp.eq.s32.totalorder %s21, 0
    %p68 = por %p66, %p67
    %p69 = scmp.ne.s32.totalorder %s55, %s56
    %p70 = scmp.eq.s32.totalorder %s22, 1
    %p71 = por %p69, %p70
    %p73 = scmp.ne.s32.totalorder %s56, %s72
    %p74 = scmp.eq.s32.totalorder %s22, 0
    %p75 = por %p73, %p74
    %s77 = sadd.s32 %s76, 1
    %p80 = scmp.eq.s32.totalorder %s16, 1
    %p81 = scmp.ne.s32.totalorder %s76, %s78
    %p82 = scmp.eq.s32.totalorder %s16, 0
    %p83 = por %p81, %p82
    %p84 = scmp.ne.s32.totalorder %s76, %s78
    %p85 = scmp.eq.s32.totalorder %s21, 1
    %p86 = por %p84, %p85
    %p87 = scmp.ne.s32.totalorder %s78, %s79
    %p88 = scmp.eq.s32.totalorder %s21, 0
    %p89 = por %p87, %p88
    %p90 = scmp.ne.s32.totalorder %s78, %s79
    %p91 = scmp.eq.s32.totalorder %s22, 1
    %p92 = por %p90, %p91
    %p94 = scmp.ne.s32.totalorder %s79, %s93
    %p95 = scmp.eq.s32.totalorder %s22, 0
    %p96 = por %p94, %p95
    %s98 = sadd.s32 %s97, 1
    %p101 = scmp.eq.s32.totalorder %s16, 1
    %p102 = scmp.ne.s32.totalorder %s97, %s99
    %p103 = scmp.eq.s32.totalorder %s16, 0
    %p104 = por %p102, %p103
    %p105 = scmp.ne.s32.totalorder %s97, %s99
    %p106 = scmp.eq.s32.totalorder %s21, 1
    %p107 = por %p105, %p106
    %p108 = scmp.ne.s32.totalorder %s99, %s100
    %p109 = scmp.eq.s32.totalorder %s21, 0
    %p110 = por %p108, %p109
    %p111 = scmp.ne.s32.totalorder %s99, %s100
    %p112 = scmp.eq.s32.totalorder %s22, 1
    %p113 = por %p111, %p112
    %p115 = scmp.ne.s32.totalorder %s100, %s114
    %p116 = scmp.eq.s32.totalorder %s22, 0
    %p117 = por %p115, %p116
    %s119 = sadd.s32 %s118, 1
    %p122 = scmp.eq.s32.totalorder %s16, 1
    %p123 = scmp.ne.s32.totalorder %s118, %s120
    %p124 = scmp.eq.s32.totalorder %s16, 0
    %p125 = por %p123, %p124
    %p126 = scmp.ne.s32.totalorder %s118, %s120
    %p127 = scmp.eq.s32.totalorder %s21, 1
    %p128 = por %p126, %p127
    %p129 = scmp.ne.s32.totalorder %s120, %s121
    %p130 = scmp.eq.s32.totalorder %s21, 0
    %p131 = por %p129, %p130
    %p132 = scmp.ne.s32.totalorder %s120, %s121
    %p133 = scmp.eq.s32.totalorder %s22, 1
    %p134 = por %p132, %p133
    %p136 = scmp.ne.s32.totalorder %s121, %s135
    %p137 = scmp.eq.s32.totalorder %s22, 0
    %p138 = por %p136, %p137
    %s140 = sadd.s32 %s139, 1
    %p143 = scmp.eq.s32.totalorder %s16, 1
    %p144 = scmp.ne.s32.totalorder %s139, %s141
    %p145 = scmp.eq.s32.totalorder %s16, 0
    %p146 = por %p144, %p145
    %p147 = scmp.ne.s32.totalorder %s139, %s141
    %p148 = scmp.eq.s32.totalorder %s21, 1
    %p149 = por %p147, %p148
    %p150 = scmp.ne.s32.totalorder %s141, %s142
    %p151 = scmp.eq.s32.totalorder %s21, 0
    %p152 = por %p150, %p151
    %p153 = scmp.ne.s32.totalorder %s141, %s142
    %p154 = scmp.eq.s32.totalorder %s22, 1
    %p155 = por %p153, %p154
    %p157 = scmp.ne.s32.totalorder %s142, %s156
    %p158 = scmp.eq.s32.totalorder %s22, 0
    %p159 = por %p157, %p158
    %s161 = sadd.s32 %s160, 1
    %p164 = scmp.eq.s32.totalorder %s16, 1
    %p165 = scmp.ne.s32.totalorder %s160, %s162
    %p166 = scmp.eq.s32.totalorder %s16, 0
    %p167 = por %p165, %p166
    %p168 = scmp.ne.s32.totalorder %s160, %s162
    %p169 = scmp.eq.s32.totalorder %s21, 1
    %p170 = por %p168, %p169
    %p171 = scmp.ne.s32.totalorder %s162, %s163
    %p172 = scmp.eq.s32.totalorder %s21, 0
    %p173 = por %p171, %p172
    %p174 = scmp.ne.s32.totalorder %s162, %s163
    %p175 = scmp.eq.s32.totalorder %s22, 1
    %p176 = por %p174, %p175
    %p178 = scmp.ne.s32.totalorder %s163, %s177
    %p179 = scmp.eq.s32.totalorder %s22, 0
    %p180 = por %p178, %p179
    %s182 = sadd.s32 %s181, 1
    %p185 = scmp.eq.s32.totalorder %s16, 1
    %p186 = scmp.ne.s32.totalorder %s181, %s183
    %p187 = scmp.eq.s32.totalorder %s16, 0
    %p188 = por %p186, %p187
    %p189 = scmp.ne.s32.totalorder %s181, %s183
    %p190 = scmp.eq.s32.totalorder %s21, 1
    %p191 = por %p189, %p190
    %p192 = scmp.ne.s32.totalorder %s183, %s184
    %p193 = scmp.eq.s32.totalorder %s21, 0
    %p194 = por %p192, %p193
    %p195 = scmp.ne.s32.totalorder %s183, %s184
    %p196 = scmp.eq.s32.totalorder %s22, 1
    %p197 = por %p195, %p196
    %p199 = scmp.ne.s32.totalorder %s184, %s198
    %p200 = scmp.eq.s32.totalorder %s22, 0
    %p201 = por %p199, %p200
    %s203 = sadd.s32 %s202, 1
    %p206 = scmp.eq.s32.totalorder %s16, 1
    %p207 = scmp.ne.s32.totalorder %s202, %s204
    %p208 = scmp.eq.s32.totalorder %s16, 0
    %p209 = por %p207, %p208
    %p210 = scmp.ne.s32.totalorder %s202, %s204
    %p211 = scmp.eq.s32.totalorder %s21, 1
    %p212 = por %p210, %p211
    %p213 = scmp.ne.s32.totalorder %s204, %s205
    %p214 = scmp.eq.s32.totalorder %s21, 0
    %p215 = por %p213, %p214
    %p216 = scmp.ne.s32.totalorder %s204, %s205
    %p217 = scmp.eq.s32.totalorder %s22, 1
    %p218 = por %p216, %p217
    %p220 = scmp.ne.s32.totalorder %s205, %s219
    %p221 = scmp.eq.s32.totalorder %s22, 0
    %p222 = por %p220, %p221
    %s224 = sadd.s32 %s223, 1
    %p227 = scmp.eq.s32.totalorder %s16, 1
    %p228 = scmp.ne.s32.totalorder %s223, %s225
    %p229 = scmp.eq.s32.totalorder %s16, 0
    %p230 = por %p228, %p229
    %p231 = scmp.ne.s32.totalorder %s223, %s225
    %p232 = scmp.eq.s32.totalorder %s21, 1
    %p233 = por %p231, %p232
    %p234 = scmp.ne.s32.totalorder %s225, %s226
    %p235 = scmp.eq.s32.totalorder %s21, 0
    %p236 = por %p234, %p235
    %p237 = scmp.ne.s32.totalorder %s225, %s226
    %p238 = scmp.eq.s32.totalorder %s22, 1
    %p239 = por %p237, %p238
    %p241 = scmp.ne.s32.totalorder %s226, %s240
    %p242 = scmp.eq.s32.totalorder %s22, 0
    %p243 = por %p241, %p242
    %s244 = ssub.s32 %s16, %s23
    %p245 = scmp.eq.s32.totalorder %s244, 0
    %s247 = sadd.s32 %s246, 1
    %s248 = scalar_select %p245, %s246, %s247
    %p251 = pneg %p245
    %p252 = scmp.eq.s32.totalorder %s16, 1
    %p253 = por %p251, %p252
    %p254 = scmp.ne.s32.totalorder %s246, %s249
    %p255 = scmp.eq.s32.totalorder %s16, 0
    %p256 = por %p254, %p255
    %p257 = scmp.ne.s32.totalorder %s246, %s249
    %p258 = scmp.eq.s32.totalorder %s21, 1
    %p259 = por %p257, %p258
    %p260 = scmp.ne.s32.totalorder %s249, %s250
    %p261 = scmp.eq.s32.totalorder %s21, 0
    %p262 = por %p260, %p261
    %p263 = scmp.ne.s32.totalorder %s249, %s250
    %p264 = scmp.eq.s32.totalorder %s22, 1
    %p265 = por %p263, %p264
    %p267 = scmp.ne.s32.totalorder %s250, %s266
    %p268 = scmp.eq.s32.totalorder %s22, 0
    %p269 = por %p267, %p268
    %p270 = scmp.le.s32.totalorder 1, %s16
    %p271 = scmp.lt.s32.totalorder %s16, 3
    %p272 = pnand %p270, %p271
    %p273 = pneg %p272
    // Predicated region
    $region9: #{siamese_geo_cheby_forward.1} parent=5 // pred_check
      _
    $region10: #{siamese_geo_cheby_forward.1} parent=5 // pred_check_branch
      %275 = sbr.rel (%p272) target = $region12
    $region11: #{siamese_geo_cheby_forward.1} parent=5 // pred_region
      %s276 = ssub.s32 %s16, 1
      // Predicated region
      $region13: #{siamese_geo_cheby_forward.1} parent=11 // pred_check
        %p277 = pneg %p89
      $region14: #{siamese_geo_cheby_forward.1} parent=11 // pred_check_branch
        %279 = sbr.rel (%p277) target = $region16
      $region15: #{siamese_geo_cheby_forward.1} parent=11 // pred_region
        _
      $region16: #{siamese_geo_cheby_forward.1} parent=11 // pred_fallthru
        _
      // Predicated region
      $region17: #{siamese_geo_cheby_forward.1} parent=11 // pred_check
        %p280 = pneg %p110
      $region18: #{siamese_geo_cheby_forward.1} parent=11 // pred_check_branch
        %282 = sbr.rel (%p280) target = $region20
      $region19: #{siamese_geo_cheby_forward.1} parent=11 // pred_region
        _
      $region20: #{siamese_geo_cheby_forward.1} parent=11 // pred_fallthru
        _
      // Predicated region
      $region21: #{siamese_geo_cheby_forward.1} parent=11 // pred_check
        %p283 = pneg %p131
      $region22: #{siamese_geo_cheby_forward.1} parent=11 // pred_check_branch
        %285 = sbr.rel (%p283) target = $region24
      $region23: #{siamese_geo_cheby_forward.1} parent=11 // pred_region
        _
      $region24: #{siamese_geo_cheby_forward.1} parent=11 // pred_fallthru
        _
      // Predicated region
      $region25: #{siamese_geo_cheby_forward.1} parent=11 // pred_check
        %p286 = pneg %p152
      $region26: #{siamese_geo_cheby_forward.1} parent=11 // pred_check_branch
        %288 = sbr.rel (%p286) target = $region28
      $region27: #{siamese_geo_cheby_forward.1} parent=11 // pred_region
        _
      $region28: #{siamese_geo_cheby_forward.1} parent=11 // pred_fallthru
        _
      // Predicated region
      $region29: #{siamese_geo_cheby_forward.1} parent=11 // pred_check
        %p289 = pneg %p173
      $region30: #{siamese_geo_cheby_forward.1} parent=11 // pred_check_branch
        %291 = sbr.rel (%p289) target = $region32
      $region31: #{siamese_geo_cheby_forward.1} parent=11 // pred_region
        _
      $region32: #{siamese_geo_cheby_forward.1} parent=11 // pred_fallthru
        _
      // Predicated region
      $region33: #{siamese_geo_cheby_forward.1} parent=11 // pred_check
        %p292 = pneg %p194
      $region34: #{siamese_geo_cheby_forward.1} parent=11 // pred_check_branch
        %294 = sbr.rel (%p292) target = $region36
      $region35: #{siamese_geo_cheby_forward.1} parent=11 // pred_region
        _
      $region36: #{siamese_geo_cheby_forward.1} parent=11 // pred_fallthru
        _
      // Predicated region
      $region37: #{siamese_geo_cheby_forward.1} parent=11 // pred_check
        %p295 = pneg %p215
      $region38: #{siamese_geo_cheby_forward.1} parent=11 // pred_check_branch
        %297 = sbr.rel (%p295) target = $region40
      $region39: #{siamese_geo_cheby_forward.1} parent=11 // pred_region
        _
      $region40: #{siamese_geo_cheby_forward.1} parent=11 // pred_fallthru
        _
      // Predicated region
      $region41: #{siamese_geo_cheby_forward.1} parent=11 // pred_check
        %p298 = pneg %p236
      $region42: #{siamese_geo_cheby_forward.1} parent=11 // pred_check_branch
        %300 = sbr.rel (%p298) target = $region44
      $region43: #{siamese_geo_cheby_forward.1} parent=11 // pred_region
        _
      $region44: #{siamese_geo_cheby_forward.1} parent=11 // pred_fallthru
        _
    $region12: #{siamese_geo_cheby_forward.1} parent=5 // pred_fallthru
      _
    %p301 = scmp.lt.s32.totalorder %s16, 2
    // Predicated region
    $region45: #{siamese_geo_cheby_forward.1} parent=5 // pred_check
      %p302 = pneg %p301
    $region46: #{siamese_geo_cheby_forward.1} parent=5 // pred_check_branch
      %304 = sbr.rel (%p302) target = $region48
    $region47: #{siamese_geo_cheby_forward.1} parent=5 // pred_region
      // Predicated region
      $region49: #{siamese_geo_cheby_forward.1} parent=47 // pred_check
        %p305 = pneg %p36
      $region50: #{siamese_geo_cheby_forward.1} parent=47 // pred_check_branch
        %307 = sbr.rel (%p305) target = $region52
      $region51: #{siamese_geo_cheby_forward.1} parent=47 // pred_region
        %s308 = smul.u32 2, %s16
        %p309 = scmp.lt.s32.totalorder %s308, 3
        %s310 = scalar_select %p309, %s308, 3
        %s311 = smul.addr %s310, 34
        %s312 = smul.addr %s311, 4
        %s313 = scalar_lea.vmem %s0, %s312
        %s314 = smul.u32 2, %s16
      $region52: #{siamese_geo_cheby_forward.1} parent=47 // pred_fallthru
        _
      // Predicated region
      $region53: #{siamese_geo_cheby_forward.1} parent=47 // pred_check
        %p315 = pneg %p62
      $region54: #{siamese_geo_cheby_forward.1} parent=47 // pred_check_branch
        %317 = sbr.rel (%p315) target = $region56
      $region55: #{siamese_geo_cheby_forward.1} parent=47 // pred_region
        %s318 = smul.u32 2, %s16
        %p319 = scmp.lt.s32.totalorder %s318, 3
        %s320 = scalar_select %p319, %s318, 3
        %s321 = smul.addr %s320, 102
        %s322 = smul.addr %s321, 4
        %s323 = scalar_lea.vmem %s1, %s322
        %s324 = smul.u32 2, %s16
      $region56: #{siamese_geo_cheby_forward.1} parent=47 // pred_fallthru
        _
    $region48: #{siamese_geo_cheby_forward.1} parent=5 // pred_fallthru
      _
    %p325 = scmp.le.s32.totalorder 1, %s16
    %p326 = scmp.lt.s32.totalorder %s16, 3
    %p327 = pnand %p325, %p326
    %p328 = pneg %p327
    // Predicated region
    $region57: #{siamese_geo_cheby_forward.1} parent=5 // pred_check
      _
    $region58: #{siamese_geo_cheby_forward.1} parent=5 // pred_check_branch
      %330 = sbr.rel (%p327) target = $region60
    $region59: #{siamese_geo_cheby_forward.1} parent=5 // pred_region
      %s331 = ssub.s32 %s16, 1
      %s332 = smul.u32 2, %s21
      %p333 = scmp.lt.s32.totalorder %s332, 3
      %s334 = scalar_select %p333, %s332, 3
      %s335 = smul.addr %s334, 34
      %s336 = smul.addr %s335, 4
      %s337 = scalar_lea.vmem %s0, %s336
      %p338 = pneg %p42
      %p339 = pneg %p39
      %s340 = smul.u32 2, %s21
      %p341 = scmp.lt.s32.totalorder %s340, 3
      %s342 = scalar_select %p341, %s340, 3
      %s343 = smul.addr %s342, 102
      %s344 = smul.addr %s343, 4
      %s345 = scalar_lea.vmem %s1, %s344
      %p346 = pneg %p68
      %p347 = pneg %p65
      %p348 = pneg %p89
      %p349 = pneg %p86
      %p350 = pneg %p110
      %p351 = pneg %p107
      %p352 = pneg %p131
      %p353 = pneg %p128
      %p354 = pneg %p152
      %p355 = pneg %p149
      %p356 = pneg %p173
      %p357 = pneg %p170
      %p358 = pneg %p194
      %p359 = pneg %p191
      %p360 = pneg %p215
      %p361 = pneg %p212
      %p362 = pneg %p236
      %p363 = pneg %p233
      %p364 = pneg %p262
      %p365 = pneg %p259
      %s366 = smul.u32 2, %s21
      %p367 = scmp.lt.s32.totalorder %s366, 3
      %s368 = scalar_select %p367, %s366, 3
      %s369 = smul.addr %s368, 8
      %s370 = scalar_lea.vmem %s10, %s369
      %s371 = smul.u32 2, %s21
      %p372 = scmp.lt.s32.totalorder %s371, 3
      %s373 = scalar_select %p372, %s371, 3
      %s374 = smul.addr %s373, 34
      %s375 = smul.addr %s374, 4
      %s376 = scalar_lea.vmem %s0, %s375
      %s377 = smul.u32 2, %s21
      %s378 = smul.u32 2, %s21
      %p379 = scmp.lt.s32.totalorder %s378, 3
      %s380 = scalar_select %p379, %s378, 3
      %s381 = smul.addr %s380, 102
      %s382 = smul.addr %s381, 4
      %s383 = scalar_lea.vmem %s1, %s382
      %s384 = smul.u32 2, %s21
      %s385 = smul.u32 2, %s21
      %p386 = scmp.lt.s32.totalorder %s385, 3
      %s387 = scalar_select %p386, %s385, 3
      %s388 = smul.addr %s387, 8
      %s389 = scalar_lea.vmem %s10, %s388
      %s390 = smul.u32 2, %s21
      %v392 = vld [vmem:[%s383] sm:$0xff]
      %v393 = vld [vmem:[%s383 + $0x8] sm:$0xf]
      %v394 = vld [vmem:[%s383 + $0xc] sm:$0xff]
      %v395 = vld [vmem:[%s383 + $0x14] sm:$0xf]
      %v396 = vld [vmem:[%s383 + $0x18] sm:$0xff]
      %v397 = vld [vmem:[%s383 + $0x20] sm:$0xf]
      %v398 = vld [vmem:[%s383 + $0x24] sm:$0xff]
      %v399 = vld [vmem:[%s383 + $0x2c] sm:$0xf]
      %v400 = vld [vmem:[%s383 + $0x30] sm:$0xff]
      %v401 = vld [vmem:[%s383 + $0x38] sm:$0xf]
      %v402 = vld [vmem:[%s383 + $0x3c] sm:$0xff]
      %v403 = vld [vmem:[%s383 + $0x44] sm:$0xf]
      %v404 = vld [vmem:[%s383 + $0x48] sm:$0xff]
      %v405 = vld [vmem:[%s383 + $0x50] sm:$0xf]
      %v406 = vld [vmem:[%s383 + $0x54] sm:$0xff]
      %v407 = vld [vmem:[%s383 + $0x5c] sm:$0xf]
      %v408 = vld [vmem:[%s383 + $0x60] sm:$0xff]
      %v409 = vld [vmem:[%s383 + $0x68] sm:$0xf]
      %v410 = vld [vmem:[%s383 + $0x6c] sm:$0xff]
      %v411 = vld [vmem:[%s383 + $0x74] sm:$0xf]
      %v412 = vld [vmem:[%s383 + $0x78] sm:$0xff]
      %v413 = vld [vmem:[%s383 + $0x80] sm:$0xf]
      %v414 = vld [vmem:[%s383 + $0x84] sm:$0xff]
      %v415 = vld [vmem:[%s383 + $0x8c] sm:$0xf]
      %v416 = vld [vmem:[%s383 + $0x90] sm:$0xff]
      %v417 = vld [vmem:[%s383 + $0x98] sm:$0xf]
      %v418 = vld [vmem:[%s383 + $0x9c] sm:$0xff]
      %v419 = vld [vmem:[%s383 + $0xa4] sm:$0xf]
      %v420 = vld [vmem:[%s383 + $0xa8] sm:$0xff]
      %v421 = vld [vmem:[%s383 + $0xb0] sm:$0xf]
      %v422 = vld [vmem:[%s383 + $0xb4] sm:$0xff]
      %v423 = vld [vmem:[%s383 + $0xbc] sm:$0xf]
      %v424 = vld [vmem:[%s383 + $0xc0] sm:$0xff]
      %v425 = vld [vmem:[%s383 + $0xc8] sm:$0xf]
      %v426 = vld [vmem:[%s383 + $0xcc] sm:$0xff]
      %v427 = vld [vmem:[%s383 + $0xd4] sm:$0xf]
      %v428 = vld [vmem:[%s383 + $0xd8] sm:$0xff]
      %v429 = vld [vmem:[%s383 + $0xe0] sm:$0xf]
      %v430 = vld [vmem:[%s383 + $0xe4] sm:$0xff]
      %v431 = vld [vmem:[%s383 + $0xec] sm:$0xf]
      %v432 = vld [vmem:[%s383 + $0xf0] sm:$0xff]
      %v433 = vld [vmem:[%s383 + $0xf8] sm:$0xf]
      %v434 = vld [vmem:[%s383 + $0xfc] sm:$0xff]
      %v435 = vld [vmem:[%s383 + $0x104] sm:$0xf]
      %v436 = vld [vmem:[%s383 + $0x108] sm:$0xff]
      %v437 = vld [vmem:[%s383 + $0x110] sm:$0xf]
      %v438 = vld [vmem:[%s383 + $0x114] sm:$0xff]
      %v439 = vld [vmem:[%s383 + $0x11c] sm:$0xf]
      %v440 = vld [vmem:[%s383 + $0x120] sm:$0xff]
      %v441 = vld [vmem:[%s383 + $0x128] sm:$0xf]
      %v442 = vld [vmem:[%s383 + $0x12c] sm:$0xff]
      %v443 = vld [vmem:[%s383 + $0x134] sm:$0xf]
      %v444 = vld [vmem:[%s383 + $0x138] sm:$0xff]
      %v445 = vld [vmem:[%s383 + $0x140] sm:$0xf]
      %v446 = vld [vmem:[%s383 + $0x144] sm:$0xff]
      %v447 = vld [vmem:[%s383 + $0x14c] sm:$0xf]
      %v448 = vld [vmem:[%s383 + $0x150] sm:$0xff]
      %v449 = vld [vmem:[%s383 + $0x158] sm:$0xf]
      %v450 = vld [vmem:[%s383 + $0x15c] sm:$0xff]
      %v451 = vld [vmem:[%s383 + $0x164] sm:$0xf]
      %v452 = vld [vmem:[%s383 + $0x168] sm:$0xff]
      %v453 = vld [vmem:[%s383 + $0x170] sm:$0xf]
      %v454 = vld [vmem:[%s383 + $0x174] sm:$0xff]
      %v455 = vld [vmem:[%s383 + $0x17c] sm:$0xf]
      %v456 = vld [vmem:[%s383 + $0x180] sm:$0xff]
      %v457 = vld [vmem:[%s383 + $0x188] sm:$0xf]
      %v458 = vld [vmem:[%s383 + $0x18c] sm:$0xff]
      %v459 = vld [vmem:[%s383 + $0x194] sm:$0xf]
      %v460 = vld [vmem:[%s376] sm:$0xf]
      %v461 = vld [vmem:[%s376 + $0x4] sm:$0xf]
      %v462 = vld [vmem:[%s376 + $0x8] sm:$0xf]
      %v463 = vld [vmem:[%s376 + $0xc] sm:$0xf]
      %v464 = vld [vmem:[%s376 + $0x10] sm:$0xf]
      %v465 = vld [vmem:[%s376 + $0x14] sm:$0xf]
      %v466 = vld [vmem:[%s376 + $0x18] sm:$0xf]
      %v467 = vld [vmem:[%s376 + $0x1c] sm:$0xf]
      %v468 = vld [vmem:[%s376 + $0x20] sm:$0xf]
      %v469 = vld [vmem:[%s376 + $0x24] sm:$0xf]
      %v470 = vld [vmem:[%s376 + $0x28] sm:$0xf]
      %v471 = vld [vmem:[%s376 + $0x2c] sm:$0xf]
      %v472 = vld [vmem:[%s376 + $0x30] sm:$0xf]
      %v473 = vld [vmem:[%s376 + $0x34] sm:$0xf]
      %v474 = vld [vmem:[%s376 + $0x38] sm:$0xf]
      %v475 = vld [vmem:[%s376 + $0x3c] sm:$0xf]
      %v476 = vld [vmem:[%s376 + $0x40] sm:$0xf]
      %v477 = vld [vmem:[%s376 + $0x44] sm:$0xf]
      %v478 = vld [vmem:[%s376 + $0x48] sm:$0xf]
      %v479 = vld [vmem:[%s376 + $0x4c] sm:$0xf]
      %v480 = vld [vmem:[%s376 + $0x50] sm:$0xf]
      %v481 = vld [vmem:[%s376 + $0x54] sm:$0xf]
      %v482 = vld [vmem:[%s376 + $0x58] sm:$0xf]
      %v483 = vld [vmem:[%s376 + $0x5c] sm:$0xf]
      %v484 = vld [vmem:[%s376 + $0x60] sm:$0xf]
      %v485 = vld [vmem:[%s376 + $0x64] sm:$0xf]
      %v486 = vld [vmem:[%s376 + $0x68] sm:$0xf]
      %v487 = vld [vmem:[%s376 + $0x6c] sm:$0xf]
      %v488 = vld [vmem:[%s376 + $0x70] sm:$0xf]
      %v489 = vld [vmem:[%s376 + $0x74] sm:$0xf]
      %v490 = vld [vmem:[%s376 + $0x78] sm:$0xf]
      %v491 = vld [vmem:[%s376 + $0x7c] sm:$0xf]
      %v492 = vld [vmem:[%s376 + $0x80] sm:$0xf]
      %v493 = vld [vmem:[%s376 + $0x84] sm:$0xf]
      %v562 = vunpack.c.l.b16 %v392
      %v563 = vunpack.c.h.b16 %v392
      %v564 = vunpack.c.l.b16 %v393
      %v565 = vunpack.c.l.b16 %v394
      %v566 = vunpack.c.h.b16 %v394
      %v567 = vunpack.c.l.b16 %v395
      %v568 = vunpack.c.l.b16 %v396
      %v569 = vunpack.c.h.b16 %v396
      %v570 = vunpack.c.l.b16 %v397
      %v571 = vunpack.c.l.b16 %v398
      %v572 = vunpack.c.h.b16 %v398
      %v573 = vunpack.c.l.b16 %v399
      %v574 = vunpack.c.l.b16 %v400
      %v575 = vunpack.c.h.b16 %v400
      %v576 = vunpack.c.l.b16 %v401
      %v577 = vunpack.c.l.b16 %v402
      %v578 = vunpack.c.h.b16 %v402
      %v579 = vunpack.c.l.b16 %v403
      %v580 = vunpack.c.l.b16 %v404
      %v581 = vunpack.c.h.b16 %v404
      %v582 = vunpack.c.l.b16 %v405
      %v583 = vunpack.c.l.b16 %v406
      %v584 = vunpack.c.h.b16 %v406
      %v585 = vunpack.c.l.b16 %v407
      %v586 = vunpack.c.l.b16 %v408
      %v587 = vunpack.c.h.b16 %v408
      %v588 = vunpack.c.l.b16 %v409
      %v589 = vunpack.c.l.b16 %v410
      %v590 = vunpack.c.h.b16 %v410
      %v591 = vunpack.c.l.b16 %v411
      %v592 = vunpack.c.l.b16 %v412
      %v593 = vunpack.c.h.b16 %v412
      %v594 = vunpack.c.l.b16 %v413
      %v595 = vunpack.c.l.b16 %v414
      %v596 = vunpack.c.h.b16 %v414
      %v597 = vunpack.c.l.b16 %v415
      %v598 = vunpack.c.l.b16 %v416
      %v599 = vunpack.c.h.b16 %v416
      %v600 = vunpack.c.l.b16 %v417
      %v601 = vunpack.c.l.b16 %v418
      %v602 = vunpack.c.h.b16 %v418
      %v603 = vunpack.c.l.b16 %v419
      %v604 = vunpack.c.l.b16 %v420
      %v605 = vunpack.c.h.b16 %v420
      %v606 = vunpack.c.l.b16 %v421
      %v607 = vunpack.c.l.b16 %v422
      %v608 = vunpack.c.h.b16 %v422
      %v609 = vunpack.c.l.b16 %v423
      %v610 = vunpack.c.l.b16 %v424
      %v611 = vunpack.c.h.b16 %v424
      %v612 = vunpack.c.l.b16 %v425
      %v613 = vunpack.c.l.b16 %v426
      %v614 = vunpack.c.h.b16 %v426
      %v615 = vunpack.c.l.b16 %v427
      %v616 = vunpack.c.l.b16 %v428
      %v617 = vunpack.c.h.b16 %v428
      %v618 = vunpack.c.l.b16 %v429
      %v619 = vunpack.c.l.b16 %v430
      %v620 = vunpack.c.h.b16 %v430
      %v621 = vunpack.c.l.b16 %v431
      %v622 = vunpack.c.l.b16 %v432
      %v623 = vunpack.c.h.b16 %v432
      %v624 = vunpack.c.l.b16 %v433
      %v625 = vunpack.c.l.b16 %v434
      %v626 = vunpack.c.h.b16 %v434
      %v627 = vunpack.c.l.b16 %v435
      %v628 = vunpack.c.l.b16 %v436
      %v629 = vunpack.c.h.b16 %v436
      %v630 = vunpack.c.l.b16 %v437
      %v631 = vunpack.c.l.b16 %v438
      %v632 = vunpack.c.h.b16 %v438
      %v633 = vunpack.c.l.b16 %v439
      %v634 = vunpack.c.l.b16 %v440
      %v635 = vunpack.c.h.b16 %v440
      %v636 = vunpack.c.l.b16 %v441
      %v637 = vunpack.c.l.b16 %v442
      %v638 = vunpack.c.h.b16 %v442
      %v639 = vunpack.c.l.b16 %v443
      %v640 = vunpack.c.l.b16 %v444
      %v641 = vunpack.c.h.b16 %v444
      %v642 = vunpack.c.l.b16 %v445
      %v643 = vunpack.c.l.b16 %v446
      %v644 = vunpack.c.h.b16 %v446
      %v645 = vunpack.c.l.b16 %v447
      %v646 = vunpack.c.l.b16 %v448
      %v647 = vunpack.c.h.b16 %v448
      %v648 = vunpack.c.l.b16 %v449
      %v649 = vunpack.c.l.b16 %v450
      %v650 = vunpack.c.h.b16 %v450
      %v651 = vunpack.c.l.b16 %v451
      %v652 = vunpack.c.l.b16 %v452
      %v653 = vunpack.c.h.b16 %v452
      %v654 = vunpack.c.l.b16 %v453
      %v655 = vunpack.c.l.b16 %v454
      %v656 = vunpack.c.h.b16 %v454
      %v657 = vunpack.c.l.b16 %v455
      %v658 = vunpack.c.l.b16 %v456
      %v659 = vunpack.c.h.b16 %v456
      %v660 = vunpack.c.l.b16 %v457
      %v661 = vunpack.c.l.b16 %v458
      %v662 = vunpack.c.h.b16 %v458
      %v663 = vunpack.c.l.b16 %v459
      %v664 = vpack.c.b16 %v565, %v562
      %v665 = vpack.c.b16 %v566, %v563
      %v666 = vpack.c.b16 %v567, %v564
      %v667 = vpack.c.b16 %v571, %v568
      %v668 = vpack.c.b16 %v572, %v569
      %v669 = vpack.c.b16 %v573, %v570
      %v670 = vpack.c.b16 %v577, %v574
      %v671 = vpack.c.b16 %v578, %v575
      %v672 = vpack.c.b16 %v579, %v576
      %v673 = vpack.c.b16 %v583, %v580
      %v674 = vpack.c.b16 %v584, %v581
      %v675 = vpack.c.b16 %v585, %v582
      %v676 = vpack.c.b16 %v589, %v586
      %v677 = vpack.c.b16 %v590, %v587
      %v678 = vpack.c.b16 %v591, %v588
      %v679 = vpack.c.b16 %v595, %v592
      %v680 = vpack.c.b16 %v596, %v593
      %v681 = vpack.c.b16 %v597, %v594
      %v682 = vpack.c.b16 %v601, %v598
      %v683 = vpack.c.b16 %v602, %v599
      %v684 = vpack.c.b16 %v603, %v600
      %v685 = vpack.c.b16 %v607, %v604
      %v686 = vpack.c.b16 %v608, %v605
      %v687 = vpack.c.b16 %v609, %v606
      %v688 = vpack.c.b16 %v613, %v610
      %v689 = vpack.c.b16 %v614, %v611
      %v690 = vpack.c.b16 %v615, %v612
      %v691 = vpack.c.b16 %v619, %v616
      %v692 = vpack.c.b16 %v620, %v617
      %v693 = vpack.c.b16 %v621, %v618
      %v694 = vpack.c.b16 %v625, %v622
      %v695 = vpack.c.b16 %v626, %v623
      %v696 = vpack.c.b16 %v627, %v624
      %v697 = vpack.c.b16 %v631, %v628
      %v698 = vpack.c.b16 %v632, %v629
      %v699 = vpack.c.b16 %v633, %v630
      %v700 = vpack.c.b16 %v637, %v634
      %v701 = vpack.c.b16 %v638, %v635
      %v702 = vpack.c.b16 %v639, %v636
      %v703 = vpack.c.b16 %v643, %v640
      %v704 = vpack.c.b16 %v644, %v641
      %v705 = vpack.c.b16 %v645, %v642
      %v706 = vpack.c.b16 %v649, %v646
      %v707 = vpack.c.b16 %v650, %v647
      %v708 = vpack.c.b16 %v651, %v648
      %v709 = vpack.c.b16 %v655, %v652
      %v710 = vpack.c.b16 %v656, %v653
      %v711 = vpack.c.b16 %v657, %v654
      %v712 = vpack.c.b16 %v661, %v658
      %v713 = vpack.c.b16 %v662, %v659
      %v714 = vpack.c.b16 %v663, %v660
      %v783 = vunpack.c.l.b16 %v460
      %v784 = vunpack.c.l.b16 %v461
      %v785 = vunpack.c.l.b16 %v462
      %v786 = vunpack.c.l.b16 %v463
      %v787 = vunpack.c.l.b16 %v464
      %v788 = vunpack.c.l.b16 %v465
      %v789 = vunpack.c.l.b16 %v466
      %v790 = vunpack.c.l.b16 %v467
      %v791 = vunpack.c.l.b16 %v468
      %v792 = vunpack.c.l.b16 %v469
      %v793 = vunpack.c.l.b16 %v470
      %v794 = vunpack.c.l.b16 %v471
      %v795 = vunpack.c.l.b16 %v472
      %v796 = vunpack.c.l.b16 %v473
      %v797 = vunpack.c.l.b16 %v474
      %v798 = vunpack.c.l.b16 %v475
      %v799 = vunpack.c.l.b16 %v476
      %v800 = vunpack.c.l.b16 %v477
      %v801 = vunpack.c.l.b16 %v478
      %v802 = vunpack.c.l.b16 %v479
      %v803 = vunpack.c.l.b16 %v480
      %v804 = vunpack.c.l.b16 %v481
      %v805 = vunpack.c.l.b16 %v482
      %v806 = vunpack.c.l.b16 %v483
      %v807 = vunpack.c.l.b16 %v484
      %v808 = vunpack.c.l.b16 %v485
      %v809 = vunpack.c.l.b16 %v486
      %v810 = vunpack.c.l.b16 %v487
      %v811 = vunpack.c.l.b16 %v488
      %v812 = vunpack.c.l.b16 %v489
      %v813 = vunpack.c.l.b16 %v490
      %v814 = vunpack.c.l.b16 %v491
      %v815 = vunpack.c.l.b16 %v492
      %v816 = vunpack.c.l.b16 %v493
      %v817 = vpack.c.b16 %v784, %v783
      %v818 = vpack.c.b16 %v786, %v785
      %v819 = vpack.c.b16 %v788, %v787
      %v820 = vpack.c.b16 %v790, %v789
      %v821 = vpack.c.b16 %v792, %v791
      %v822 = vpack.c.b16 %v794, %v793
      %v823 = vpack.c.b16 %v796, %v795
      %v824 = vpack.c.b16 %v798, %v797
      %v825 = vpack.c.b16 %v800, %v799
      %v826 = vpack.c.b16 %v802, %v801
      %v827 = vpack.c.b16 %v804, %v803
      %v828 = vpack.c.b16 %v806, %v805
      %v829 = vpack.c.b16 %v808, %v807
      %v830 = vpack.c.b16 %v810, %v809
      %v831 = vpack.c.b16 %v812, %v811
      %v832 = vpack.c.b16 %v814, %v813
      %v833 = vpack.c.b16 %v816, %v815
      %vm851 = vcmask 130048
      %v853 = vsel %vm851, %v666, 0
      %v856 = vsel %vm851, %v669, 0
      %v859 = vsel %vm851, %v672, 0
      %v862 = vsel %vm851, %v675, 0
      %v865 = vsel %vm851, %v678, 0
      %v868 = vsel %vm851, %v681, 0
      %v871 = vsel %vm851, %v684, 0
      %v874 = vsel %vm851, %v687, 0
      %v877 = vsel %vm851, %v690, 0
      %v880 = vsel %vm851, %v693, 0
      %v883 = vsel %vm851, %v696, 0
      %v886 = vsel %vm851, %v699, 0
      %v889 = vsel %vm851, %v702, 0
      %v892 = vsel %vm851, %v705, 0
      %v895 = vsel %vm851, %v708, 0
      %v898 = vsel %vm851, %v711, 0
      %v901 = vsel %vm851, %v714, 0
      %903 = vmatprep.subr.bf16.mxu0 0
      %904 = vmatpush1.bf16.msra.mxu0 %v824
      %905 = vmatprep.subr.bf16.mxu0 0
      %906 = vmatpush1.bf16.msra.mxu0 %v823
      %907 = vmatprep.subr.bf16.mxu0 0
      %908 = vmatpush1.bf16.msra.mxu0 %v822
      %909 = vmatprep.subr.bf16.mxu0 0
      %910 = vmatpush1.bf16.msra.mxu0 %v821
      %911 = vmatprep.subr.bf16.mxu0 0
      %912 = vmatpush1.bf16.msra.mxu0 %v820
      %913 = vmatprep.subr.bf16.mxu0 0
      %914 = vmatpush1.bf16.msra.mxu0 %v819
      %915 = vmatprep.subr.bf16.mxu0 0
      %916 = vmatpush1.bf16.msra.mxu0 %v818
      %917 = vmatprep.subr.bf16.mxu0 0
      %918 = vmatpush1.bf16.msra.mxu0 %v817
      %919 = vmatprep.subr.bf16.mxu0 0
      %920 = vmatpush2.bf16.msra.mxu0 %v832
      %921 = vmatprep.subr.bf16.mxu0 0
      %922 = vmatpush2.bf16.msra.mxu0 %v831
      %923 = vmatprep.subr.bf16.mxu0 0
      %924 = vmatpush2.bf16.msra.mxu0 %v830
      %925 = vmatprep.subr.bf16.mxu0 0
      %926 = vmatpush2.bf16.msra.mxu0 %v829
      %927 = vmatprep.subr.bf16.mxu0 0
      %928 = vmatpush2.bf16.msra.mxu0 %v828
      %929 = vmatprep.subr.bf16.mxu0 0
      %930 = vmatpush2.bf16.msra.mxu0 %v827
      %931 = vmatprep.subr.bf16.mxu0 0
      %932 = vmatpush2.bf16.msra.mxu0 %v826
      %933 = vmatprep.subr.bf16.mxu0 0
      %934 = vmatpush2.bf16.msra.mxu0 %v825
      %935 = vmatprep.mubr.bf16.mxu0 %v665
      %936 = vmatmul.mubr.bf16.gmra.mxu0 %v664
      %v937 = vpop.f32.mrf.mxu0
      %v938 = vadd.f32 0.0, %v937
      %v939 = vpop.f32.mrf.mxu0
      %v940 = vpop.f32.mrf.mxu0
      %v941 = vadd.f32 0.0, %v940
      %v942 = vpop.f32.mrf.mxu0
      %943 = vmatprep.mubr.bf16.mxu0 %v668
      %944 = vmatmul.mubr.bf16.gmra.mxu0 %v667
      %v945 = vpop.f32.mrf.mxu0
      %v946 = vadd.f32 0.0, %v945
      %v947 = vpop.f32.mrf.mxu0
      %v948 = vpop.f32.mrf.mxu0
      %v949 = vadd.f32 0.0, %v948
      %v950 = vpop.f32.mrf.mxu0
      %951 = vmatprep.mubr.bf16.mxu0 %v671
      %952 = vmatmul.mubr.bf16.gmra.mxu0 %v670
      %v953 = vpop.f32.mrf.mxu0
      %v954 = vadd.f32 0.0, %v953
      %v955 = vpop.f32.mrf.mxu0
      %v956 = vpop.f32.mrf.mxu0
      %v957 = vadd.f32 0.0, %v956
      %v958 = vpop.f32.mrf.mxu0
      %959 = vmatprep.mubr.bf16.mxu0 %v674
      %960 = vmatmul.mubr.bf16.gmra.mxu0 %v673
      %v961 = vpop.f32.mrf.mxu0
      %v962 = vadd.f32 0.0, %v961
      %v963 = vpop.f32.mrf.mxu0
      %v964 = vpop.f32.mrf.mxu0
      %v965 = vadd.f32 0.0, %v964
      %v966 = vpop.f32.mrf.mxu0
      %967 = vmatprep.mubr.bf16.mxu0 %v677
      %968 = vmatmul.mubr.bf16.gmra.mxu0 %v676
      %v969 = vpop.f32.mrf.mxu0
      %v970 = vadd.f32 0.0, %v969
      %v971 = vpop.f32.mrf.mxu0
      %v972 = vpop.f32.mrf.mxu0
      %v973 = vadd.f32 0.0, %v972
      %v974 = vpop.f32.mrf.mxu0
      %975 = vmatprep.mubr.bf16.mxu0 %v680
      %976 = vmatmul.mubr.bf16.gmra.mxu0 %v679
      %v977 = vpop.f32.mrf.mxu0
      %v978 = vadd.f32 0.0, %v977
      %v979 = vpop.f32.mrf.mxu0
      %v980 = vpop.f32.mrf.mxu0
      %v981 = vadd.f32 0.0, %v980
      %v982 = vpop.f32.mrf.mxu0
      %983 = vmatprep.mubr.bf16.mxu0 %v683
      %984 = vmatmul.mubr.bf16.gmra.mxu0 %v682
      %v985 = vpop.f32.mrf.mxu0
      %v986 = vadd.f32 0.0, %v985
      %v987 = vpop.f32.mrf.mxu0
      %v988 = vpop.f32.mrf.mxu0
      %v989 = vadd.f32 0.0, %v988
      %v990 = vpop.f32.mrf.mxu0
      %991 = vmatprep.mubr.bf16.mxu0 %v686
      %992 = vmatmul.mubr.bf16.gmra.mxu0 %v685
      %v993 = vpop.f32.mrf.mxu0
      %v994 = vadd.f32 0.0, %v993
      %v995 = vpop.f32.mrf.mxu0
      %v996 = vpop.f32.mrf.mxu0
      %v997 = vadd.f32 0.0, %v996
      %v998 = vpop.f32.mrf.mxu0
      %999 = vmatprep.mubr.bf16.mxu0 %v689
      %1000 = vmatmul.mubr.bf16.gmra.mxu0 %v688
      %v1001 = vpop.f32.mrf.mxu0
      %v1002 = vadd.f32 0.0, %v1001
      %v1003 = vpop.f32.mrf.mxu0
      %v1004 = vpop.f32.mrf.mxu0
      %v1005 = vadd.f32 0.0, %v1004
      %v1006 = vpop.f32.mrf.mxu0
      %1007 = vmatprep.mubr.bf16.mxu0 %v692
      %1008 = vmatmul.mubr.bf16.gmra.mxu0 %v691
      %v1009 = vpop.f32.mrf.mxu0
      %v1010 = vadd.f32 0.0, %v1009
      %v1011 = vpop.f32.mrf.mxu0
      %v1012 = vpop.f32.mrf.mxu0
      %v1013 = vadd.f32 0.0, %v1012
      %v1014 = vpop.f32.mrf.mxu0
      %1015 = vmatprep.mubr.bf16.mxu0 %v695
      %1016 = vmatmul.mubr.bf16.gmra.mxu0 %v694
      %v1017 = vpop.f32.mrf.mxu0
      %v1018 = vadd.f32 0.0, %v1017
      %v1019 = vpop.f32.mrf.mxu0
      %v1020 = vpop.f32.mrf.mxu0
      %v1021 = vadd.f32 0.0, %v1020
      %v1022 = vpop.f32.mrf.mxu0
      %1023 = vmatprep.mubr.bf16.mxu0 %v698
      %1024 = vmatmul.mubr.bf16.gmra.mxu0 %v697
      %v1025 = vpop.f32.mrf.mxu0
      %v1026 = vadd.f32 0.0, %v1025
      %v1027 = vpop.f32.mrf.mxu0
      %v1028 = vpop.f32.mrf.mxu0
      %v1029 = vadd.f32 0.0, %v1028
      %v1030 = vpop.f32.mrf.mxu0
      %1031 = vmatprep.mubr.bf16.mxu0 %v701
      %1032 = vmatmul.mubr.bf16.gmra.mxu0 %v700
      %v1033 = vpop.f32.mrf.mxu0
      %v1034 = vadd.f32 0.0, %v1033
      %v1035 = vpop.f32.mrf.mxu0
      %v1036 = vpop.f32.mrf.mxu0
      %v1037 = vadd.f32 0.0, %v1036
      %v1038 = vpop.f32.mrf.mxu0
      %1039 = vmatprep.mubr.bf16.mxu0 %v704
      %1040 = vmatmul.mubr.bf16.gmra.mxu0 %v703
      %v1041 = vpop.f32.mrf.mxu0
      %v1042 = vadd.f32 0.0, %v1041
      %v1043 = vpop.f32.mrf.mxu0
      %v1044 = vpop.f32.mrf.mxu0
      %v1045 = vadd.f32 0.0, %v1044
      %v1046 = vpop.f32.mrf.mxu0
      %1047 = vmatprep.mubr.bf16.mxu0 %v707
      %1048 = vmatmul.mubr.bf16.gmra.mxu0 %v706
      %v1049 = vpop.f32.mrf.mxu0
      %v1050 = vadd.f32 0.0, %v1049
      %v1051 = vpop.f32.mrf.mxu0
      %v1052 = vpop.f32.mrf.mxu0
      %v1053 = vadd.f32 0.0, %v1052
      %v1054 = vpop.f32.mrf.mxu0
      %1055 = vmatprep.mubr.bf16.mxu0 %v710
      %1056 = vmatmul.mubr.bf16.gmra.mxu0 %v709
      %v1057 = vpop.f32.mrf.mxu0
      %v1058 = vadd.f32 0.0, %v1057
      %v1059 = vpop.f32.mrf.mxu0
      %v1060 = vpop.f32.mrf.mxu0
      %v1061 = vadd.f32 0.0, %v1060
      %v1062 = vpop.f32.mrf.mxu0
      %1063 = vmatprep.mubr.bf16.mxu0 %v713
      %1064 = vmatmul.mubr.bf16.gmra.mxu0 %v712
      %v1065 = vpop.f32.mrf.mxu0
      %v1066 = vadd.f32 0.0, %v1065
      %v1067 = vpop.f32.mrf.mxu0
      %v1068 = vpop.f32.mrf.mxu0
      %v1069 = vadd.f32 0.0, %v1068
      %v1070 = vpop.f32.mrf.mxu0
      %1071 = vdwg.mxu0
      %1072 = vmatprep.subr.bf16.mxu0 0
      %1073 = vmatpush1.bf16.msra.mxu0 0
      %1074 = vmatprep.subr.bf16.mxu0 0
      %1075 = vmatpush1.bf16.msra.mxu0 0
      %1076 = vmatprep.subr.bf16.mxu0 0
      %1077 = vmatpush1.bf16.msra.mxu0 0
      %1078 = vmatprep.subr.bf16.mxu0 0
      %1079 = vmatpush1.bf16.msra.mxu0 0
      %1080 = vmatprep.subr.bf16.mxu0 0
      %1081 = vmatpush1.bf16.msra.mxu0 0
      %1082 = vmatprep.subr.bf16.mxu0 0
      %1083 = vmatpush1.bf16.msra.mxu0 0
      %1084 = vmatprep.subr.bf16.mxu0 0
      %1085 = vmatpush1.bf16.msra.mxu0 0
      %1086 = vmatprep.subr.bf16.mxu0 0
      %1087 = vmatpush1.bf16.msra.mxu0 %v833
      %1088 = vmatprep.subr.bf16.mxu0 0
      %1089 = vmatpush2.bf16.msra.mxu0 0
      %1090 = vmatprep.subr.bf16.mxu0 0
      %1091 = vmatpush2.bf16.msra.mxu0 0
      %1092 = vmatprep.subr.bf16.mxu0 0
      %1093 = vmatpush2.bf16.msra.mxu0 0
      %1094 = vmatprep.subr.bf16.mxu0 0
      %1095 = vmatpush2.bf16.msra.mxu0 0
      %1096 = vmatprep.subr.bf16.mxu0 0
      %1097 = vmatpush2.bf16.msra.mxu0 0
      %1098 = vmatprep.subr.bf16.mxu0 0
      %1099 = vmatpush2.bf16.msra.mxu0 0
      %1100 = vmatprep.subr.bf16.mxu0 0
      %1101 = vmatpush2.bf16.msra.mxu0 0
      %1102 = vmatprep.subr.bf16.mxu0 0
      %1103 = vmatpush2.bf16.msra.mxu0 0
      %1104 = vmatprep.mubr.bf16.mxu0 0
      %1105 = vmatmul.mubr.bf16.gmra.mxu0 %v853
      %v1106 = vpop.f32.mrf.mxu0
      %v1107 = vadd.f32 %v938, %v1106
      %v1108 = vpop.f32.mrf.mxu0
      %v1109 = vpop.f32.mrf.mxu0
      %v1110 = vadd.f32 %v941, %v1109
      %v1111 = vpop.f32.mrf.mxu0
      %1112 = vmatprep.mubr.bf16.mxu0 0
      %1113 = vmatmul.mubr.bf16.gmra.mxu0 %v856
      %v1114 = vpop.f32.mrf.mxu0
      %v1115 = vadd.f32 %v946, %v1114
      %v1116 = vpop.f32.mrf.mxu0
      %v1117 = vpop.f32.mrf.mxu0
      %v1118 = vadd.f32 %v949, %v1117
      %v1119 = vpop.f32.mrf.mxu0
      %1120 = vmatprep.mubr.bf16.mxu0 0
      %1121 = vmatmul.mubr.bf16.gmra.mxu0 %v859
      %v1122 = vpop.f32.mrf.mxu0
      %v1123 = vadd.f32 %v954, %v1122
      %v1124 = vpop.f32.mrf.mxu0
      %v1125 = vpop.f32.mrf.mxu0
      %v1126 = vadd.f32 %v957, %v1125
      %v1127 = vpop.f32.mrf.mxu0
      %1128 = vmatprep.mubr.bf16.mxu0 0
      %1129 = vmatmul.mubr.bf16.gmra.mxu0 %v862
      %v1130 = vpop.f32.mrf.mxu0
      %v1131 = vadd.f32 %v962, %v1130
      %v1132 = vpop.f32.mrf.mxu0
      %v1133 = vpop.f32.mrf.mxu0
      %v1134 = vadd.f32 %v965, %v1133
      %v1135 = vpop.f32.mrf.mxu0
      %1136 = vmatprep.mubr.bf16.mxu0 0
      %1137 = vmatmul.mubr.bf16.gmra.mxu0 %v865
      %v1138 = vpop.f32.mrf.mxu0
      %v1139 = vadd.f32 %v970, %v1138
      %v1140 = vpop.f32.mrf.mxu0
      %v1141 = vpop.f32.mrf.mxu0
      %v1142 = vadd.f32 %v973, %v1141
      %v1143 = vpop.f32.mrf.mxu0
      %1144 = vmatprep.mubr.bf16.mxu0 0
      %1145 = vmatmul.mubr.bf16.gmra.mxu0 %v868
      %v1146 = vpop.f32.mrf.mxu0
      %v1147 = vadd.f32 %v978, %v1146
      %v1148 = vpop.f32.mrf.mxu0
      %v1149 = vpop.f32.mrf.mxu0
      %v1150 = vadd.f32 %v981, %v1149
      %v1151 = vpop.f32.mrf.mxu0
      %1152 = vmatprep.mubr.bf16.mxu0 0
      %1153 = vmatmul.mubr.bf16.gmra.mxu0 %v871
      %v1154 = vpop.f32.mrf.mxu0
      %v1155 = vadd.f32 %v986, %v1154
      %v1156 = vpop.f32.mrf.mxu0
      %v1157 = vpop.f32.mrf.mxu0
      %v1158 = vadd.f32 %v989, %v1157
      %v1159 = vpop.f32.mrf.mxu0
      %1160 = vmatprep.mubr.bf16.mxu0 0
      %1161 = vmatmul.mubr.bf16.gmra.mxu0 %v874
      %v1162 = vpop.f32.mrf.mxu0
      %v1163 = vadd.f32 %v994, %v1162
      %v1164 = vpop.f32.mrf.mxu0
      %v1165 = vpop.f32.mrf.mxu0
      %v1166 = vadd.f32 %v997, %v1165
      %v1167 = vpop.f32.mrf.mxu0
      %1168 = vmatprep.mubr.bf16.mxu0 0
      %1169 = vmatmul.mubr.bf16.gmra.mxu0 %v877
      %v1170 = vpop.f32.mrf.mxu0
      %v1171 = vadd.f32 %v1002, %v1170
      %v1172 = vpop.f32.mrf.mxu0
      %v1173 = vpop.f32.mrf.mxu0
      %v1174 = vadd.f32 %v1005, %v1173
      %v1175 = vpop.f32.mrf.mxu0
      %1176 = vmatprep.mubr.bf16.mxu0 0
      %1177 = vmatmul.mubr.bf16.gmra.mxu0 %v880
      %v1178 = vpop.f32.mrf.mxu0
      %v1179 = vadd.f32 %v1010, %v1178
      %v1180 = vpop.f32.mrf.mxu0
      %v1181 = vpop.f32.mrf.mxu0
      %v1182 = vadd.f32 %v1013, %v1181
      %v1183 = vpop.f32.mrf.mxu0
      %1184 = vmatprep.mubr.bf16.mxu0 0
      %1185 = vmatmul.mubr.bf16.gmra.mxu0 %v883
      %v1186 = vpop.f32.mrf.mxu0
      %v1187 = vadd.f32 %v1018, %v1186
      %v1188 = vpop.f32.mrf.mxu0
      %v1189 = vpop.f32.mrf.mxu0
      %v1190 = vadd.f32 %v1021, %v1189
      %v1191 = vpop.f32.mrf.mxu0
      %1192 = vmatprep.mubr.bf16.mxu0 0
      %1193 = vmatmul.mubr.bf16.gmra.mxu0 %v886
      %v1194 = vpop.f32.mrf.mxu0
      %v1195 = vadd.f32 %v1026, %v1194
      %v1196 = vpop.f32.mrf.mxu0
      %v1197 = vpop.f32.mrf.mxu0
      %v1198 = vadd.f32 %v1029, %v1197
      %v1199 = vpop.f32.mrf.mxu0
      %1200 = vmatprep.mubr.bf16.mxu0 0
      %1201 = vmatmul.mubr.bf16.gmra.mxu0 %v889
      %v1202 = vpop.f32.mrf.mxu0
      %v1203 = vadd.f32 %v1034, %v1202
      %v1204 = vpop.f32.mrf.mxu0
      %v1205 = vpop.f32.mrf.mxu0
      %v1206 = vadd.f32 %v1037, %v1205
      %v1207 = vpop.f32.mrf.mxu0
      %1208 = vmatprep.mubr.bf16.mxu0 0
      %1209 = vmatmul.mubr.bf16.gmra.mxu0 %v892
      %v1210 = vpop.f32.mrf.mxu0
      %v1211 = vadd.f32 %v1042, %v1210
      %v1212 = vpop.f32.mrf.mxu0
      %v1213 = vpop.f32.mrf.mxu0
      %v1214 = vadd.f32 %v1045, %v1213
      %v1215 = vpop.f32.mrf.mxu0
      %1216 = vmatprep.mubr.bf16.mxu0 0
      %1217 = vmatmul.mubr.bf16.gmra.mxu0 %v895
      %v1218 = vpop.f32.mrf.mxu0
      %v1219 = vadd.f32 %v1050, %v1218
      %v1220 = vpop.f32.mrf.mxu0
      %v1221 = vpop.f32.mrf.mxu0
      %v1222 = vadd.f32 %v1053, %v1221
      %v1223 = vpop.f32.mrf.mxu0
      %1224 = vmatprep.mubr.bf16.mxu0 0
      %1225 = vmatmul.mubr.bf16.gmra.mxu0 %v898
      %v1226 = vpop.f32.mrf.mxu0
      %v1227 = vadd.f32 %v1058, %v1226
      %v1228 = vpop.f32.mrf.mxu0
      %v1229 = vpop.f32.mrf.mxu0
      %v1230 = vadd.f32 %v1061, %v1229
      %v1231 = vpop.f32.mrf.mxu0
      %1232 = vmatprep.mubr.bf16.mxu0 0
      %1233 = vmatmul.mubr.bf16.gmra.mxu0 %v901
      %v1234 = vpop.f32.mrf.mxu0
      %v1235 = vadd.f32 %v1066, %v1234
      %v1236 = vpop.f32.mrf.mxu0
      %v1237 = vpop.f32.mrf.mxu0
      %v1238 = vadd.f32 %v1069, %v1237
      %v1239 = vpop.f32.mrf.mxu0
      %1240 = vdwg.mxu0
      %v1241 = vpack.c.bf16 %v1110, %v1107
      %v1242 = vpack.c.bf16 %v1118, %v1115
      %v1243 = vpack.c.bf16 %v1126, %v1123
      %v1244 = vpack.c.bf16 %v1134, %v1131
      %v1245 = vpack.c.bf16 %v1142, %v1139
      %v1246 = vpack.c.bf16 %v1150, %v1147
      %v1247 = vpack.c.bf16 %v1158, %v1155
      %v1248 = vpack.c.bf16 %v1166, %v1163
      %v1249 = vpack.c.bf16 %v1174, %v1171
      %v1250 = vpack.c.bf16 %v1182, %v1179
      %v1251 = vpack.c.bf16 %v1190, %v1187
      %v1252 = vpack.c.bf16 %v1198, %v1195
      %v1253 = vpack.c.bf16 %v1206, %v1203
      %v1254 = vpack.c.bf16 %v1214, %v1211
      %v1255 = vpack.c.bf16 %v1222, %v1219
      %v1256 = vpack.c.bf16 %v1230, %v1227
      %v1257 = vpack.c.bf16 %v1238, %v1235
      %1258 = vmatprep.subr.bf16.mxu0 0
      %1259 = vmatpush1.bf16.msra.mxu0 %v1248
      %1260 = vmatprep.subr.bf16.mxu0 0
      %1261 = vmatpush1.bf16.msra.mxu0 %v1247
      %1262 = vmatprep.subr.bf16.mxu0 0
      %1263 = vmatpush1.bf16.msra.mxu0 %v1246
      %1264 = vmatprep.subr.bf16.mxu0 0
      %1265 = vmatpush1.bf16.msra.mxu0 %v1245
      %1266 = vmatprep.subr.bf16.mxu0 0
      %1267 = vmatpush1.bf16.msra.mxu0 %v1244
      %1268 = vmatprep.subr.bf16.mxu0 0
      %1269 = vmatpush1.bf16.msra.mxu0 %v1243
      %1270 = vmatprep.subr.bf16.mxu0 0
      %1271 = vmatpush1.bf16.msra.mxu0 %v1242
      %1272 = vmatprep.subr.bf16.mxu0 0
      %1273 = vmatpush1.bf16.msra.mxu0 %v1241
      %1274 = vmatprep.subr.bf16.mxu0 0
      %1275 = vmatpush2.bf16.msra.mxu0 %v1256
      %1276 = vmatprep.subr.bf16.mxu0 0
      %1277 = vmatpush2.bf16.msra.mxu0 %v1255
      %1278 = vmatprep.subr.bf16.mxu0 0
      %1279 = vmatpush2.bf16.msra.mxu0 %v1254
      %1280 = vmatprep.subr.bf16.mxu0 0
      %1281 = vmatpush2.bf16.msra.mxu0 %v1253
      %1282 = vmatprep.subr.bf16.mxu0 0
      %1283 = vmatpush2.bf16.msra.mxu0 %v1252
      %1284 = vmatprep.subr.bf16.mxu0 0
      %1285 = vmatpush2.bf16.msra.mxu0 %v1251
      %1286 = vmatprep.subr.bf16.mxu0 0
      %1287 = vmatpush2.bf16.msra.mxu0 %v1250
      %1288 = vmatprep.subr.bf16.mxu0 0
      %1289 = vmatpush2.bf16.msra.mxu0 %v1249
      %1290 = vmatprep.mubr.bf16.mxu0 %v665
      %1291 = vmatmul.mubr.bf16.gmra.mxu0 %v664
      %v1292 = vpop.f32.mrf.mxu0
      %v1293 = vadd.f32 0.0, %v1292
      %v1294 = vpop.f32.mrf.mxu0
      %v1295 = vpop.f32.mrf.mxu0
      %v1296 = vadd.f32 0.0, %v1295
      %v1297 = vpop.f32.mrf.mxu0
      %1298 = vmatprep.mubr.bf16.mxu0 %v668
      %1299 = vmatmul.mubr.bf16.gmra.mxu0 %v667
      %v1300 = vpop.f32.mrf.mxu0
      %v1301 = vadd.f32 0.0, %v1300
      %v1302 = vpop.f32.mrf.mxu0
      %v1303 = vpop.f32.mrf.mxu0
      %v1304 = vadd.f32 0.0, %v1303
      %v1305 = vpop.f32.mrf.mxu0
      %1306 = vmatprep.mubr.bf16.mxu0 %v671
      %1307 = vmatmul.mubr.bf16.gmra.mxu0 %v670
      %v1308 = vpop.f32.mrf.mxu0
      %v1309 = vadd.f32 0.0, %v1308
      %v1310 = vpop.f32.mrf.mxu0
      %v1311 = vpop.f32.mrf.mxu0
      %v1312 = vadd.f32 0.0, %v1311
      %v1313 = vpop.f32.mrf.mxu0
      %1314 = vmatprep.mubr.bf16.mxu0 %v674
      %1315 = vmatmul.mubr.bf16.gmra.mxu0 %v673
      %v1316 = vpop.f32.mrf.mxu0
      %v1317 = vadd.f32 0.0, %v1316
      %v1318 = vpop.f32.mrf.mxu0
      %v1319 = vpop.f32.mrf.mxu0
      %v1320 = vadd.f32 0.0, %v1319
      %v1321 = vpop.f32.mrf.mxu0
      %1322 = vmatprep.mubr.bf16.mxu0 %v677
      %1323 = vmatmul.mubr.bf16.gmra.mxu0 %v676
      %v1324 = vpop.f32.mrf.mxu0
      %v1325 = vadd.f32 0.0, %v1324
      %v1326 = vpop.f32.mrf.mxu0
      %v1327 = vpop.f32.mrf.mxu0
      %v1328 = vadd.f32 0.0, %v1327
      %v1329 = vpop.f32.mrf.mxu0
      %1330 = vmatprep.mubr.bf16.mxu0 %v680
      %1331 = vmatmul.mubr.bf16.gmra.mxu0 %v679
      %v1332 = vpop.f32.mrf.mxu0
      %v1333 = vadd.f32 0.0, %v1332
      %v1334 = vpop.f32.mrf.mxu0
      %v1335 = vpop.f32.mrf.mxu0
      %v1336 = vadd.f32 0.0, %v1335
      %v1337 = vpop.f32.mrf.mxu0
      %1338 = vmatprep.mubr.bf16.mxu0 %v683
      %1339 = vmatmul.mubr.bf16.gmra.mxu0 %v682
      %v1340 = vpop.f32.mrf.mxu0
      %v1341 = vadd.f32 0.0, %v1340
      %v1342 = vpop.f32.mrf.mxu0
      %v1343 = vpop.f32.mrf.mxu0
      %v1344 = vadd.f32 0.0, %v1343
      %v1345 = vpop.f32.mrf.mxu0
      %1346 = vmatprep.mubr.bf16.mxu0 %v686
      %1347 = vmatmul.mubr.bf16.gmra.mxu0 %v685
      %v1348 = vpop.f32.mrf.mxu0
      %v1349 = vadd.f32 0.0, %v1348
      %v1350 = vpop.f32.mrf.mxu0
      %v1351 = vpop.f32.mrf.mxu0
      %v1352 = vadd.f32 0.0, %v1351
      %v1353 = vpop.f32.mrf.mxu0
      %1354 = vmatprep.mubr.bf16.mxu0 %v689
      %1355 = vmatmul.mubr.bf16.gmra.mxu0 %v688
      %v1356 = vpop.f32.mrf.mxu0
      %v1357 = vadd.f32 0.0, %v1356
      %v1358 = vpop.f32.mrf.mxu0
      %v1359 = vpop.f32.mrf.mxu0
      %v1360 = vadd.f32 0.0, %v1359
      %v1361 = vpop.f32.mrf.mxu0
      %1362 = vmatprep.mubr.bf16.mxu0 %v692
      %1363 = vmatmul.mubr.bf16.gmra.mxu0 %v691
      %v1364 = vpop.f32.mrf.mxu0
      %v1365 = vadd.f32 0.0, %v1364
      %v1366 = vpop.f32.mrf.mxu0
      %v1367 = vpop.f32.mrf.mxu0
      %v1368 = vadd.f32 0.0, %v1367
      %v1369 = vpop.f32.mrf.mxu0
      %1370 = vmatprep.mubr.bf16.mxu0 %v695
      %1371 = vmatmul.mubr.bf16.gmra.mxu0 %v694
      %v1372 = vpop.f32.mrf.mxu0
      %v1373 = vadd.f32 0.0, %v1372
      %v1374 = vpop.f32.mrf.mxu0
      %v1375 = vpop.f32.mrf.mxu0
      %v1376 = vadd.f32 0.0, %v1375
      %v1377 = vpop.f32.mrf.mxu0
      %1378 = vmatprep.mubr.bf16.mxu0 %v698
      %1379 = vmatmul.mubr.bf16.gmra.mxu0 %v697
      %v1380 = vpop.f32.mrf.mxu0
      %v1381 = vadd.f32 0.0, %v1380
      %v1382 = vpop.f32.mrf.mxu0
      %v1383 = vpop.f32.mrf.mxu0
      %v1384 = vadd.f32 0.0, %v1383
      %v1385 = vpop.f32.mrf.mxu0
      %1386 = vmatprep.mubr.bf16.mxu0 %v701
      %1387 = vmatmul.mubr.bf16.gmra.mxu0 %v700
      %v1388 = vpop.f32.mrf.mxu0
      %v1389 = vadd.f32 0.0, %v1388
      %v1390 = vpop.f32.mrf.mxu0
      %v1391 = vpop.f32.mrf.mxu0
      %v1392 = vadd.f32 0.0, %v1391
      %v1393 = vpop.f32.mrf.mxu0
      %1394 = vmatprep.mubr.bf16.mxu0 %v704
      %1395 = vmatmul.mubr.bf16.gmra.mxu0 %v703
      %v1396 = vpop.f32.mrf.mxu0
      %v1397 = vadd.f32 0.0, %v1396
      %v1398 = vpop.f32.mrf.mxu0
      %v1399 = vpop.f32.mrf.mxu0
      %v1400 = vadd.f32 0.0, %v1399
      %v1401 = vpop.f32.mrf.mxu0
      %1402 = vmatprep.mubr.bf16.mxu0 %v707
      %1403 = vmatmul.mubr.bf16.gmra.mxu0 %v706
      %v1404 = vpop.f32.mrf.mxu0
      %v1405 = vadd.f32 0.0, %v1404
      %v1406 = vpop.f32.mrf.mxu0
      %v1407 = vpop.f32.mrf.mxu0
      %v1408 = vadd.f32 0.0, %v1407
      %v1409 = vpop.f32.mrf.mxu0
      %1410 = vmatprep.mubr.bf16.mxu0 %v710
      %1411 = vmatmul.mubr.bf16.gmra.mxu0 %v709
      %v1412 = vpop.f32.mrf.mxu0
      %v1413 = vadd.f32 0.0, %v1412
      %v1414 = vpop.f32.mrf.mxu0
      %v1415 = vpop.f32.mrf.mxu0
      %v1416 = vadd.f32 0.0, %v1415
      %v1417 = vpop.f32.mrf.mxu0
      %1418 = vmatprep.mubr.bf16.mxu0 %v713
      %1419 = vmatmul.mubr.bf16.gmra.mxu0 %v712
      %v1420 = vpop.f32.mrf.mxu0
      %v1421 = vadd.f32 0.0, %v1420
      %v1422 = vpop.f32.mrf.mxu0
      %v1423 = vpop.f32.mrf.mxu0
      %v1424 = vadd.f32 0.0, %v1423
      %v1425 = vpop.f32.mrf.mxu0
      %1426 = vdwg.mxu0
      %1427 = vmatprep.subr.bf16.mxu0 0
      %1428 = vmatpush1.bf16.msra.mxu0 0
      %1429 = vmatprep.subr.bf16.mxu0 0
      %1430 = vmatpush1.bf16.msra.mxu0 0
      %1431 = vmatprep.subr.bf16.mxu0 0
      %1432 = vmatpush1.bf16.msra.mxu0 0
      %1433 = vmatprep.subr.bf16.mxu0 0
      %1434 = vmatpush1.bf16.msra.mxu0 0
      %1435 = vmatprep.subr.bf16.mxu0 0
      %1436 = vmatpush1.bf16.msra.mxu0 0
      %1437 = vmatprep.subr.bf16.mxu0 0
      %1438 = vmatpush1.bf16.msra.mxu0 0
      %1439 = vmatprep.subr.bf16.mxu0 0
      %1440 = vmatpush1.bf16.msra.mxu0 0
      %1441 = vmatprep.subr.bf16.mxu0 0
      %1442 = vmatpush1.bf16.msra.mxu0 %v1257
      %1443 = vmatprep.subr.bf16.mxu0 0
      %1444 = vmatpush2.bf16.msra.mxu0 0
      %1445 = vmatprep.subr.bf16.mxu0 0
      %1446 = vmatpush2.bf16.msra.mxu0 0
      %1447 = vmatprep.subr.bf16.mxu0 0
      %1448 = vmatpush2.bf16.msra.mxu0 0
      %1449 = vmatprep.subr.bf16.mxu0 0
      %1450 = vmatpush2.bf16.msra.mxu0 0
      %1451 = vmatprep.subr.bf16.mxu0 0
      %1452 = vmatpush2.bf16.msra.mxu0 0
      %1453 = vmatprep.subr.bf16.mxu0 0
      %1454 = vmatpush2.bf16.msra.mxu0 0
      %1455 = vmatprep.subr.bf16.mxu0 0
      %1456 = vmatpush2.bf16.msra.mxu0 0
      %1457 = vmatprep.subr.bf16.mxu0 0
      %1458 = vmatpush2.bf16.msra.mxu0 0
      %1459 = vmatprep.mubr.bf16.mxu0 0
      %1460 = vmatmul.mubr.bf16.gmra.mxu0 %v853
      %v1461 = vpop.f32.mrf.mxu0
      %v1462 = vadd.f32 %v1293, %v1461
      %v1463 = vpop.f32.mrf.mxu0
      %v1464 = vpop.f32.mrf.mxu0
      %v1465 = vadd.f32 %v1296, %v1464
      %v1466 = vpop.f32.mrf.mxu0
      %1467 = vmatprep.mubr.bf16.mxu0 0
      %1468 = vmatmul.mubr.bf16.gmra.mxu0 %v856
      %v1469 = vpop.f32.mrf.mxu0
      %v1470 = vadd.f32 %v1301, %v1469
      %v1471 = vpop.f32.mrf.mxu0
      %v1472 = vpop.f32.mrf.mxu0
      %v1473 = vadd.f32 %v1304, %v1472
      %v1474 = vpop.f32.mrf.mxu0
      %1475 = vmatprep.mubr.bf16.mxu0 0
      %1476 = vmatmul.mubr.bf16.gmra.mxu0 %v859
      %v1477 = vpop.f32.mrf.mxu0
      %v1478 = vadd.f32 %v1309, %v1477
      %v1479 = vpop.f32.mrf.mxu0
      %v1480 = vpop.f32.mrf.mxu0
      %v1481 = vadd.f32 %v1312, %v1480
      %v1482 = vpop.f32.mrf.mxu0
      %1483 = vmatprep.mubr.bf16.mxu0 0
      %1484 = vmatmul.mubr.bf16.gmra.mxu0 %v862
      %v1485 = vpop.f32.mrf.mxu0
      %v1486 = vadd.f32 %v1317, %v1485
      %v1487 = vpop.f32.mrf.mxu0
      %v1488 = vpop.f32.mrf.mxu0
      %v1489 = vadd.f32 %v1320, %v1488
      %v1490 = vpop.f32.mrf.mxu0
      %1491 = vmatprep.mubr.bf16.mxu0 0
      %1492 = vmatmul.mubr.bf16.gmra.mxu0 %v865
      %v1493 = vpop.f32.mrf.mxu0
      %v1494 = vadd.f32 %v1325, %v1493
      %v1495 = vpop.f32.mrf.mxu0
      %v1496 = vpop.f32.mrf.mxu0
      %v1497 = vadd.f32 %v1328, %v1496
      %v1498 = vpop.f32.mrf.mxu0
      %1499 = vmatprep.mubr.bf16.mxu0 0
      %1500 = vmatmul.mubr.bf16.gmra.mxu0 %v868
      %v1501 = vpop.f32.mrf.mxu0
      %v1502 = vadd.f32 %v1333, %v1501
      %v1503 = vpop.f32.mrf.mxu0
      %v1504 = vpop.f32.mrf.mxu0
      %v1505 = vadd.f32 %v1336, %v1504
      %v1506 = vpop.f32.mrf.mxu0
      %1507 = vmatprep.mubr.bf16.mxu0 0
      %1508 = vmatmul.mubr.bf16.gmra.mxu0 %v871
      %v1509 = vpop.f32.mrf.mxu0
      %v1510 = vadd.f32 %v1341, %v1509
      %v1511 = vpop.f32.mrf.mxu0
      %v1512 = vpop.f32.mrf.mxu0
      %v1513 = vadd.f32 %v1344, %v1512
      %v1514 = vpop.f32.mrf.mxu0
      %1515 = vmatprep.mubr.bf16.mxu0 0
      %1516 = vmatmul.mubr.bf16.gmra.mxu0 %v874
      %v1517 = vpop.f32.mrf.mxu0
      %v1518 = vadd.f32 %v1349, %v1517
      %v1519 = vpop.f32.mrf.mxu0
      %v1520 = vpop.f32.mrf.mxu0
      %v1521 = vadd.f32 %v1352, %v1520
      %v1522 = vpop.f32.mrf.mxu0
      %1523 = vmatprep.mubr.bf16.mxu0 0
      %1524 = vmatmul.mubr.bf16.gmra.mxu0 %v877
      %v1525 = vpop.f32.mrf.mxu0
      %v1526 = vadd.f32 %v1357, %v1525
      %v1527 = vpop.f32.mrf.mxu0
      %v1528 = vpop.f32.mrf.mxu0
      %v1529 = vadd.f32 %v1360, %v1528
      %v1530 = vpop.f32.mrf.mxu0
      %1531 = vmatprep.mubr.bf16.mxu0 0
      %1532 = vmatmul.mubr.bf16.gmra.mxu0 %v880
      %v1533 = vpop.f32.mrf.mxu0
      %v1534 = vadd.f32 %v1365, %v1533
      %v1535 = vpop.f32.mrf.mxu0
      %v1536 = vpop.f32.mrf.mxu0
      %v1537 = vadd.f32 %v1368, %v1536
      %v1538 = vpop.f32.mrf.mxu0
      %1539 = vmatprep.mubr.bf16.mxu0 0
      %1540 = vmatmul.mubr.bf16.gmra.mxu0 %v883
      %v1541 = vpop.f32.mrf.mxu0
      %v1542 = vadd.f32 %v1373, %v1541
      %v1543 = vpop.f32.mrf.mxu0
      %v1544 = vpop.f32.mrf.mxu0
      %v1545 = vadd.f32 %v1376, %v1544
      %v1546 = vpop.f32.mrf.mxu0
      %1547 = vmatprep.mubr.bf16.mxu0 0
      %1548 = vmatmul.mubr.bf16.gmra.mxu0 %v886
      %v1549 = vpop.f32.mrf.mxu0
      %v1550 = vadd.f32 %v1381, %v1549
      %v1551 = vpop.f32.mrf.mxu0
      %v1552 = vpop.f32.mrf.mxu0
      %v1553 = vadd.f32 %v1384, %v1552
      %v1554 = vpop.f32.mrf.mxu0
      %1555 = vmatprep.mubr.bf16.mxu0 0
      %1556 = vmatmul.mubr.bf16.gmra.mxu0 %v889
      %v1557 = vpop.f32.mrf.mxu0
      %v1558 = vadd.f32 %v1389, %v1557
      %v1559 = vpop.f32.mrf.mxu0
      %v1560 = vpop.f32.mrf.mxu0
      %v1561 = vadd.f32 %v1392, %v1560
      %v1562 = vpop.f32.mrf.mxu0
      %1563 = vmatprep.mubr.bf16.mxu0 0
      %1564 = vmatmul.mubr.bf16.gmra.mxu0 %v892
      %v1565 = vpop.f32.mrf.mxu0
      %v1566 = vadd.f32 %v1397, %v1565
      %v1567 = vpop.f32.mrf.mxu0
      %v1568 = vpop.f32.mrf.mxu0
      %v1569 = vadd.f32 %v1400, %v1568
      %v1570 = vpop.f32.mrf.mxu0
      %1571 = vmatprep.mubr.bf16.mxu0 0
      %1572 = vmatmul.mubr.bf16.gmra.mxu0 %v895
      %v1573 = vpop.f32.mrf.mxu0
      %v1574 = vadd.f32 %v1405, %v1573
      %v1575 = vpop.f32.mrf.mxu0
      %v1576 = vpop.f32.mrf.mxu0
      %v1577 = vadd.f32 %v1408, %v1576
      %v1578 = vpop.f32.mrf.mxu0
      %1579 = vmatprep.mubr.bf16.mxu0 0
      %1580 = vmatmul.mubr.bf16.gmra.mxu0 %v898
      %v1581 = vpop.f32.mrf.mxu0
      %v1582 = vadd.f32 %v1413, %v1581
      %v1583 = vpop.f32.mrf.mxu0
      %v1584 = vpop.f32.mrf.mxu0
      %v1585 = vadd.f32 %v1416, %v1584
      %v1586 = vpop.f32.mrf.mxu0
      %1587 = vmatprep.mubr.bf16.mxu0 0
      %1588 = vmatmul.mubr.bf16.gmra.mxu0 %v901
      %v1589 = vpop.f32.mrf.mxu0
      %v1590 = vadd.f32 %v1421, %v1589
      %v1591 = vpop.f32.mrf.mxu0
      %v1592 = vpop.f32.mrf.mxu0
      %v1593 = vadd.f32 %v1424, %v1592
      %v1594 = vpop.f32.mrf.mxu0
      %1595 = vdwg.mxu0
      %v1596 = vmul.f32 %v1462, 2.0
      %v1597 = vmul.f32 %v1465, 2.0
      %v1598 = vmul.f32 %v1470, 2.0
      %v1599 = vmul.f32 %v1473, 2.0
      %v1600 = vmul.f32 %v1478, 2.0
      %v1601 = vmul.f32 %v1481, 2.0
      %v1602 = vmul.f32 %v1486, 2.0
      %v1603 = vmul.f32 %v1489, 2.0
      %v1604 = vmul.f32 %v1494, 2.0
      %v1605 = vmul.f32 %v1497, 2.0
      %v1606 = vmul.f32 %v1502, 2.0
      %v1607 = vmul.f32 %v1505, 2.0
      %v1608 = vmul.f32 %v1510, 2.0
      %v1609 = vmul.f32 %v1513, 2.0
      %v1610 = vmul.f32 %v1518, 2.0
      %v1611 = vmul.f32 %v1521, 2.0
      %v1612 = vmul.f32 %v1526, 2.0
      %v1613 = vmul.f32 %v1529, 2.0
      %v1614 = vmul.f32 %v1534, 2.0
      %v1615 = vmul.f32 %v1537, 2.0
      %v1616 = vmul.f32 %v1542, 2.0
      %v1617 = vmul.f32 %v1545, 2.0
      %v1618 = vmul.f32 %v1550, 2.0
      %v1619 = vmul.f32 %v1553, 2.0
      %v1620 = vmul.f32 %v1558, 2.0
      %v1621 = vmul.f32 %v1561, 2.0
      %v1622 = vmul.f32 %v1566, 2.0
      %v1623 = vmul.f32 %v1569, 2.0
      %v1624 = vmul.f32 %v1574, 2.0
      %v1625 = vmul.f32 %v1577, 2.0
      %v1626 = vmul.f32 %v1582, 2.0
      %v1627 = vmul.f32 %v1585, 2.0
      %v1628 = vmul.f32 %v1590, 2.0
      %v1629 = vmul.f32 %v1593, 2.0
      %v1630 = vunpack.c.l.bf16 %v460
      %v1631 = vunpack.c.l.bf16 %v461
      %v1632 = vunpack.c.l.bf16 %v462
      %v1633 = vunpack.c.l.bf16 %v463
      %v1634 = vunpack.c.l.bf16 %v464
      %v1635 = vunpack.c.l.bf16 %v465
      %v1636 = vunpack.c.l.bf16 %v466
      %v1637 = vunpack.c.l.bf16 %v467
      %v1638 = vunpack.c.l.bf16 %v468
      %v1639 = vunpack.c.l.bf16 %v469
      %v1640 = vunpack.c.l.bf16 %v470
      %v1641 = vunpack.c.l.bf16 %v471
      %v1642 = vunpack.c.l.bf16 %v472
      %v1643 = vunpack.c.l.bf16 %v473
      %v1644 = vunpack.c.l.bf16 %v474
      %v1645 = vunpack.c.l.bf16 %v475
      %v1646 = vunpack.c.l.bf16 %v476
      %v1647 = vunpack.c.l.bf16 %v477
      %v1648 = vunpack.c.l.bf16 %v478
      %v1649 = vunpack.c.l.bf16 %v479
      %v1650 = vunpack.c.l.bf16 %v480
      %v1651 = vunpack.c.l.bf16 %v481
      %v1652 = vunpack.c.l.bf16 %v482
      %v1653 = vunpack.c.l.bf16 %v483
      %v1654 = vunpack.c.l.bf16 %v484
      %v1655 = vunpack.c.l.bf16 %v485
      %v1656 = vunpack.c.l.bf16 %v486
      %v1657 = vunpack.c.l.bf16 %v487
      %v1658 = vunpack.c.l.bf16 %v488
      %v1659 = vunpack.c.l.bf16 %v489
      %v1660 = vunpack.c.l.bf16 %v490
      %v1661 = vunpack.c.l.bf16 %v491
      %v1662 = vunpack.c.l.bf16 %v492
      %v1663 = vunpack.c.l.bf16 %v493
      %v1664 = vsub.f32 %v1596, %v1630
      %v1665 = vsub.f32 %v1597, %v1631
      %v1666 = vsub.f32 %v1598, %v1632
      %v1667 = vsub.f32 %v1599, %v1633
      %v1668 = vsub.f32 %v1600, %v1634
      %v1669 = vsub.f32 %v1601, %v1635
      %v1670 = vsub.f32 %v1602, %v1636
      %v1671 = vsub.f32 %v1603, %v1637
      %v1672 = vsub.f32 %v1604, %v1638
      %v1673 = vsub.f32 %v1605, %v1639
      %v1674 = vsub.f32 %v1606, %v1640
      %v1675 = vsub.f32 %v1607, %v1641
      %v1676 = vsub.f32 %v1608, %v1642
      %v1677 = vsub.f32 %v1609, %v1643
      %v1678 = vsub.f32 %v1610, %v1644
      %v1679 = vsub.f32 %v1611, %v1645
      %v1680 = vsub.f32 %v1612, %v1646
      %v1681 = vsub.f32 %v1613, %v1647
      %v1682 = vsub.f32 %v1614, %v1648
      %v1683 = vsub.f32 %v1615, %v1649
      %v1684 = vsub.f32 %v1616, %v1650
      %v1685 = vsub.f32 %v1617, %v1651
      %v1686 = vsub.f32 %v1618, %v1652
      %v1687 = vsub.f32 %v1619, %v1653
      %v1688 = vsub.f32 %v1620, %v1654
      %v1689 = vsub.f32 %v1621, %v1655
      %v1690 = vsub.f32 %v1622, %v1656
      %v1691 = vsub.f32 %v1623, %v1657
      %v1692 = vsub.f32 %v1624, %v1658
      %v1693 = vsub.f32 %v1625, %v1659
      %v1694 = vsub.f32 %v1626, %v1660
      %v1695 = vsub.f32 %v1627, %v1661
      %v1696 = vsub.f32 %v1628, %v1662
      %v1697 = vsub.f32 %v1629, %v1663
      %v1698 = vpack.c.bf16 %v1665, %v1664
      %v1699 = vpack.c.bf16 %v1667, %v1666
      %v1700 = vpack.c.bf16 %v1669, %v1668
      %v1701 = vpack.c.bf16 %v1671, %v1670
      %v1702 = vpack.c.bf16 %v1673, %v1672
      %v1703 = vpack.c.bf16 %v1675, %v1674
      %v1704 = vpack.c.bf16 %v1677, %v1676
      %v1705 = vpack.c.bf16 %v1679, %v1678
      %v1706 = vpack.c.bf16 %v1681, %v1680
      %v1707 = vpack.c.bf16 %v1683, %v1682
      %v1708 = vpack.c.bf16 %v1685, %v1684
      %v1709 = vpack.c.bf16 %v1687, %v1686
      %v1710 = vpack.c.bf16 %v1689, %v1688
      %v1711 = vpack.c.bf16 %v1691, %v1690
      %v1712 = vpack.c.bf16 %v1693, %v1692
      %v1713 = vpack.c.bf16 %v1695, %v1694
      %v1714 = vpack.c.bf16 %v1697, %v1696
      %1732 = vrot.lane.b32.xlu0 %v1241, 16
      %v1733 = vpop.permute.xlu0 %1732
      %1734 = vrot.lane.b32.xlu0 %v1242, 16
      %v1735 = vpop.permute.xlu0 %1734
      %1736 = vrot.lane.b32.xlu0 %v1243, 16
      %v1737 = vpop.permute.xlu0 %1736
      %1738 = vrot.lane.b32.xlu0 %v1244, 16
      %v1739 = vpop.permute.xlu0 %1738
      %1740 = vrot.lane.b32.xlu0 %v1245, 16
      %v1741 = vpop.permute.xlu0 %1740
      %1742 = vrot.lane.b32.xlu0 %v1246, 16
      %v1743 = vpop.permute.xlu0 %1742
      %1744 = vrot.lane.b32.xlu0 %v1247, 16
      %v1745 = vpop.permute.xlu0 %1744
      %1746 = vrot.lane.b32.xlu0 %v1248, 16
      %v1747 = vpop.permute.xlu0 %1746
      %1748 = vrot.lane.b32.xlu0 %v1249, 16
      %v1749 = vpop.permute.xlu0 %1748
      %1750 = vrot.lane.b32.xlu0 %v1250, 16
      %v1751 = vpop.permute.xlu0 %1750
      %1752 = vrot.lane.b32.xlu0 %v1251, 16
      %v1753 = vpop.permute.xlu0 %1752
      %1754 = vrot.lane.b32.xlu0 %v1252, 16
      %v1755 = vpop.permute.xlu0 %1754
      %1756 = vrot.lane.b32.xlu0 %v1253, 16
      %v1757 = vpop.permute.xlu0 %1756
      %1758 = vrot.lane.b32.xlu0 %v1254, 16
      %v1759 = vpop.permute.xlu0 %1758
      %1760 = vrot.lane.b32.xlu0 %v1255, 16
      %v1761 = vpop.permute.xlu0 %1760
      %1762 = vrot.lane.b32.xlu0 %v1256, 16
      %v1763 = vpop.permute.xlu0 %1762
      %1764 = vrot.lane.b32.xlu0 %v1257, 16
      %v1765 = vpop.permute.xlu0 %1764
      %1783 = vrot.lane.b32.xlu0 %v1698, 32
      %v1784 = vpop.permute.xlu0 %1783
      %1785 = vrot.lane.b32.xlu0 %v1699, 32
      %v1786 = vpop.permute.xlu0 %1785
      %1787 = vrot.lane.b32.xlu0 %v1700, 32
      %v1788 = vpop.permute.xlu0 %1787
      %1789 = vrot.lane.b32.xlu0 %v1701, 32
      %v1790 = vpop.permute.xlu0 %1789
      %1791 = vrot.lane.b32.xlu0 %v1702, 32
      %v1792 = vpop.permute.xlu0 %1791
      %1793 = vrot.lane.b32.xlu0 %v1703, 32
      %v1794 = vpop.permute.xlu0 %1793
      %1795 = vrot.lane.b32.xlu0 %v1704, 32
      %v1796 = vpop.permute.xlu0 %1795
      %1797 = vrot.lane.b32.xlu0 %v1705, 32
      %v1798 = vpop.permute.xlu0 %1797
      %1799 = vrot.lane.b32.xlu0 %v1706, 32
      %v1800 = vpop.permute.xlu0 %1799
      %1801 = vrot.lane.b32.xlu0 %v1707, 32
      %v1802 = vpop.permute.xlu0 %1801
      %1803 = vrot.lane.b32.xlu0 %v1708, 32
      %v1804 = vpop.permute.xlu0 %1803
      %1805 = vrot.lane.b32.xlu0 %v1709, 32
      %v1806 = vpop.permute.xlu0 %1805
      %1807 = vrot.lane.b32.xlu0 %v1710, 32
      %v1808 = vpop.permute.xlu0 %1807
      %1809 = vrot.lane.b32.xlu0 %v1711, 32
      %v1810 = vpop.permute.xlu0 %1809
      %1811 = vrot.lane.b32.xlu0 %v1712, 32
      %v1812 = vpop.permute.xlu0 %1811
      %1813 = vrot.lane.b32.xlu0 %v1713, 32
      %v1814 = vpop.permute.xlu0 %1813
      %1815 = vrot.lane.b32.xlu0 %v1714, 32
      %v1816 = vpop.permute.xlu0 %1815
      %v1819 = vsel %vm851, %v817, %v1733
      %v1822 = vsel %vm851, %v818, %v1735
      %v1825 = vsel %vm851, %v819, %v1737
      %v1828 = vsel %vm851, %v820, %v1739
      %v1831 = vsel %vm851, %v821, %v1741
      %v1834 = vsel %vm851, %v822, %v1743
      %v1837 = vsel %vm851, %v823, %v1745
      %v1840 = vsel %vm851, %v824, %v1747
      %v1843 = vsel %vm851, %v825, %v1749
      %v1846 = vsel %vm851, %v826, %v1751
      %v1849 = vsel %vm851, %v827, %v1753
      %v1852 = vsel %vm851, %v828, %v1755
      %v1855 = vsel %vm851, %v829, %v1757
      %v1858 = vsel %vm851, %v830, %v1759
      %v1861 = vsel %vm851, %v831, %v1761
      %v1864 = vsel %vm851, %v832, %v1763
      %v1867 = vsel %vm851, %v833, %v1765
      %vm1868 = vcmask 261120
      %v1870 = vsel %vm1868, %v1819, %v1784
      %v1872 = vsel %vm1868, %v1822, %v1786
      %v1874 = vsel %vm1868, %v1825, %v1788
      %v1876 = vsel %vm1868, %v1828, %v1790
      %v1878 = vsel %vm1868, %v1831, %v1792
      %v1880 = vsel %vm1868, %v1834, %v1794
      %v1882 = vsel %vm1868, %v1837, %v1796
      %v1884 = vsel %vm1868, %v1840, %v1798
      %v1886 = vsel %vm1868, %v1843, %v1800
      %v1888 = vsel %vm1868, %v1846, %v1802
      %v1890 = vsel %vm1868, %v1849, %v1804
      %v1892 = vsel %vm1868, %v1852, %v1806
      %v1894 = vsel %vm1868, %v1855, %v1808
      %v1896 = vsel %vm1868, %v1858, %v1810
      %v1898 = vsel %vm1868, %v1861, %v1812
      %v1900 = vsel %vm1868, %v1864, %v1814
      %v1902 = vsel %vm1868, %v1867, %v1816
      %s1903 = scalar_lea.vmem %s383, 408
      %v1904 = vld [vmem:[%s1903] sm:$0xff]
      %v1905 = vld [vmem:[%s1903 + $0x8] sm:$0xf]
      %v1906 = vld [vmem:[%s1903 + $0xc] sm:$0xff]
      %v1907 = vld [vmem:[%s1903 + $0x14] sm:$0xf]
      %v1908 = vld [vmem:[%s1903 + $0x18] sm:$0xff]
      %v1909 = vld [vmem:[%s1903 + $0x20] sm:$0xf]
      %v1910 = vld [vmem:[%s1903 + $0x24] sm:$0xff]
      %v1911 = vld [vmem:[%s1903 + $0x2c] sm:$0xf]
      %v1912 = vld [vmem:[%s1903 + $0x30] sm:$0xff]
      %v1913 = vld [vmem:[%s1903 + $0x38] sm:$0xf]
      %v1914 = vld [vmem:[%s1903 + $0x3c] sm:$0xff]
      %v1915 = vld [vmem:[%s1903 + $0x44] sm:$0xf]
      %v1916 = vld [vmem:[%s1903 + $0x48] sm:$0xff]
      %v1917 = vld [vmem:[%s1903 + $0x50] sm:$0xf]
      %v1918 = vld [vmem:[%s1903 + $0x54] sm:$0xff]
      %v1919 = vld [vmem:[%s1903 + $0x5c] sm:$0xf]
      %v1920 = vld [vmem:[%s1903 + $0x60] sm:$0xff]
      %v1921 = vld [vmem:[%s1903 + $0x68] sm:$0xf]
      %v1922 = vld [vmem:[%s1903 + $0x6c] sm:$0xff]
      %v1923 = vld [vmem:[%s1903 + $0x74] sm:$0xf]
      %v1924 = vld [vmem:[%s1903 + $0x78] sm:$0xff]
      %v1925 = vld [vmem:[%s1903 + $0x80] sm:$0xf]
      %v1926 = vld [vmem:[%s1903 + $0x84] sm:$0xff]
      %v1927 = vld [vmem:[%s1903 + $0x8c] sm:$0xf]
      %v1928 = vld [vmem:[%s1903 + $0x90] sm:$0xff]
      %v1929 = vld [vmem:[%s1903 + $0x98] sm:$0xf]
      %v1930 = vld [vmem:[%s1903 + $0x9c] sm:$0xff]
      %v1931 = vld [vmem:[%s1903 + $0xa4] sm:$0xf]
      %v1932 = vld [vmem:[%s1903 + $0xa8] sm:$0xff]
      %v1933 = vld [vmem:[%s1903 + $0xb0] sm:$0xf]
      %v1934 = vld [vmem:[%s1903 + $0xb4] sm:$0xff]
      %v1935 = vld [vmem:[%s1903 + $0xbc] sm:$0xf]
      %v1936 = vld [vmem:[%s1903 + $0xc0] sm:$0xff]
      %v1937 = vld [vmem:[%s1903 + $0xc8] sm:$0xf]
      %v1938 = vld [vmem:[%s1903 + $0xcc] sm:$0xff]
      %v1939 = vld [vmem:[%s1903 + $0xd4] sm:$0xf]
      %v1940 = vld [vmem:[%s1903 + $0xd8] sm:$0xff]
      %v1941 = vld [vmem:[%s1903 + $0xe0] sm:$0xf]
      %v1942 = vld [vmem:[%s1903 + $0xe4] sm:$0xff]
      %v1943 = vld [vmem:[%s1903 + $0xec] sm:$0xf]
      %v1944 = vld [vmem:[%s1903 + $0xf0] sm:$0xff]
      %v1945 = vld [vmem:[%s1903 + $0xf8] sm:$0xf]
      %v1946 = vld [vmem:[%s1903 + $0xfc] sm:$0xff]
      %v1947 = vld [vmem:[%s1903 + $0x104] sm:$0xf]
      %v1948 = vld [vmem:[%s1903 + $0x108] sm:$0xff]
      %v1949 = vld [vmem:[%s1903 + $0x110] sm:$0xf]
      %v1950 = vld [vmem:[%s1903 + $0x114] sm:$0xff]
      %v1951 = vld [vmem:[%s1903 + $0x11c] sm:$0xf]
      %v1952 = vld [vmem:[%s1903 + $0x120] sm:$0xff]
      %v1953 = vld [vmem:[%s1903 + $0x128] sm:$0xf]
      %v1954 = vld [vmem:[%s1903 + $0x12c] sm:$0xff]
      %v1955 = vld [vmem:[%s1903 + $0x134] sm:$0xf]
      %v1956 = vld [vmem:[%s1903 + $0x138] sm:$0xff]
      %v1957 = vld [vmem:[%s1903 + $0x140] sm:$0xf]
      %v1958 = vld [vmem:[%s1903 + $0x144] sm:$0xff]
      %v1959 = vld [vmem:[%s1903 + $0x14c] sm:$0xf]
      %v1960 = vld [vmem:[%s1903 + $0x150] sm:$0xff]
      %v1961 = vld [vmem:[%s1903 + $0x158] sm:$0xf]
      %v1962 = vld [vmem:[%s1903 + $0x15c] sm:$0xff]
      %v1963 = vld [vmem:[%s1903 + $0x164] sm:$0xf]
      %v1964 = vld [vmem:[%s1903 + $0x168] sm:$0xff]
      %v1965 = vld [vmem:[%s1903 + $0x170] sm:$0xf]
      %v1966 = vld [vmem:[%s1903 + $0x174] sm:$0xff]
      %v1967 = vld [vmem:[%s1903 + $0x17c] sm:$0xf]
      %v1968 = vld [vmem:[%s1903 + $0x180] sm:$0xff]
      %v1969 = vld [vmem:[%s1903 + $0x188] sm:$0xf]
      %v1970 = vld [vmem:[%s1903 + $0x18c] sm:$0xff]
      %v1971 = vld [vmem:[%s1903 + $0x194] sm:$0xf]
      %s1972 = scalar_lea.vmem %s376, 136
      %v1973 = vld [vmem:[%s1972] sm:$0xf]
      %v1974 = vld [vmem:[%s1972 + $0x4] sm:$0xf]
      %v1975 = vld [vmem:[%s1972 + $0x8] sm:$0xf]
      %v1976 = vld [vmem:[%s1972 + $0xc] sm:$0xf]
      %v1977 = vld [vmem:[%s1972 + $0x10] sm:$0xf]
      %v1978 = vld [vmem:[%s1972 + $0x14] sm:$0xf]
      %v1979 = vld [vmem:[%s1972 + $0x18] sm:$0xf]
      %v1980 = vld [vmem:[%s1972 + $0x1c] sm:$0xf]
      %v1981 = vld [vmem:[%s1972 + $0x20] sm:$0xf]
      %v1982 = vld [vmem:[%s1972 + $0x24] sm:$0xf]
      %v1983 = vld [vmem:[%s1972 + $0x28] sm:$0xf]
      %v1984 = vld [vmem:[%s1972 + $0x2c] sm:$0xf]
      %v1985 = vld [vmem:[%s1972 + $0x30] sm:$0xf]
      %v1986 = vld [vmem:[%s1972 + $0x34] sm:$0xf]
      %v1987 = vld [vmem:[%s1972 + $0x38] sm:$0xf]
      %v1988 = vld [vmem:[%s1972 + $0x3c] sm:$0xf]
      %v1989 = vld [vmem:[%s1972 + $0x40] sm:$0xf]
      %v1990 = vld [vmem:[%s1972 + $0x44] sm:$0xf]
      %v1991 = vld [vmem:[%s1972 + $0x48] sm:$0xf]
      %v1992 = vld [vmem:[%s1972 + $0x4c] sm:$0xf]
      %v1993 = vld [vmem:[%s1972 + $0x50] sm:$0xf]
      %v1994 = vld [vmem:[%s1972 + $0x54] sm:$0xf]
      %v1995 = vld [vmem:[%s1972 + $0x58] sm:$0xf]
      %v1996 = vld [vmem:[%s1972 + $0x5c] sm:$0xf]
      %v1997 = vld [vmem:[%s1972 + $0x60] sm:$0xf]
      %v1998 = vld [vmem:[%s1972 + $0x64] sm:$0xf]
      %v1999 = vld [vmem:[%s1972 + $0x68] sm:$0xf]
      %v2000 = vld [vmem:[%s1972 + $0x6c] sm:$0xf]
      %v2001 = vld [vmem:[%s1972 + $0x70] sm:$0xf]
      %v2002 = vld [vmem:[%s1972 + $0x74] sm:$0xf]
      %v2003 = vld [vmem:[%s1972 + $0x78] sm:$0xf]
      %v2004 = vld [vmem:[%s1972 + $0x7c] sm:$0xf]
      %v2005 = vld [vmem:[%s1972 + $0x80] sm:$0xf]
      %v2006 = vld [vmem:[%s1972 + $0x84] sm:$0xf]
      %v2075 = vunpack.c.l.b16 %v1904
      %v2076 = vunpack.c.h.b16 %v1904
      %v2077 = vunpack.c.l.b16 %v1905
      %v2078 = vunpack.c.l.b16 %v1906
      %v2079 = vunpack.c.h.b16 %v1906
      %v2080 = vunpack.c.l.b16 %v1907
      %v2081 = vunpack.c.l.b16 %v1908
      %v2082 = vunpack.c.h.b16 %v1908
      %v2083 = vunpack.c.l.b16 %v1909
      %v2084 = vunpack.c.l.b16 %v1910
      %v2085 = vunpack.c.h.b16 %v1910
      %v2086 = vunpack.c.l.b16 %v1911
      %v2087 = vunpack.c.l.b16 %v1912
      %v2088 = vunpack.c.h.b16 %v1912
      %v2089 = vunpack.c.l.b16 %v1913
      %v2090 = vunpack.c.l.b16 %v1914
      %v2091 = vunpack.c.h.b16 %v1914
      %v2092 = vunpack.c.l.b16 %v1915
      %v2093 = vunpack.c.l.b16 %v1916
      %v2094 = vunpack.c.h.b16 %v1916
      %v2095 = vunpack.c.l.b16 %v1917
      %v2096 = vunpack.c.l.b16 %v1918
      %v2097 = vunpack.c.h.b16 %v1918
      %v2098 = vunpack.c.l.b16 %v1919
      %v2099 = vunpack.c.l.b16 %v1920
      %v2100 = vunpack.c.h.b16 %v1920
      %v2101 = vunpack.c.l.b16 %v1921
      %v2102 = vunpack.c.l.b16 %v1922
      %v2103 = vunpack.c.h.b16 %v1922
      %v2104 = vunpack.c.l.b16 %v1923
      %v2105 = vunpack.c.l.b16 %v1924
      %v2106 = vunpack.c.h.b16 %v1924
      %v2107 = vunpack.c.l.b16 %v1925
      %v2108 = vunpack.c.l.b16 %v1926
      %v2109 = vunpack.c.h.b16 %v1926
      %v2110 = vunpack.c.l.b16 %v1927
      %v2111 = vunpack.c.l.b16 %v1928
      %v2112 = vunpack.c.h.b16 %v1928
      %v2113 = vunpack.c.l.b16 %v1929
      %v2114 = vunpack.c.l.b16 %v1930
      %v2115 = vunpack.c.h.b16 %v1930
      %v2116 = vunpack.c.l.b16 %v1931
      %v2117 = vunpack.c.l.b16 %v1932
      %v2118 = vunpack.c.h.b16 %v1932
      %v2119 = vunpack.c.l.b16 %v1933
      %v2120 = vunpack.c.l.b16 %v1934
      %v2121 = vunpack.c.h.b16 %v1934
      %v2122 = vunpack.c.l.b16 %v1935
      %v2123 = vunpack.c.l.b16 %v1936
      %v2124 = vunpack.c.h.b16 %v1936
      %v2125 = vunpack.c.l.b16 %v1937
      %v2126 = vunpack.c.l.b16 %v1938
      %v2127 = vunpack.c.h.b16 %v1938
      %v2128 = vunpack.c.l.b16 %v1939
      %v2129 = vunpack.c.l.b16 %v1940
      %v2130 = vunpack.c.h.b16 %v1940
      %v2131 = vunpack.c.l.b16 %v1941
      %v2132 = vunpack.c.l.b16 %v1942
      %v2133 = vunpack.c.h.b16 %v1942
      %v2134 = vunpack.c.l.b16 %v1943
      %v2135 = vunpack.c.l.b16 %v1944
      %v2136 = vunpack.c.h.b16 %v1944
      %v2137 = vunpack.c.l.b16 %v1945
      %v2138 = vunpack.c.l.b16 %v1946
      %v2139 = vunpack.c.h.b16 %v1946
      %v2140 = vunpack.c.l.b16 %v1947
      %v2141 = vunpack.c.l.b16 %v1948
      %v2142 = vunpack.c.h.b16 %v1948
      %v2143 = vunpack.c.l.b16 %v1949
      %v2144 = vunpack.c.l.b16 %v1950
      %v2145 = vunpack.c.h.b16 %v1950
      %v2146 = vunpack.c.l.b16 %v1951
      %v2147 = vunpack.c.l.b16 %v1952
      %v2148 = vunpack.c.h.b16 %v1952
      %v2149 = vunpack.c.l.b16 %v1953
      %v2150 = vunpack.c.l.b16 %v1954
      %v2151 = vunpack.c.h.b16 %v1954
      %v2152 = vunpack.c.l.b16 %v1955
      %v2153 = vunpack.c.l.b16 %v1956
      %v2154 = vunpack.c.h.b16 %v1956
      %v2155 = vunpack.c.l.b16 %v1957
      %v2156 = vunpack.c.l.b16 %v1958
      %v2157 = vunpack.c.h.b16 %v1958
      %v2158 = vunpack.c.l.b16 %v1959
      %v2159 = vunpack.c.l.b16 %v1960
      %v2160 = vunpack.c.h.b16 %v1960
      %v2161 = vunpack.c.l.b16 %v1961
      %v2162 = vunpack.c.l.b16 %v1962
      %v2163 = vunpack.c.h.b16 %v1962
      %v2164 = vunpack.c.l.b16 %v1963
      %v2165 = vunpack.c.l.b16 %v1964
      %v2166 = vunpack.c.h.b16 %v1964
      %v2167 = vunpack.c.l.b16 %v1965
      %v2168 = vunpack.c.l.b16 %v1966
      %v2169 = vunpack.c.h.b16 %v1966
      %v2170 = vunpack.c.l.b16 %v1967
      %v2171 = vunpack.c.l.b16 %v1968
      %v2172 = vunpack.c.h.b16 %v1968
      %v2173 = vunpack.c.l.b16 %v1969
      %v2174 = vunpack.c.l.b16 %v1970
      %v2175 = vunpack.c.h.b16 %v1970
      %v2176 = vunpack.c.l.b16 %v1971
      %v2177 = vpack.c.b16 %v2078, %v2075
      %v2178 = vpack.c.b16 %v2079, %v2076
      %v2179 = vpack.c.b16 %v2080, %v2077
      %v2180 = vpack.c.b16 %v2084, %v2081
      %v2181 = vpack.c.b16 %v2085, %v2082
      %v2182 = vpack.c.b16 %v2086, %v2083
      %v2183 = vpack.c.b16 %v2090, %v2087
      %v2184 = vpack.c.b16 %v2091, %v2088
      %v2185 = vpack.c.b16 %v2092, %v2089
      %v2186 = vpack.c.b16 %v2096, %v2093
      %v2187 = vpack.c.b16 %v2097, %v2094
      %v2188 = vpack.c.b16 %v2098, %v2095
      %v2189 = vpack.c.b16 %v2102, %v2099
      %v2190 = vpack.c.b16 %v2103, %v2100
      %v2191 = vpack.c.b16 %v2104, %v2101
      %v2192 = vpack.c.b16 %v2108, %v2105
      %v2193 = vpack.c.b16 %v2109, %v2106
      %v2194 = vpack.c.b16 %v2110, %v2107
      %v2195 = vpack.c.b16 %v2114, %v2111
      %v2196 = vpack.c.b16 %v2115, %v2112
      %v2197 = vpack.c.b16 %v2116, %v2113
      %v2198 = vpack.c.b16 %v2120, %v2117
      %v2199 = vpack.c.b16 %v2121, %v2118
      %v2200 = vpack.c.b16 %v2122, %v2119
      %v2201 = vpack.c.b16 %v2126, %v2123
      %v2202 = vpack.c.b16 %v2127, %v2124
      %v2203 = vpack.c.b16 %v2128, %v2125
      %v2204 = vpack.c.b16 %v2132, %v2129
      %v2205 = vpack.c.b16 %v2133, %v2130
      %v2206 = vpack.c.b16 %v2134, %v2131
      %v2207 = vpack.c.b16 %v2138, %v2135
      %v2208 = vpack.c.b16 %v2139, %v2136
      %v2209 = vpack.c.b16 %v2140, %v2137
      %v2210 = vpack.c.b16 %v2144, %v2141
      %v2211 = vpack.c.b16 %v2145, %v2142
      %v2212 = vpack.c.b16 %v2146, %v2143
      %v2213 = vpack.c.b16 %v2150, %v2147
      %v2214 = vpack.c.b16 %v2151, %v2148
      %v2215 = vpack.c.b16 %v2152, %v2149
      %v2216 = vpack.c.b16 %v2156, %v2153
      %v2217 = vpack.c.b16 %v2157, %v2154
      %v2218 = vpack.c.b16 %v2158, %v2155
      %v2219 = vpack.c.b16 %v2162, %v2159
      %v2220 = vpack.c.b16 %v2163, %v2160
      %v2221 = vpack.c.b16 %v2164, %v2161
      %v2222 = vpack.c.b16 %v2168, %v2165
      %v2223 = vpack.c.b16 %v2169, %v2166
      %v2224 = vpack.c.b16 %v2170, %v2167
      %v2225 = vpack.c.b16 %v2174, %v2171
      %v2226 = vpack.c.b16 %v2175, %v2172
      %v2227 = vpack.c.b16 %v2176, %v2173
      %v2296 = vunpack.c.l.b16 %v1973
      %v2297 = vunpack.c.l.b16 %v1974
      %v2298 = vunpack.c.l.b16 %v1975
      %v2299 = vunpack.c.l.b16 %v1976
      %v2300 = vunpack.c.l.b16 %v1977
      %v2301 = vunpack.c.l.b16 %v1978
      %v2302 = vunpack.c.l.b16 %v1979
      %v2303 = vunpack.c.l.b16 %v1980
      %v2304 = vunpack.c.l.b16 %v1981
      %v2305 = vunpack.c.l.b16 %v1982
      %v2306 = vunpack.c.l.b16 %v1983
      %v2307 = vunpack.c.l.b16 %v1984
      %v2308 = vunpack.c.l.b16 %v1985
      %v2309 = vunpack.c.l.b16 %v1986
      %v2310 = vunpack.c.l.b16 %v1987
      %v2311 = vunpack.c.l.b16 %v1988
      %v2312 = vunpack.c.l.b16 %v1989
      %v2313 = vunpack.c.l.b16 %v1990
      %v2314 = vunpack.c.l.b16 %v1991
      %v2315 = vunpack.c.l.b16 %v1992
      %v2316 = vunpack.c.l.b16 %v1993
      %v2317 = vunpack.c.l.b16 %v1994
      %v2318 = vunpack.c.l.b16 %v1995
      %v2319 = vunpack.c.l.b16 %v1996
      %v2320 = vunpack.c.l.b16 %v1997
      %v2321 = vunpack.c.l.b16 %v1998
      %v2322 = vunpack.c.l.b16 %v1999
      %v2323 = vunpack.c.l.b16 %v2000
      %v2324 = vunpack.c.l.b16 %v2001
      %v2325 = vunpack.c.l.b16 %v2002
      %v2326 = vunpack.c.l.b16 %v2003
      %v2327 = vunpack.c.l.b16 %v2004
      %v2328 = vunpack.c.l.b16 %v2005
      %v2329 = vunpack.c.l.b16 %v2006
      %v2330 = vpack.c.b16 %v2297, %v2296
      %v2331 = vpack.c.b16 %v2299, %v2298
      %v2332 = vpack.c.b16 %v2301, %v2300
      %v2333 = vpack.c.b16 %v2303, %v2302
      %v2334 = vpack.c.b16 %v2305, %v2304
      %v2335 = vpack.c.b16 %v2307, %v2306
      %v2336 = vpack.c.b16 %v2309, %v2308
      %v2337 = vpack.c.b16 %v2311, %v2310
      %v2338 = vpack.c.b16 %v2313, %v2312
      %v2339 = vpack.c.b16 %v2315, %v2314
      %v2340 = vpack.c.b16 %v2317, %v2316
      %v2341 = vpack.c.b16 %v2319, %v2318
      %v2342 = vpack.c.b16 %v2321, %v2320
      %v2343 = vpack.c.b16 %v2323, %v2322
      %v2344 = vpack.c.b16 %v2325, %v2324
      %v2345 = vpack.c.b16 %v2327, %v2326
      %v2346 = vpack.c.b16 %v2329, %v2328
      %v2365 = vsel %vm851, %v2179, 0
      %v2368 = vsel %vm851, %v2182, 0
      %v2371 = vsel %vm851, %v2185, 0
      %v2374 = vsel %vm851, %v2188, 0
      %v2377 = vsel %vm851, %v2191, 0
      %v2380 = vsel %vm851, %v2194, 0
      %v2383 = vsel %vm851, %v2197, 0
      %v2386 = vsel %vm851, %v2200, 0
      %v2389 = vsel %vm851, %v2203, 0
      %v2392 = vsel %vm851, %v2206, 0
      %v2395 = vsel %vm851, %v2209, 0
      %v2398 = vsel %vm851, %v2212, 0
      %v2401 = vsel %vm851, %v2215, 0
      %v2404 = vsel %vm851, %v2218, 0
      %v2407 = vsel %vm851, %v2221, 0
      %v2410 = vsel %vm851, %v2224, 0
      %v2413 = vsel %vm851, %v2227, 0
      %2415 = vmatprep.subr.bf16.mxu0 0
      %2416 = vmatpush1.bf16.msra.mxu0 %v2337
      %2417 = vmatprep.subr.bf16.mxu0 0
      %2418 = vmatpush1.bf16.msra.mxu0 %v2336
      %2419 = vmatprep.subr.bf16.mxu0 0
      %2420 = vmatpush1.bf16.msra.mxu0 %v2335
      %2421 = vmatprep.subr.bf16.mxu0 0
      %2422 = vmatpush1.bf16.msra.mxu0 %v2334
      %2423 = vmatprep.subr.bf16.mxu0 0
      %2424 = vmatpush1.bf16.msra.mxu0 %v2333
      %2425 = vmatprep.subr.bf16.mxu0 0
      %2426 = vmatpush1.bf16.msra.mxu0 %v2332
      %2427 = vmatprep.subr.bf16.mxu0 0
      %2428 = vmatpush1.bf16.msra.mxu0 %v2331
      %2429 = vmatprep.subr.bf16.mxu0 0
      %2430 = vmatpush1.bf16.msra.mxu0 %v2330
      %2431 = vmatprep.subr.bf16.mxu0 0
      %2432 = vmatpush2.bf16.msra.mxu0 %v2345
      %2433 = vmatprep.subr.bf16.mxu0 0
      %2434 = vmatpush2.bf16.msra.mxu0 %v2344
      %2435 = vmatprep.subr.bf16.mxu0 0
      %2436 = vmatpush2.bf16.msra.mxu0 %v2343
      %2437 = vmatprep.subr.bf16.mxu0 0
      %2438 = vmatpush2.bf16.msra.mxu0 %v2342
      %2439 = vmatprep.subr.bf16.mxu0 0
      %2440 = vmatpush2.bf16.msra.mxu0 %v2341
      %2441 = vmatprep.subr.bf16.mxu0 0
      %2442 = vmatpush2.bf16.msra.mxu0 %v2340
      %2443 = vmatprep.subr.bf16.mxu0 0
      %2444 = vmatpush2.bf16.msra.mxu0 %v2339
      %2445 = vmatprep.subr.bf16.mxu0 0
      %2446 = vmatpush2.bf16.msra.mxu0 %v2338
      %2447 = vmatprep.mubr.bf16.mxu0 %v2178
      %2448 = vmatmul.mubr.bf16.gmra.mxu0 %v2177
      %v2449 = vpop.f32.mrf.mxu0
      %v2450 = vadd.f32 0.0, %v2449
      %v2451 = vpop.f32.mrf.mxu0
      %v2452 = vpop.f32.mrf.mxu0
      %v2453 = vadd.f32 0.0, %v2452
      %v2454 = vpop.f32.mrf.mxu0
      %2455 = vmatprep.mubr.bf16.mxu0 %v2181
      %2456 = vmatmul.mubr.bf16.gmra.mxu0 %v2180
      %v2457 = vpop.f32.mrf.mxu0
      %v2458 = vadd.f32 0.0, %v2457
      %v2459 = vpop.f32.mrf.mxu0
      %v2460 = vpop.f32.mrf.mxu0
      %v2461 = vadd.f32 0.0, %v2460
      %v2462 = vpop.f32.mrf.mxu0
      %2463 = vmatprep.mubr.bf16.mxu0 %v2184
      %2464 = vmatmul.mubr.bf16.gmra.mxu0 %v2183
      %v2465 = vpop.f32.mrf.mxu0
      %v2466 = vadd.f32 0.0, %v2465
      %v2467 = vpop.f32.mrf.mxu0
      %v2468 = vpop.f32.mrf.mxu0
      %v2469 = vadd.f32 0.0, %v2468
      %v2470 = vpop.f32.mrf.mxu0
      %2471 = vmatprep.mubr.bf16.mxu0 %v2187
      %2472 = vmatmul.mubr.bf16.gmra.mxu0 %v2186
      %v2473 = vpop.f32.mrf.mxu0
      %v2474 = vadd.f32 0.0, %v2473
      %v2475 = vpop.f32.mrf.mxu0
      %v2476 = vpop.f32.mrf.mxu0
      %v2477 = vadd.f32 0.0, %v2476
      %v2478 = vpop.f32.mrf.mxu0
      %2479 = vmatprep.mubr.bf16.mxu0 %v2190
      %2480 = vmatmul.mubr.bf16.gmra.mxu0 %v2189
      %v2481 = vpop.f32.mrf.mxu0
      %v2482 = vadd.f32 0.0, %v2481
      %v2483 = vpop.f32.mrf.mxu0
      %v2484 = vpop.f32.mrf.mxu0
      %v2485 = vadd.f32 0.0, %v2484
      %v2486 = vpop.f32.mrf.mxu0
      %2487 = vmatprep.mubr.bf16.mxu0 %v2193
      %2488 = vmatmul.mubr.bf16.gmra.mxu0 %v2192
      %v2489 = vpop.f32.mrf.mxu0
      %v2490 = vadd.f32 0.0, %v2489
      %v2491 = vpop.f32.mrf.mxu0
      %v2492 = vpop.f32.mrf.mxu0
      %v2493 = vadd.f32 0.0, %v2492
      %v2494 = vpop.f32.mrf.mxu0
      %2495 = vmatprep.mubr.bf16.mxu0 %v2196
      %2496 = vmatmul.mubr.bf16.gmra.mxu0 %v2195
      %v2497 = vpop.f32.mrf.mxu0
      %v2498 = vadd.f32 0.0, %v2497
      %v2499 = vpop.f32.mrf.mxu0
      %v2500 = vpop.f32.mrf.mxu0
      %v2501 = vadd.f32 0.0, %v2500
      %v2502 = vpop.f32.mrf.mxu0
      %2503 = vmatprep.mubr.bf16.mxu0 %v2199
      %2504 = vmatmul.mubr.bf16.gmra.mxu0 %v2198
      %v2505 = vpop.f32.mrf.mxu0
      %v2506 = vadd.f32 0.0, %v2505
      %v2507 = vpop.f32.mrf.mxu0
      %v2508 = vpop.f32.mrf.mxu0
      %v2509 = vadd.f32 0.0, %v2508
      %v2510 = vpop.f32.mrf.mxu0
      %2511 = vmatprep.mubr.bf16.mxu0 %v2202
      %2512 = vmatmul.mubr.bf16.gmra.mxu0 %v2201
      %v2513 = vpop.f32.mrf.mxu0
      %v2514 = vadd.f32 0.0, %v2513
      %v2515 = vpop.f32.mrf.mxu0
      %v2516 = vpop.f32.mrf.mxu0
      %v2517 = vadd.f32 0.0, %v2516
      %v2518 = vpop.f32.mrf.mxu0
      %2519 = vmatprep.mubr.bf16.mxu0 %v2205
      %2520 = vmatmul.mubr.bf16.gmra.mxu0 %v2204
      %v2521 = vpop.f32.mrf.mxu0
      %v2522 = vadd.f32 0.0, %v2521
      %v2523 = vpop.f32.mrf.mxu0
      %v2524 = vpop.f32.mrf.mxu0
      %v2525 = vadd.f32 0.0, %v2524
      %v2526 = vpop.f32.mrf.mxu0
      %2527 = vmatprep.mubr.bf16.mxu0 %v2208
      %2528 = vmatmul.mubr.bf16.gmra.mxu0 %v2207
      %v2529 = vpop.f32.mrf.mxu0
      %v2530 = vadd.f32 0.0, %v2529
      %v2531 = vpop.f32.mrf.mxu0
      %v2532 = vpop.f32.mrf.mxu0
      %v2533 = vadd.f32 0.0, %v2532
      %v2534 = vpop.f32.mrf.mxu0
      %2535 = vmatprep.mubr.bf16.mxu0 %v2211
      %2536 = vmatmul.mubr.bf16.gmra.mxu0 %v2210
      %v2537 = vpop.f32.mrf.mxu0
      %v2538 = vadd.f32 0.0, %v2537
      %v2539 = vpop.f32.mrf.mxu0
      %v2540 = vpop.f32.mrf.mxu0
      %v2541 = vadd.f32 0.0, %v2540
      %v2542 = vpop.f32.mrf.mxu0
      %2543 = vmatprep.mubr.bf16.mxu0 %v2214
      %2544 = vmatmul.mubr.bf16.gmra.mxu0 %v2213
      %v2545 = vpop.f32.mrf.mxu0
      %v2546 = vadd.f32 0.0, %v2545
      %v2547 = vpop.f32.mrf.mxu0
      %v2548 = vpop.f32.mrf.mxu0
      %v2549 = vadd.f32 0.0, %v2548
      %v2550 = vpop.f32.mrf.mxu0
      %2551 = vmatprep.mubr.bf16.mxu0 %v2217
      %2552 = vmatmul.mubr.bf16.gmra.mxu0 %v2216
      %v2553 = vpop.f32.mrf.mxu0
      %v2554 = vadd.f32 0.0, %v2553
      %v2555 = vpop.f32.mrf.mxu0
      %v2556 = vpop.f32.mrf.mxu0
      %v2557 = vadd.f32 0.0, %v2556
      %v2558 = vpop.f32.mrf.mxu0
      %2559 = vmatprep.mubr.bf16.mxu0 %v2220
      %2560 = vmatmul.mubr.bf16.gmra.mxu0 %v2219
      %v2561 = vpop.f32.mrf.mxu0
      %v2562 = vadd.f32 0.0, %v2561
      %v2563 = vpop.f32.mrf.mxu0
      %v2564 = vpop.f32.mrf.mxu0
      %v2565 = vadd.f32 0.0, %v2564
      %v2566 = vpop.f32.mrf.mxu0
      %2567 = vmatprep.mubr.bf16.mxu0 %v2223
      %2568 = vmatmul.mubr.bf16.gmra.mxu0 %v2222
      %v2569 = vpop.f32.mrf.mxu0
      %v2570 = vadd.f32 0.0, %v2569
      %v2571 = vpop.f32.mrf.mxu0
      %v2572 = vpop.f32.mrf.mxu0
      %v2573 = vadd.f32 0.0, %v2572
      %v2574 = vpop.f32.mrf.mxu0
      %2575 = vmatprep.mubr.bf16.mxu0 %v2226
      %2576 = vmatmul.mubr.bf16.gmra.mxu0 %v2225
      %v2577 = vpop.f32.mrf.mxu0
      %v2578 = vadd.f32 0.0, %v2577
      %v2579 = vpop.f32.mrf.mxu0
      %v2580 = vpop.f32.mrf.mxu0
      %v2581 = vadd.f32 0.0, %v2580
      %v2582 = vpop.f32.mrf.mxu0
      %2583 = vdwg.mxu0
      %2584 = vmatprep.subr.bf16.mxu0 0
      %2585 = vmatpush1.bf16.msra.mxu0 0
      %2586 = vmatprep.subr.bf16.mxu0 0
      %2587 = vmatpush1.bf16.msra.mxu0 0
      %2588 = vmatprep.subr.bf16.mxu0 0
      %2589 = vmatpush1.bf16.msra.mxu0 0
      %2590 = vmatprep.subr.bf16.mxu0 0
      %2591 = vmatpush1.bf16.msra.mxu0 0
      %2592 = vmatprep.subr.bf16.mxu0 0
      %2593 = vmatpush1.bf16.msra.mxu0 0
      %2594 = vmatprep.subr.bf16.mxu0 0
      %2595 = vmatpush1.bf16.msra.mxu0 0
      %2596 = vmatprep.subr.bf16.mxu0 0
      %2597 = vmatpush1.bf16.msra.mxu0 0
      %2598 = vmatprep.subr.bf16.mxu0 0
      %2599 = vmatpush1.bf16.msra.mxu0 %v2346
      %2600 = vmatprep.subr.bf16.mxu0 0
      %2601 = vmatpush2.bf16.msra.mxu0 0
      %2602 = vmatprep.subr.bf16.mxu0 0
      %2603 = vmatpush2.bf16.msra.mxu0 0
      %2604 = vmatprep.subr.bf16.mxu0 0
      %2605 = vmatpush2.bf16.msra.mxu0 0
      %2606 = vmatprep.subr.bf16.mxu0 0
      %2607 = vmatpush2.bf16.msra.mxu0 0
      %2608 = vmatprep.subr.bf16.mxu0 0
      %2609 = vmatpush2.bf16.msra.mxu0 0
      %2610 = vmatprep.subr.bf16.mxu0 0
      %2611 = vmatpush2.bf16.msra.mxu0 0
      %2612 = vmatprep.subr.bf16.mxu0 0
      %2613 = vmatpush2.bf16.msra.mxu0 0
      %2614 = vmatprep.subr.bf16.mxu0 0
      %2615 = vmatpush2.bf16.msra.mxu0 0
      %2616 = vmatprep.mubr.bf16.mxu0 0
      %2617 = vmatmul.mubr.bf16.gmra.mxu0 %v2365
      %v2618 = vpop.f32.mrf.mxu0
      %v2619 = vadd.f32 %v2450, %v2618
      %v2620 = vpop.f32.mrf.mxu0
      %v2621 = vpop.f32.mrf.mxu0
      %v2622 = vadd.f32 %v2453, %v2621
      %v2623 = vpop.f32.mrf.mxu0
      %2624 = vmatprep.mubr.bf16.mxu0 0
      %2625 = vmatmul.mubr.bf16.gmra.mxu0 %v2368
      %v2626 = vpop.f32.mrf.mxu0
      %v2627 = vadd.f32 %v2458, %v2626
      %v2628 = vpop.f32.mrf.mxu0
      %v2629 = vpop.f32.mrf.mxu0
      %v2630 = vadd.f32 %v2461, %v2629
      %v2631 = vpop.f32.mrf.mxu0
      %2632 = vmatprep.mubr.bf16.mxu0 0
      %2633 = vmatmul.mubr.bf16.gmra.mxu0 %v2371
      %v2634 = vpop.f32.mrf.mxu0
      %v2635 = vadd.f32 %v2466, %v2634
      %v2636 = vpop.f32.mrf.mxu0
      %v2637 = vpop.f32.mrf.mxu0
      %v2638 = vadd.f32 %v2469, %v2637
      %v2639 = vpop.f32.mrf.mxu0
      %2640 = vmatprep.mubr.bf16.mxu0 0
      %2641 = vmatmul.mubr.bf16.gmra.mxu0 %v2374
      %v2642 = vpop.f32.mrf.mxu0
      %v2643 = vadd.f32 %v2474, %v2642
      %v2644 = vpop.f32.mrf.mxu0
      %v2645 = vpop.f32.mrf.mxu0
      %v2646 = vadd.f32 %v2477, %v2645
      %v2647 = vpop.f32.mrf.mxu0
      %2648 = vmatprep.mubr.bf16.mxu0 0
      %2649 = vmatmul.mubr.bf16.gmra.mxu0 %v2377
      %v2650 = vpop.f32.mrf.mxu0
      %v2651 = vadd.f32 %v2482, %v2650
      %v2652 = vpop.f32.mrf.mxu0
      %v2653 = vpop.f32.mrf.mxu0
      %v2654 = vadd.f32 %v2485, %v2653
      %v2655 = vpop.f32.mrf.mxu0
      %2656 = vmatprep.mubr.bf16.mxu0 0
      %2657 = vmatmul.mubr.bf16.gmra.mxu0 %v2380
      %v2658 = vpop.f32.mrf.mxu0
      %v2659 = vadd.f32 %v2490, %v2658
      %v2660 = vpop.f32.mrf.mxu0
      %v2661 = vpop.f32.mrf.mxu0
      %v2662 = vadd.f32 %v2493, %v2661
      %v2663 = vpop.f32.mrf.mxu0
      %2664 = vmatprep.mubr.bf16.mxu0 0
      %2665 = vmatmul.mubr.bf16.gmra.mxu0 %v2383
      %v2666 = vpop.f32.mrf.mxu0
      %v2667 = vadd.f32 %v2498, %v2666
      %v2668 = vpop.f32.mrf.mxu0
      %v2669 = vpop.f32.mrf.mxu0
      %v2670 = vadd.f32 %v2501, %v2669
      %v2671 = vpop.f32.mrf.mxu0
      %2672 = vmatprep.mubr.bf16.mxu0 0
      %2673 = vmatmul.mubr.bf16.gmra.mxu0 %v2386
      %v2674 = vpop.f32.mrf.mxu0
      %v2675 = vadd.f32 %v2506, %v2674
      %v2676 = vpop.f32.mrf.mxu0
      %v2677 = vpop.f32.mrf.mxu0
      %v2678 = vadd.f32 %v2509, %v2677
      %v2679 = vpop.f32.mrf.mxu0
      %2680 = vmatprep.mubr.bf16.mxu0 0
      %2681 = vmatmul.mubr.bf16.gmra.mxu0 %v2389
      %v2682 = vpop.f32.mrf.mxu0
      %v2683 = vadd.f32 %v2514, %v2682
      %v2684 = vpop.f32.mrf.mxu0
      %v2685 = vpop.f32.mrf.mxu0
      %v2686 = vadd.f32 %v2517, %v2685
      %v2687 = vpop.f32.mrf.mxu0
      %2688 = vmatprep.mubr.bf16.mxu0 0
      %2689 = vmatmul.mubr.bf16.gmra.mxu0 %v2392
      %v2690 = vpop.f32.mrf.mxu0
      %v2691 = vadd.f32 %v2522, %v2690
      %v2692 = vpop.f32.mrf.mxu0
      %v2693 = vpop.f32.mrf.mxu0
      %v2694 = vadd.f32 %v2525, %v2693
      %v2695 = vpop.f32.mrf.mxu0
      %2696 = vmatprep.mubr.bf16.mxu0 0
      %2697 = vmatmul.mubr.bf16.gmra.mxu0 %v2395
      %v2698 = vpop.f32.mrf.mxu0
      %v2699 = vadd.f32 %v2530, %v2698
      %v2700 = vpop.f32.mrf.mxu0
      %v2701 = vpop.f32.mrf.mxu0
      %v2702 = vadd.f32 %v2533, %v2701
      %v2703 = vpop.f32.mrf.mxu0
      %2704 = vmatprep.mubr.bf16.mxu0 0
      %2705 = vmatmul.mubr.bf16.gmra.mxu0 %v2398
      %v2706 = vpop.f32.mrf.mxu0
      %v2707 = vadd.f32 %v2538, %v2706
      %v2708 = vpop.f32.mrf.mxu0
      %v2709 = vpop.f32.mrf.mxu0
      %v2710 = vadd.f32 %v2541, %v2709
      %v2711 = vpop.f32.mrf.mxu0
      %2712 = vmatprep.mubr.bf16.mxu0 0
      %2713 = vmatmul.mubr.bf16.gmra.mxu0 %v2401
      %v2714 = vpop.f32.mrf.mxu0
      %v2715 = vadd.f32 %v2546, %v2714
      %v2716 = vpop.f32.mrf.mxu0
      %v2717 = vpop.f32.mrf.mxu0
      %v2718 = vadd.f32 %v2549, %v2717
      %v2719 = vpop.f32.mrf.mxu0
      %2720 = vmatprep.mubr.bf16.mxu0 0
      %2721 = vmatmul.mubr.bf16.gmra.mxu0 %v2404
      %v2722 = vpop.f32.mrf.mxu0
      %v2723 = vadd.f32 %v2554, %v2722
      %v2724 = vpop.f32.mrf.mxu0
      %v2725 = vpop.f32.mrf.mxu0
      %v2726 = vadd.f32 %v2557, %v2725
      %v2727 = vpop.f32.mrf.mxu0
      %2728 = vmatprep.mubr.bf16.mxu0 0
      %2729 = vmatmul.mubr.bf16.gmra.mxu0 %v2407
      %v2730 = vpop.f32.mrf.mxu0
      %v2731 = vadd.f32 %v2562, %v2730
      %v2732 = vpop.f32.mrf.mxu0
      %v2733 = vpop.f32.mrf.mxu0
      %v2734 = vadd.f32 %v2565, %v2733
      %v2735 = vpop.f32.mrf.mxu0
      %2736 = vmatprep.mubr.bf16.mxu0 0
      %2737 = vmatmul.mubr.bf16.gmra.mxu0 %v2410
      %v2738 = vpop.f32.mrf.mxu0
      %v2739 = vadd.f32 %v2570, %v2738
      %v2740 = vpop.f32.mrf.mxu0
      %v2741 = vpop.f32.mrf.mxu0
      %v2742 = vadd.f32 %v2573, %v2741
      %v2743 = vpop.f32.mrf.mxu0
      %2744 = vmatprep.mubr.bf16.mxu0 0
      %2745 = vmatmul.mubr.bf16.gmra.mxu0 %v2413
      %v2746 = vpop.f32.mrf.mxu0
      %v2747 = vadd.f32 %v2578, %v2746
      %v2748 = vpop.f32.mrf.mxu0
      %v2749 = vpop.f32.mrf.mxu0
      %v2750 = vadd.f32 %v2581, %v2749
      %v2751 = vpop.f32.mrf.mxu0
      %2752 = vdwg.mxu0
      %v2753 = vpack.c.bf16 %v2622, %v2619
      %v2754 = vpack.c.bf16 %v2630, %v2627
      %v2755 = vpack.c.bf16 %v2638, %v2635
      %v2756 = vpack.c.bf16 %v2646, %v2643
      %v2757 = vpack.c.bf16 %v2654, %v2651
      %v2758 = vpack.c.bf16 %v2662, %v2659
      %v2759 = vpack.c.bf16 %v2670, %v2667
      %v2760 = vpack.c.bf16 %v2678, %v2675
      %v2761 = vpack.c.bf16 %v2686, %v2683
      %v2762 = vpack.c.bf16 %v2694, %v2691
      %v2763 = vpack.c.bf16 %v2702, %v2699
      %v2764 = vpack.c.bf16 %v2710, %v2707
      %v2765 = vpack.c.bf16 %v2718, %v2715
      %v2766 = vpack.c.bf16 %v2726, %v2723
      %v2767 = vpack.c.bf16 %v2734, %v2731
      %v2768 = vpack.c.bf16 %v2742, %v2739
      %v2769 = vpack.c.bf16 %v2750, %v2747
      %2770 = vmatprep.subr.bf16.mxu0 0
      %2771 = vmatpush1.bf16.msra.mxu0 %v2760
      %2772 = vmatprep.subr.bf16.mxu0 0
      %2773 = vmatpush1.bf16.msra.mxu0 %v2759
      %2774 = vmatprep.subr.bf16.mxu0 0
      %2775 = vmatpush1.bf16.msra.mxu0 %v2758
      %2776 = vmatprep.subr.bf16.mxu0 0
      %2777 = vmatpush1.bf16.msra.mxu0 %v2757
      %2778 = vmatprep.subr.bf16.mxu0 0
      %2779 = vmatpush1.bf16.msra.mxu0 %v2756
      %2780 = vmatprep.subr.bf16.mxu0 0
      %2781 = vmatpush1.bf16.msra.mxu0 %v2755
      %2782 = vmatprep.subr.bf16.mxu0 0
      %2783 = vmatpush1.bf16.msra.mxu0 %v2754
      %2784 = vmatprep.subr.bf16.mxu0 0
      %2785 = vmatpush1.bf16.msra.mxu0 %v2753
      %2786 = vmatprep.subr.bf16.mxu0 0
      %2787 = vmatpush2.bf16.msra.mxu0 %v2768
      %2788 = vmatprep.subr.bf16.mxu0 0
      %2789 = vmatpush2.bf16.msra.mxu0 %v2767
      %2790 = vmatprep.subr.bf16.mxu0 0
      %2791 = vmatpush2.bf16.msra.mxu0 %v2766
      %2792 = vmatprep.subr.bf16.mxu0 0
      %2793 = vmatpush2.bf16.msra.mxu0 %v2765
      %2794 = vmatprep.subr.bf16.mxu0 0
      %2795 = vmatpush2.bf16.msra.mxu0 %v2764
      %2796 = vmatprep.subr.bf16.mxu0 0
      %2797 = vmatpush2.bf16.msra.mxu0 %v2763
      %2798 = vmatprep.subr.bf16.mxu0 0
      %2799 = vmatpush2.bf16.msra.mxu0 %v2762
      %2800 = vmatprep.subr.bf16.mxu0 0
      %2801 = vmatpush2.bf16.msra.mxu0 %v2761
      %2802 = vmatprep.mubr.bf16.mxu0 %v2178
      %2803 = vmatmul.mubr.bf16.gmra.mxu0 %v2177
      %v2804 = vpop.f32.mrf.mxu0
      %v2805 = vadd.f32 0.0, %v2804
      %v2806 = vpop.f32.mrf.mxu0
      %v2807 = vpop.f32.mrf.mxu0
      %v2808 = vadd.f32 0.0, %v2807
      %v2809 = vpop.f32.mrf.mxu0
      %2810 = vmatprep.mubr.bf16.mxu0 %v2181
      %2811 = vmatmul.mubr.bf16.gmra.mxu0 %v2180
      %v2812 = vpop.f32.mrf.mxu0
      %v2813 = vadd.f32 0.0, %v2812
      %v2814 = vpop.f32.mrf.mxu0
      %v2815 = vpop.f32.mrf.mxu0
      %v2816 = vadd.f32 0.0, %v2815
      %v2817 = vpop.f32.mrf.mxu0
      %2818 = vmatprep.mubr.bf16.mxu0 %v2184
      %2819 = vmatmul.mubr.bf16.gmra.mxu0 %v2183
      %v2820 = vpop.f32.mrf.mxu0
      %v2821 = vadd.f32 0.0, %v2820
      %v2822 = vpop.f32.mrf.mxu0
      %v2823 = vpop.f32.mrf.mxu0
      %v2824 = vadd.f32 0.0, %v2823
      %v2825 = vpop.f32.mrf.mxu0
      %2826 = vmatprep.mubr.bf16.mxu0 %v2187
      %2827 = vmatmul.mubr.bf16.gmra.mxu0 %v2186
      %v2828 = vpop.f32.mrf.mxu0
      %v2829 = vadd.f32 0.0, %v2828
      %v2830 = vpop.f32.mrf.mxu0
      %v2831 = vpop.f32.mrf.mxu0
      %v2832 = vadd.f32 0.0, %v2831
      %v2833 = vpop.f32.mrf.mxu0
      %2834 = vmatprep.mubr.bf16.mxu0 %v2190
      %2835 = vmatmul.mubr.bf16.gmra.mxu0 %v2189
      %v2836 = vpop.f32.mrf.mxu0
      %v2837 = vadd.f32 0.0, %v2836
      %v2838 = vpop.f32.mrf.mxu0
      %v2839 = vpop.f32.mrf.mxu0
      %v2840 = vadd.f32 0.0, %v2839
      %v2841 = vpop.f32.mrf.mxu0
      %2842 = vmatprep.mubr.bf16.mxu0 %v2193
      %2843 = vmatmul.mubr.bf16.gmra.mxu0 %v2192
      %v2844 = vpop.f32.mrf.mxu0
      %v2845 = vadd.f32 0.0, %v2844
      %v2846 = vpop.f32.mrf.mxu0
      %v2847 = vpop.f32.mrf.mxu0
      %v2848 = vadd.f32 0.0, %v2847
      %v2849 = vpop.f32.mrf.mxu0
      %2850 = vmatprep.mubr.bf16.mxu0 %v2196
      %2851 = vmatmul.mubr.bf16.gmra.mxu0 %v2195
      %v2852 = vpop.f32.mrf.mxu0
      %v2853 = vadd.f32 0.0, %v2852
      %v2854 = vpop.f32.mrf.mxu0
      %v2855 = vpop.f32.mrf.mxu0
      %v2856 = vadd.f32 0.0, %v2855
      %v2857 = vpop.f32.mrf.mxu0
      %2858 = vmatprep.mubr.bf16.mxu0 %v2199
      %2859 = vmatmul.mubr.bf16.gmra.mxu0 %v2198
      %v2860 = vpop.f32.mrf.mxu0
      %v2861 = vadd.f32 0.0, %v2860
      %v2862 = vpop.f32.mrf.mxu0
      %v2863 = vpop.f32.mrf.mxu0
      %v2864 = vadd.f32 0.0, %v2863
      %v2865 = vpop.f32.mrf.mxu0
      %2866 = vmatprep.mubr.bf16.mxu0 %v2202
      %2867 = vmatmul.mubr.bf16.gmra.mxu0 %v2201
      %v2868 = vpop.f32.mrf.mxu0
      %v2869 = vadd.f32 0.0, %v2868
      %v2870 = vpop.f32.mrf.mxu0
      %v2871 = vpop.f32.mrf.mxu0
      %v2872 = vadd.f32 0.0, %v2871
      %v2873 = vpop.f32.mrf.mxu0
      %2874 = vmatprep.mubr.bf16.mxu0 %v2205
      %2875 = vmatmul.mubr.bf16.gmra.mxu0 %v2204
      %v2876 = vpop.f32.mrf.mxu0
      %v2877 = vadd.f32 0.0, %v2876
      %v2878 = vpop.f32.mrf.mxu0
      %v2879 = vpop.f32.mrf.mxu0
      %v2880 = vadd.f32 0.0, %v2879
      %v2881 = vpop.f32.mrf.mxu0
      %2882 = vmatprep.mubr.bf16.mxu0 %v2208
      %2883 = vmatmul.mubr.bf16.gmra.mxu0 %v2207
      %v2884 = vpop.f32.mrf.mxu0
      %v2885 = vadd.f32 0.0, %v2884
      %v2886 = vpop.f32.mrf.mxu0
      %v2887 = vpop.f32.mrf.mxu0
      %v2888 = vadd.f32 0.0, %v2887
      %v2889 = vpop.f32.mrf.mxu0
      %2890 = vmatprep.mubr.bf16.mxu0 %v2211
      %2891 = vmatmul.mubr.bf16.gmra.mxu0 %v2210
      %v2892 = vpop.f32.mrf.mxu0
      %v2893 = vadd.f32 0.0, %v2892
      %v2894 = vpop.f32.mrf.mxu0
      %v2895 = vpop.f32.mrf.mxu0
      %v2896 = vadd.f32 0.0, %v2895
      %v2897 = vpop.f32.mrf.mxu0
      %2898 = vmatprep.mubr.bf16.mxu0 %v2214
      %2899 = vmatmul.mubr.bf16.gmra.mxu0 %v2213
      %v2900 = vpop.f32.mrf.mxu0
      %v2901 = vadd.f32 0.0, %v2900
      %v2902 = vpop.f32.mrf.mxu0
      %v2903 = vpop.f32.mrf.mxu0
      %v2904 = vadd.f32 0.0, %v2903
      %v2905 = vpop.f32.mrf.mxu0
      %2906 = vmatprep.mubr.bf16.mxu0 %v2217
      %2907 = vmatmul.mubr.bf16.gmra.mxu0 %v2216
      %v2908 = vpop.f32.mrf.mxu0
      %v2909 = vadd.f32 0.0, %v2908
      %v2910 = vpop.f32.mrf.mxu0
      %v2911 = vpop.f32.mrf.mxu0
      %v2912 = vadd.f32 0.0, %v2911
      %v2913 = vpop.f32.mrf.mxu0
      %2914 = vmatprep.mubr.bf16.mxu0 %v2220
      %2915 = vmatmul.mubr.bf16.gmra.mxu0 %v2219
      %v2916 = vpop.f32.mrf.mxu0
      %v2917 = vadd.f32 0.0, %v2916
      %v2918 = vpop.f32.mrf.mxu0
      %v2919 = vpop.f32.mrf.mxu0
      %v2920 = vadd.f32 0.0, %v2919
      %v2921 = vpop.f32.mrf.mxu0
      %2922 = vmatprep.mubr.bf16.mxu0 %v2223
      %2923 = vmatmul.mubr.bf16.gmra.mxu0 %v2222
      %v2924 = vpop.f32.mrf.mxu0
      %v2925 = vadd.f32 0.0, %v2924
      %v2926 = vpop.f32.mrf.mxu0
      %v2927 = vpop.f32.mrf.mxu0
      %v2928 = vadd.f32 0.0, %v2927
      %v2929 = vpop.f32.mrf.mxu0
      %2930 = vmatprep.mubr.bf16.mxu0 %v2226
      %2931 = vmatmul.mubr.bf16.gmra.mxu0 %v2225
      %v2932 = vpop.f32.mrf.mxu0
      %v2933 = vadd.f32 0.0, %v2932
      %v2934 = vpop.f32.mrf.mxu0
      %v2935 = vpop.f32.mrf.mxu0
      %v2936 = vadd.f32 0.0, %v2935
      %v2937 = vpop.f32.mrf.mxu0
      %2938 = vdwg.mxu0
      %2939 = vmatprep.subr.bf16.mxu0 0
      %2940 = vmatpush1.bf16.msra.mxu0 0
      %2941 = vmatprep.subr.bf16.mxu0 0
      %2942 = vmatpush1.bf16.msra.mxu0 0
      %2943 = vmatprep.subr.bf16.mxu0 0
      %2944 = vmatpush1.bf16.msra.mxu0 0
      %2945 = vmatprep.subr.bf16.mxu0 0
      %2946 = vmatpush1.bf16.msra.mxu0 0
      %2947 = vmatprep.subr.bf16.mxu0 0
      %2948 = vmatpush1.bf16.msra.mxu0 0
      %2949 = vmatprep.subr.bf16.mxu0 0
      %2950 = vmatpush1.bf16.msra.mxu0 0
      %2951 = vmatprep.subr.bf16.mxu0 0
      %2952 = vmatpush1.bf16.msra.mxu0 0
      %2953 = vmatprep.subr.bf16.mxu0 0
      %2954 = vmatpush1.bf16.msra.mxu0 %v2769
      %2955 = vmatprep.subr.bf16.mxu0 0
      %2956 = vmatpush2.bf16.msra.mxu0 0
      %2957 = vmatprep.subr.bf16.mxu0 0
      %2958 = vmatpush2.bf16.msra.mxu0 0
      %2959 = vmatprep.subr.bf16.mxu0 0
      %2960 = vmatpush2.bf16.msra.mxu0 0
      %2961 = vmatprep.subr.bf16.mxu0 0
      %2962 = vmatpush2.bf16.msra.mxu0 0
      %2963 = vmatprep.subr.bf16.mxu0 0
      %2964 = vmatpush2.bf16.msra.mxu0 0
      %2965 = vmatprep.subr.bf16.mxu0 0
      %2966 = vmatpush2.bf16.msra.mxu0 0
      %2967 = vmatprep.subr.bf16.mxu0 0
      %2968 = vmatpush2.bf16.msra.mxu0 0
      %2969 = vmatprep.subr.bf16.mxu0 0
      %2970 = vmatpush2.bf16.msra.mxu0 0
      %2971 = vmatprep.mubr.bf16.mxu0 0
      %2972 = vmatmul.mubr.bf16.gmra.mxu0 %v2365
      %v2973 = vpop.f32.mrf.mxu0
      %v2974 = vadd.f32 %v2805, %v2973
      %v2975 = vpop.f32.mrf.mxu0
      %v2976 = vpop.f32.mrf.mxu0
      %v2977 = vadd.f32 %v2808, %v2976
      %v2978 = vpop.f32.mrf.mxu0
      %2979 = vmatprep.mubr.bf16.mxu0 0
      %2980 = vmatmul.mubr.bf16.gmra.mxu0 %v2368
      %v2981 = vpop.f32.mrf.mxu0
      %v2982 = vadd.f32 %v2813, %v2981
      %v2983 = vpop.f32.mrf.mxu0
      %v2984 = vpop.f32.mrf.mxu0
      %v2985 = vadd.f32 %v2816, %v2984
      %v2986 = vpop.f32.mrf.mxu0
      %2987 = vmatprep.mubr.bf16.mxu0 0
      %2988 = vmatmul.mubr.bf16.gmra.mxu0 %v2371
      %v2989 = vpop.f32.mrf.mxu0
      %v2990 = vadd.f32 %v2821, %v2989
      %v2991 = vpop.f32.mrf.mxu0
      %v2992 = vpop.f32.mrf.mxu0
      %v2993 = vadd.f32 %v2824, %v2992
      %v2994 = vpop.f32.mrf.mxu0
      %2995 = vmatprep.mubr.bf16.mxu0 0
      %2996 = vmatmul.mubr.bf16.gmra.mxu0 %v2374
      %v2997 = vpop.f32.mrf.mxu0
      %v2998 = vadd.f32 %v2829, %v2997
      %v2999 = vpop.f32.mrf.mxu0
      %v3000 = vpop.f32.mrf.mxu0
      %v3001 = vadd.f32 %v2832, %v3000
      %v3002 = vpop.f32.mrf.mxu0
      %3003 = vmatprep.mubr.bf16.mxu0 0
      %3004 = vmatmul.mubr.bf16.gmra.mxu0 %v2377
      %v3005 = vpop.f32.mrf.mxu0
      %v3006 = vadd.f32 %v2837, %v3005
      %v3007 = vpop.f32.mrf.mxu0
      %v3008 = vpop.f32.mrf.mxu0
      %v3009 = vadd.f32 %v2840, %v3008
      %v3010 = vpop.f32.mrf.mxu0
      %3011 = vmatprep.mubr.bf16.mxu0 0
      %3012 = vmatmul.mubr.bf16.gmra.mxu0 %v2380
      %v3013 = vpop.f32.mrf.mxu0
      %v3014 = vadd.f32 %v2845, %v3013
      %v3015 = vpop.f32.mrf.mxu0
      %v3016 = vpop.f32.mrf.mxu0
      %v3017 = vadd.f32 %v2848, %v3016
      %v3018 = vpop.f32.mrf.mxu0
      %3019 = vmatprep.mubr.bf16.mxu0 0
      %3020 = vmatmul.mubr.bf16.gmra.mxu0 %v2383
      %v3021 = vpop.f32.mrf.mxu0
      %v3022 = vadd.f32 %v2853, %v3021
      %v3023 = vpop.f32.mrf.mxu0
      %v3024 = vpop.f32.mrf.mxu0
      %v3025 = vadd.f32 %v2856, %v3024
      %v3026 = vpop.f32.mrf.mxu0
      %3027 = vmatprep.mubr.bf16.mxu0 0
      %3028 = vmatmul.mubr.bf16.gmra.mxu0 %v2386
      %v3029 = vpop.f32.mrf.mxu0
      %v3030 = vadd.f32 %v2861, %v3029
      %v3031 = vpop.f32.mrf.mxu0
      %v3032 = vpop.f32.mrf.mxu0
      %v3033 = vadd.f32 %v2864, %v3032
      %v3034 = vpop.f32.mrf.mxu0
      %3035 = vmatprep.mubr.bf16.mxu0 0
      %3036 = vmatmul.mubr.bf16.gmra.mxu0 %v2389
      %v3037 = vpop.f32.mrf.mxu0
      %v3038 = vadd.f32 %v2869, %v3037
      %v3039 = vpop.f32.mrf.mxu0
      %v3040 = vpop.f32.mrf.mxu0
      %v3041 = vadd.f32 %v2872, %v3040
      %v3042 = vpop.f32.mrf.mxu0
      %3043 = vmatprep.mubr.bf16.mxu0 0
      %3044 = vmatmul.mubr.bf16.gmra.mxu0 %v2392
      %v3045 = vpop.f32.mrf.mxu0
      %v3046 = vadd.f32 %v2877, %v3045
      %v3047 = vpop.f32.mrf.mxu0
      %v3048 = vpop.f32.mrf.mxu0
      %v3049 = vadd.f32 %v2880, %v3048
      %v3050 = vpop.f32.mrf.mxu0
      %3051 = vmatprep.mubr.bf16.mxu0 0
      %3052 = vmatmul.mubr.bf16.gmra.mxu0 %v2395
      %v3053 = vpop.f32.mrf.mxu0
      %v3054 = vadd.f32 %v2885, %v3053
      %v3055 = vpop.f32.mrf.mxu0
      %v3056 = vpop.f32.mrf.mxu0
      %v3057 = vadd.f32 %v2888, %v3056
      %v3058 = vpop.f32.mrf.mxu0
      %3059 = vmatprep.mubr.bf16.mxu0 0
      %3060 = vmatmul.mubr.bf16.gmra.mxu0 %v2398
      %v3061 = vpop.f32.mrf.mxu0
      %v3062 = vadd.f32 %v2893, %v3061
      %v3063 = vpop.f32.mrf.mxu0
      %v3064 = vpop.f32.mrf.mxu0
      %v3065 = vadd.f32 %v2896, %v3064
      %v3066 = vpop.f32.mrf.mxu0
      %3067 = vmatprep.mubr.bf16.mxu0 0
      %3068 = vmatmul.mubr.bf16.gmra.mxu0 %v2401
      %v3069 = vpop.f32.mrf.mxu0
      %v3070 = vadd.f32 %v2901, %v3069
      %v3071 = vpop.f32.mrf.mxu0
      %v3072 = vpop.f32.mrf.mxu0
      %v3073 = vadd.f32 %v2904, %v3072
      %v3074 = vpop.f32.mrf.mxu0
      %3075 = vmatprep.mubr.bf16.mxu0 0
      %3076 = vmatmul.mubr.bf16.gmra.mxu0 %v2404
      %v3077 = vpop.f32.mrf.mxu0
      %v3078 = vadd.f32 %v2909, %v3077
      %v3079 = vpop.f32.mrf.mxu0
      %v3080 = vpop.f32.mrf.mxu0
      %v3081 = vadd.f32 %v2912, %v3080
      %v3082 = vpop.f32.mrf.mxu0
      %3083 = vmatprep.mubr.bf16.mxu0 0
      %3084 = vmatmul.mubr.bf16.gmra.mxu0 %v2407
      %v3085 = vpop.f32.mrf.mxu0
      %v3086 = vadd.f32 %v2917, %v3085
      %v3087 = vpop.f32.mrf.mxu0
      %v3088 = vpop.f32.mrf.mxu0
      %v3089 = vadd.f32 %v2920, %v3088
      %v3090 = vpop.f32.mrf.mxu0
      %3091 = vmatprep.mubr.bf16.mxu0 0
      %3092 = vmatmul.mubr.bf16.gmra.mxu0 %v2410
      %v3093 = vpop.f32.mrf.mxu0
      %v3094 = vadd.f32 %v2925, %v3093
      %v3095 = vpop.f32.mrf.mxu0
      %v3096 = vpop.f32.mrf.mxu0
      %v3097 = vadd.f32 %v2928, %v3096
      %v3098 = vpop.f32.mrf.mxu0
      %3099 = vmatprep.mubr.bf16.mxu0 0
      %3100 = vmatmul.mubr.bf16.gmra.mxu0 %v2413
      %v3101 = vpop.f32.mrf.mxu0
      %v3102 = vadd.f32 %v2933, %v3101
      %v3103 = vpop.f32.mrf.mxu0
      %v3104 = vpop.f32.mrf.mxu0
      %v3105 = vadd.f32 %v2936, %v3104
      %v3106 = vpop.f32.mrf.mxu0
      %3107 = vdwg.mxu0
      %v3108 = vmul.f32 %v2974, 2.0
      %v3109 = vmul.f32 %v2977, 2.0
      %v3110 = vmul.f32 %v2982, 2.0
      %v3111 = vmul.f32 %v2985, 2.0
      %v3112 = vmul.f32 %v2990, 2.0
      %v3113 = vmul.f32 %v2993, 2.0
      %v3114 = vmul.f32 %v2998, 2.0
      %v3115 = vmul.f32 %v3001, 2.0
      %v3116 = vmul.f32 %v3006, 2.0
      %v3117 = vmul.f32 %v3009, 2.0
      %v3118 = vmul.f32 %v3014, 2.0
      %v3119 = vmul.f32 %v3017, 2.0
      %v3120 = vmul.f32 %v3022, 2.0
      %v3121 = vmul.f32 %v3025, 2.0
      %v3122 = vmul.f32 %v3030, 2.0
      %v3123 = vmul.f32 %v3033, 2.0
      %v3124 = vmul.f32 %v3038, 2.0
      %v3125 = vmul.f32 %v3041, 2.0
      %v3126 = vmul.f32 %v3046, 2.0
      %v3127 = vmul.f32 %v3049, 2.0
      %v3128 = vmul.f32 %v3054, 2.0
      %v3129 = vmul.f32 %v3057, 2.0
      %v3130 = vmul.f32 %v3062, 2.0
      %v3131 = vmul.f32 %v3065, 2.0
      %v3132 = vmul.f32 %v3070, 2.0
      %v3133 = vmul.f32 %v3073, 2.0
      %v3134 = vmul.f32 %v3078, 2.0
      %v3135 = vmul.f32 %v3081, 2.0
      %v3136 = vmul.f32 %v3086, 2.0
      %v3137 = vmul.f32 %v3089, 2.0
      %v3138 = vmul.f32 %v3094, 2.0
      %v3139 = vmul.f32 %v3097, 2.0
      %v3140 = vmul.f32 %v3102, 2.0
      %v3141 = vmul.f32 %v3105, 2.0
      %v3142 = vunpack.c.l.bf16 %v1973
      %v3143 = vunpack.c.l.bf16 %v1974
      %v3144 = vunpack.c.l.bf16 %v1975
      %v3145 = vunpack.c.l.bf16 %v1976
      %v3146 = vunpack.c.l.bf16 %v1977
      %v3147 = vunpack.c.l.bf16 %v1978
      %v3148 = vunpack.c.l.bf16 %v1979
      %v3149 = vunpack.c.l.bf16 %v1980
      %v3150 = vunpack.c.l.bf16 %v1981
      %v3151 = vunpack.c.l.bf16 %v1982
      %v3152 = vunpack.c.l.bf16 %v1983
      %v3153 = vunpack.c.l.bf16 %v1984
      %v3154 = vunpack.c.l.bf16 %v1985
      %v3155 = vunpack.c.l.bf16 %v1986
      %v3156 = vunpack.c.l.bf16 %v1987
      %v3157 = vunpack.c.l.bf16 %v1988
      %v3158 = vunpack.c.l.bf16 %v1989
      %v3159 = vunpack.c.l.bf16 %v1990
      %v3160 = vunpack.c.l.bf16 %v1991
      %v3161 = vunpack.c.l.bf16 %v1992
      %v3162 = vunpack.c.l.bf16 %v1993
      %v3163 = vunpack.c.l.bf16 %v1994
      %v3164 = vunpack.c.l.bf16 %v1995
      %v3165 = vunpack.c.l.bf16 %v1996
      %v3166 = vunpack.c.l.bf16 %v1997
      %v3167 = vunpack.c.l.bf16 %v1998
      %v3168 = vunpack.c.l.bf16 %v1999
      %v3169 = vunpack.c.l.bf16 %v2000
      %v3170 = vunpack.c.l.bf16 %v2001
      %v3171 = vunpack.c.l.bf16 %v2002
      %v3172 = vunpack.c.l.bf16 %v2003
      %v3173 = vunpack.c.l.bf16 %v2004
      %v3174 = vunpack.c.l.bf16 %v2005
      %v3175 = vunpack.c.l.bf16 %v2006
      %v3176 = vsub.f32 %v3108, %v3142
      %v3177 = vsub.f32 %v3109, %v3143
      %v3178 = vsub.f32 %v3110, %v3144
      %v3179 = vsub.f32 %v3111, %v3145
      %v3180 = vsub.f32 %v3112, %v3146
      %v3181 = vsub.f32 %v3113, %v3147
      %v3182 = vsub.f32 %v3114, %v3148
      %v3183 = vsub.f32 %v3115, %v3149
      %v3184 = vsub.f32 %v3116, %v3150
      %v3185 = vsub.f32 %v3117, %v3151
      %v3186 = vsub.f32 %v3118, %v3152
      %v3187 = vsub.f32 %v3119, %v3153
      %v3188 = vsub.f32 %v3120, %v3154
      %v3189 = vsub.f32 %v3121, %v3155
      %v3190 = vsub.f32 %v3122, %v3156
      %v3191 = vsub.f32 %v3123, %v3157
      %v3192 = vsub.f32 %v3124, %v3158
      %v3193 = vsub.f32 %v3125, %v3159
      %v3194 = vsub.f32 %v3126, %v3160
      %v3195 = vsub.f32 %v3127, %v3161
      %v3196 = vsub.f32 %v3128, %v3162
      %v3197 = vsub.f32 %v3129, %v3163
      %v3198 = vsub.f32 %v3130, %v3164
      %v3199 = vsub.f32 %v3131, %v3165
      %v3200 = vsub.f32 %v3132, %v3166
      %v3201 = vsub.f32 %v3133, %v3167
      %v3202 = vsub.f32 %v3134, %v3168
      %v3203 = vsub.f32 %v3135, %v3169
      %v3204 = vsub.f32 %v3136, %v3170
      %v3205 = vsub.f32 %v3137, %v3171
      %v3206 = vsub.f32 %v3138, %v3172
      %v3207 = vsub.f32 %v3139, %v3173
      %v3208 = vsub.f32 %v3140, %v3174
      %v3209 = vsub.f32 %v3141, %v3175
      %v3210 = vpack.c.bf16 %v3177, %v3176
      %v3211 = vpack.c.bf16 %v3179, %v3178
      %v3212 = vpack.c.bf16 %v3181, %v3180
      %v3213 = vpack.c.bf16 %v3183, %v3182
      %v3214 = vpack.c.bf16 %v3185, %v3184
      %v3215 = vpack.c.bf16 %v3187, %v3186
      %v3216 = vpack.c.bf16 %v3189, %v3188
      %v3217 = vpack.c.bf16 %v3191, %v3190
      %v3218 = vpack.c.bf16 %v3193, %v3192
      %v3219 = vpack.c.bf16 %v3195, %v3194
      %v3220 = vpack.c.bf16 %v3197, %v3196
      %v3221 = vpack.c.bf16 %v3199, %v3198
      %v3222 = vpack.c.bf16 %v3201, %v3200
      %v3223 = vpack.c.bf16 %v3203, %v3202
      %v3224 = vpack.c.bf16 %v3205, %v3204
      %v3225 = vpack.c.bf16 %v3207, %v3206
      %v3226 = vpack.c.bf16 %v3209, %v3208
      %3244 = vrot.lane.b32.xlu0 %v2753, 16
      %v3245 = vpop.permute.xlu0 %3244
      %3246 = vrot.lane.b32.xlu0 %v2754, 16
      %v3247 = vpop.permute.xlu0 %3246
      %3248 = vrot.lane.b32.xlu0 %v2755, 16
      %v3249 = vpop.permute.xlu0 %3248
      %3250 = vrot.lane.b32.xlu0 %v2756, 16
      %v3251 = vpop.permute.xlu0 %3250
      %3252 = vrot.lane.b32.xlu0 %v2757, 16
      %v3253 = vpop.permute.xlu0 %3252
      %3254 = vrot.lane.b32.xlu0 %v2758, 16
      %v3255 = vpop.permute.xlu0 %3254
      %3256 = vrot.lane.b32.xlu0 %v2759, 16
      %v3257 = vpop.permute.xlu0 %3256
      %3258 = vrot.lane.b32.xlu0 %v2760, 16
      %v3259 = vpop.permute.xlu0 %3258
      %3260 = vrot.lane.b32.xlu0 %v2761, 16
      %v3261 = vpop.permute.xlu0 %3260
      %3262 = vrot.lane.b32.xlu0 %v2762, 16
      %v3263 = vpop.permute.xlu0 %3262
      %3264 = vrot.lane.b32.xlu0 %v2763, 16
      %v3265 = vpop.permute.xlu0 %3264
      %3266 = vrot.lane.b32.xlu0 %v2764, 16
      %v3267 = vpop.permute.xlu0 %3266
      %3268 = vrot.lane.b32.xlu0 %v2765, 16
      %v3269 = vpop.permute.xlu0 %3268
      %3270 = vrot.lane.b32.xlu0 %v2766, 16
      %v3271 = vpop.permute.xlu0 %3270
      %3272 = vrot.lane.b32.xlu0 %v2767, 16
      %v3273 = vpop.permute.xlu0 %3272
      %3274 = vrot.lane.b32.xlu0 %v2768, 16
      %v3275 = vpop.permute.xlu0 %3274
      %3276 = vrot.lane.b32.xlu0 %v2769, 16
      %v3277 = vpop.permute.xlu0 %3276
      %3295 = vrot.lane.b32.xlu0 %v3210, 32
      %v3296 = vpop.permute.xlu0 %3295
      %3297 = vrot.lane.b32.xlu0 %v3211, 32
      %v3298 = vpop.permute.xlu0 %3297
      %3299 = vrot.lane.b32.xlu0 %v3212, 32
      %v3300 = vpop.permute.xlu0 %3299
      %3301 = vrot.lane.b32.xlu0 %v3213, 32
      %v3302 = vpop.permute.xlu0 %3301
      %3303 = vrot.lane.b32.xlu0 %v3214, 32
      %v3304 = vpop.permute.xlu0 %3303
      %3305 = vrot.lane.b32.xlu0 %v3215, 32
      %v3306 = vpop.permute.xlu0 %3305
      %3307 = vrot.lane.b32.xlu0 %v3216, 32
      %v3308 = vpop.permute.xlu0 %3307
      %3309 = vrot.lane.b32.xlu0 %v3217, 32
      %v3310 = vpop.permute.xlu0 %3309
      %3311 = vrot.lane.b32.xlu0 %v3218, 32
      %v3312 = vpop.permute.xlu0 %3311
      %3313 = vrot.lane.b32.xlu0 %v3219, 32
      %v3314 = vpop.permute.xlu0 %3313
      %3315 = vrot.lane.b32.xlu0 %v3220, 32
      %v3316 = vpop.permute.xlu0 %3315
      %3317 = vrot.lane.b32.xlu0 %v3221, 32
      %v3318 = vpop.permute.xlu0 %3317
      %3319 = vrot.lane.b32.xlu0 %v3222, 32
      %v3320 = vpop.permute.xlu0 %3319
      %3321 = vrot.lane.b32.xlu0 %v3223, 32
      %v3322 = vpop.permute.xlu0 %3321
      %3323 = vrot.lane.b32.xlu0 %v3224, 32
      %v3324 = vpop.permute.xlu0 %3323
      %3325 = vrot.lane.b32.xlu0 %v3225, 32
      %v3326 = vpop.permute.xlu0 %3325
      %3327 = vrot.lane.b32.xlu0 %v3226, 32
      %v3328 = vpop.permute.xlu0 %3327
      %v3331 = vsel %vm851, %v2330, %v3245
      %v3334 = vsel %vm851, %v2331, %v3247
      %v3337 = vsel %vm851, %v2332, %v3249
      %v3340 = vsel %vm851, %v2333, %v3251
      %v3343 = vsel %vm851, %v2334, %v3253
      %v3346 = vsel %vm851, %v2335, %v3255
      %v3349 = vsel %vm851, %v2336, %v3257
      %v3352 = vsel %vm851, %v2337, %v3259
      %v3355 = vsel %vm851, %v2338, %v3261
      %v3358 = vsel %vm851, %v2339, %v3263
      %v3361 = vsel %vm851, %v2340, %v3265
      %v3364 = vsel %vm851, %v2341, %v3267
      %v3367 = vsel %vm851, %v2342, %v3269
      %v3370 = vsel %vm851, %v2343, %v3271
      %v3373 = vsel %vm851, %v2344, %v3273
      %v3376 = vsel %vm851, %v2345, %v3275
      %v3379 = vsel %vm851, %v2346, %v3277
      %v3381 = vsel %vm1868, %v3331, %v3296
      %v3383 = vsel %vm1868, %v3334, %v3298
      %v3385 = vsel %vm1868, %v3337, %v3300
      %v3387 = vsel %vm1868, %v3340, %v3302
      %v3389 = vsel %vm1868, %v3343, %v3304
      %v3391 = vsel %vm1868, %v3346, %v3306
      %v3393 = vsel %vm1868, %v3349, %v3308
      %v3395 = vsel %vm1868, %v3352, %v3310
      %v3397 = vsel %vm1868, %v3355, %v3312
      %v3399 = vsel %vm1868, %v3358, %v3314
      %v3401 = vsel %vm1868, %v3361, %v3316
      %v3403 = vsel %vm1868, %v3364, %v3318
      %v3405 = vsel %vm1868, %v3367, %v3320
      %v3407 = vsel %vm1868, %v3370, %v3322
      %v3409 = vsel %vm1868, %v3373, %v3324
      %v3411 = vsel %vm1868, %v3376, %v3326
      %v3413 = vsel %vm1868, %v3379, %v3328
      %v3414 = vld [vmem:[%s2] sm:$0xf]
      %v3415 = vld [vmem:[%s2 + $0x4] sm:$0xf]
      %v3416 = vld [vmem:[%s2 + $0x8] sm:$0xf]
      %v3417 = vld [vmem:[%s2 + $0xc] sm:$0xf]
      %v3418 = vld [vmem:[%s2 + $0x10] sm:$0xf]
      %v3419 = vld [vmem:[%s2 + $0x14] sm:$0xf]
      %v3420 = vld [vmem:[%s3] sm:$0x1]
      %v3422 = vlaneseq
      %v3423 = vshrl.u32 %v3422, 7
      %v3424 = vsub.s32 0, %v3423
      %v3425 = vrot.slane %v3420, %v3424
      %v3433 = vunpack.c.l.b16 %v3414
      %v3434 = vunpack.c.l.b16 %v3415
      %v3435 = vunpack.c.l.b16 %v3416
      %v3436 = vunpack.c.l.b16 %v3417
      %v3437 = vunpack.c.l.b16 %v3418
      %v3438 = vunpack.c.l.b16 %v3419
      %v3439 = vpack.c.b16 %v3434, %v3433
      %v3440 = vpack.c.b16 %v3436, %v3435
      %v3441 = vpack.c.b16 %v3438, %v3437
      %vm3445 = vcmask 392192
      %v3446 = vsel %vm3445, %v1870, 0
      %v3448 = vsel %vm3445, %v1872, 0
      %v3450 = vsel %vm3445, %v1874, 0
      %v3452 = vsel %vm3445, %v1876, 0
      %v3454 = vsel %vm3445, %v1878, 0
      %v3456 = vsel %vm3445, %v1880, 0
      %v3458 = vsel %vm3445, %v1882, 0
      %v3460 = vsel %vm3445, %v1884, 0
      %v3462 = vsel %vm3445, %v1886, 0
      %v3464 = vsel %vm3445, %v1888, 0
      %v3466 = vsel %vm3445, %v1890, 0
      %v3468 = vsel %vm3445, %v1892, 0
      %v3470 = vsel %vm3445, %v1894, 0
      %v3472 = vsel %vm3445, %v1896, 0
      %v3474 = vsel %vm3445, %v1898, 0
      %v3476 = vsel %vm3445, %v1900, 0
      %v3478 = vsel %vm3445, %v1902, 0
      %v3480 = vsel %vm3445, %v3381, 0
      %v3482 = vsel %vm3445, %v3383, 0
      %v3484 = vsel %vm3445, %v3385, 0
      %v3486 = vsel %vm3445, %v3387, 0
      %v3488 = vsel %vm3445, %v3389, 0
      %v3490 = vsel %vm3445, %v3391, 0
      %v3492 = vsel %vm3445, %v3393, 0
      %v3494 = vsel %vm3445, %v3395, 0
      %v3496 = vsel %vm3445, %v3397, 0
      %v3498 = vsel %vm3445, %v3399, 0
      %v3500 = vsel %vm3445, %v3401, 0
      %v3502 = vsel %vm3445, %v3403, 0
      %v3504 = vsel %vm3445, %v3405, 0
      %v3506 = vsel %vm3445, %v3407, 0
      %v3508 = vsel %vm3445, %v3409, 0
      %v3510 = vsel %vm3445, %v3411, 0
      %v3512 = vsel %vm3445, %v3413, 0
      %3514 = vmatprep.subr.bf16.mxu0 0
      %3515 = vmatpush1.bf16.msra.mxu0 0
      %3516 = vmatprep.subr.bf16.mxu0 0
      %3517 = vmatpush1.bf16.msra.mxu0 0
      %3518 = vmatprep.subr.bf16.mxu0 0
      %3519 = vmatpush1.bf16.msra.mxu0 0
      %3520 = vmatprep.subr.bf16.mxu0 0
      %3521 = vmatpush1.bf16.msra.mxu0 0
      %3522 = vmatprep.subr.bf16.mxu0 0
      %3523 = vmatpush1.bf16.msra.mxu0 0
      %3524 = vmatprep.subr.bf16.mxu0 0
      %3525 = vmatpush1.bf16.msra.mxu0 %v3441
      %3526 = vmatprep.subr.bf16.mxu0 0
      %3527 = vmatpush1.bf16.msra.mxu0 %v3440
      %3528 = vmatprep.subr.bf16.mxu0 0
      %3529 = vmatpush1.bf16.msra.mxu0 %v3439
      %3530 = vmatprep.subr.bf16.mxu0 0
      %3531 = vmatpush2.bf16.msra.mxu0 0
      %3532 = vmatprep.subr.bf16.mxu0 0
      %3533 = vmatpush2.bf16.msra.mxu0 0
      %3534 = vmatprep.subr.bf16.mxu0 0
      %3535 = vmatpush2.bf16.msra.mxu0 0
      %3536 = vmatprep.subr.bf16.mxu0 0
      %3537 = vmatpush2.bf16.msra.mxu0 0
      %3538 = vmatprep.subr.bf16.mxu0 0
      %3539 = vmatpush2.bf16.msra.mxu0 0
      %3540 = vmatprep.subr.bf16.mxu0 0
      %3541 = vmatpush2.bf16.msra.mxu0 0
      %3542 = vmatprep.subr.bf16.mxu0 0
      %3543 = vmatpush2.bf16.msra.mxu0 0
      %3544 = vmatprep.subr.bf16.mxu0 0
      %3545 = vmatpush2.bf16.msra.mxu0 0
      %3546 = vmatprep.mubr.bf16.mxu0 0
      %3547 = vmatmul.mubr.bf16.gmra.mxu0 %v3446
      %v3548 = vpop.f32.mrf.mxu0
      %v3549 = vadd.f32 %v3425, %v3548
      %v3550 = vpop.f32.mrf.mxu0
      %v3551 = vpop.f32.mrf.mxu0
      %v3552 = vadd.f32 %v3425, %v3551
      %v3553 = vpop.f32.mrf.mxu0
      %3554 = vmatprep.mubr.bf16.mxu0 0
      %3555 = vmatmul.mubr.bf16.gmra.mxu0 %v3448
      %v3556 = vpop.f32.mrf.mxu0
      %v3557 = vadd.f32 %v3425, %v3556
      %v3558 = vpop.f32.mrf.mxu0
      %v3559 = vpop.f32.mrf.mxu0
      %v3560 = vadd.f32 %v3425, %v3559
      %v3561 = vpop.f32.mrf.mxu0
      %3562 = vmatprep.mubr.bf16.mxu0 0
      %3563 = vmatmul.mubr.bf16.gmra.mxu0 %v3450
      %v3564 = vpop.f32.mrf.mxu0
      %v3565 = vadd.f32 %v3425, %v3564
      %v3566 = vpop.f32.mrf.mxu0
      %v3567 = vpop.f32.mrf.mxu0
      %v3568 = vadd.f32 %v3425, %v3567
      %v3569 = vpop.f32.mrf.mxu0
      %3570 = vmatprep.mubr.bf16.mxu0 0
      %3571 = vmatmul.mubr.bf16.gmra.mxu0 %v3452
      %v3572 = vpop.f32.mrf.mxu0
      %v3573 = vadd.f32 %v3425, %v3572
      %v3574 = vpop.f32.mrf.mxu0
      %v3575 = vpop.f32.mrf.mxu0
      %v3576 = vadd.f32 %v3425, %v3575
      %v3577 = vpop.f32.mrf.mxu0
      %3578 = vmatprep.mubr.bf16.mxu0 0
      %3579 = vmatmul.mubr.bf16.gmra.mxu0 %v3454
      %v3580 = vpop.f32.mrf.mxu0
      %v3581 = vadd.f32 %v3425, %v3580
      %v3582 = vpop.f32.mrf.mxu0
      %v3583 = vpop.f32.mrf.mxu0
      %v3584 = vadd.f32 %v3425, %v3583
      %v3585 = vpop.f32.mrf.mxu0
      %3586 = vmatprep.mubr.bf16.mxu0 0
      %3587 = vmatmul.mubr.bf16.gmra.mxu0 %v3456
      %v3588 = vpop.f32.mrf.mxu0
      %v3589 = vadd.f32 %v3425, %v3588
      %v3590 = vpop.f32.mrf.mxu0
      %v3591 = vpop.f32.mrf.mxu0
      %v3592 = vadd.f32 %v3425, %v3591
      %v3593 = vpop.f32.mrf.mxu0
      %3594 = vmatprep.mubr.bf16.mxu0 0
      %3595 = vmatmul.mubr.bf16.gmra.mxu0 %v3458
      %v3596 = vpop.f32.mrf.mxu0
      %v3597 = vadd.f32 %v3425, %v3596
      %v3598 = vpop.f32.mrf.mxu0
      %v3599 = vpop.f32.mrf.mxu0
      %v3600 = vadd.f32 %v3425, %v3599
      %v3601 = vpop.f32.mrf.mxu0
      %3602 = vmatprep.mubr.bf16.mxu0 0
      %3603 = vmatmul.mubr.bf16.gmra.mxu0 %v3460
      %v3604 = vpop.f32.mrf.mxu0
      %v3605 = vadd.f32 %v3425, %v3604
      %v3606 = vpop.f32.mrf.mxu0
      %v3607 = vpop.f32.mrf.mxu0
      %v3608 = vadd.f32 %v3425, %v3607
      %v3609 = vpop.f32.mrf.mxu0
      %3610 = vmatprep.mubr.bf16.mxu0 0
      %3611 = vmatmul.mubr.bf16.gmra.mxu0 %v3462
      %v3612 = vpop.f32.mrf.mxu0
      %v3613 = vadd.f32 %v3425, %v3612
      %v3614 = vpop.f32.mrf.mxu0
      %v3615 = vpop.f32.mrf.mxu0
      %v3616 = vadd.f32 %v3425, %v3615
      %v3617 = vpop.f32.mrf.mxu0
      %3618 = vmatprep.mubr.bf16.mxu0 0
      %3619 = vmatmul.mubr.bf16.gmra.mxu0 %v3464
      %v3620 = vpop.f32.mrf.mxu0
      %v3621 = vadd.f32 %v3425, %v3620
      %v3622 = vpop.f32.mrf.mxu0
      %v3623 = vpop.f32.mrf.mxu0
      %v3624 = vadd.f32 %v3425, %v3623
      %v3625 = vpop.f32.mrf.mxu0
      %3626 = vmatprep.mubr.bf16.mxu0 0
      %3627 = vmatmul.mubr.bf16.gmra.mxu0 %v3466
      %v3628 = vpop.f32.mrf.mxu0
      %v3629 = vadd.f32 %v3425, %v3628
      %v3630 = vpop.f32.mrf.mxu0
      %v3631 = vpop.f32.mrf.mxu0
      %v3632 = vadd.f32 %v3425, %v3631
      %v3633 = vpop.f32.mrf.mxu0
      %3634 = vmatprep.mubr.bf16.mxu0 0
      %3635 = vmatmul.mubr.bf16.gmra.mxu0 %v3468
      %v3636 = vpop.f32.mrf.mxu0
      %v3637 = vadd.f32 %v3425, %v3636
      %v3638 = vpop.f32.mrf.mxu0
      %v3639 = vpop.f32.mrf.mxu0
      %v3640 = vadd.f32 %v3425, %v3639
      %v3641 = vpop.f32.mrf.mxu0
      %3642 = vmatprep.mubr.bf16.mxu0 0
      %3643 = vmatmul.mubr.bf16.gmra.mxu0 %v3470
      %v3644 = vpop.f32.mrf.mxu0
      %v3645 = vadd.f32 %v3425, %v3644
      %v3646 = vpop.f32.mrf.mxu0
      %v3647 = vpop.f32.mrf.mxu0
      %v3648 = vadd.f32 %v3425, %v3647
      %v3649 = vpop.f32.mrf.mxu0
      %3650 = vmatprep.mubr.bf16.mxu0 0
      %3651 = vmatmul.mubr.bf16.gmra.mxu0 %v3472
      %v3652 = vpop.f32.mrf.mxu0
      %v3653 = vadd.f32 %v3425, %v3652
      %v3654 = vpop.f32.mrf.mxu0
      %v3655 = vpop.f32.mrf.mxu0
      %v3656 = vadd.f32 %v3425, %v3655
      %v3657 = vpop.f32.mrf.mxu0
      %3658 = vmatprep.mubr.bf16.mxu0 0
      %3659 = vmatmul.mubr.bf16.gmra.mxu0 %v3474
      %v3660 = vpop.f32.mrf.mxu0
      %v3661 = vadd.f32 %v3425, %v3660
      %v3662 = vpop.f32.mrf.mxu0
      %v3663 = vpop.f32.mrf.mxu0
      %v3664 = vadd.f32 %v3425, %v3663
      %v3665 = vpop.f32.mrf.mxu0
      %3666 = vmatprep.mubr.bf16.mxu0 0
      %3667 = vmatmul.mubr.bf16.gmra.mxu0 %v3476
      %v3668 = vpop.f32.mrf.mxu0
      %v3669 = vadd.f32 %v3425, %v3668
      %v3670 = vpop.f32.mrf.mxu0
      %v3671 = vpop.f32.mrf.mxu0
      %v3672 = vadd.f32 %v3425, %v3671
      %v3673 = vpop.f32.mrf.mxu0
      %3674 = vmatprep.mubr.bf16.mxu0 0
      %3675 = vmatmul.mubr.bf16.gmra.mxu0 %v3478
      %v3676 = vpop.f32.mrf.mxu0
      %v3677 = vadd.f32 %v3425, %v3676
      %v3678 = vpop.f32.mrf.mxu0
      %v3679 = vpop.f32.mrf.mxu0
      %v3680 = vadd.f32 %v3425, %v3679
      %v3681 = vpop.f32.mrf.mxu0
      %3682 = vmatprep.mubr.bf16.mxu0 0
      %3683 = vmatmul.mubr.bf16.gmra.mxu0 %v3480
      %v3684 = vpop.f32.mrf.mxu0
      %v3685 = vadd.f32 %v3425, %v3684
      %v3686 = vpop.f32.mrf.mxu0
      %v3687 = vpop.f32.mrf.mxu0
      %v3688 = vadd.f32 %v3425, %v3687
      %v3689 = vpop.f32.mrf.mxu0
      %3690 = vmatprep.mubr.bf16.mxu0 0
      %3691 = vmatmul.mubr.bf16.gmra.mxu0 %v3482
      %v3692 = vpop.f32.mrf.mxu0
      %v3693 = vadd.f32 %v3425, %v3692
      %v3694 = vpop.f32.mrf.mxu0
      %v3695 = vpop.f32.mrf.mxu0
      %v3696 = vadd.f32 %v3425, %v3695
      %v3697 = vpop.f32.mrf.mxu0
      %3698 = vmatprep.mubr.bf16.mxu0 0
      %3699 = vmatmul.mubr.bf16.gmra.mxu0 %v3484
      %v3700 = vpop.f32.mrf.mxu0
      %v3701 = vadd.f32 %v3425, %v3700
      %v3702 = vpop.f32.mrf.mxu0
      %v3703 = vpop.f32.mrf.mxu0
      %v3704 = vadd.f32 %v3425, %v3703
      %v3705 = vpop.f32.mrf.mxu0
      %3706 = vmatprep.mubr.bf16.mxu0 0
      %3707 = vmatmul.mubr.bf16.gmra.mxu0 %v3486
      %v3708 = vpop.f32.mrf.mxu0
      %v3709 = vadd.f32 %v3425, %v3708
      %v3710 = vpop.f32.mrf.mxu0
      %v3711 = vpop.f32.mrf.mxu0
      %v3712 = vadd.f32 %v3425, %v3711
      %v3713 = vpop.f32.mrf.mxu0
      %3714 = vmatprep.mubr.bf16.mxu0 0
      %3715 = vmatmul.mubr.bf16.gmra.mxu0 %v3488
      %v3716 = vpop.f32.mrf.mxu0
      %v3717 = vadd.f32 %v3425, %v3716
      %v3718 = vpop.f32.mrf.mxu0
      %v3719 = vpop.f32.mrf.mxu0
      %v3720 = vadd.f32 %v3425, %v3719
      %v3721 = vpop.f32.mrf.mxu0
      %3722 = vmatprep.mubr.bf16.mxu0 0
      %3723 = vmatmul.mubr.bf16.gmra.mxu0 %v3490
      %v3724 = vpop.f32.mrf.mxu0
      %v3725 = vadd.f32 %v3425, %v3724
      %v3726 = vpop.f32.mrf.mxu0
      %v3727 = vpop.f32.mrf.mxu0
      %v3728 = vadd.f32 %v3425, %v3727
      %v3729 = vpop.f32.mrf.mxu0
      %3730 = vmatprep.mubr.bf16.mxu0 0
      %3731 = vmatmul.mubr.bf16.gmra.mxu0 %v3492
      %v3732 = vpop.f32.mrf.mxu0
      %v3733 = vadd.f32 %v3425, %v3732
      %v3734 = vpop.f32.mrf.mxu0
      %v3735 = vpop.f32.mrf.mxu0
      %v3736 = vadd.f32 %v3425, %v3735
      %v3737 = vpop.f32.mrf.mxu0
      %3738 = vmatprep.mubr.bf16.mxu0 0
      %3739 = vmatmul.mubr.bf16.gmra.mxu0 %v3494
      %v3740 = vpop.f32.mrf.mxu0
      %v3741 = vadd.f32 %v3425, %v3740
      %v3742 = vpop.f32.mrf.mxu0
      %v3743 = vpop.f32.mrf.mxu0
      %v3744 = vadd.f32 %v3425, %v3743
      %v3745 = vpop.f32.mrf.mxu0
      %3746 = vmatprep.mubr.bf16.mxu0 0
      %3747 = vmatmul.mubr.bf16.gmra.mxu0 %v3496
      %v3748 = vpop.f32.mrf.mxu0
      %v3749 = vadd.f32 %v3425, %v3748
      %v3750 = vpop.f32.mrf.mxu0
      %v3751 = vpop.f32.mrf.mxu0
      %v3752 = vadd.f32 %v3425, %v3751
      %v3753 = vpop.f32.mrf.mxu0
      %3754 = vmatprep.mubr.bf16.mxu0 0
      %3755 = vmatmul.mubr.bf16.gmra.mxu0 %v3498
      %v3756 = vpop.f32.mrf.mxu0
      %v3757 = vadd.f32 %v3425, %v3756
      %v3758 = vpop.f32.mrf.mxu0
      %v3759 = vpop.f32.mrf.mxu0
      %v3760 = vadd.f32 %v3425, %v3759
      %v3761 = vpop.f32.mrf.mxu0
      %3762 = vmatprep.mubr.bf16.mxu0 0
      %3763 = vmatmul.mubr.bf16.gmra.mxu0 %v3500
      %v3764 = vpop.f32.mrf.mxu0
      %v3765 = vadd.f32 %v3425, %v3764
      %v3766 = vpop.f32.mrf.mxu0
      %v3767 = vpop.f32.mrf.mxu0
      %v3768 = vadd.f32 %v3425, %v3767
      %v3769 = vpop.f32.mrf.mxu0
      %3770 = vmatprep.mubr.bf16.mxu0 0
      %3771 = vmatmul.mubr.bf16.gmra.mxu0 %v3502
      %v3772 = vpop.f32.mrf.mxu0
      %v3773 = vadd.f32 %v3425, %v3772
      %v3774 = vpop.f32.mrf.mxu0
      %v3775 = vpop.f32.mrf.mxu0
      %v3776 = vadd.f32 %v3425, %v3775
      %v3777 = vpop.f32.mrf.mxu0
      %3778 = vmatprep.mubr.bf16.mxu0 0
      %3779 = vmatmul.mubr.bf16.gmra.mxu0 %v3504
      %v3780 = vpop.f32.mrf.mxu0
      %v3781 = vadd.f32 %v3425, %v3780
      %v3782 = vpop.f32.mrf.mxu0
      %v3783 = vpop.f32.mrf.mxu0
      %v3784 = vadd.f32 %v3425, %v3783
      %v3785 = vpop.f32.mrf.mxu0
      %3786 = vmatprep.mubr.bf16.mxu0 0
      %3787 = vmatmul.mubr.bf16.gmra.mxu0 %v3506
      %v3788 = vpop.f32.mrf.mxu0
      %v3789 = vadd.f32 %v3425, %v3788
      %v3790 = vpop.f32.mrf.mxu0
      %v3791 = vpop.f32.mrf.mxu0
      %v3792 = vadd.f32 %v3425, %v3791
      %v3793 = vpop.f32.mrf.mxu0
      %3794 = vmatprep.mubr.bf16.mxu0 0
      %3795 = vmatmul.mubr.bf16.gmra.mxu0 %v3508
      %v3796 = vpop.f32.mrf.mxu0
      %v3797 = vadd.f32 %v3425, %v3796
      %v3798 = vpop.f32.mrf.mxu0
      %v3799 = vpop.f32.mrf.mxu0
      %v3800 = vadd.f32 %v3425, %v3799
      %v3801 = vpop.f32.mrf.mxu0
      %3802 = vmatprep.mubr.bf16.mxu0 0
      %3803 = vmatmul.mubr.bf16.gmra.mxu0 %v3510
      %v3804 = vpop.f32.mrf.mxu0
      %v3805 = vadd.f32 %v3425, %v3804
      %v3806 = vpop.f32.mrf.mxu0
      %v3807 = vpop.f32.mrf.mxu0
      %v3808 = vadd.f32 %v3425, %v3807
      %v3809 = vpop.f32.mrf.mxu0
      %3810 = vmatprep.mubr.bf16.mxu0 0
      %3811 = vmatmul.mubr.bf16.gmra.mxu0 %v3512
      %v3812 = vpop.f32.mrf.mxu0
      %v3813 = vadd.f32 %v3425, %v3812
      %v3814 = vpop.f32.mrf.mxu0
      %v3815 = vpop.f32.mrf.mxu0
      %v3816 = vadd.f32 %v3425, %v3815
      %v3817 = vpop.f32.mrf.mxu0
      %3818 = vdwg.mxu0
      %v3819 = vpack.c.bf16 %v3552, %v3549
      %v3820 = vpack.c.bf16 %v3560, %v3557
      %v3821 = vpack.c.bf16 %v3568, %v3565
      %v3822 = vpack.c.bf16 %v3576, %v3573
      %v3823 = vpack.c.bf16 %v3584, %v3581
      %v3824 = vpack.c.bf16 %v3592, %v3589
      %v3825 = vpack.c.bf16 %v3600, %v3597
      %v3826 = vpack.c.bf16 %v3608, %v3605
      %v3827 = vpack.c.bf16 %v3616, %v3613
      %v3828 = vpack.c.bf16 %v3624, %v3621
      %v3829 = vpack.c.bf16 %v3632, %v3629
      %v3830 = vpack.c.bf16 %v3640, %v3637
      %v3831 = vpack.c.bf16 %v3648, %v3645
      %v3832 = vpack.c.bf16 %v3656, %v3653
      %v3833 = vpack.c.bf16 %v3664, %v3661
      %v3834 = vpack.c.bf16 %v3672, %v3669
      %v3835 = vpack.c.bf16 %v3680, %v3677
      %v3836 = vpack.c.bf16 %v3688, %v3685
      %v3837 = vpack.c.bf16 %v3696, %v3693
      %v3838 = vpack.c.bf16 %v3704, %v3701
      %v3839 = vpack.c.bf16 %v3712, %v3709
      %v3840 = vpack.c.bf16 %v3720, %v3717
      %v3841 = vpack.c.bf16 %v3728, %v3725
      %v3842 = vpack.c.bf16 %v3736, %v3733
      %v3843 = vpack.c.bf16 %v3744, %v3741
      %v3844 = vpack.c.bf16 %v3752, %v3749
      %v3845 = vpack.c.bf16 %v3760, %v3757
      %v3846 = vpack.c.bf16 %v3768, %v3765
      %v3847 = vpack.c.bf16 %v3776, %v3773
      %v3848 = vpack.c.bf16 %v3784, %v3781
      %v3849 = vpack.c.bf16 %v3792, %v3789
      %v3850 = vpack.c.bf16 %v3800, %v3797
      %v3851 = vpack.c.bf16 %v3808, %v3805
      %v3852 = vpack.c.bf16 %v3816, %v3813
      %v3853 = vld [vmem:[%s4] sm:$0xf]
      %v3854 = vld [vmem:[%s4 + $0x4] sm:$0xf]
      %v3855 = vld [vmem:[%s4 + $0x8] sm:$0xf]
      %v3856 = vld [vmem:[%s4 + $0xc] sm:$0xf]
      %v3861 = vunpack.c.l.b16 %v3853
      %v3862 = vunpack.c.l.b16 %v3854
      %v3863 = vunpack.c.l.b16 %v3855
      %v3864 = vunpack.c.l.b16 %v3856
      %v3865 = vpack.c.b16 %v3862, %v3861
      %v3866 = vpack.c.b16 %v3864, %v3863
      %v3870 = vsel %vm1868, %v3819, 0
      %v3873 = vsel %vm1868, %v3820, 0
      %v3876 = vsel %vm1868, %v3821, 0
      %v3879 = vsel %vm1868, %v3822, 0
      %v3882 = vsel %vm1868, %v3823, 0
      %v3885 = vsel %vm1868, %v3824, 0
      %v3888 = vsel %vm1868, %v3825, 0
      %v3891 = vsel %vm1868, %v3826, 0
      %v3894 = vsel %vm1868, %v3827, 0
      %v3897 = vsel %vm1868, %v3828, 0
      %v3900 = vsel %vm1868, %v3829, 0
      %v3903 = vsel %vm1868, %v3830, 0
      %v3906 = vsel %vm1868, %v3831, 0
      %v3909 = vsel %vm1868, %v3832, 0
      %v3912 = vsel %vm1868, %v3833, 0
      %v3915 = vsel %vm1868, %v3834, 0
      %v3918 = vsel %vm1868, %v3835, 0
      %v3921 = vsel %vm1868, %v3836, 0
      %v3924 = vsel %vm1868, %v3837, 0
      %v3927 = vsel %vm1868, %v3838, 0
      %v3930 = vsel %vm1868, %v3839, 0
      %v3933 = vsel %vm1868, %v3840, 0
      %v3936 = vsel %vm1868, %v3841, 0
      %v3939 = vsel %vm1868, %v3842, 0
      %v3942 = vsel %vm1868, %v3843, 0
      %v3945 = vsel %vm1868, %v3844, 0
      %v3948 = vsel %vm1868, %v3845, 0
      %v3951 = vsel %vm1868, %v3846, 0
      %v3954 = vsel %vm1868, %v3847, 0
      %v3957 = vsel %vm1868, %v3848, 0
      %v3960 = vsel %vm1868, %v3849, 0
      %v3963 = vsel %vm1868, %v3850, 0
      %v3966 = vsel %vm1868, %v3851, 0
      %v3969 = vsel %vm1868, %v3852, 0
      %3971 = vmatprep.subr.bf16.mxu0 0
      %3972 = vmatpush1.bf16.msra.mxu0 0
      %3973 = vmatprep.subr.bf16.mxu0 0
      %3974 = vmatpush1.bf16.msra.mxu0 0
      %3975 = vmatprep.subr.bf16.mxu0 0
      %3976 = vmatpush1.bf16.msra.mxu0 0
      %3977 = vmatprep.subr.bf16.mxu0 0
      %3978 = vmatpush1.bf16.msra.mxu0 0
      %3979 = vmatprep.subr.bf16.mxu0 0
      %3980 = vmatpush1.bf16.msra.mxu0 0
      %3981 = vmatprep.subr.bf16.mxu0 0
      %3982 = vmatpush1.bf16.msra.mxu0 0
      %3983 = vmatprep.subr.bf16.mxu0 0
      %3984 = vmatpush1.bf16.msra.mxu0 %v3866
      %3985 = vmatprep.subr.bf16.mxu0 0
      %3986 = vmatpush1.bf16.msra.mxu0 %v3865
      %3987 = vmatprep.subr.bf16.mxu0 0
      %3988 = vmatpush2.bf16.msra.mxu0 0
      %3989 = vmatprep.subr.bf16.mxu0 0
      %3990 = vmatpush2.bf16.msra.mxu0 0
      %3991 = vmatprep.subr.bf16.mxu0 0
      %3992 = vmatpush2.bf16.msra.mxu0 0
      %3993 = vmatprep.subr.bf16.mxu0 0
      %3994 = vmatpush2.bf16.msra.mxu0 0
      %3995 = vmatprep.subr.bf16.mxu0 0
      %3996 = vmatpush2.bf16.msra.mxu0 0
      %3997 = vmatprep.subr.bf16.mxu0 0
      %3998 = vmatpush2.bf16.msra.mxu0 0
      %3999 = vmatprep.subr.bf16.mxu0 0
      %4000 = vmatpush2.bf16.msra.mxu0 0
      %4001 = vmatprep.subr.bf16.mxu0 0
      %4002 = vmatpush2.bf16.msra.mxu0 0
      %4003 = vmatprep.mubr.bf16.mxu0 0
      %4004 = vmatmul.mubr.bf16.gmra.mxu0 %v3870
      %v4005 = vpop.f32.mrf.mxu0
      %v4006 = vadd.f32 0.0, %v4005
      %v4007 = vpop.f32.mrf.mxu0
      %v4008 = vpop.f32.mrf.mxu0
      %v4009 = vadd.f32 0.0, %v4008
      %v4010 = vpop.f32.mrf.mxu0
      %4011 = vmatprep.mubr.bf16.mxu0 0
      %4012 = vmatmul.mubr.bf16.gmra.mxu0 %v3873
      %v4013 = vpop.f32.mrf.mxu0
      %v4014 = vadd.f32 0.0, %v4013
      %v4015 = vpop.f32.mrf.mxu0
      %v4016 = vpop.f32.mrf.mxu0
      %v4017 = vadd.f32 0.0, %v4016
      %v4018 = vpop.f32.mrf.mxu0
      %4019 = vmatprep.mubr.bf16.mxu0 0
      %4020 = vmatmul.mubr.bf16.gmra.mxu0 %v3876
      %v4021 = vpop.f32.mrf.mxu0
      %v4022 = vadd.f32 0.0, %v4021
      %v4023 = vpop.f32.mrf.mxu0
      %v4024 = vpop.f32.mrf.mxu0
      %v4025 = vadd.f32 0.0, %v4024
      %v4026 = vpop.f32.mrf.mxu0
      %4027 = vmatprep.mubr.bf16.mxu0 0
      %4028 = vmatmul.mubr.bf16.gmra.mxu0 %v3879
      %v4029 = vpop.f32.mrf.mxu0
      %v4030 = vadd.f32 0.0, %v4029
      %v4031 = vpop.f32.mrf.mxu0
      %v4032 = vpop.f32.mrf.mxu0
      %v4033 = vadd.f32 0.0, %v4032
      %v4034 = vpop.f32.mrf.mxu0
      %4035 = vmatprep.mubr.bf16.mxu0 0
      %4036 = vmatmul.mubr.bf16.gmra.mxu0 %v3882
      %v4037 = vpop.f32.mrf.mxu0
      %v4038 = vadd.f32 0.0, %v4037
      %v4039 = vpop.f32.mrf.mxu0
      %v4040 = vpop.f32.mrf.mxu0
      %v4041 = vadd.f32 0.0, %v4040
      %v4042 = vpop.f32.mrf.mxu0
      %4043 = vmatprep.mubr.bf16.mxu0 0
      %4044 = vmatmul.mubr.bf16.gmra.mxu0 %v3885
      %v4045 = vpop.f32.mrf.mxu0
      %v4046 = vadd.f32 0.0, %v4045
      %v4047 = vpop.f32.mrf.mxu0
      %v4048 = vpop.f32.mrf.mxu0
      %v4049 = vadd.f32 0.0, %v4048
      %v4050 = vpop.f32.mrf.mxu0
      %4051 = vmatprep.mubr.bf16.mxu0 0
      %4052 = vmatmul.mubr.bf16.gmra.mxu0 %v3888
      %v4053 = vpop.f32.mrf.mxu0
      %v4054 = vadd.f32 0.0, %v4053
      %v4055 = vpop.f32.mrf.mxu0
      %v4056 = vpop.f32.mrf.mxu0
      %v4057 = vadd.f32 0.0, %v4056
      %v4058 = vpop.f32.mrf.mxu0
      %4059 = vmatprep.mubr.bf16.mxu0 0
      %4060 = vmatmul.mubr.bf16.gmra.mxu0 %v3891
      %v4061 = vpop.f32.mrf.mxu0
      %v4062 = vadd.f32 0.0, %v4061
      %v4063 = vpop.f32.mrf.mxu0
      %v4064 = vpop.f32.mrf.mxu0
      %v4065 = vadd.f32 0.0, %v4064
      %v4066 = vpop.f32.mrf.mxu0
      %4067 = vmatprep.mubr.bf16.mxu0 0
      %4068 = vmatmul.mubr.bf16.gmra.mxu0 %v3894
      %v4069 = vpop.f32.mrf.mxu0
      %v4070 = vadd.f32 0.0, %v4069
      %v4071 = vpop.f32.mrf.mxu0
      %v4072 = vpop.f32.mrf.mxu0
      %v4073 = vadd.f32 0.0, %v4072
      %v4074 = vpop.f32.mrf.mxu0
      %4075 = vmatprep.mubr.bf16.mxu0 0
      %4076 = vmatmul.mubr.bf16.gmra.mxu0 %v3897
      %v4077 = vpop.f32.mrf.mxu0
      %v4078 = vadd.f32 0.0, %v4077
      %v4079 = vpop.f32.mrf.mxu0
      %v4080 = vpop.f32.mrf.mxu0
      %v4081 = vadd.f32 0.0, %v4080
      %v4082 = vpop.f32.mrf.mxu0
      %4083 = vmatprep.mubr.bf16.mxu0 0
      %4084 = vmatmul.mubr.bf16.gmra.mxu0 %v3900
      %v4085 = vpop.f32.mrf.mxu0
      %v4086 = vadd.f32 0.0, %v4085
      %v4087 = vpop.f32.mrf.mxu0
      %v4088 = vpop.f32.mrf.mxu0
      %v4089 = vadd.f32 0.0, %v4088
      %v4090 = vpop.f32.mrf.mxu0
      %4091 = vmatprep.mubr.bf16.mxu0 0
      %4092 = vmatmul.mubr.bf16.gmra.mxu0 %v3903
      %v4093 = vpop.f32.mrf.mxu0
      %v4094 = vadd.f32 0.0, %v4093
      %v4095 = vpop.f32.mrf.mxu0
      %v4096 = vpop.f32.mrf.mxu0
      %v4097 = vadd.f32 0.0, %v4096
      %v4098 = vpop.f32.mrf.mxu0
      %4099 = vmatprep.mubr.bf16.mxu0 0
      %4100 = vmatmul.mubr.bf16.gmra.mxu0 %v3906
      %v4101 = vpop.f32.mrf.mxu0
      %v4102 = vadd.f32 0.0, %v4101
      %v4103 = vpop.f32.mrf.mxu0
      %v4104 = vpop.f32.mrf.mxu0
      %v4105 = vadd.f32 0.0, %v4104
      %v4106 = vpop.f32.mrf.mxu0
      %4107 = vmatprep.mubr.bf16.mxu0 0
      %4108 = vmatmul.mubr.bf16.gmra.mxu0 %v3909
      %v4109 = vpop.f32.mrf.mxu0
      %v4110 = vadd.f32 0.0, %v4109
      %v4111 = vpop.f32.mrf.mxu0
      %v4112 = vpop.f32.mrf.mxu0
      %v4113 = vadd.f32 0.0, %v4112
      %v4114 = vpop.f32.mrf.mxu0
      %4115 = vmatprep.mubr.bf16.mxu0 0
      %4116 = vmatmul.mubr.bf16.gmra.mxu0 %v3912
      %v4117 = vpop.f32.mrf.mxu0
      %v4118 = vadd.f32 0.0, %v4117
      %v4119 = vpop.f32.mrf.mxu0
      %v4120 = vpop.f32.mrf.mxu0
      %v4121 = vadd.f32 0.0, %v4120
      %v4122 = vpop.f32.mrf.mxu0
      %4123 = vmatprep.mubr.bf16.mxu0 0
      %4124 = vmatmul.mubr.bf16.gmra.mxu0 %v3915
      %v4125 = vpop.f32.mrf.mxu0
      %v4126 = vadd.f32 0.0, %v4125
      %v4127 = vpop.f32.mrf.mxu0
      %v4128 = vpop.f32.mrf.mxu0
      %v4129 = vadd.f32 0.0, %v4128
      %v4130 = vpop.f32.mrf.mxu0
      %4131 = vmatprep.mubr.bf16.mxu0 0
      %4132 = vmatmul.mubr.bf16.gmra.mxu0 %v3918
      %v4133 = vpop.f32.mrf.mxu0
      %v4134 = vadd.f32 0.0, %v4133
      %v4135 = vpop.f32.mrf.mxu0
      %v4136 = vpop.f32.mrf.mxu0
      %v4137 = vadd.f32 0.0, %v4136
      %v4138 = vpop.f32.mrf.mxu0
      %4139 = vmatprep.mubr.bf16.mxu0 0
      %4140 = vmatmul.mubr.bf16.gmra.mxu0 %v3921
      %v4141 = vpop.f32.mrf.mxu0
      %v4142 = vadd.f32 0.0, %v4141
      %v4143 = vpop.f32.mrf.mxu0
      %v4144 = vpop.f32.mrf.mxu0
      %v4145 = vadd.f32 0.0, %v4144
      %v4146 = vpop.f32.mrf.mxu0
      %4147 = vmatprep.mubr.bf16.mxu0 0
      %4148 = vmatmul.mubr.bf16.gmra.mxu0 %v3924
      %v4149 = vpop.f32.mrf.mxu0
      %v4150 = vadd.f32 0.0, %v4149
      %v4151 = vpop.f32.mrf.mxu0
      %v4152 = vpop.f32.mrf.mxu0
      %v4153 = vadd.f32 0.0, %v4152
      %v4154 = vpop.f32.mrf.mxu0
      %4155 = vmatprep.mubr.bf16.mxu0 0
      %4156 = vmatmul.mubr.bf16.gmra.mxu0 %v3927
      %v4157 = vpop.f32.mrf.mxu0
      %v4158 = vadd.f32 0.0, %v4157
      %v4159 = vpop.f32.mrf.mxu0
      %v4160 = vpop.f32.mrf.mxu0
      %v4161 = vadd.f32 0.0, %v4160
      %v4162 = vpop.f32.mrf.mxu0
      %4163 = vmatprep.mubr.bf16.mxu0 0
      %4164 = vmatmul.mubr.bf16.gmra.mxu0 %v3930
      %v4165 = vpop.f32.mrf.mxu0
      %v4166 = vadd.f32 0.0, %v4165
      %v4167 = vpop.f32.mrf.mxu0
      %v4168 = vpop.f32.mrf.mxu0
      %v4169 = vadd.f32 0.0, %v4168
      %v4170 = vpop.f32.mrf.mxu0
      %4171 = vmatprep.mubr.bf16.mxu0 0
      %4172 = vmatmul.mubr.bf16.gmra.mxu0 %v3933
      %v4173 = vpop.f32.mrf.mxu0
      %v4174 = vadd.f32 0.0, %v4173
      %v4175 = vpop.f32.mrf.mxu0
      %v4176 = vpop.f32.mrf.mxu0
      %v4177 = vadd.f32 0.0, %v4176
      %v4178 = vpop.f32.mrf.mxu0
      %4179 = vmatprep.mubr.bf16.mxu0 0
      %4180 = vmatmul.mubr.bf16.gmra.mxu0 %v3936
      %v4181 = vpop.f32.mrf.mxu0
      %v4182 = vadd.f32 0.0, %v4181
      %v4183 = vpop.f32.mrf.mxu0
      %v4184 = vpop.f32.mrf.mxu0
      %v4185 = vadd.f32 0.0, %v4184
      %v4186 = vpop.f32.mrf.mxu0
      %4187 = vmatprep.mubr.bf16.mxu0 0
      %4188 = vmatmul.mubr.bf16.gmra.mxu0 %v3939
      %v4189 = vpop.f32.mrf.mxu0
      %v4190 = vadd.f32 0.0, %v4189
      %v4191 = vpop.f32.mrf.mxu0
      %v4192 = vpop.f32.mrf.mxu0
      %v4193 = vadd.f32 0.0, %v4192
      %v4194 = vpop.f32.mrf.mxu0
      %4195 = vmatprep.mubr.bf16.mxu0 0
      %4196 = vmatmul.mubr.bf16.gmra.mxu0 %v3942
      %v4197 = vpop.f32.mrf.mxu0
      %v4198 = vadd.f32 0.0, %v4197
      %v4199 = vpop.f32.mrf.mxu0
      %v4200 = vpop.f32.mrf.mxu0
      %v4201 = vadd.f32 0.0, %v4200
      %v4202 = vpop.f32.mrf.mxu0
      %4203 = vmatprep.mubr.bf16.mxu0 0
      %4204 = vmatmul.mubr.bf16.gmra.mxu0 %v3945
      %v4205 = vpop.f32.mrf.mxu0
      %v4206 = vadd.f32 0.0, %v4205
      %v4207 = vpop.f32.mrf.mxu0
      %v4208 = vpop.f32.mrf.mxu0
      %v4209 = vadd.f32 0.0, %v4208
      %v4210 = vpop.f32.mrf.mxu0
      %4211 = vmatprep.mubr.bf16.mxu0 0
      %4212 = vmatmul.mubr.bf16.gmra.mxu0 %v3948
      %v4213 = vpop.f32.mrf.mxu0
      %v4214 = vadd.f32 0.0, %v4213
      %v4215 = vpop.f32.mrf.mxu0
      %v4216 = vpop.f32.mrf.mxu0
      %v4217 = vadd.f32 0.0, %v4216
      %v4218 = vpop.f32.mrf.mxu0
      %4219 = vmatprep.mubr.bf16.mxu0 0
      %4220 = vmatmul.mubr.bf16.gmra.mxu0 %v3951
      %v4221 = vpop.f32.mrf.mxu0
      %v4222 = vadd.f32 0.0, %v4221
      %v4223 = vpop.f32.mrf.mxu0
      %v4224 = vpop.f32.mrf.mxu0
      %v4225 = vadd.f32 0.0, %v4224
      %v4226 = vpop.f32.mrf.mxu0
      %4227 = vmatprep.mubr.bf16.mxu0 0
      %4228 = vmatmul.mubr.bf16.gmra.mxu0 %v3954
      %v4229 = vpop.f32.mrf.mxu0
      %v4230 = vadd.f32 0.0, %v4229
      %v4231 = vpop.f32.mrf.mxu0
      %v4232 = vpop.f32.mrf.mxu0
      %v4233 = vadd.f32 0.0, %v4232
      %v4234 = vpop.f32.mrf.mxu0
      %4235 = vmatprep.mubr.bf16.mxu0 0
      %4236 = vmatmul.mubr.bf16.gmra.mxu0 %v3957
      %v4237 = vpop.f32.mrf.mxu0
      %v4238 = vadd.f32 0.0, %v4237
      %v4239 = vpop.f32.mrf.mxu0
      %v4240 = vpop.f32.mrf.mxu0
      %v4241 = vadd.f32 0.0, %v4240
      %v4242 = vpop.f32.mrf.mxu0
      %4243 = vmatprep.mubr.bf16.mxu0 0
      %4244 = vmatmul.mubr.bf16.gmra.mxu0 %v3960
      %v4245 = vpop.f32.mrf.mxu0
      %v4246 = vadd.f32 0.0, %v4245
      %v4247 = vpop.f32.mrf.mxu0
      %v4248 = vpop.f32.mrf.mxu0
      %v4249 = vadd.f32 0.0, %v4248
      %v4250 = vpop.f32.mrf.mxu0
      %4251 = vmatprep.mubr.bf16.mxu0 0
      %4252 = vmatmul.mubr.bf16.gmra.mxu0 %v3963
      %v4253 = vpop.f32.mrf.mxu0
      %v4254 = vadd.f32 0.0, %v4253
      %v4255 = vpop.f32.mrf.mxu0
      %v4256 = vpop.f32.mrf.mxu0
      %v4257 = vadd.f32 0.0, %v4256
      %v4258 = vpop.f32.mrf.mxu0
      %4259 = vmatprep.mubr.bf16.mxu0 0
      %4260 = vmatmul.mubr.bf16.gmra.mxu0 %v3966
      %v4261 = vpop.f32.mrf.mxu0
      %v4262 = vadd.f32 0.0, %v4261
      %v4263 = vpop.f32.mrf.mxu0
      %v4264 = vpop.f32.mrf.mxu0
      %v4265 = vadd.f32 0.0, %v4264
      %v4266 = vpop.f32.mrf.mxu0
      %4267 = vmatprep.mubr.bf16.mxu0 0
      %4268 = vmatmul.mubr.bf16.gmra.mxu0 %v3969
      %v4269 = vpop.f32.mrf.mxu0
      %v4270 = vadd.f32 0.0, %v4269
      %v4271 = vpop.f32.mrf.mxu0
      %v4272 = vpop.f32.mrf.mxu0
      %v4273 = vadd.f32 0.0, %v4272
      %v4274 = vpop.f32.mrf.mxu0
      %4275 = vdwg.mxu0
      %v4276 = vpack.c.bf16 %v4009, %v4006
      %v4277 = vpack.c.bf16 %v4017, %v4014
      %v4278 = vpack.c.bf16 %v4025, %v4022
      %v4279 = vpack.c.bf16 %v4033, %v4030
      %v4280 = vpack.c.bf16 %v4041, %v4038
      %v4281 = vpack.c.bf16 %v4049, %v4046
      %v4282 = vpack.c.bf16 %v4057, %v4054
      %v4283 = vpack.c.bf16 %v4065, %v4062
      %v4284 = vpack.c.bf16 %v4073, %v4070
      %v4285 = vpack.c.bf16 %v4081, %v4078
      %v4286 = vpack.c.bf16 %v4089, %v4086
      %v4287 = vpack.c.bf16 %v4097, %v4094
      %v4288 = vpack.c.bf16 %v4105, %v4102
      %v4289 = vpack.c.bf16 %v4113, %v4110
      %v4290 = vpack.c.bf16 %v4121, %v4118
      %v4291 = vpack.c.bf16 %v4129, %v4126
      %v4292 = vpack.c.bf16 %v4137, %v4134
      %4310 = vrot.lane.b32.xlu0 %v4276, 120
      %v4311 = vpop.permute.xlu0 %4310
      %4312 = vrot.lane.b32.xlu0 %v4277, 120
      %v4313 = vpop.permute.xlu0 %4312
      %4314 = vrot.lane.b32.xlu0 %v4278, 120
      %v4315 = vpop.permute.xlu0 %4314
      %4316 = vrot.lane.b32.xlu0 %v4279, 120
      %v4317 = vpop.permute.xlu0 %4316
      %4318 = vrot.lane.b32.xlu0 %v4280, 120
      %v4319 = vpop.permute.xlu0 %4318
      %4320 = vrot.lane.b32.xlu0 %v4281, 120
      %v4321 = vpop.permute.xlu0 %4320
      %4322 = vrot.lane.b32.xlu0 %v4282, 120
      %v4323 = vpop.permute.xlu0 %4322
      %4324 = vrot.lane.b32.xlu0 %v4283, 120
      %v4325 = vpop.permute.xlu0 %4324
      %4326 = vrot.lane.b32.xlu0 %v4284, 120
      %v4327 = vpop.permute.xlu0 %4326
      %4328 = vrot.lane.b32.xlu0 %v4285, 120
      %v4329 = vpop.permute.xlu0 %4328
      %4330 = vrot.lane.b32.xlu0 %v4286, 120
      %v4331 = vpop.permute.xlu0 %4330
      %4332 = vrot.lane.b32.xlu0 %v4287, 120
      %v4333 = vpop.permute.xlu0 %4332
      %4334 = vrot.lane.b32.xlu0 %v4288, 120
      %v4335 = vpop.permute.xlu0 %4334
      %4336 = vrot.lane.b32.xlu0 %v4289, 120
      %v4337 = vpop.permute.xlu0 %4336
      %4338 = vrot.lane.b32.xlu0 %v4290, 120
      %v4339 = vpop.permute.xlu0 %4338
      %4340 = vrot.lane.b32.xlu0 %v4291, 120
      %v4341 = vpop.permute.xlu0 %4340
      %4342 = vrot.lane.b32.xlu0 %v4292, 120
      %v4343 = vpop.permute.xlu0 %4342
      %4361 = vmatprep.subr.bf16.mxu0 0
      %4362 = vmatpush1.bf16.msra.mxu0 %v4325
      %4363 = vmatprep.subr.bf16.mxu0 0
      %4364 = vmatpush1.bf16.msra.mxu0 %v4323
      %4365 = vmatprep.subr.bf16.mxu0 0
      %4366 = vmatpush1.bf16.msra.mxu0 %v4321
      %4367 = vmatprep.subr.bf16.mxu0 0
      %4368 = vmatpush1.bf16.msra.mxu0 %v4319
      %4369 = vmatprep.subr.bf16.mxu0 0
      %4370 = vmatpush1.bf16.msra.mxu0 %v4317
      %4371 = vmatprep.subr.bf16.mxu0 0
      %4372 = vmatpush1.bf16.msra.mxu0 %v4315
      %4373 = vmatprep.subr.bf16.mxu0 0
      %4374 = vmatpush1.bf16.msra.mxu0 %v4313
      %4375 = vmatprep.subr.bf16.mxu0 0
      %4376 = vmatpush1.bf16.msra.mxu0 %v4311
      %4377 = vmatprep.subr.bf16.mxu0 0
      %4378 = vmatpush2.bf16.msra.mxu0 %v4341
      %4379 = vmatprep.subr.bf16.mxu0 0
      %4380 = vmatpush2.bf16.msra.mxu0 %v4339
      %4381 = vmatprep.subr.bf16.mxu0 0
      %4382 = vmatpush2.bf16.msra.mxu0 %v4337
      %4383 = vmatprep.subr.bf16.mxu0 0
      %4384 = vmatpush2.bf16.msra.mxu0 %v4335
      %4385 = vmatprep.subr.bf16.mxu0 0
      %4386 = vmatpush2.bf16.msra.mxu0 %v4333
      %4387 = vmatprep.subr.bf16.mxu0 0
      %4388 = vmatpush2.bf16.msra.mxu0 %v4331
      %4389 = vmatprep.subr.bf16.mxu0 0
      %4390 = vmatpush2.bf16.msra.mxu0 %v4329
      %4391 = vmatprep.subr.bf16.mxu0 0
      %4392 = vmatpush2.bf16.msra.mxu0 %v4327
      %4393 = vmatprep.mubr.bf16.mxu0 %v665
      %4394 = vmatmul.mubr.bf16.gmra.mxu0 %v664
      %v4395 = vpop.f32.mrf.mxu0
      %v4396 = vadd.f32 0.0, %v4395
      %v4397 = vpop.f32.mrf.mxu0
      %v4398 = vpop.f32.mrf.mxu0
      %v4399 = vadd.f32 0.0, %v4398
      %v4400 = vpop.f32.mrf.mxu0
      %4401 = vmatprep.mubr.bf16.mxu0 %v668
      %4402 = vmatmul.mubr.bf16.gmra.mxu0 %v667
      %v4403 = vpop.f32.mrf.mxu0
      %v4404 = vadd.f32 0.0, %v4403
      %v4405 = vpop.f32.mrf.mxu0
      %v4406 = vpop.f32.mrf.mxu0
      %v4407 = vadd.f32 0.0, %v4406
      %v4408 = vpop.f32.mrf.mxu0
      %4409 = vmatprep.mubr.bf16.mxu0 %v671
      %4410 = vmatmul.mubr.bf16.gmra.mxu0 %v670
      %v4411 = vpop.f32.mrf.mxu0
      %v4412 = vadd.f32 0.0, %v4411
      %v4413 = vpop.f32.mrf.mxu0
      %v4414 = vpop.f32.mrf.mxu0
      %v4415 = vadd.f32 0.0, %v4414
      %v4416 = vpop.f32.mrf.mxu0
      %4417 = vmatprep.mubr.bf16.mxu0 %v674
      %4418 = vmatmul.mubr.bf16.gmra.mxu0 %v673
      %v4419 = vpop.f32.mrf.mxu0
      %v4420 = vadd.f32 0.0, %v4419
      %v4421 = vpop.f32.mrf.mxu0
      %v4422 = vpop.f32.mrf.mxu0
      %v4423 = vadd.f32 0.0, %v4422
      %v4424 = vpop.f32.mrf.mxu0
      %4425 = vmatprep.mubr.bf16.mxu0 %v677
      %4426 = vmatmul.mubr.bf16.gmra.mxu0 %v676
      %v4427 = vpop.f32.mrf.mxu0
      %v4428 = vadd.f32 0.0, %v4427
      %v4429 = vpop.f32.mrf.mxu0
      %v4430 = vpop.f32.mrf.mxu0
      %v4431 = vadd.f32 0.0, %v4430
      %v4432 = vpop.f32.mrf.mxu0
      %4433 = vmatprep.mubr.bf16.mxu0 %v680
      %4434 = vmatmul.mubr.bf16.gmra.mxu0 %v679
      %v4435 = vpop.f32.mrf.mxu0
      %v4436 = vadd.f32 0.0, %v4435
      %v4437 = vpop.f32.mrf.mxu0
      %v4438 = vpop.f32.mrf.mxu0
      %v4439 = vadd.f32 0.0, %v4438
      %v4440 = vpop.f32.mrf.mxu0
      %4441 = vmatprep.mubr.bf16.mxu0 %v683
      %4442 = vmatmul.mubr.bf16.gmra.mxu0 %v682
      %v4443 = vpop.f32.mrf.mxu0
      %v4444 = vadd.f32 0.0, %v4443
      %v4445 = vpop.f32.mrf.mxu0
      %v4446 = vpop.f32.mrf.mxu0
      %v4447 = vadd.f32 0.0, %v4446
      %v4448 = vpop.f32.mrf.mxu0
      %4449 = vmatprep.mubr.bf16.mxu0 %v686
      %4450 = vmatmul.mubr.bf16.gmra.mxu0 %v685
      %v4451 = vpop.f32.mrf.mxu0
      %v4452 = vadd.f32 0.0, %v4451
      %v4453 = vpop.f32.mrf.mxu0
      %v4454 = vpop.f32.mrf.mxu0
      %v4455 = vadd.f32 0.0, %v4454
      %v4456 = vpop.f32.mrf.mxu0
      %4457 = vmatprep.mubr.bf16.mxu0 %v689
      %4458 = vmatmul.mubr.bf16.gmra.mxu0 %v688
      %v4459 = vpop.f32.mrf.mxu0
      %v4460 = vadd.f32 0.0, %v4459
      %v4461 = vpop.f32.mrf.mxu0
      %v4462 = vpop.f32.mrf.mxu0
      %v4463 = vadd.f32 0.0, %v4462
      %v4464 = vpop.f32.mrf.mxu0
      %4465 = vmatprep.mubr.bf16.mxu0 %v692
      %4466 = vmatmul.mubr.bf16.gmra.mxu0 %v691
      %v4467 = vpop.f32.mrf.mxu0
      %v4468 = vadd.f32 0.0, %v4467
      %v4469 = vpop.f32.mrf.mxu0
      %v4470 = vpop.f32.mrf.mxu0
      %v4471 = vadd.f32 0.0, %v4470
      %v4472 = vpop.f32.mrf.mxu0
      %4473 = vmatprep.mubr.bf16.mxu0 %v695
      %4474 = vmatmul.mubr.bf16.gmra.mxu0 %v694
      %v4475 = vpop.f32.mrf.mxu0
      %v4476 = vadd.f32 0.0, %v4475
      %v4477 = vpop.f32.mrf.mxu0
      %v4478 = vpop.f32.mrf.mxu0
      %v4479 = vadd.f32 0.0, %v4478
      %v4480 = vpop.f32.mrf.mxu0
      %4481 = vmatprep.mubr.bf16.mxu0 %v698
      %4482 = vmatmul.mubr.bf16.gmra.mxu0 %v697
      %v4483 = vpop.f32.mrf.mxu0
      %v4484 = vadd.f32 0.0, %v4483
      %v4485 = vpop.f32.mrf.mxu0
      %v4486 = vpop.f32.mrf.mxu0
      %v4487 = vadd.f32 0.0, %v4486
      %v4488 = vpop.f32.mrf.mxu0
      %4489 = vmatprep.mubr.bf16.mxu0 %v701
      %4490 = vmatmul.mubr.bf16.gmra.mxu0 %v700
      %v4491 = vpop.f32.mrf.mxu0
      %v4492 = vadd.f32 0.0, %v4491
      %v4493 = vpop.f32.mrf.mxu0
      %v4494 = vpop.f32.mrf.mxu0
      %v4495 = vadd.f32 0.0, %v4494
      %v4496 = vpop.f32.mrf.mxu0
      %4497 = vmatprep.mubr.bf16.mxu0 %v704
      %4498 = vmatmul.mubr.bf16.gmra.mxu0 %v703
      %v4499 = vpop.f32.mrf.mxu0
      %v4500 = vadd.f32 0.0, %v4499
      %v4501 = vpop.f32.mrf.mxu0
      %v4502 = vpop.f32.mrf.mxu0
      %v4503 = vadd.f32 0.0, %v4502
      %v4504 = vpop.f32.mrf.mxu0
      %4505 = vmatprep.mubr.bf16.mxu0 %v707
      %4506 = vmatmul.mubr.bf16.gmra.mxu0 %v706
      %v4507 = vpop.f32.mrf.mxu0
      %v4508 = vadd.f32 0.0, %v4507
      %v4509 = vpop.f32.mrf.mxu0
      %v4510 = vpop.f32.mrf.mxu0
      %v4511 = vadd.f32 0.0, %v4510
      %v4512 = vpop.f32.mrf.mxu0
      %4513 = vmatprep.mubr.bf16.mxu0 %v710
      %4514 = vmatmul.mubr.bf16.gmra.mxu0 %v709
      %v4515 = vpop.f32.mrf.mxu0
      %v4516 = vadd.f32 0.0, %v4515
      %v4517 = vpop.f32.mrf.mxu0
      %v4518 = vpop.f32.mrf.mxu0
      %v4519 = vadd.f32 0.0, %v4518
      %v4520 = vpop.f32.mrf.mxu0
      %4521 = vmatprep.mubr.bf16.mxu0 %v713
      %4522 = vmatmul.mubr.bf16.gmra.mxu0 %v712
      %v4523 = vpop.f32.mrf.mxu0
      %v4524 = vadd.f32 0.0, %v4523
      %v4525 = vpop.f32.mrf.mxu0
      %v4526 = vpop.f32.mrf.mxu0
      %v4527 = vadd.f32 0.0, %v4526
      %v4528 = vpop.f32.mrf.mxu0
      %4529 = vdwg.mxu0
      %4530 = vmatprep.subr.bf16.mxu0 0
      %4531 = vmatpush1.bf16.msra.mxu0 0
      %4532 = vmatprep.subr.bf16.mxu0 0
      %4533 = vmatpush1.bf16.msra.mxu0 0
      %4534 = vmatprep.subr.bf16.mxu0 0
      %4535 = vmatpush1.bf16.msra.mxu0 0
      %4536 = vmatprep.subr.bf16.mxu0 0
      %4537 = vmatpush1.bf16.msra.mxu0 0
      %4538 = vmatprep.subr.bf16.mxu0 0
      %4539 = vmatpush1.bf16.msra.mxu0 0
      %4540 = vmatprep.subr.bf16.mxu0 0
      %4541 = vmatpush1.bf16.msra.mxu0 0
      %4542 = vmatprep.subr.bf16.mxu0 0
      %4543 = vmatpush1.bf16.msra.mxu0 0
      %4544 = vmatprep.subr.bf16.mxu0 0
      %4545 = vmatpush1.bf16.msra.mxu0 %v4343
      %4546 = vmatprep.subr.bf16.mxu0 0
      %4547 = vmatpush2.bf16.msra.mxu0 0
      %4548 = vmatprep.subr.bf16.mxu0 0
      %4549 = vmatpush2.bf16.msra.mxu0 0
      %4550 = vmatprep.subr.bf16.mxu0 0
      %4551 = vmatpush2.bf16.msra.mxu0 0
      %4552 = vmatprep.subr.bf16.mxu0 0
      %4553 = vmatpush2.bf16.msra.mxu0 0
      %4554 = vmatprep.subr.bf16.mxu0 0
      %4555 = vmatpush2.bf16.msra.mxu0 0
      %4556 = vmatprep.subr.bf16.mxu0 0
      %4557 = vmatpush2.bf16.msra.mxu0 0
      %4558 = vmatprep.subr.bf16.mxu0 0
      %4559 = vmatpush2.bf16.msra.mxu0 0
      %4560 = vmatprep.subr.bf16.mxu0 0
      %4561 = vmatpush2.bf16.msra.mxu0 0
      %4562 = vmatprep.mubr.bf16.mxu0 0
      %4563 = vmatmul.mubr.bf16.gmra.mxu0 %v853
      %v4564 = vpop.f32.mrf.mxu0
      %v4565 = vadd.f32 %v4396, %v4564
      %v4566 = vpop.f32.mrf.mxu0
      %v4567 = vpop.f32.mrf.mxu0
      %v4568 = vadd.f32 %v4399, %v4567
      %v4569 = vpop.f32.mrf.mxu0
      %4570 = vmatprep.mubr.bf16.mxu0 0
      %4571 = vmatmul.mubr.bf16.gmra.mxu0 %v856
      %v4572 = vpop.f32.mrf.mxu0
      %v4573 = vadd.f32 %v4404, %v4572
      %v4574 = vpop.f32.mrf.mxu0
      %v4575 = vpop.f32.mrf.mxu0
      %v4576 = vadd.f32 %v4407, %v4575
      %v4577 = vpop.f32.mrf.mxu0
      %4578 = vmatprep.mubr.bf16.mxu0 0
      %4579 = vmatmul.mubr.bf16.gmra.mxu0 %v859
      %v4580 = vpop.f32.mrf.mxu0
      %v4581 = vadd.f32 %v4412, %v4580
      %v4582 = vpop.f32.mrf.mxu0
      %v4583 = vpop.f32.mrf.mxu0
      %v4584 = vadd.f32 %v4415, %v4583
      %v4585 = vpop.f32.mrf.mxu0
      %4586 = vmatprep.mubr.bf16.mxu0 0
      %4587 = vmatmul.mubr.bf16.gmra.mxu0 %v862
      %v4588 = vpop.f32.mrf.mxu0
      %v4589 = vadd.f32 %v4420, %v4588
      %v4590 = vpop.f32.mrf.mxu0
      %v4591 = vpop.f32.mrf.mxu0
      %v4592 = vadd.f32 %v4423, %v4591
      %v4593 = vpop.f32.mrf.mxu0
      %4594 = vmatprep.mubr.bf16.mxu0 0
      %4595 = vmatmul.mubr.bf16.gmra.mxu0 %v865
      %v4596 = vpop.f32.mrf.mxu0
      %v4597 = vadd.f32 %v4428, %v4596
      %v4598 = vpop.f32.mrf.mxu0
      %v4599 = vpop.f32.mrf.mxu0
      %v4600 = vadd.f32 %v4431, %v4599
      %v4601 = vpop.f32.mrf.mxu0
      %4602 = vmatprep.mubr.bf16.mxu0 0
      %4603 = vmatmul.mubr.bf16.gmra.mxu0 %v868
      %v4604 = vpop.f32.mrf.mxu0
      %v4605 = vadd.f32 %v4436, %v4604
      %v4606 = vpop.f32.mrf.mxu0
      %v4607 = vpop.f32.mrf.mxu0
      %v4608 = vadd.f32 %v4439, %v4607
      %v4609 = vpop.f32.mrf.mxu0
      %4610 = vmatprep.mubr.bf16.mxu0 0
      %4611 = vmatmul.mubr.bf16.gmra.mxu0 %v871
      %v4612 = vpop.f32.mrf.mxu0
      %v4613 = vadd.f32 %v4444, %v4612
      %v4614 = vpop.f32.mrf.mxu0
      %v4615 = vpop.f32.mrf.mxu0
      %v4616 = vadd.f32 %v4447, %v4615
      %v4617 = vpop.f32.mrf.mxu0
      %4618 = vmatprep.mubr.bf16.mxu0 0
      %4619 = vmatmul.mubr.bf16.gmra.mxu0 %v874
      %v4620 = vpop.f32.mrf.mxu0
      %v4621 = vadd.f32 %v4452, %v4620
      %v4622 = vpop.f32.mrf.mxu0
      %v4623 = vpop.f32.mrf.mxu0
      %v4624 = vadd.f32 %v4455, %v4623
      %v4625 = vpop.f32.mrf.mxu0
      %4626 = vmatprep.mubr.bf16.mxu0 0
      %4627 = vmatmul.mubr.bf16.gmra.mxu0 %v877
      %v4628 = vpop.f32.mrf.mxu0
      %v4629 = vadd.f32 %v4460, %v4628
      %v4630 = vpop.f32.mrf.mxu0
      %v4631 = vpop.f32.mrf.mxu0
      %v4632 = vadd.f32 %v4463, %v4631
      %v4633 = vpop.f32.mrf.mxu0
      %4634 = vmatprep.mubr.bf16.mxu0 0
      %4635 = vmatmul.mubr.bf16.gmra.mxu0 %v880
      %v4636 = vpop.f32.mrf.mxu0
      %v4637 = vadd.f32 %v4468, %v4636
      %v4638 = vpop.f32.mrf.mxu0
      %v4639 = vpop.f32.mrf.mxu0
      %v4640 = vadd.f32 %v4471, %v4639
      %v4641 = vpop.f32.mrf.mxu0
      %4642 = vmatprep.mubr.bf16.mxu0 0
      %4643 = vmatmul.mubr.bf16.gmra.mxu0 %v883
      %v4644 = vpop.f32.mrf.mxu0
      %v4645 = vadd.f32 %v4476, %v4644
      %v4646 = vpop.f32.mrf.mxu0
      %v4647 = vpop.f32.mrf.mxu0
      %v4648 = vadd.f32 %v4479, %v4647
      %v4649 = vpop.f32.mrf.mxu0
      %4650 = vmatprep.mubr.bf16.mxu0 0
      %4651 = vmatmul.mubr.bf16.gmra.mxu0 %v886
      %v4652 = vpop.f32.mrf.mxu0
      %v4653 = vadd.f32 %v4484, %v4652
      %v4654 = vpop.f32.mrf.mxu0
      %v4655 = vpop.f32.mrf.mxu0
      %v4656 = vadd.f32 %v4487, %v4655
      %v4657 = vpop.f32.mrf.mxu0
      %4658 = vmatprep.mubr.bf16.mxu0 0
      %4659 = vmatmul.mubr.bf16.gmra.mxu0 %v889
      %v4660 = vpop.f32.mrf.mxu0
      %v4661 = vadd.f32 %v4492, %v4660
      %v4662 = vpop.f32.mrf.mxu0
      %v4663 = vpop.f32.mrf.mxu0
      %v4664 = vadd.f32 %v4495, %v4663
      %v4665 = vpop.f32.mrf.mxu0
      %4666 = vmatprep.mubr.bf16.mxu0 0
      %4667 = vmatmul.mubr.bf16.gmra.mxu0 %v892
      %v4668 = vpop.f32.mrf.mxu0
      %v4669 = vadd.f32 %v4500, %v4668
      %v4670 = vpop.f32.mrf.mxu0
      %v4671 = vpop.f32.mrf.mxu0
      %v4672 = vadd.f32 %v4503, %v4671
      %v4673 = vpop.f32.mrf.mxu0
      %4674 = vmatprep.mubr.bf16.mxu0 0
      %4675 = vmatmul.mubr.bf16.gmra.mxu0 %v895
      %v4676 = vpop.f32.mrf.mxu0
      %v4677 = vadd.f32 %v4508, %v4676
      %v4678 = vpop.f32.mrf.mxu0
      %v4679 = vpop.f32.mrf.mxu0
      %v4680 = vadd.f32 %v4511, %v4679
      %v4681 = vpop.f32.mrf.mxu0
      %4682 = vmatprep.mubr.bf16.mxu0 0
      %4683 = vmatmul.mubr.bf16.gmra.mxu0 %v898
      %v4684 = vpop.f32.mrf.mxu0
      %v4685 = vadd.f32 %v4516, %v4684
      %v4686 = vpop.f32.mrf.mxu0
      %v4687 = vpop.f32.mrf.mxu0
      %v4688 = vadd.f32 %v4519, %v4687
      %v4689 = vpop.f32.mrf.mxu0
      %4690 = vmatprep.mubr.bf16.mxu0 0
      %4691 = vmatmul.mubr.bf16.gmra.mxu0 %v901
      %v4692 = vpop.f32.mrf.mxu0
      %v4693 = vadd.f32 %v4524, %v4692
      %v4694 = vpop.f32.mrf.mxu0
      %v4695 = vpop.f32.mrf.mxu0
      %v4696 = vadd.f32 %v4527, %v4695
      %v4697 = vpop.f32.mrf.mxu0
      %4698 = vdwg.mxu0
      %v4699 = vpack.c.bf16 %v4568, %v4565
      %v4700 = vpack.c.bf16 %v4576, %v4573
      %v4701 = vpack.c.bf16 %v4584, %v4581
      %v4702 = vpack.c.bf16 %v4592, %v4589
      %v4703 = vpack.c.bf16 %v4600, %v4597
      %v4704 = vpack.c.bf16 %v4608, %v4605
      %v4705 = vpack.c.bf16 %v4616, %v4613
      %v4706 = vpack.c.bf16 %v4624, %v4621
      %v4707 = vpack.c.bf16 %v4632, %v4629
      %v4708 = vpack.c.bf16 %v4640, %v4637
      %v4709 = vpack.c.bf16 %v4648, %v4645
      %v4710 = vpack.c.bf16 %v4656, %v4653
      %v4711 = vpack.c.bf16 %v4664, %v4661
      %v4712 = vpack.c.bf16 %v4672, %v4669
      %v4713 = vpack.c.bf16 %v4680, %v4677
      %v4714 = vpack.c.bf16 %v4688, %v4685
      %v4715 = vpack.c.bf16 %v4696, %v4693
      %4733 = vrot.lane.b32.xlu0 %v4699, 120
      %v4734 = vpop.permute.xlu0 %4733
      %4735 = vrot.lane.b32.xlu0 %v4700, 120
      %v4736 = vpop.permute.xlu0 %4735
      %4737 = vrot.lane.b32.xlu0 %v4701, 120
      %v4738 = vpop.permute.xlu0 %4737
      %4739 = vrot.lane.b32.xlu0 %v4702, 120
      %v4740 = vpop.permute.xlu0 %4739
      %4741 = vrot.lane.b32.xlu0 %v4703, 120
      %v4742 = vpop.permute.xlu0 %4741
      %4743 = vrot.lane.b32.xlu0 %v4704, 120
      %v4744 = vpop.permute.xlu0 %4743
      %4745 = vrot.lane.b32.xlu0 %v4705, 120
      %v4746 = vpop.permute.xlu0 %4745
      %4747 = vrot.lane.b32.xlu0 %v4706, 120
      %v4748 = vpop.permute.xlu0 %4747
      %4749 = vrot.lane.b32.xlu0 %v4707, 120
      %v4750 = vpop.permute.xlu0 %4749
      %4751 = vrot.lane.b32.xlu0 %v4708, 120
      %v4752 = vpop.permute.xlu0 %4751
      %4753 = vrot.lane.b32.xlu0 %v4709, 120
      %v4754 = vpop.permute.xlu0 %4753
      %4755 = vrot.lane.b32.xlu0 %v4710, 120
      %v4756 = vpop.permute.xlu0 %4755
      %4757 = vrot.lane.b32.xlu0 %v4711, 120
      %v4758 = vpop.permute.xlu0 %4757
      %4759 = vrot.lane.b32.xlu0 %v4712, 120
      %v4760 = vpop.permute.xlu0 %4759
      %4761 = vrot.lane.b32.xlu0 %v4713, 120
      %v4762 = vpop.permute.xlu0 %4761
      %4763 = vrot.lane.b32.xlu0 %v4714, 120
      %v4764 = vpop.permute.xlu0 %4763
      %4765 = vrot.lane.b32.xlu0 %v4715, 120
      %v4766 = vpop.permute.xlu0 %4765
      %4784 = vmatprep.subr.bf16.mxu0 0
      %4785 = vmatpush1.bf16.msra.mxu0 %v4748
      %4786 = vmatprep.subr.bf16.mxu0 0
      %4787 = vmatpush1.bf16.msra.mxu0 %v4746
      %4788 = vmatprep.subr.bf16.mxu0 0
      %4789 = vmatpush1.bf16.msra.mxu0 %v4744
      %4790 = vmatprep.subr.bf16.mxu0 0
      %4791 = vmatpush1.bf16.msra.mxu0 %v4742
      %4792 = vmatprep.subr.bf16.mxu0 0
      %4793 = vmatpush1.bf16.msra.mxu0 %v4740
      %4794 = vmatprep.subr.bf16.mxu0 0
      %4795 = vmatpush1.bf16.msra.mxu0 %v4738
      %4796 = vmatprep.subr.bf16.mxu0 0
      %4797 = vmatpush1.bf16.msra.mxu0 %v4736
      %4798 = vmatprep.subr.bf16.mxu0 0
      %4799 = vmatpush1.bf16.msra.mxu0 %v4734
      %4800 = vmatprep.subr.bf16.mxu0 0
      %4801 = vmatpush2.bf16.msra.mxu0 %v4764
      %4802 = vmatprep.subr.bf16.mxu0 0
      %4803 = vmatpush2.bf16.msra.mxu0 %v4762
      %4804 = vmatprep.subr.bf16.mxu0 0
      %4805 = vmatpush2.bf16.msra.mxu0 %v4760
      %4806 = vmatprep.subr.bf16.mxu0 0
      %4807 = vmatpush2.bf16.msra.mxu0 %v4758
      %4808 = vmatprep.subr.bf16.mxu0 0
      %4809 = vmatpush2.bf16.msra.mxu0 %v4756
      %4810 = vmatprep.subr.bf16.mxu0 0
      %4811 = vmatpush2.bf16.msra.mxu0 %v4754
      %4812 = vmatprep.subr.bf16.mxu0 0
      %4813 = vmatpush2.bf16.msra.mxu0 %v4752
      %4814 = vmatprep.subr.bf16.mxu0 0
      %4815 = vmatpush2.bf16.msra.mxu0 %v4750
      %4816 = vmatprep.mubr.bf16.mxu0 %v665
      %4817 = vmatmul.mubr.bf16.gmra.mxu0 %v664
      %v4818 = vpop.f32.mrf.mxu0
      %v4819 = vadd.f32 0.0, %v4818
      %v4820 = vpop.f32.mrf.mxu0
      %v4821 = vpop.f32.mrf.mxu0
      %v4822 = vadd.f32 0.0, %v4821
      %v4823 = vpop.f32.mrf.mxu0
      %4824 = vmatprep.mubr.bf16.mxu0 %v668
      %4825 = vmatmul.mubr.bf16.gmra.mxu0 %v667
      %v4826 = vpop.f32.mrf.mxu0
      %v4827 = vadd.f32 0.0, %v4826
      %v4828 = vpop.f32.mrf.mxu0
      %v4829 = vpop.f32.mrf.mxu0
      %v4830 = vadd.f32 0.0, %v4829
      %v4831 = vpop.f32.mrf.mxu0
      %4832 = vmatprep.mubr.bf16.mxu0 %v671
      %4833 = vmatmul.mubr.bf16.gmra.mxu0 %v670
      %v4834 = vpop.f32.mrf.mxu0
      %v4835 = vadd.f32 0.0, %v4834
      %v4836 = vpop.f32.mrf.mxu0
      %v4837 = vpop.f32.mrf.mxu0
      %v4838 = vadd.f32 0.0, %v4837
      %v4839 = vpop.f32.mrf.mxu0
      %4840 = vmatprep.mubr.bf16.mxu0 %v674
      %4841 = vmatmul.mubr.bf16.gmra.mxu0 %v673
      %v4842 = vpop.f32.mrf.mxu0
      %v4843 = vadd.f32 0.0, %v4842
      %v4844 = vpop.f32.mrf.mxu0
      %v4845 = vpop.f32.mrf.mxu0
      %v4846 = vadd.f32 0.0, %v4845
      %v4847 = vpop.f32.mrf.mxu0
      %4848 = vmatprep.mubr.bf16.mxu0 %v677
      %4849 = vmatmul.mubr.bf16.gmra.mxu0 %v676
      %v4850 = vpop.f32.mrf.mxu0
      %v4851 = vadd.f32 0.0, %v4850
      %v4852 = vpop.f32.mrf.mxu0
      %v4853 = vpop.f32.mrf.mxu0
      %v4854 = vadd.f32 0.0, %v4853
      %v4855 = vpop.f32.mrf.mxu0
      %4856 = vmatprep.mubr.bf16.mxu0 %v680
      %4857 = vmatmul.mubr.bf16.gmra.mxu0 %v679
      %v4858 = vpop.f32.mrf.mxu0
      %v4859 = vadd.f32 0.0, %v4858
      %v4860 = vpop.f32.mrf.mxu0
      %v4861 = vpop.f32.mrf.mxu0
      %v4862 = vadd.f32 0.0, %v4861
      %v4863 = vpop.f32.mrf.mxu0
      %4864 = vmatprep.mubr.bf16.mxu0 %v683
      %4865 = vmatmul.mubr.bf16.gmra.mxu0 %v682
      %v4866 = vpop.f32.mrf.mxu0
      %v4867 = vadd.f32 0.0, %v4866
      %v4868 = vpop.f32.mrf.mxu0
      %v4869 = vpop.f32.mrf.mxu0
      %v4870 = vadd.f32 0.0, %v4869
      %v4871 = vpop.f32.mrf.mxu0
      %4872 = vmatprep.mubr.bf16.mxu0 %v686
      %4873 = vmatmul.mubr.bf16.gmra.mxu0 %v685
      %v4874 = vpop.f32.mrf.mxu0
      %v4875 = vadd.f32 0.0, %v4874
      %v4876 = vpop.f32.mrf.mxu0
      %v4877 = vpop.f32.mrf.mxu0
      %v4878 = vadd.f32 0.0, %v4877
      %v4879 = vpop.f32.mrf.mxu0
      %4880 = vmatprep.mubr.bf16.mxu0 %v689
      %4881 = vmatmul.mubr.bf16.gmra.mxu0 %v688
      %v4882 = vpop.f32.mrf.mxu0
      %v4883 = vadd.f32 0.0, %v4882
      %v4884 = vpop.f32.mrf.mxu0
      %v4885 = vpop.f32.mrf.mxu0
      %v4886 = vadd.f32 0.0, %v4885
      %v4887 = vpop.f32.mrf.mxu0
      %4888 = vmatprep.mubr.bf16.mxu0 %v692
      %4889 = vmatmul.mubr.bf16.gmra.mxu0 %v691
      %v4890 = vpop.f32.mrf.mxu0
      %v4891 = vadd.f32 0.0, %v4890
      %v4892 = vpop.f32.mrf.mxu0
      %v4893 = vpop.f32.mrf.mxu0
      %v4894 = vadd.f32 0.0, %v4893
      %v4895 = vpop.f32.mrf.mxu0
      %4896 = vmatprep.mubr.bf16.mxu0 %v695
      %4897 = vmatmul.mubr.bf16.gmra.mxu0 %v694
      %v4898 = vpop.f32.mrf.mxu0
      %v4899 = vadd.f32 0.0, %v4898
      %v4900 = vpop.f32.mrf.mxu0
      %v4901 = vpop.f32.mrf.mxu0
      %v4902 = vadd.f32 0.0, %v4901
      %v4903 = vpop.f32.mrf.mxu0
      %4904 = vmatprep.mubr.bf16.mxu0 %v698
      %4905 = vmatmul.mubr.bf16.gmra.mxu0 %v697
      %v4906 = vpop.f32.mrf.mxu0
      %v4907 = vadd.f32 0.0, %v4906
      %v4908 = vpop.f32.mrf.mxu0
      %v4909 = vpop.f32.mrf.mxu0
      %v4910 = vadd.f32 0.0, %v4909
      %v4911 = vpop.f32.mrf.mxu0
      %4912 = vmatprep.mubr.bf16.mxu0 %v701
      %4913 = vmatmul.mubr.bf16.gmra.mxu0 %v700
      %v4914 = vpop.f32.mrf.mxu0
      %v4915 = vadd.f32 0.0, %v4914
      %v4916 = vpop.f32.mrf.mxu0
      %v4917 = vpop.f32.mrf.mxu0
      %v4918 = vadd.f32 0.0, %v4917
      %v4919 = vpop.f32.mrf.mxu0
      %4920 = vmatprep.mubr.bf16.mxu0 %v704
      %4921 = vmatmul.mubr.bf16.gmra.mxu0 %v703
      %v4922 = vpop.f32.mrf.mxu0
      %v4923 = vadd.f32 0.0, %v4922
      %v4924 = vpop.f32.mrf.mxu0
      %v4925 = vpop.f32.mrf.mxu0
      %v4926 = vadd.f32 0.0, %v4925
      %v4927 = vpop.f32.mrf.mxu0
      %4928 = vmatprep.mubr.bf16.mxu0 %v707
      %4929 = vmatmul.mubr.bf16.gmra.mxu0 %v706
      %v4930 = vpop.f32.mrf.mxu0
      %v4931 = vadd.f32 0.0, %v4930
      %v4932 = vpop.f32.mrf.mxu0
      %v4933 = vpop.f32.mrf.mxu0
      %v4934 = vadd.f32 0.0, %v4933
      %v4935 = vpop.f32.mrf.mxu0
      %4936 = vmatprep.mubr.bf16.mxu0 %v710
      %4937 = vmatmul.mubr.bf16.gmra.mxu0 %v709
      %v4938 = vpop.f32.mrf.mxu0
      %v4939 = vadd.f32 0.0, %v4938
      %v4940 = vpop.f32.mrf.mxu0
      %v4941 = vpop.f32.mrf.mxu0
      %v4942 = vadd.f32 0.0, %v4941
      %v4943 = vpop.f32.mrf.mxu0
      %4944 = vmatprep.mubr.bf16.mxu0 %v713
      %4945 = vmatmul.mubr.bf16.gmra.mxu0 %v712
      %v4946 = vpop.f32.mrf.mxu0
      %v4947 = vadd.f32 0.0, %v4946
      %v4948 = vpop.f32.mrf.mxu0
      %v4949 = vpop.f32.mrf.mxu0
      %v4950 = vadd.f32 0.0, %v4949
      %v4951 = vpop.f32.mrf.mxu0
      %4952 = vdwg.mxu0
      %4953 = vmatprep.subr.bf16.mxu0 0
      %4954 = vmatpush1.bf16.msra.mxu0 0
      %4955 = vmatprep.subr.bf16.mxu0 0
      %4956 = vmatpush1.bf16.msra.mxu0 0
      %4957 = vmatprep.subr.bf16.mxu0 0
      %4958 = vmatpush1.bf16.msra.mxu0 0
      %4959 = vmatprep.subr.bf16.mxu0 0
      %4960 = vmatpush1.bf16.msra.mxu0 0
      %4961 = vmatprep.subr.bf16.mxu0 0
      %4962 = vmatpush1.bf16.msra.mxu0 0
      %4963 = vmatprep.subr.bf16.mxu0 0
      %4964 = vmatpush1.bf16.msra.mxu0 0
      %4965 = vmatprep.subr.bf16.mxu0 0
      %4966 = vmatpush1.bf16.msra.mxu0 0
      %4967 = vmatprep.subr.bf16.mxu0 0
      %4968 = vmatpush1.bf16.msra.mxu0 %v4766
      %4969 = vmatprep.subr.bf16.mxu0 0
      %4970 = vmatpush2.bf16.msra.mxu0 0
      %4971 = vmatprep.subr.bf16.mxu0 0
      %4972 = vmatpush2.bf16.msra.mxu0 0
      %4973 = vmatprep.subr.bf16.mxu0 0
      %4974 = vmatpush2.bf16.msra.mxu0 0
      %4975 = vmatprep.subr.bf16.mxu0 0
      %4976 = vmatpush2.bf16.msra.mxu0 0
      %4977 = vmatprep.subr.bf16.mxu0 0
      %4978 = vmatpush2.bf16.msra.mxu0 0
      %4979 = vmatprep.subr.bf16.mxu0 0
      %4980 = vmatpush2.bf16.msra.mxu0 0
      %4981 = vmatprep.subr.bf16.mxu0 0
      %4982 = vmatpush2.bf16.msra.mxu0 0
      %4983 = vmatprep.subr.bf16.mxu0 0
      %4984 = vmatpush2.bf16.msra.mxu0 0
      %4985 = vmatprep.mubr.bf16.mxu0 0
      %4986 = vmatmul.mubr.bf16.gmra.mxu0 %v853
      %v4987 = vpop.f32.mrf.mxu0
      %v4988 = vadd.f32 %v4819, %v4987
      %v4989 = vpop.f32.mrf.mxu0
      %v4990 = vpop.f32.mrf.mxu0
      %v4991 = vadd.f32 %v4822, %v4990
      %v4992 = vpop.f32.mrf.mxu0
      %4993 = vmatprep.mubr.bf16.mxu0 0
      %4994 = vmatmul.mubr.bf16.gmra.mxu0 %v856
      %v4995 = vpop.f32.mrf.mxu0
      %v4996 = vadd.f32 %v4827, %v4995
      %v4997 = vpop.f32.mrf.mxu0
      %v4998 = vpop.f32.mrf.mxu0
      %v4999 = vadd.f32 %v4830, %v4998
      %v5000 = vpop.f32.mrf.mxu0
      %5001 = vmatprep.mubr.bf16.mxu0 0
      %5002 = vmatmul.mubr.bf16.gmra.mxu0 %v859
      %v5003 = vpop.f32.mrf.mxu0
      %v5004 = vadd.f32 %v4835, %v5003
      %v5005 = vpop.f32.mrf.mxu0
      %v5006 = vpop.f32.mrf.mxu0
      %v5007 = vadd.f32 %v4838, %v5006
      %v5008 = vpop.f32.mrf.mxu0
      %5009 = vmatprep.mubr.bf16.mxu0 0
      %5010 = vmatmul.mubr.bf16.gmra.mxu0 %v862
      %v5011 = vpop.f32.mrf.mxu0
      %v5012 = vadd.f32 %v4843, %v5011
      %v5013 = vpop.f32.mrf.mxu0
      %v5014 = vpop.f32.mrf.mxu0
      %v5015 = vadd.f32 %v4846, %v5014
      %v5016 = vpop.f32.mrf.mxu0
      %5017 = vmatprep.mubr.bf16.mxu0 0
      %5018 = vmatmul.mubr.bf16.gmra.mxu0 %v865
      %v5019 = vpop.f32.mrf.mxu0
      %v5020 = vadd.f32 %v4851, %v5019
      %v5021 = vpop.f32.mrf.mxu0
      %v5022 = vpop.f32.mrf.mxu0
      %v5023 = vadd.f32 %v4854, %v5022
      %v5024 = vpop.f32.mrf.mxu0
      %5025 = vmatprep.mubr.bf16.mxu0 0
      %5026 = vmatmul.mubr.bf16.gmra.mxu0 %v868
      %v5027 = vpop.f32.mrf.mxu0
      %v5028 = vadd.f32 %v4859, %v5027
      %v5029 = vpop.f32.mrf.mxu0
      %v5030 = vpop.f32.mrf.mxu0
      %v5031 = vadd.f32 %v4862, %v5030
      %v5032 = vpop.f32.mrf.mxu0
      %5033 = vmatprep.mubr.bf16.mxu0 0
      %5034 = vmatmul.mubr.bf16.gmra.mxu0 %v871
      %v5035 = vpop.f32.mrf.mxu0
      %v5036 = vadd.f32 %v4867, %v5035
      %v5037 = vpop.f32.mrf.mxu0
      %v5038 = vpop.f32.mrf.mxu0
      %v5039 = vadd.f32 %v4870, %v5038
      %v5040 = vpop.f32.mrf.mxu0
      %5041 = vmatprep.mubr.bf16.mxu0 0
      %5042 = vmatmul.mubr.bf16.gmra.mxu0 %v874
      %v5043 = vpop.f32.mrf.mxu0
      %v5044 = vadd.f32 %v4875, %v5043
      %v5045 = vpop.f32.mrf.mxu0
      %v5046 = vpop.f32.mrf.mxu0
      %v5047 = vadd.f32 %v4878, %v5046
      %v5048 = vpop.f32.mrf.mxu0
      %5049 = vmatprep.mubr.bf16.mxu0 0
      %5050 = vmatmul.mubr.bf16.gmra.mxu0 %v877
      %v5051 = vpop.f32.mrf.mxu0
      %v5052 = vadd.f32 %v4883, %v5051
      %v5053 = vpop.f32.mrf.mxu0
      %v5054 = vpop.f32.mrf.mxu0
      %v5055 = vadd.f32 %v4886, %v5054
      %v5056 = vpop.f32.mrf.mxu0
      %5057 = vmatprep.mubr.bf16.mxu0 0
      %5058 = vmatmul.mubr.bf16.gmra.mxu0 %v880
      %v5059 = vpop.f32.mrf.mxu0
      %v5060 = vadd.f32 %v4891, %v5059
      %v5061 = vpop.f32.mrf.mxu0
      %v5062 = vpop.f32.mrf.mxu0
      %v5063 = vadd.f32 %v4894, %v5062
      %v5064 = vpop.f32.mrf.mxu0
      %5065 = vmatprep.mubr.bf16.mxu0 0
      %5066 = vmatmul.mubr.bf16.gmra.mxu0 %v883
      %v5067 = vpop.f32.mrf.mxu0
      %v5068 = vadd.f32 %v4899, %v5067
      %v5069 = vpop.f32.mrf.mxu0
      %v5070 = vpop.f32.mrf.mxu0
      %v5071 = vadd.f32 %v4902, %v5070
      %v5072 = vpop.f32.mrf.mxu0
      %5073 = vmatprep.mubr.bf16.mxu0 0
      %5074 = vmatmul.mubr.bf16.gmra.mxu0 %v886
      %v5075 = vpop.f32.mrf.mxu0
      %v5076 = vadd.f32 %v4907, %v5075
      %v5077 = vpop.f32.mrf.mxu0
      %v5078 = vpop.f32.mrf.mxu0
      %v5079 = vadd.f32 %v4910, %v5078
      %v5080 = vpop.f32.mrf.mxu0
      %5081 = vmatprep.mubr.bf16.mxu0 0
      %5082 = vmatmul.mubr.bf16.gmra.mxu0 %v889
      %v5083 = vpop.f32.mrf.mxu0
      %v5084 = vadd.f32 %v4915, %v5083
      %v5085 = vpop.f32.mrf.mxu0
      %v5086 = vpop.f32.mrf.mxu0
      %v5087 = vadd.f32 %v4918, %v5086
      %v5088 = vpop.f32.mrf.mxu0
      %5089 = vmatprep.mubr.bf16.mxu0 0
      %5090 = vmatmul.mubr.bf16.gmra.mxu0 %v892
      %v5091 = vpop.f32.mrf.mxu0
      %v5092 = vadd.f32 %v4923, %v5091
      %v5093 = vpop.f32.mrf.mxu0
      %v5094 = vpop.f32.mrf.mxu0
      %v5095 = vadd.f32 %v4926, %v5094
      %v5096 = vpop.f32.mrf.mxu0
      %5097 = vmatprep.mubr.bf16.mxu0 0
      %5098 = vmatmul.mubr.bf16.gmra.mxu0 %v895
      %v5099 = vpop.f32.mrf.mxu0
      %v5100 = vadd.f32 %v4931, %v5099
      %v5101 = vpop.f32.mrf.mxu0
      %v5102 = vpop.f32.mrf.mxu0
      %v5103 = vadd.f32 %v4934, %v5102
      %v5104 = vpop.f32.mrf.mxu0
      %5105 = vmatprep.mubr.bf16.mxu0 0
      %5106 = vmatmul.mubr.bf16.gmra.mxu0 %v898
      %v5107 = vpop.f32.mrf.mxu0
      %v5108 = vadd.f32 %v4939, %v5107
      %v5109 = vpop.f32.mrf.mxu0
      %v5110 = vpop.f32.mrf.mxu0
      %v5111 = vadd.f32 %v4942, %v5110
      %v5112 = vpop.f32.mrf.mxu0
      %5113 = vmatprep.mubr.bf16.mxu0 0
      %5114 = vmatmul.mubr.bf16.gmra.mxu0 %v901
      %v5115 = vpop.f32.mrf.mxu0
      %v5116 = vadd.f32 %v4947, %v5115
      %v5117 = vpop.f32.mrf.mxu0
      %v5118 = vpop.f32.mrf.mxu0
      %v5119 = vadd.f32 %v4950, %v5118
      %v5120 = vpop.f32.mrf.mxu0
      %5121 = vdwg.mxu0
      %v5122 = vadd.f32 %v4006, %v4565
      %v5123 = vadd.f32 %v4009, %v4568
      %v5124 = vadd.f32 %v4014, %v4573
      %v5125 = vadd.f32 %v4017, %v4576
      %v5126 = vadd.f32 %v4022, %v4581
      %v5127 = vadd.f32 %v4025, %v4584
      %v5128 = vadd.f32 %v4030, %v4589
      %v5129 = vadd.f32 %v4033, %v4592
      %v5130 = vadd.f32 %v4038, %v4597
      %v5131 = vadd.f32 %v4041, %v4600
      %v5132 = vadd.f32 %v4046, %v4605
      %v5133 = vadd.f32 %v4049, %v4608
      %v5134 = vadd.f32 %v4054, %v4613
      %v5135 = vadd.f32 %v4057, %v4616
      %v5136 = vadd.f32 %v4062, %v4621
      %v5137 = vadd.f32 %v4065, %v4624
      %v5138 = vadd.f32 %v4070, %v4629
      %v5139 = vadd.f32 %v4073, %v4632
      %v5140 = vadd.f32 %v4078, %v4637
      %v5141 = vadd.f32 %v4081, %v4640
      %v5142 = vadd.f32 %v4086, %v4645
      %v5143 = vadd.f32 %v4089, %v4648
      %v5144 = vadd.f32 %v4094, %v4653
      %v5145 = vadd.f32 %v4097, %v4656
      %v5146 = vadd.f32 %v4102, %v4661
      %v5147 = vadd.f32 %v4105, %v4664
      %v5148 = vadd.f32 %v4110, %v4669
      %v5149 = vadd.f32 %v4113, %v4672
      %v5150 = vadd.f32 %v4118, %v4677
      %v5151 = vadd.f32 %v4121, %v4680
      %v5152 = vadd.f32 %v4126, %v4685
      %v5153 = vadd.f32 %v4129, %v4688
      %v5154 = vadd.f32 %v4134, %v4693
      %v5155 = vadd.f32 %v4137, %v4696
      %v5156 = vmul.f32 %v4988, 2.0
      %v5157 = vmul.f32 %v4991, 2.0
      %v5158 = vmul.f32 %v4996, 2.0
      %v5159 = vmul.f32 %v4999, 2.0
      %v5160 = vmul.f32 %v5004, 2.0
      %v5161 = vmul.f32 %v5007, 2.0
      %v5162 = vmul.f32 %v5012, 2.0
      %v5163 = vmul.f32 %v5015, 2.0
      %v5164 = vmul.f32 %v5020, 2.0
      %v5165 = vmul.f32 %v5023, 2.0
      %v5166 = vmul.f32 %v5028, 2.0
      %v5167 = vmul.f32 %v5031, 2.0
      %v5168 = vmul.f32 %v5036, 2.0
      %v5169 = vmul.f32 %v5039, 2.0
      %v5170 = vmul.f32 %v5044, 2.0
      %v5171 = vmul.f32 %v5047, 2.0
      %v5172 = vmul.f32 %v5052, 2.0
      %v5173 = vmul.f32 %v5055, 2.0
      %v5174 = vmul.f32 %v5060, 2.0
      %v5175 = vmul.f32 %v5063, 2.0
      %v5176 = vmul.f32 %v5068, 2.0
      %v5177 = vmul.f32 %v5071, 2.0
      %v5178 = vmul.f32 %v5076, 2.0
      %v5179 = vmul.f32 %v5079, 2.0
      %v5180 = vmul.f32 %v5084, 2.0
      %v5181 = vmul.f32 %v5087, 2.0
      %v5182 = vmul.f32 %v5092, 2.0
      %v5183 = vmul.f32 %v5095, 2.0
      %v5184 = vmul.f32 %v5100, 2.0
      %v5185 = vmul.f32 %v5103, 2.0
      %v5186 = vmul.f32 %v5108, 2.0
      %v5187 = vmul.f32 %v5111, 2.0
      %v5188 = vmul.f32 %v5116, 2.0
      %v5189 = vmul.f32 %v5119, 2.0
      %v5190 = vadd.f32 %v5122, %v5156
      %v5191 = vadd.f32 %v5123, %v5157
      %v5192 = vadd.f32 %v5124, %v5158
      %v5193 = vadd.f32 %v5125, %v5159
      %v5194 = vadd.f32 %v5126, %v5160
      %v5195 = vadd.f32 %v5127, %v5161
      %v5196 = vadd.f32 %v5128, %v5162
      %v5197 = vadd.f32 %v5129, %v5163
      %v5198 = vadd.f32 %v5130, %v5164
      %v5199 = vadd.f32 %v5131, %v5165
      %v5200 = vadd.f32 %v5132, %v5166
      %v5201 = vadd.f32 %v5133, %v5167
      %v5202 = vadd.f32 %v5134, %v5168
      %v5203 = vadd.f32 %v5135, %v5169
      %v5204 = vadd.f32 %v5136, %v5170
      %v5205 = vadd.f32 %v5137, %v5171
      %v5206 = vadd.f32 %v5138, %v5172
      %v5207 = vadd.f32 %v5139, %v5173
      %v5208 = vadd.f32 %v5140, %v5174
      %v5209 = vadd.f32 %v5141, %v5175
      %v5210 = vadd.f32 %v5142, %v5176
      %v5211 = vadd.f32 %v5143, %v5177
      %v5212 = vadd.f32 %v5144, %v5178
      %v5213 = vadd.f32 %v5145, %v5179
      %v5214 = vadd.f32 %v5146, %v5180
      %v5215 = vadd.f32 %v5147, %v5181
      %v5216 = vadd.f32 %v5148, %v5182
      %v5217 = vadd.f32 %v5149, %v5183
      %v5218 = vadd.f32 %v5150, %v5184
      %v5219 = vadd.f32 %v5151, %v5185
      %v5220 = vadd.f32 %v5152, %v5186
      %v5221 = vadd.f32 %v5153, %v5187
      %v5222 = vadd.f32 %v5154, %v5188
      %v5223 = vadd.f32 %v5155, %v5189
      %5258 = vrot.lane.b32.xlu0 %v4006, 112
      %v5259 = vpop.permute.xlu0 %5258
      %5260 = vrot.lane.b32.xlu0 %v4009, 112
      %v5261 = vpop.permute.xlu0 %5260
      %5262 = vrot.lane.b32.xlu0 %v4014, 112
      %v5263 = vpop.permute.xlu0 %5262
      %5264 = vrot.lane.b32.xlu0 %v4017, 112
      %v5265 = vpop.permute.xlu0 %5264
      %5266 = vrot.lane.b32.xlu0 %v4022, 112
      %v5267 = vpop.permute.xlu0 %5266
      %5268 = vrot.lane.b32.xlu0 %v4025, 112
      %v5269 = vpop.permute.xlu0 %5268
      %5270 = vrot.lane.b32.xlu0 %v4030, 112
      %v5271 = vpop.permute.xlu0 %5270
      %5272 = vrot.lane.b32.xlu0 %v4033, 112
      %v5273 = vpop.permute.xlu0 %5272
      %5274 = vrot.lane.b32.xlu0 %v4038, 112
      %v5275 = vpop.permute.xlu0 %5274
      %5276 = vrot.lane.b32.xlu0 %v4041, 112
      %v5277 = vpop.permute.xlu0 %5276
      %5278 = vrot.lane.b32.xlu0 %v4046, 112
      %v5279 = vpop.permute.xlu0 %5278
      %5280 = vrot.lane.b32.xlu0 %v4049, 112
      %v5281 = vpop.permute.xlu0 %5280
      %5282 = vrot.lane.b32.xlu0 %v4054, 112
      %v5283 = vpop.permute.xlu0 %5282
      %5284 = vrot.lane.b32.xlu0 %v4057, 112
      %v5285 = vpop.permute.xlu0 %5284
      %5286 = vrot.lane.b32.xlu0 %v4062, 112
      %v5287 = vpop.permute.xlu0 %5286
      %5288 = vrot.lane.b32.xlu0 %v4065, 112
      %v5289 = vpop.permute.xlu0 %5288
      %5290 = vrot.lane.b32.xlu0 %v4070, 112
      %v5291 = vpop.permute.xlu0 %5290
      %5292 = vrot.lane.b32.xlu0 %v4073, 112
      %v5293 = vpop.permute.xlu0 %5292
      %5294 = vrot.lane.b32.xlu0 %v4078, 112
      %v5295 = vpop.permute.xlu0 %5294
      %5296 = vrot.lane.b32.xlu0 %v4081, 112
      %v5297 = vpop.permute.xlu0 %5296
      %5298 = vrot.lane.b32.xlu0 %v4086, 112
      %v5299 = vpop.permute.xlu0 %5298
      %5300 = vrot.lane.b32.xlu0 %v4089, 112
      %v5301 = vpop.permute.xlu0 %5300
      %5302 = vrot.lane.b32.xlu0 %v4094, 112
      %v5303 = vpop.permute.xlu0 %5302
      %5304 = vrot.lane.b32.xlu0 %v4097, 112
      %v5305 = vpop.permute.xlu0 %5304
      %5306 = vrot.lane.b32.xlu0 %v4102, 112
      %v5307 = vpop.permute.xlu0 %5306
      %5308 = vrot.lane.b32.xlu0 %v4105, 112
      %v5309 = vpop.permute.xlu0 %5308
      %5310 = vrot.lane.b32.xlu0 %v4110, 112
      %v5311 = vpop.permute.xlu0 %5310
      %5312 = vrot.lane.b32.xlu0 %v4113, 112
      %v5313 = vpop.permute.xlu0 %5312
      %5314 = vrot.lane.b32.xlu0 %v4118, 112
      %v5315 = vpop.permute.xlu0 %5314
      %5316 = vrot.lane.b32.xlu0 %v4121, 112
      %v5317 = vpop.permute.xlu0 %5316
      %5318 = vrot.lane.b32.xlu0 %v4126, 112
      %v5319 = vpop.permute.xlu0 %5318
      %5320 = vrot.lane.b32.xlu0 %v4129, 112
      %v5321 = vpop.permute.xlu0 %5320
      %5322 = vrot.lane.b32.xlu0 %v4134, 112
      %v5323 = vpop.permute.xlu0 %5322
      %5324 = vrot.lane.b32.xlu0 %v4137, 112
      %v5325 = vpop.permute.xlu0 %5324
      %v5360 = vsub.f32 %v5190, %v5259
      %v5361 = vsub.f32 %v5191, %v5261
      %v5362 = vsub.f32 %v5192, %v5263
      %v5363 = vsub.f32 %v5193, %v5265
      %v5364 = vsub.f32 %v5194, %v5267
      %v5365 = vsub.f32 %v5195, %v5269
      %v5366 = vsub.f32 %v5196, %v5271
      %v5367 = vsub.f32 %v5197, %v5273
      %v5368 = vsub.f32 %v5198, %v5275
      %v5369 = vsub.f32 %v5199, %v5277
      %v5370 = vsub.f32 %v5200, %v5279
      %v5371 = vsub.f32 %v5201, %v5281
      %v5372 = vsub.f32 %v5202, %v5283
      %v5373 = vsub.f32 %v5203, %v5285
      %v5374 = vsub.f32 %v5204, %v5287
      %v5375 = vsub.f32 %v5205, %v5289
      %v5376 = vsub.f32 %v5206, %v5291
      %v5377 = vsub.f32 %v5207, %v5293
      %v5378 = vsub.f32 %v5208, %v5295
      %v5379 = vsub.f32 %v5209, %v5297
      %v5380 = vsub.f32 %v5210, %v5299
      %v5381 = vsub.f32 %v5211, %v5301
      %v5382 = vsub.f32 %v5212, %v5303
      %v5383 = vsub.f32 %v5213, %v5305
      %v5384 = vsub.f32 %v5214, %v5307
      %v5385 = vsub.f32 %v5215, %v5309
      %v5386 = vsub.f32 %v5216, %v5311
      %v5387 = vsub.f32 %v5217, %v5313
      %v5388 = vsub.f32 %v5218, %v5315
      %v5389 = vsub.f32 %v5219, %v5317
      %v5390 = vsub.f32 %v5220, %v5319
      %v5391 = vsub.f32 %v5221, %v5321
      %v5392 = vsub.f32 %v5222, %v5323
      %v5393 = vsub.f32 %v5223, %v5325
      %v5394 = vld [vmem:[%s5] sm:$0x1]
      %v5396 = vlaneseq
      %v5397 = vshrl.u32 %v5396, 7
      %v5398 = vsub.s32 0, %v5397
      %v5399 = vrot.slane %v5394, %v5398
      %v5401 = vadd.f32 %v5360, %v5399
      %v5402 = vadd.f32 %v5361, %v5399
      %v5403 = vadd.f32 %v5362, %v5399
      %v5404 = vadd.f32 %v5363, %v5399
      %v5405 = vadd.f32 %v5364, %v5399
      %v5406 = vadd.f32 %v5365, %v5399
      %v5407 = vadd.f32 %v5366, %v5399
      %v5408 = vadd.f32 %v5367, %v5399
      %v5409 = vadd.f32 %v5368, %v5399
      %v5410 = vadd.f32 %v5369, %v5399
      %v5411 = vadd.f32 %v5370, %v5399
      %v5412 = vadd.f32 %v5371, %v5399
      %v5413 = vadd.f32 %v5372, %v5399
      %v5414 = vadd.f32 %v5373, %v5399
      %v5415 = vadd.f32 %v5374, %v5399
      %v5416 = vadd.f32 %v5375, %v5399
      %v5417 = vadd.f32 %v5376, %v5399
      %v5418 = vadd.f32 %v5377, %v5399
      %v5419 = vadd.f32 %v5378, %v5399
      %v5420 = vadd.f32 %v5379, %v5399
      %v5421 = vadd.f32 %v5380, %v5399
      %v5422 = vadd.f32 %v5381, %v5399
      %v5423 = vadd.f32 %v5382, %v5399
      %v5424 = vadd.f32 %v5383, %v5399
      %v5425 = vadd.f32 %v5384, %v5399
      %v5426 = vadd.f32 %v5385, %v5399
      %v5427 = vadd.f32 %v5386, %v5399
      %v5428 = vadd.f32 %v5387, %v5399
      %v5429 = vadd.f32 %v5388, %v5399
      %v5430 = vadd.f32 %v5389, %v5399
      %v5431 = vadd.f32 %v5390, %v5399
      %v5432 = vadd.f32 %v5391, %v5399
      %v5433 = vadd.f32 %v5392, %v5399
      %v5434 = vadd.f32 %v5393, %v5399
      %v5435 = vpack.c.bf16 %v5402, %v5401
      %v5436 = vpack.c.bf16 %v5404, %v5403
      %v5437 = vpack.c.bf16 %v5406, %v5405
      %v5438 = vpack.c.bf16 %v5408, %v5407
      %v5439 = vpack.c.bf16 %v5410, %v5409
      %v5440 = vpack.c.bf16 %v5412, %v5411
      %v5441 = vpack.c.bf16 %v5414, %v5413
      %v5442 = vpack.c.bf16 %v5416, %v5415
      %v5443 = vpack.c.bf16 %v5418, %v5417
      %v5444 = vpack.c.bf16 %v5420, %v5419
      %v5445 = vpack.c.bf16 %v5422, %v5421
      %v5446 = vpack.c.bf16 %v5424, %v5423
      %v5447 = vpack.c.bf16 %v5426, %v5425
      %v5448 = vpack.c.bf16 %v5428, %v5427
      %v5449 = vpack.c.bf16 %v5430, %v5429
      %v5450 = vpack.c.bf16 %v5432, %v5431
      %v5451 = vpack.c.bf16 %v5434, %v5433
      %v5452 = vpack.c.bf16 %v4145, %v4142
      %v5453 = vpack.c.bf16 %v4153, %v4150
      %v5454 = vpack.c.bf16 %v4161, %v4158
      %v5455 = vpack.c.bf16 %v4169, %v4166
      %v5456 = vpack.c.bf16 %v4177, %v4174
      %v5457 = vpack.c.bf16 %v4185, %v4182
      %v5458 = vpack.c.bf16 %v4193, %v4190
      %v5459 = vpack.c.bf16 %v4201, %v4198
      %v5460 = vpack.c.bf16 %v4209, %v4206
      %v5461 = vpack.c.bf16 %v4217, %v4214
      %v5462 = vpack.c.bf16 %v4225, %v4222
      %v5463 = vpack.c.bf16 %v4233, %v4230
      %v5464 = vpack.c.bf16 %v4241, %v4238
      %v5465 = vpack.c.bf16 %v4249, %v4246
      %v5466 = vpack.c.bf16 %v4257, %v4254
      %v5467 = vpack.c.bf16 %v4265, %v4262
      %v5468 = vpack.c.bf16 %v4273, %v4270
      %5486 = vrot.lane.b32.xlu0 %v5452, 120
      %v5487 = vpop.permute.xlu0 %5486
      %5488 = vrot.lane.b32.xlu0 %v5453, 120
      %v5489 = vpop.permute.xlu0 %5488
      %5490 = vrot.lane.b32.xlu0 %v5454, 120
      %v5491 = vpop.permute.xlu0 %5490
      %5492 = vrot.lane.b32.xlu0 %v5455, 120
      %v5493 = vpop.permute.xlu0 %5492
      %5494 = vrot.lane.b32.xlu0 %v5456, 120
      %v5495 = vpop.permute.xlu0 %5494
      %5496 = vrot.lane.b32.xlu0 %v5457, 120
      %v5497 = vpop.permute.xlu0 %5496
      %5498 = vrot.lane.b32.xlu0 %v5458, 120
      %v5499 = vpop.permute.xlu0 %5498
      %5500 = vrot.lane.b32.xlu0 %v5459, 120
      %v5501 = vpop.permute.xlu0 %5500
      %5502 = vrot.lane.b32.xlu0 %v5460, 120
      %v5503 = vpop.permute.xlu0 %5502
      %5504 = vrot.lane.b32.xlu0 %v5461, 120
      %v5505 = vpop.permute.xlu0 %5504
      %5506 = vrot.lane.b32.xlu0 %v5462, 120
      %v5507 = vpop.permute.xlu0 %5506
      %5508 = vrot.lane.b32.xlu0 %v5463, 120
      %v5509 = vpop.permute.xlu0 %5508
      %5510 = vrot.lane.b32.xlu0 %v5464, 120
      %v5511 = vpop.permute.xlu0 %5510
      %5512 = vrot.lane.b32.xlu0 %v5465, 120
      %v5513 = vpop.permute.xlu0 %5512
      %5514 = vrot.lane.b32.xlu0 %v5466, 120
      %v5515 = vpop.permute.xlu0 %5514
      %5516 = vrot.lane.b32.xlu0 %v5467, 120
      %v5517 = vpop.permute.xlu0 %5516
      %5518 = vrot.lane.b32.xlu0 %v5468, 120
      %v5519 = vpop.permute.xlu0 %5518
      %5537 = vmatprep.subr.bf16.mxu0 0
      %5538 = vmatpush1.bf16.msra.mxu0 %v5501
      %5539 = vmatprep.subr.bf16.mxu0 0
      %5540 = vmatpush1.bf16.msra.mxu0 %v5499
      %5541 = vmatprep.subr.bf16.mxu0 0
      %5542 = vmatpush1.bf16.msra.mxu0 %v5497
      %5543 = vmatprep.subr.bf16.mxu0 0
      %5544 = vmatpush1.bf16.msra.mxu0 %v5495
      %5545 = vmatprep.subr.bf16.mxu0 0
      %5546 = vmatpush1.bf16.msra.mxu0 %v5493
      %5547 = vmatprep.subr.bf16.mxu0 0
      %5548 = vmatpush1.bf16.msra.mxu0 %v5491
      %5549 = vmatprep.subr.bf16.mxu0 0
      %5550 = vmatpush1.bf16.msra.mxu0 %v5489
      %5551 = vmatprep.subr.bf16.mxu0 0
      %5552 = vmatpush1.bf16.msra.mxu0 %v5487
      %5553 = vmatprep.subr.bf16.mxu0 0
      %5554 = vmatpush2.bf16.msra.mxu0 %v5517
      %5555 = vmatprep.subr.bf16.mxu0 0
      %5556 = vmatpush2.bf16.msra.mxu0 %v5515
      %5557 = vmatprep.subr.bf16.mxu0 0
      %5558 = vmatpush2.bf16.msra.mxu0 %v5513
      %5559 = vmatprep.subr.bf16.mxu0 0
      %5560 = vmatpush2.bf16.msra.mxu0 %v5511
      %5561 = vmatprep.subr.bf16.mxu0 0
      %5562 = vmatpush2.bf16.msra.mxu0 %v5509
      %5563 = vmatprep.subr.bf16.mxu0 0
      %5564 = vmatpush2.bf16.msra.mxu0 %v5507
      %5565 = vmatprep.subr.bf16.mxu0 0
      %5566 = vmatpush2.bf16.msra.mxu0 %v5505
      %5567 = vmatprep.subr.bf16.mxu0 0
      %5568 = vmatpush2.bf16.msra.mxu0 %v5503
      %5569 = vmatprep.mubr.bf16.mxu0 %v2178
      %5570 = vmatmul.mubr.bf16.gmra.mxu0 %v2177
      %v5571 = vpop.f32.mrf.mxu0
      %v5572 = vadd.f32 0.0, %v5571
      %v5573 = vpop.f32.mrf.mxu0
      %v5574 = vpop.f32.mrf.mxu0
      %v5575 = vadd.f32 0.0, %v5574
      %v5576 = vpop.f32.mrf.mxu0
      %5577 = vmatprep.mubr.bf16.mxu0 %v2181
      %5578 = vmatmul.mubr.bf16.gmra.mxu0 %v2180
      %v5579 = vpop.f32.mrf.mxu0
      %v5580 = vadd.f32 0.0, %v5579
      %v5581 = vpop.f32.mrf.mxu0
      %v5582 = vpop.f32.mrf.mxu0
      %v5583 = vadd.f32 0.0, %v5582
      %v5584 = vpop.f32.mrf.mxu0
      %5585 = vmatprep.mubr.bf16.mxu0 %v2184
      %5586 = vmatmul.mubr.bf16.gmra.mxu0 %v2183
      %v5587 = vpop.f32.mrf.mxu0
      %v5588 = vadd.f32 0.0, %v5587
      %v5589 = vpop.f32.mrf.mxu0
      %v5590 = vpop.f32.mrf.mxu0
      %v5591 = vadd.f32 0.0, %v5590
      %v5592 = vpop.f32.mrf.mxu0
      %5593 = vmatprep.mubr.bf16.mxu0 %v2187
      %5594 = vmatmul.mubr.bf16.gmra.mxu0 %v2186
      %v5595 = vpop.f32.mrf.mxu0
      %v5596 = vadd.f32 0.0, %v5595
      %v5597 = vpop.f32.mrf.mxu0
      %v5598 = vpop.f32.mrf.mxu0
      %v5599 = vadd.f32 0.0, %v5598
      %v5600 = vpop.f32.mrf.mxu0
      %5601 = vmatprep.mubr.bf16.mxu0 %v2190
      %5602 = vmatmul.mubr.bf16.gmra.mxu0 %v2189
      %v5603 = vpop.f32.mrf.mxu0
      %v5604 = vadd.f32 0.0, %v5603
      %v5605 = vpop.f32.mrf.mxu0
      %v5606 = vpop.f32.mrf.mxu0
      %v5607 = vadd.f32 0.0, %v5606
      %v5608 = vpop.f32.mrf.mxu0
      %5609 = vmatprep.mubr.bf16.mxu0 %v2193
      %5610 = vmatmul.mubr.bf16.gmra.mxu0 %v2192
      %v5611 = vpop.f32.mrf.mxu0
      %v5612 = vadd.f32 0.0, %v5611
      %v5613 = vpop.f32.mrf.mxu0
      %v5614 = vpop.f32.mrf.mxu0
      %v5615 = vadd.f32 0.0, %v5614
      %v5616 = vpop.f32.mrf.mxu0
      %5617 = vmatprep.mubr.bf16.mxu0 %v2196
      %5618 = vmatmul.mubr.bf16.gmra.mxu0 %v2195
      %v5619 = vpop.f32.mrf.mxu0
      %v5620 = vadd.f32 0.0, %v5619
      %v5621 = vpop.f32.mrf.mxu0
      %v5622 = vpop.f32.mrf.mxu0
      %v5623 = vadd.f32 0.0, %v5622
      %v5624 = vpop.f32.mrf.mxu0
      %5625 = vmatprep.mubr.bf16.mxu0 %v2199
      %5626 = vmatmul.mubr.bf16.gmra.mxu0 %v2198
      %v5627 = vpop.f32.mrf.mxu0
      %v5628 = vadd.f32 0.0, %v5627
      %v5629 = vpop.f32.mrf.mxu0
      %v5630 = vpop.f32.mrf.mxu0
      %v5631 = vadd.f32 0.0, %v5630
      %v5632 = vpop.f32.mrf.mxu0
      %5633 = vmatprep.mubr.bf16.mxu0 %v2202
      %5634 = vmatmul.mubr.bf16.gmra.mxu0 %v2201
      %v5635 = vpop.f32.mrf.mxu0
      %v5636 = vadd.f32 0.0, %v5635
      %v5637 = vpop.f32.mrf.mxu0
      %v5638 = vpop.f32.mrf.mxu0
      %v5639 = vadd.f32 0.0, %v5638
      %v5640 = vpop.f32.mrf.mxu0
      %5641 = vmatprep.mubr.bf16.mxu0 %v2205
      %5642 = vmatmul.mubr.bf16.gmra.mxu0 %v2204
      %v5643 = vpop.f32.mrf.mxu0
      %v5644 = vadd.f32 0.0, %v5643
      %v5645 = vpop.f32.mrf.mxu0
      %v5646 = vpop.f32.mrf.mxu0
      %v5647 = vadd.f32 0.0, %v5646
      %v5648 = vpop.f32.mrf.mxu0
      %5649 = vmatprep.mubr.bf16.mxu0 %v2208
      %5650 = vmatmul.mubr.bf16.gmra.mxu0 %v2207
      %v5651 = vpop.f32.mrf.mxu0
      %v5652 = vadd.f32 0.0, %v5651
      %v5653 = vpop.f32.mrf.mxu0
      %v5654 = vpop.f32.mrf.mxu0
      %v5655 = vadd.f32 0.0, %v5654
      %v5656 = vpop.f32.mrf.mxu0
      %5657 = vmatprep.mubr.bf16.mxu0 %v2211
      %5658 = vmatmul.mubr.bf16.gmra.mxu0 %v2210
      %v5659 = vpop.f32.mrf.mxu0
      %v5660 = vadd.f32 0.0, %v5659
      %v5661 = vpop.f32.mrf.mxu0
      %v5662 = vpop.f32.mrf.mxu0
      %v5663 = vadd.f32 0.0, %v5662
      %v5664 = vpop.f32.mrf.mxu0
      %5665 = vmatprep.mubr.bf16.mxu0 %v2214
      %5666 = vmatmul.mubr.bf16.gmra.mxu0 %v2213
      %v5667 = vpop.f32.mrf.mxu0
      %v5668 = vadd.f32 0.0, %v5667
      %v5669 = vpop.f32.mrf.mxu0
      %v5670 = vpop.f32.mrf.mxu0
      %v5671 = vadd.f32 0.0, %v5670
      %v5672 = vpop.f32.mrf.mxu0
      %5673 = vmatprep.mubr.bf16.mxu0 %v2217
      %5674 = vmatmul.mubr.bf16.gmra.mxu0 %v2216
      %v5675 = vpop.f32.mrf.mxu0
      %v5676 = vadd.f32 0.0, %v5675
      %v5677 = vpop.f32.mrf.mxu0
      %v5678 = vpop.f32.mrf.mxu0
      %v5679 = vadd.f32 0.0, %v5678
      %v5680 = vpop.f32.mrf.mxu0
      %5681 = vmatprep.mubr.bf16.mxu0 %v2220
      %5682 = vmatmul.mubr.bf16.gmra.mxu0 %v2219
      %v5683 = vpop.f32.mrf.mxu0
      %v5684 = vadd.f32 0.0, %v5683
      %v5685 = vpop.f32.mrf.mxu0
      %v5686 = vpop.f32.mrf.mxu0
      %v5687 = vadd.f32 0.0, %v5686
      %v5688 = vpop.f32.mrf.mxu0
      %5689 = vmatprep.mubr.bf16.mxu0 %v2223
      %5690 = vmatmul.mubr.bf16.gmra.mxu0 %v2222
      %v5691 = vpop.f32.mrf.mxu0
      %v5692 = vadd.f32 0.0, %v5691
      %v5693 = vpop.f32.mrf.mxu0
      %v5694 = vpop.f32.mrf.mxu0
      %v5695 = vadd.f32 0.0, %v5694
      %v5696 = vpop.f32.mrf.mxu0
      %5697 = vmatprep.mubr.bf16.mxu0 %v2226
      %5698 = vmatmul.mubr.bf16.gmra.mxu0 %v2225
      %v5699 = vpop.f32.mrf.mxu0
      %v5700 = vadd.f32 0.0, %v5699
      %v5701 = vpop.f32.mrf.mxu0
      %v5702 = vpop.f32.mrf.mxu0
      %v5703 = vadd.f32 0.0, %v5702
      %v5704 = vpop.f32.mrf.mxu0
      %5705 = vdwg.mxu0
      %5706 = vmatprep.subr.bf16.mxu0 0
      %5707 = vmatpush1.bf16.msra.mxu0 0
      %5708 = vmatprep.subr.bf16.mxu0 0
      %5709 = vmatpush1.bf16.msra.mxu0 0
      %5710 = vmatprep.subr.bf16.mxu0 0
      %5711 = vmatpush1.bf16.msra.mxu0 0
      %5712 = vmatprep.subr.bf16.mxu0 0
      %5713 = vmatpush1.bf16.msra.mxu0 0
      %5714 = vmatprep.subr.bf16.mxu0 0
      %5715 = vmatpush1.bf16.msra.mxu0 0
      %5716 = vmatprep.subr.bf16.mxu0 0
      %5717 = vmatpush1.bf16.msra.mxu0 0
      %5718 = vmatprep.subr.bf16.mxu0 0
      %5719 = vmatpush1.bf16.msra.mxu0 0
      %5720 = vmatprep.subr.bf16.mxu0 0
      %5721 = vmatpush1.bf16.msra.mxu0 %v5519
      %5722 = vmatprep.subr.bf16.mxu0 0
      %5723 = vmatpush2.bf16.msra.mxu0 0
      %5724 = vmatprep.subr.bf16.mxu0 0
      %5725 = vmatpush2.bf16.msra.mxu0 0
      %5726 = vmatprep.subr.bf16.mxu0 0
      %5727 = vmatpush2.bf16.msra.mxu0 0
      %5728 = vmatprep.subr.bf16.mxu0 0
      %5729 = vmatpush2.bf16.msra.mxu0 0
      %5730 = vmatprep.subr.bf16.mxu0 0
      %5731 = vmatpush2.bf16.msra.mxu0 0
      %5732 = vmatprep.subr.bf16.mxu0 0
      %5733 = vmatpush2.bf16.msra.mxu0 0
      %5734 = vmatprep.subr.bf16.mxu0 0
      %5735 = vmatpush2.bf16.msra.mxu0 0
      %5736 = vmatprep.subr.bf16.mxu0 0
      %5737 = vmatpush2.bf16.msra.mxu0 0
      %5738 = vmatprep.mubr.bf16.mxu0 0
      %5739 = vmatmul.mubr.bf16.gmra.mxu0 %v2365
      %v5740 = vpop.f32.mrf.mxu0
      %v5741 = vadd.f32 %v5572, %v5740
      %v5742 = vpop.f32.mrf.mxu0
      %v5743 = vpop.f32.mrf.mxu0
      %v5744 = vadd.f32 %v5575, %v5743
      %v5745 = vpop.f32.mrf.mxu0
      %5746 = vmatprep.mubr.bf16.mxu0 0
      %5747 = vmatmul.mubr.bf16.gmra.mxu0 %v2368
      %v5748 = vpop.f32.mrf.mxu0
      %v5749 = vadd.f32 %v5580, %v5748
      %v5750 = vpop.f32.mrf.mxu0
      %v5751 = vpop.f32.mrf.mxu0
      %v5752 = vadd.f32 %v5583, %v5751
      %v5753 = vpop.f32.mrf.mxu0
      %5754 = vmatprep.mubr.bf16.mxu0 0
      %5755 = vmatmul.mubr.bf16.gmra.mxu0 %v2371
      %v5756 = vpop.f32.mrf.mxu0
      %v5757 = vadd.f32 %v5588, %v5756
      %v5758 = vpop.f32.mrf.mxu0
      %v5759 = vpop.f32.mrf.mxu0
      %v5760 = vadd.f32 %v5591, %v5759
      %v5761 = vpop.f32.mrf.mxu0
      %5762 = vmatprep.mubr.bf16.mxu0 0
      %5763 = vmatmul.mubr.bf16.gmra.mxu0 %v2374
      %v5764 = vpop.f32.mrf.mxu0
      %v5765 = vadd.f32 %v5596, %v5764
      %v5766 = vpop.f32.mrf.mxu0
      %v5767 = vpop.f32.mrf.mxu0
      %v5768 = vadd.f32 %v5599, %v5767
      %v5769 = vpop.f32.mrf.mxu0
      %5770 = vmatprep.mubr.bf16.mxu0 0
      %5771 = vmatmul.mubr.bf16.gmra.mxu0 %v2377
      %v5772 = vpop.f32.mrf.mxu0
      %v5773 = vadd.f32 %v5604, %v5772
      %v5774 = vpop.f32.mrf.mxu0
      %v5775 = vpop.f32.mrf.mxu0
      %v5776 = vadd.f32 %v5607, %v5775
      %v5777 = vpop.f32.mrf.mxu0
      %5778 = vmatprep.mubr.bf16.mxu0 0
      %5779 = vmatmul.mubr.bf16.gmra.mxu0 %v2380
      %v5780 = vpop.f32.mrf.mxu0
      %v5781 = vadd.f32 %v5612, %v5780
      %v5782 = vpop.f32.mrf.mxu0
      %v5783 = vpop.f32.mrf.mxu0
      %v5784 = vadd.f32 %v5615, %v5783
      %v5785 = vpop.f32.mrf.mxu0
      %5786 = vmatprep.mubr.bf16.mxu0 0
      %5787 = vmatmul.mubr.bf16.gmra.mxu0 %v2383
      %v5788 = vpop.f32.mrf.mxu0
      %v5789 = vadd.f32 %v5620, %v5788
      %v5790 = vpop.f32.mrf.mxu0
      %v5791 = vpop.f32.mrf.mxu0
      %v5792 = vadd.f32 %v5623, %v5791
      %v5793 = vpop.f32.mrf.mxu0
      %5794 = vmatprep.mubr.bf16.mxu0 0
      %5795 = vmatmul.mubr.bf16.gmra.mxu0 %v2386
      %v5796 = vpop.f32.mrf.mxu0
      %v5797 = vadd.f32 %v5628, %v5796
      %v5798 = vpop.f32.mrf.mxu0
      %v5799 = vpop.f32.mrf.mxu0
      %v5800 = vadd.f32 %v5631, %v5799
      %v5801 = vpop.f32.mrf.mxu0
      %5802 = vmatprep.mubr.bf16.mxu0 0
      %5803 = vmatmul.mubr.bf16.gmra.mxu0 %v2389
      %v5804 = vpop.f32.mrf.mxu0
      %v5805 = vadd.f32 %v5636, %v5804
      %v5806 = vpop.f32.mrf.mxu0
      %v5807 = vpop.f32.mrf.mxu0
      %v5808 = vadd.f32 %v5639, %v5807
      %v5809 = vpop.f32.mrf.mxu0
      %5810 = vmatprep.mubr.bf16.mxu0 0
      %5811 = vmatmul.mubr.bf16.gmra.mxu0 %v2392
      %v5812 = vpop.f32.mrf.mxu0
      %v5813 = vadd.f32 %v5644, %v5812
      %v5814 = vpop.f32.mrf.mxu0
      %v5815 = vpop.f32.mrf.mxu0
      %v5816 = vadd.f32 %v5647, %v5815
      %v5817 = vpop.f32.mrf.mxu0
      %5818 = vmatprep.mubr.bf16.mxu0 0
      %5819 = vmatmul.mubr.bf16.gmra.mxu0 %v2395
      %v5820 = vpop.f32.mrf.mxu0
      %v5821 = vadd.f32 %v5652, %v5820
      %v5822 = vpop.f32.mrf.mxu0
      %v5823 = vpop.f32.mrf.mxu0
      %v5824 = vadd.f32 %v5655, %v5823
      %v5825 = vpop.f32.mrf.mxu0
      %5826 = vmatprep.mubr.bf16.mxu0 0
      %5827 = vmatmul.mubr.bf16.gmra.mxu0 %v2398
      %v5828 = vpop.f32.mrf.mxu0
      %v5829 = vadd.f32 %v5660, %v5828
      %v5830 = vpop.f32.mrf.mxu0
      %v5831 = vpop.f32.mrf.mxu0
      %v5832 = vadd.f32 %v5663, %v5831
      %v5833 = vpop.f32.mrf.mxu0
      %5834 = vmatprep.mubr.bf16.mxu0 0
      %5835 = vmatmul.mubr.bf16.gmra.mxu0 %v2401
      %v5836 = vpop.f32.mrf.mxu0
      %v5837 = vadd.f32 %v5668, %v5836
      %v5838 = vpop.f32.mrf.mxu0
      %v5839 = vpop.f32.mrf.mxu0
      %v5840 = vadd.f32 %v5671, %v5839
      %v5841 = vpop.f32.mrf.mxu0
      %5842 = vmatprep.mubr.bf16.mxu0 0
      %5843 = vmatmul.mubr.bf16.gmra.mxu0 %v2404
      %v5844 = vpop.f32.mrf.mxu0
      %v5845 = vadd.f32 %v5676, %v5844
      %v5846 = vpop.f32.mrf.mxu0
      %v5847 = vpop.f32.mrf.mxu0
      %v5848 = vadd.f32 %v5679, %v5847
      %v5849 = vpop.f32.mrf.mxu0
      %5850 = vmatprep.mubr.bf16.mxu0 0
      %5851 = vmatmul.mubr.bf16.gmra.mxu0 %v2407
      %v5852 = vpop.f32.mrf.mxu0
      %v5853 = vadd.f32 %v5684, %v5852
      %v5854 = vpop.f32.mrf.mxu0
      %v5855 = vpop.f32.mrf.mxu0
      %v5856 = vadd.f32 %v5687, %v5855
      %v5857 = vpop.f32.mrf.mxu0
      %5858 = vmatprep.mubr.bf16.mxu0 0
      %5859 = vmatmul.mubr.bf16.gmra.mxu0 %v2410
      %v5860 = vpop.f32.mrf.mxu0
      %v5861 = vadd.f32 %v5692, %v5860
      %v5862 = vpop.f32.mrf.mxu0
      %v5863 = vpop.f32.mrf.mxu0
      %v5864 = vadd.f32 %v5695, %v5863
      %v5865 = vpop.f32.mrf.mxu0
      %5866 = vmatprep.mubr.bf16.mxu0 0
      %5867 = vmatmul.mubr.bf16.gmra.mxu0 %v2413
      %v5868 = vpop.f32.mrf.mxu0
      %v5869 = vadd.f32 %v5700, %v5868
      %v5870 = vpop.f32.mrf.mxu0
      %v5871 = vpop.f32.mrf.mxu0
      %v5872 = vadd.f32 %v5703, %v5871
      %v5873 = vpop.f32.mrf.mxu0
      %5874 = vdwg.mxu0
      %v5875 = vpack.c.bf16 %v5744, %v5741
      %v5876 = vpack.c.bf16 %v5752, %v5749
      %v5877 = vpack.c.bf16 %v5760, %v5757
      %v5878 = vpack.c.bf16 %v5768, %v5765
      %v5879 = vpack.c.bf16 %v5776, %v5773
      %v5880 = vpack.c.bf16 %v5784, %v5781
      %v5881 = vpack.c.bf16 %v5792, %v5789
      %v5882 = vpack.c.bf16 %v5800, %v5797
      %v5883 = vpack.c.bf16 %v5808, %v5805
      %v5884 = vpack.c.bf16 %v5816, %v5813
      %v5885 = vpack.c.bf16 %v5824, %v5821
      %v5886 = vpack.c.bf16 %v5832, %v5829
      %v5887 = vpack.c.bf16 %v5840, %v5837
      %v5888 = vpack.c.bf16 %v5848, %v5845
      %v5889 = vpack.c.bf16 %v5856, %v5853
      %v5890 = vpack.c.bf16 %v5864, %v5861
      %v5891 = vpack.c.bf16 %v5872, %v5869
      %5909 = vrot.lane.b32.xlu0 %v5875, 120
      %v5910 = vpop.permute.xlu0 %5909
      %5911 = vrot.lane.b32.xlu0 %v5876, 120
      %v5912 = vpop.permute.xlu0 %5911
      %5913 = vrot.lane.b32.xlu0 %v5877, 120
      %v5914 = vpop.permute.xlu0 %5913
      %5915 = vrot.lane.b32.xlu0 %v5878, 120
      %v5916 = vpop.permute.xlu0 %5915
      %5917 = vrot.lane.b32.xlu0 %v5879, 120
      %v5918 = vpop.permute.xlu0 %5917
      %5919 = vrot.lane.b32.xlu0 %v5880, 120
      %v5920 = vpop.permute.xlu0 %5919
      %5921 = vrot.lane.b32.xlu0 %v5881, 120
      %v5922 = vpop.permute.xlu0 %5921
      %5923 = vrot.lane.b32.xlu0 %v5882, 120
      %v5924 = vpop.permute.xlu0 %5923
      %5925 = vrot.lane.b32.xlu0 %v5883, 120
      %v5926 = vpop.permute.xlu0 %5925
      %5927 = vrot.lane.b32.xlu0 %v5884, 120
      %v5928 = vpop.permute.xlu0 %5927
      %5929 = vrot.lane.b32.xlu0 %v5885, 120
      %v5930 = vpop.permute.xlu0 %5929
      %5931 = vrot.lane.b32.xlu0 %v5886, 120
      %v5932 = vpop.permute.xlu0 %5931
      %5933 = vrot.lane.b32.xlu0 %v5887, 120
      %v5934 = vpop.permute.xlu0 %5933
      %5935 = vrot.lane.b32.xlu0 %v5888, 120
      %v5936 = vpop.permute.xlu0 %5935
      %5937 = vrot.lane.b32.xlu0 %v5889, 120
      %v5938 = vpop.permute.xlu0 %5937
      %5939 = vrot.lane.b32.xlu0 %v5890, 120
      %v5940 = vpop.permute.xlu0 %5939
      %5941 = vrot.lane.b32.xlu0 %v5891, 120
      %v5942 = vpop.permute.xlu0 %5941
      %5960 = vmatprep.subr.bf16.mxu0 0
      %5961 = vmatpush1.bf16.msra.mxu0 %v5924
      %5962 = vmatprep.subr.bf16.mxu0 0
      %5963 = vmatpush1.bf16.msra.mxu0 %v5922
      %5964 = vmatprep.subr.bf16.mxu0 0
      %5965 = vmatpush1.bf16.msra.mxu0 %v5920
      %5966 = vmatprep.subr.bf16.mxu0 0
      %5967 = vmatpush1.bf16.msra.mxu0 %v5918
      %5968 = vmatprep.subr.bf16.mxu0 0
      %5969 = vmatpush1.bf16.msra.mxu0 %v5916
      %5970 = vmatprep.subr.bf16.mxu0 0
      %5971 = vmatpush1.bf16.msra.mxu0 %v5914
      %5972 = vmatprep.subr.bf16.mxu0 0
      %5973 = vmatpush1.bf16.msra.mxu0 %v5912
      %5974 = vmatprep.subr.bf16.mxu0 0
      %5975 = vmatpush1.bf16.msra.mxu0 %v5910
      %5976 = vmatprep.subr.bf16.mxu0 0
      %5977 = vmatpush2.bf16.msra.mxu0 %v5940
      %5978 = vmatprep.subr.bf16.mxu0 0
      %5979 = vmatpush2.bf16.msra.mxu0 %v5938
      %5980 = vmatprep.subr.bf16.mxu0 0
      %5981 = vmatpush2.bf16.msra.mxu0 %v5936
      %5982 = vmatprep.subr.bf16.mxu0 0
      %5983 = vmatpush2.bf16.msra.mxu0 %v5934
      %5984 = vmatprep.subr.bf16.mxu0 0
      %5985 = vmatpush2.bf16.msra.mxu0 %v5932
      %5986 = vmatprep.subr.bf16.mxu0 0
      %5987 = vmatpush2.bf16.msra.mxu0 %v5930
      %5988 = vmatprep.subr.bf16.mxu0 0
      %5989 = vmatpush2.bf16.msra.mxu0 %v5928
      %5990 = vmatprep.subr.bf16.mxu0 0
      %5991 = vmatpush2.bf16.msra.mxu0 %v5926
      %5992 = vmatprep.mubr.bf16.mxu0 %v2178
      %5993 = vmatmul.mubr.bf16.gmra.mxu0 %v2177
      %v5994 = vpop.f32.mrf.mxu0
      %v5995 = vadd.f32 0.0, %v5994
      %v5996 = vpop.f32.mrf.mxu0
      %v5997 = vpop.f32.mrf.mxu0
      %v5998 = vadd.f32 0.0, %v5997
      %v5999 = vpop.f32.mrf.mxu0
      %6000 = vmatprep.mubr.bf16.mxu0 %v2181
      %6001 = vmatmul.mubr.bf16.gmra.mxu0 %v2180
      %v6002 = vpop.f32.mrf.mxu0
      %v6003 = vadd.f32 0.0, %v6002
      %v6004 = vpop.f32.mrf.mxu0
      %v6005 = vpop.f32.mrf.mxu0
      %v6006 = vadd.f32 0.0, %v6005
      %v6007 = vpop.f32.mrf.mxu0
      %6008 = vmatprep.mubr.bf16.mxu0 %v2184
      %6009 = vmatmul.mubr.bf16.gmra.mxu0 %v2183
      %v6010 = vpop.f32.mrf.mxu0
      %v6011 = vadd.f32 0.0, %v6010
      %v6012 = vpop.f32.mrf.mxu0
      %v6013 = vpop.f32.mrf.mxu0
      %v6014 = vadd.f32 0.0, %v6013
      %v6015 = vpop.f32.mrf.mxu0
      %6016 = vmatprep.mubr.bf16.mxu0 %v2187
      %6017 = vmatmul.mubr.bf16.gmra.mxu0 %v2186
      %v6018 = vpop.f32.mrf.mxu0
      %v6019 = vadd.f32 0.0, %v6018
      %v6020 = vpop.f32.mrf.mxu0
      %v6021 = vpop.f32.mrf.mxu0
      %v6022 = vadd.f32 0.0, %v6021
      %v6023 = vpop.f32.mrf.mxu0
      %6024 = vmatprep.mubr.bf16.mxu0 %v2190
      %6025 = vmatmul.mubr.bf16.gmra.mxu0 %v2189
      %v6026 = vpop.f32.mrf.mxu0
      %v6027 = vadd.f32 0.0, %v6026
      %v6028 = vpop.f32.mrf.mxu0
      %v6029 = vpop.f32.mrf.mxu0
      %v6030 = vadd.f32 0.0, %v6029
      %v6031 = vpop.f32.mrf.mxu0
      %6032 = vmatprep.mubr.bf16.mxu0 %v2193
      %6033 = vmatmul.mubr.bf16.gmra.mxu0 %v2192
      %v6034 = vpop.f32.mrf.mxu0
      %v6035 = vadd.f32 0.0, %v6034
      %v6036 = vpop.f32.mrf.mxu0
      %v6037 = vpop.f32.mrf.mxu0
      %v6038 = vadd.f32 0.0, %v6037
      %v6039 = vpop.f32.mrf.mxu0
      %6040 = vmatprep.mubr.bf16.mxu0 %v2196
      %6041 = vmatmul.mubr.bf16.gmra.mxu0 %v2195
      %v6042 = vpop.f32.mrf.mxu0
      %v6043 = vadd.f32 0.0, %v6042
      %v6044 = vpop.f32.mrf.mxu0
      %v6045 = vpop.f32.mrf.mxu0
      %v6046 = vadd.f32 0.0, %v6045
      %v6047 = vpop.f32.mrf.mxu0
      %6048 = vmatprep.mubr.bf16.mxu0 %v2199
      %6049 = vmatmul.mubr.bf16.gmra.mxu0 %v2198
      %v6050 = vpop.f32.mrf.mxu0
      %v6051 = vadd.f32 0.0, %v6050
      %v6052 = vpop.f32.mrf.mxu0
      %v6053 = vpop.f32.mrf.mxu0
      %v6054 = vadd.f32 0.0, %v6053
      %v6055 = vpop.f32.mrf.mxu0
      %6056 = vmatprep.mubr.bf16.mxu0 %v2202
      %6057 = vmatmul.mubr.bf16.gmra.mxu0 %v2201
      %v6058 = vpop.f32.mrf.mxu0
      %v6059 = vadd.f32 0.0, %v6058
      %v6060 = vpop.f32.mrf.mxu0
      %v6061 = vpop.f32.mrf.mxu0
      %v6062 = vadd.f32 0.0, %v6061
      %v6063 = vpop.f32.mrf.mxu0
      %6064 = vmatprep.mubr.bf16.mxu0 %v2205
      %6065 = vmatmul.mubr.bf16.gmra.mxu0 %v2204
      %v6066 = vpop.f32.mrf.mxu0
      %v6067 = vadd.f32 0.0, %v6066
      %v6068 = vpop.f32.mrf.mxu0
      %v6069 = vpop.f32.mrf.mxu0
      %v6070 = vadd.f32 0.0, %v6069
      %v6071 = vpop.f32.mrf.mxu0
      %6072 = vmatprep.mubr.bf16.mxu0 %v2208
      %6073 = vmatmul.mubr.bf16.gmra.mxu0 %v2207
      %v6074 = vpop.f32.mrf.mxu0
      %v6075 = vadd.f32 0.0, %v6074
      %v6076 = vpop.f32.mrf.mxu0
      %v6077 = vpop.f32.mrf.mxu0
      %v6078 = vadd.f32 0.0, %v6077
      %v6079 = vpop.f32.mrf.mxu0
      %6080 = vmatprep.mubr.bf16.mxu0 %v2211
      %6081 = vmatmul.mubr.bf16.gmra.mxu0 %v2210
      %v6082 = vpop.f32.mrf.mxu0
      %v6083 = vadd.f32 0.0, %v6082
      %v6084 = vpop.f32.mrf.mxu0
      %v6085 = vpop.f32.mrf.mxu0
      %v6086 = vadd.f32 0.0, %v6085
      %v6087 = vpop.f32.mrf.mxu0
      %6088 = vmatprep.mubr.bf16.mxu0 %v2214
      %6089 = vmatmul.mubr.bf16.gmra.mxu0 %v2213
      %v6090 = vpop.f32.mrf.mxu0
      %v6091 = vadd.f32 0.0, %v6090
      %v6092 = vpop.f32.mrf.mxu0
      %v6093 = vpop.f32.mrf.mxu0
      %v6094 = vadd.f32 0.0, %v6093
      %v6095 = vpop.f32.mrf.mxu0
      %6096 = vmatprep.mubr.bf16.mxu0 %v2217
      %6097 = vmatmul.mubr.bf16.gmra.mxu0 %v2216
      %v6098 = vpop.f32.mrf.mxu0
      %v6099 = vadd.f32 0.0, %v6098
      %v6100 = vpop.f32.mrf.mxu0
      %v6101 = vpop.f32.mrf.mxu0
      %v6102 = vadd.f32 0.0, %v6101
      %v6103 = vpop.f32.mrf.mxu0
      %6104 = vmatprep.mubr.bf16.mxu0 %v2220
      %6105 = vmatmul.mubr.bf16.gmra.mxu0 %v2219
      %v6106 = vpop.f32.mrf.mxu0
      %v6107 = vadd.f32 0.0, %v6106
      %v6108 = vpop.f32.mrf.mxu0
      %v6109 = vpop.f32.mrf.mxu0
      %v6110 = vadd.f32 0.0, %v6109
      %v6111 = vpop.f32.mrf.mxu0
      %6112 = vmatprep.mubr.bf16.mxu0 %v2223
      %6113 = vmatmul.mubr.bf16.gmra.mxu0 %v2222
      %v6114 = vpop.f32.mrf.mxu0
      %v6115 = vadd.f32 0.0, %v6114
      %v6116 = vpop.f32.mrf.mxu0
      %v6117 = vpop.f32.mrf.mxu0
      %v6118 = vadd.f32 0.0, %v6117
      %v6119 = vpop.f32.mrf.mxu0
      %6120 = vmatprep.mubr.bf16.mxu0 %v2226
      %6121 = vmatmul.mubr.bf16.gmra.mxu0 %v2225
      %v6122 = vpop.f32.mrf.mxu0
      %v6123 = vadd.f32 0.0, %v6122
      %v6124 = vpop.f32.mrf.mxu0
      %v6125 = vpop.f32.mrf.mxu0
      %v6126 = vadd.f32 0.0, %v6125
      %v6127 = vpop.f32.mrf.mxu0
      %6128 = vdwg.mxu0
      %6129 = vmatprep.subr.bf16.mxu0 0
      %6130 = vmatpush1.bf16.msra.mxu0 0
      %6131 = vmatprep.subr.bf16.mxu0 0
      %6132 = vmatpush1.bf16.msra.mxu0 0
      %6133 = vmatprep.subr.bf16.mxu0 0
      %6134 = vmatpush1.bf16.msra.mxu0 0
      %6135 = vmatprep.subr.bf16.mxu0 0
      %6136 = vmatpush1.bf16.msra.mxu0 0
      %6137 = vmatprep.subr.bf16.mxu0 0
      %6138 = vmatpush1.bf16.msra.mxu0 0
      %6139 = vmatprep.subr.bf16.mxu0 0
      %6140 = vmatpush1.bf16.msra.mxu0 0
      %6141 = vmatprep.subr.bf16.mxu0 0
      %6142 = vmatpush1.bf16.msra.mxu0 0
      %6143 = vmatprep.subr.bf16.mxu0 0
      %6144 = vmatpush1.bf16.msra.mxu0 %v5942
      %6145 = vmatprep.subr.bf16.mxu0 0
      %6146 = vmatpush2.bf16.msra.mxu0 0
      %6147 = vmatprep.subr.bf16.mxu0 0
      %6148 = vmatpush2.bf16.msra.mxu0 0
      %6149 = vmatprep.subr.bf16.mxu0 0
      %6150 = vmatpush2.bf16.msra.mxu0 0
      %6151 = vmatprep.subr.bf16.mxu0 0
      %6152 = vmatpush2.bf16.msra.mxu0 0
      %6153 = vmatprep.subr.bf16.mxu0 0
      %6154 = vmatpush2.bf16.msra.mxu0 0
      %6155 = vmatprep.subr.bf16.mxu0 0
      %6156 = vmatpush2.bf16.msra.mxu0 0
      %6157 = vmatprep.subr.bf16.mxu0 0
      %6158 = vmatpush2.bf16.msra.mxu0 0
      %6159 = vmatprep.subr.bf16.mxu0 0
      %6160 = vmatpush2.bf16.msra.mxu0 0
      %6161 = vmatprep.mubr.bf16.mxu0 0
      %6162 = vmatmul.mubr.bf16.gmra.mxu0 %v2365
      %v6163 = vpop.f32.mrf.mxu0
      %v6164 = vadd.f32 %v5995, %v6163
      %v6165 = vpop.f32.mrf.mxu0
      %v6166 = vpop.f32.mrf.mxu0
      %v6167 = vadd.f32 %v5998, %v6166
      %v6168 = vpop.f32.mrf.mxu0
      %6169 = vmatprep.mubr.bf16.mxu0 0
      %6170 = vmatmul.mubr.bf16.gmra.mxu0 %v2368
      %v6171 = vpop.f32.mrf.mxu0
      %v6172 = vadd.f32 %v6003, %v6171
      %v6173 = vpop.f32.mrf.mxu0
      %v6174 = vpop.f32.mrf.mxu0
      %v6175 = vadd.f32 %v6006, %v6174
      %v6176 = vpop.f32.mrf.mxu0
      %6177 = vmatprep.mubr.bf16.mxu0 0
      %6178 = vmatmul.mubr.bf16.gmra.mxu0 %v2371
      %v6179 = vpop.f32.mrf.mxu0
      %v6180 = vadd.f32 %v6011, %v6179
      %v6181 = vpop.f32.mrf.mxu0
      %v6182 = vpop.f32.mrf.mxu0
      %v6183 = vadd.f32 %v6014, %v6182
      %v6184 = vpop.f32.mrf.mxu0
      %6185 = vmatprep.mubr.bf16.mxu0 0
      %6186 = vmatmul.mubr.bf16.gmra.mxu0 %v2374
      %v6187 = vpop.f32.mrf.mxu0
      %v6188 = vadd.f32 %v6019, %v6187
      %v6189 = vpop.f32.mrf.mxu0
      %v6190 = vpop.f32.mrf.mxu0
      %v6191 = vadd.f32 %v6022, %v6190
      %v6192 = vpop.f32.mrf.mxu0
      %6193 = vmatprep.mubr.bf16.mxu0 0
      %6194 = vmatmul.mubr.bf16.gmra.mxu0 %v2377
      %v6195 = vpop.f32.mrf.mxu0
      %v6196 = vadd.f32 %v6027, %v6195
      %v6197 = vpop.f32.mrf.mxu0
      %v6198 = vpop.f32.mrf.mxu0
      %v6199 = vadd.f32 %v6030, %v6198
      %v6200 = vpop.f32.mrf.mxu0
      %6201 = vmatprep.mubr.bf16.mxu0 0
      %6202 = vmatmul.mubr.bf16.gmra.mxu0 %v2380
      %v6203 = vpop.f32.mrf.mxu0
      %v6204 = vadd.f32 %v6035, %v6203
      %v6205 = vpop.f32.mrf.mxu0
      %v6206 = vpop.f32.mrf.mxu0
      %v6207 = vadd.f32 %v6038, %v6206
      %v6208 = vpop.f32.mrf.mxu0
      %6209 = vmatprep.mubr.bf16.mxu0 0
      %6210 = vmatmul.mubr.bf16.gmra.mxu0 %v2383
      %v6211 = vpop.f32.mrf.mxu0
      %v6212 = vadd.f32 %v6043, %v6211
      %v6213 = vpop.f32.mrf.mxu0
      %v6214 = vpop.f32.mrf.mxu0
      %v6215 = vadd.f32 %v6046, %v6214
      %v6216 = vpop.f32.mrf.mxu0
      %6217 = vmatprep.mubr.bf16.mxu0 0
      %6218 = vmatmul.mubr.bf16.gmra.mxu0 %v2386
      %v6219 = vpop.f32.mrf.mxu0
      %v6220 = vadd.f32 %v6051, %v6219
      %v6221 = vpop.f32.mrf.mxu0
      %v6222 = vpop.f32.mrf.mxu0
      %v6223 = vadd.f32 %v6054, %v6222
      %v6224 = vpop.f32.mrf.mxu0
      %6225 = vmatprep.mubr.bf16.mxu0 0
      %6226 = vmatmul.mubr.bf16.gmra.mxu0 %v2389
      %v6227 = vpop.f32.mrf.mxu0
      %v6228 = vadd.f32 %v6059, %v6227
      %v6229 = vpop.f32.mrf.mxu0
      %v6230 = vpop.f32.mrf.mxu0
      %v6231 = vadd.f32 %v6062, %v6230
      %v6232 = vpop.f32.mrf.mxu0
      %6233 = vmatprep.mubr.bf16.mxu0 0
      %6234 = vmatmul.mubr.bf16.gmra.mxu0 %v2392
      %v6235 = vpop.f32.mrf.mxu0
      %v6236 = vadd.f32 %v6067, %v6235
      %v6237 = vpop.f32.mrf.mxu0
      %v6238 = vpop.f32.mrf.mxu0
      %v6239 = vadd.f32 %v6070, %v6238
      %v6240 = vpop.f32.mrf.mxu0
      %6241 = vmatprep.mubr.bf16.mxu0 0
      %6242 = vmatmul.mubr.bf16.gmra.mxu0 %v2395
      %v6243 = vpop.f32.mrf.mxu0
      %v6244 = vadd.f32 %v6075, %v6243
      %v6245 = vpop.f32.mrf.mxu0
      %v6246 = vpop.f32.mrf.mxu0
      %v6247 = vadd.f32 %v6078, %v6246
      %v6248 = vpop.f32.mrf.mxu0
      %6249 = vmatprep.mubr.bf16.mxu0 0
      %6250 = vmatmul.mubr.bf16.gmra.mxu0 %v2398
      %v6251 = vpop.f32.mrf.mxu0
      %v6252 = vadd.f32 %v6083, %v6251
      %v6253 = vpop.f32.mrf.mxu0
      %v6254 = vpop.f32.mrf.mxu0
      %v6255 = vadd.f32 %v6086, %v6254
      %v6256 = vpop.f32.mrf.mxu0
      %6257 = vmatprep.mubr.bf16.mxu0 0
      %6258 = vmatmul.mubr.bf16.gmra.mxu0 %v2401
      %v6259 = vpop.f32.mrf.mxu0
      %v6260 = vadd.f32 %v6091, %v6259
      %v6261 = vpop.f32.mrf.mxu0
      %v6262 = vpop.f32.mrf.mxu0
      %v6263 = vadd.f32 %v6094, %v6262
      %v6264 = vpop.f32.mrf.mxu0
      %6265 = vmatprep.mubr.bf16.mxu0 0
      %6266 = vmatmul.mubr.bf16.gmra.mxu0 %v2404
      %v6267 = vpop.f32.mrf.mxu0
      %v6268 = vadd.f32 %v6099, %v6267
      %v6269 = vpop.f32.mrf.mxu0
      %v6270 = vpop.f32.mrf.mxu0
      %v6271 = vadd.f32 %v6102, %v6270
      %v6272 = vpop.f32.mrf.mxu0
      %6273 = vmatprep.mubr.bf16.mxu0 0
      %6274 = vmatmul.mubr.bf16.gmra.mxu0 %v2407
      %v6275 = vpop.f32.mrf.mxu0
      %v6276 = vadd.f32 %v6107, %v6275
      %v6277 = vpop.f32.mrf.mxu0
      %v6278 = vpop.f32.mrf.mxu0
      %v6279 = vadd.f32 %v6110, %v6278
      %v6280 = vpop.f32.mrf.mxu0
      %6281 = vmatprep.mubr.bf16.mxu0 0
      %6282 = vmatmul.mubr.bf16.gmra.mxu0 %v2410
      %v6283 = vpop.f32.mrf.mxu0
      %v6284 = vadd.f32 %v6115, %v6283
      %v6285 = vpop.f32.mrf.mxu0
      %v6286 = vpop.f32.mrf.mxu0
      %v6287 = vadd.f32 %v6118, %v6286
      %v6288 = vpop.f32.mrf.mxu0
      %6289 = vmatprep.mubr.bf16.mxu0 0
      %6290 = vmatmul.mubr.bf16.gmra.mxu0 %v2413
      %v6291 = vpop.f32.mrf.mxu0
      %v6292 = vadd.f32 %v6123, %v6291
      %v6293 = vpop.f32.mrf.mxu0
      %v6294 = vpop.f32.mrf.mxu0
      %v6295 = vadd.f32 %v6126, %v6294
      %v6296 = vpop.f32.mrf.mxu0
      %6297 = vdwg.mxu0
      %v6298 = vadd.f32 %v4142, %v5741
      %v6299 = vadd.f32 %v4145, %v5744
      %v6300 = vadd.f32 %v4150, %v5749
      %v6301 = vadd.f32 %v4153, %v5752
      %v6302 = vadd.f32 %v4158, %v5757
      %v6303 = vadd.f32 %v4161, %v5760
      %v6304 = vadd.f32 %v4166, %v5765
      %v6305 = vadd.f32 %v4169, %v5768
      %v6306 = vadd.f32 %v4174, %v5773
      %v6307 = vadd.f32 %v4177, %v5776
      %v6308 = vadd.f32 %v4182, %v5781
      %v6309 = vadd.f32 %v4185, %v5784
      %v6310 = vadd.f32 %v4190, %v5789
      %v6311 = vadd.f32 %v4193, %v5792
      %v6312 = vadd.f32 %v4198, %v5797
      %v6313 = vadd.f32 %v4201, %v5800
      %v6314 = vadd.f32 %v4206, %v5805
      %v6315 = vadd.f32 %v4209, %v5808
      %v6316 = vadd.f32 %v4214, %v5813
      %v6317 = vadd.f32 %v4217, %v5816
      %v6318 = vadd.f32 %v4222, %v5821
      %v6319 = vadd.f32 %v4225, %v5824
      %v6320 = vadd.f32 %v4230, %v5829
      %v6321 = vadd.f32 %v4233, %v5832
      %v6322 = vadd.f32 %v4238, %v5837
      %v6323 = vadd.f32 %v4241, %v5840
      %v6324 = vadd.f32 %v4246, %v5845
      %v6325 = vadd.f32 %v4249, %v5848
      %v6326 = vadd.f32 %v4254, %v5853
      %v6327 = vadd.f32 %v4257, %v5856
      %v6328 = vadd.f32 %v4262, %v5861
      %v6329 = vadd.f32 %v4265, %v5864
      %v6330 = vadd.f32 %v4270, %v5869
      %v6331 = vadd.f32 %v4273, %v5872
      %v6332 = vmul.f32 %v6164, 2.0
      %v6333 = vmul.f32 %v6167, 2.0
      %v6334 = vmul.f32 %v6172, 2.0
      %v6335 = vmul.f32 %v6175, 2.0
      %v6336 = vmul.f32 %v6180, 2.0
      %v6337 = vmul.f32 %v6183, 2.0
      %v6338 = vmul.f32 %v6188, 2.0
      %v6339 = vmul.f32 %v6191, 2.0
      %v6340 = vmul.f32 %v6196, 2.0
      %v6341 = vmul.f32 %v6199, 2.0
      %v6342 = vmul.f32 %v6204, 2.0
      %v6343 = vmul.f32 %v6207, 2.0
      %v6344 = vmul.f32 %v6212, 2.0
      %v6345 = vmul.f32 %v6215, 2.0
      %v6346 = vmul.f32 %v6220, 2.0
      %v6347 = vmul.f32 %v6223, 2.0
      %v6348 = vmul.f32 %v6228, 2.0
      %v6349 = vmul.f32 %v6231, 2.0
      %v6350 = vmul.f32 %v6236, 2.0
      %v6351 = vmul.f32 %v6239, 2.0
      %v6352 = vmul.f32 %v6244, 2.0
      %v6353 = vmul.f32 %v6247, 2.0
      %v6354 = vmul.f32 %v6252, 2.0
      %v6355 = vmul.f32 %v6255, 2.0
      %v6356 = vmul.f32 %v6260, 2.0
      %v6357 = vmul.f32 %v6263, 2.0
      %v6358 = vmul.f32 %v6268, 2.0
      %v6359 = vmul.f32 %v6271, 2.0
      %v6360 = vmul.f32 %v6276, 2.0
      %v6361 = vmul.f32 %v6279, 2.0
      %v6362 = vmul.f32 %v6284, 2.0
      %v6363 = vmul.f32 %v6287, 2.0
      %v6364 = vmul.f32 %v6292, 2.0
      %v6365 = vmul.f32 %v6295, 2.0
      %v6366 = vadd.f32 %v6298, %v6332
      %v6367 = vadd.f32 %v6299, %v6333
      %v6368 = vadd.f32 %v6300, %v6334
      %v6369 = vadd.f32 %v6301, %v6335
      %v6370 = vadd.f32 %v6302, %v6336
      %v6371 = vadd.f32 %v6303, %v6337
      %v6372 = vadd.f32 %v6304, %v6338
      %v6373 = vadd.f32 %v6305, %v6339
      %v6374 = vadd.f32 %v6306, %v6340
      %v6375 = vadd.f32 %v6307, %v6341
      %v6376 = vadd.f32 %v6308, %v6342
      %v6377 = vadd.f32 %v6309, %v6343
      %v6378 = vadd.f32 %v6310, %v6344
      %v6379 = vadd.f32 %v6311, %v6345
      %v6380 = vadd.f32 %v6312, %v6346
      %v6381 = vadd.f32 %v6313, %v6347
      %v6382 = vadd.f32 %v6314, %v6348
      %v6383 = vadd.f32 %v6315, %v6349
      %v6384 = vadd.f32 %v6316, %v6350
      %v6385 = vadd.f32 %v6317, %v6351
      %v6386 = vadd.f32 %v6318, %v6352
      %v6387 = vadd.f32 %v6319, %v6353
      %v6388 = vadd.f32 %v6320, %v6354
      %v6389 = vadd.f32 %v6321, %v6355
      %v6390 = vadd.f32 %v6322, %v6356
      %v6391 = vadd.f32 %v6323, %v6357
      %v6392 = vadd.f32 %v6324, %v6358
      %v6393 = vadd.f32 %v6325, %v6359
      %v6394 = vadd.f32 %v6326, %v6360
      %v6395 = vadd.f32 %v6327, %v6361
      %v6396 = vadd.f32 %v6328, %v6362
      %v6397 = vadd.f32 %v6329, %v6363
      %v6398 = vadd.f32 %v6330, %v6364
      %v6399 = vadd.f32 %v6331, %v6365
      %6434 = vrot.lane.b32.xlu0 %v4142, 112
      %v6435 = vpop.permute.xlu0 %6434
      %6436 = vrot.lane.b32.xlu0 %v4145, 112
      %v6437 = vpop.permute.xlu0 %6436
      %6438 = vrot.lane.b32.xlu0 %v4150, 112
      %v6439 = vpop.permute.xlu0 %6438
      %6440 = vrot.lane.b32.xlu0 %v4153, 112
      %v6441 = vpop.permute.xlu0 %6440
      %6442 = vrot.lane.b32.xlu0 %v4158, 112
      %v6443 = vpop.permute.xlu0 %6442
      %6444 = vrot.lane.b32.xlu0 %v4161, 112
      %v6445 = vpop.permute.xlu0 %6444
      %6446 = vrot.lane.b32.xlu0 %v4166, 112
      %v6447 = vpop.permute.xlu0 %6446
      %6448 = vrot.lane.b32.xlu0 %v4169, 112
      %v6449 = vpop.permute.xlu0 %6448
      %6450 = vrot.lane.b32.xlu0 %v4174, 112
      %v6451 = vpop.permute.xlu0 %6450
      %6452 = vrot.lane.b32.xlu0 %v4177, 112
      %v6453 = vpop.permute.xlu0 %6452
      %6454 = vrot.lane.b32.xlu0 %v4182, 112
      %v6455 = vpop.permute.xlu0 %6454
      %6456 = vrot.lane.b32.xlu0 %v4185, 112
      %v6457 = vpop.permute.xlu0 %6456
      %6458 = vrot.lane.b32.xlu0 %v4190, 112
      %v6459 = vpop.permute.xlu0 %6458
      %6460 = vrot.lane.b32.xlu0 %v4193, 112
      %v6461 = vpop.permute.xlu0 %6460
      %6462 = vrot.lane.b32.xlu0 %v4198, 112
      %v6463 = vpop.permute.xlu0 %6462
      %6464 = vrot.lane.b32.xlu0 %v4201, 112
      %v6465 = vpop.permute.xlu0 %6464
      %6466 = vrot.lane.b32.xlu0 %v4206, 112
      %v6467 = vpop.permute.xlu0 %6466
      %6468 = vrot.lane.b32.xlu0 %v4209, 112
      %v6469 = vpop.permute.xlu0 %6468
      %6470 = vrot.lane.b32.xlu0 %v4214, 112
      %v6471 = vpop.permute.xlu0 %6470
      %6472 = vrot.lane.b32.xlu0 %v4217, 112
      %v6473 = vpop.permute.xlu0 %6472
      %6474 = vrot.lane.b32.xlu0 %v4222, 112
      %v6475 = vpop.permute.xlu0 %6474
      %6476 = vrot.lane.b32.xlu0 %v4225, 112
      %v6477 = vpop.permute.xlu0 %6476
      %6478 = vrot.lane.b32.xlu0 %v4230, 112
      %v6479 = vpop.permute.xlu0 %6478
      %6480 = vrot.lane.b32.xlu0 %v4233, 112
      %v6481 = vpop.permute.xlu0 %6480
      %6482 = vrot.lane.b32.xlu0 %v4238, 112
      %v6483 = vpop.permute.xlu0 %6482
      %6484 = vrot.lane.b32.xlu0 %v4241, 112
      %v6485 = vpop.permute.xlu0 %6484
      %6486 = vrot.lane.b32.xlu0 %v4246, 112
      %v6487 = vpop.permute.xlu0 %6486
      %6488 = vrot.lane.b32.xlu0 %v4249, 112
      %v6489 = vpop.permute.xlu0 %6488
      %6490 = vrot.lane.b32.xlu0 %v4254, 112
      %v6491 = vpop.permute.xlu0 %6490
      %6492 = vrot.lane.b32.xlu0 %v4257, 112
      %v6493 = vpop.permute.xlu0 %6492
      %6494 = vrot.lane.b32.xlu0 %v4262, 112
      %v6495 = vpop.permute.xlu0 %6494
      %6496 = vrot.lane.b32.xlu0 %v4265, 112
      %v6497 = vpop.permute.xlu0 %6496
      %6498 = vrot.lane.b32.xlu0 %v4270, 112
      %v6499 = vpop.permute.xlu0 %6498
      %6500 = vrot.lane.b32.xlu0 %v4273, 112
      %v6501 = vpop.permute.xlu0 %6500
      %v6536 = vsub.f32 %v6366, %v6435
      %v6537 = vsub.f32 %v6367, %v6437
      %v6538 = vsub.f32 %v6368, %v6439
      %v6539 = vsub.f32 %v6369, %v6441
      %v6540 = vsub.f32 %v6370, %v6443
      %v6541 = vsub.f32 %v6371, %v6445
      %v6542 = vsub.f32 %v6372, %v6447
      %v6543 = vsub.f32 %v6373, %v6449
      %v6544 = vsub.f32 %v6374, %v6451
      %v6545 = vsub.f32 %v6375, %v6453
      %v6546 = vsub.f32 %v6376, %v6455
      %v6547 = vsub.f32 %v6377, %v6457
      %v6548 = vsub.f32 %v6378, %v6459
      %v6549 = vsub.f32 %v6379, %v6461
      %v6550 = vsub.f32 %v6380, %v6463
      %v6551 = vsub.f32 %v6381, %v6465
      %v6552 = vsub.f32 %v6382, %v6467
      %v6553 = vsub.f32 %v6383, %v6469
      %v6554 = vsub.f32 %v6384, %v6471
      %v6555 = vsub.f32 %v6385, %v6473
      %v6556 = vsub.f32 %v6386, %v6475
      %v6557 = vsub.f32 %v6387, %v6477
      %v6558 = vsub.f32 %v6388, %v6479
      %v6559 = vsub.f32 %v6389, %v6481
      %v6560 = vsub.f32 %v6390, %v6483
      %v6561 = vsub.f32 %v6391, %v6485
      %v6562 = vsub.f32 %v6392, %v6487
      %v6563 = vsub.f32 %v6393, %v6489
      %v6564 = vsub.f32 %v6394, %v6491
      %v6565 = vsub.f32 %v6395, %v6493
      %v6566 = vsub.f32 %v6396, %v6495
      %v6567 = vsub.f32 %v6397, %v6497
      %v6568 = vsub.f32 %v6398, %v6499
      %v6569 = vsub.f32 %v6399, %v6501
      %v6570 = vadd.f32 %v6536, %v5399
      %v6571 = vadd.f32 %v6537, %v5399
      %v6572 = vadd.f32 %v6538, %v5399
      %v6573 = vadd.f32 %v6539, %v5399
      %v6574 = vadd.f32 %v6540, %v5399
      %v6575 = vadd.f32 %v6541, %v5399
      %v6576 = vadd.f32 %v6542, %v5399
      %v6577 = vadd.f32 %v6543, %v5399
      %v6578 = vadd.f32 %v6544, %v5399
      %v6579 = vadd.f32 %v6545, %v5399
      %v6580 = vadd.f32 %v6546, %v5399
      %v6581 = vadd.f32 %v6547, %v5399
      %v6582 = vadd.f32 %v6548, %v5399
      %v6583 = vadd.f32 %v6549, %v5399
      %v6584 = vadd.f32 %v6550, %v5399
      %v6585 = vadd.f32 %v6551, %v5399
      %v6586 = vadd.f32 %v6552, %v5399
      %v6587 = vadd.f32 %v6553, %v5399
      %v6588 = vadd.f32 %v6554, %v5399
      %v6589 = vadd.f32 %v6555, %v5399
      %v6590 = vadd.f32 %v6556, %v5399
      %v6591 = vadd.f32 %v6557, %v5399
      %v6592 = vadd.f32 %v6558, %v5399
      %v6593 = vadd.f32 %v6559, %v5399
      %v6594 = vadd.f32 %v6560, %v5399
      %v6595 = vadd.f32 %v6561, %v5399
      %v6596 = vadd.f32 %v6562, %v5399
      %v6597 = vadd.f32 %v6563, %v5399
      %v6598 = vadd.f32 %v6564, %v5399
      %v6599 = vadd.f32 %v6565, %v5399
      %v6600 = vadd.f32 %v6566, %v5399
      %v6601 = vadd.f32 %v6567, %v5399
      %v6602 = vadd.f32 %v6568, %v5399
      %v6603 = vadd.f32 %v6569, %v5399
      %v6604 = vpack.c.bf16 %v6571, %v6570
      %v6605 = vpack.c.bf16 %v6573, %v6572
      %v6606 = vpack.c.bf16 %v6575, %v6574
      %v6607 = vpack.c.bf16 %v6577, %v6576
      %v6608 = vpack.c.bf16 %v6579, %v6578
      %v6609 = vpack.c.bf16 %v6581, %v6580
      %v6610 = vpack.c.bf16 %v6583, %v6582
      %v6611 = vpack.c.bf16 %v6585, %v6584
      %v6612 = vpack.c.bf16 %v6587, %v6586
      %v6613 = vpack.c.bf16 %v6589, %v6588
      %v6614 = vpack.c.bf16 %v6591, %v6590
      %v6615 = vpack.c.bf16 %v6593, %v6592
      %v6616 = vpack.c.bf16 %v6595, %v6594
      %v6617 = vpack.c.bf16 %v6597, %v6596
      %v6618 = vpack.c.bf16 %v6599, %v6598
      %v6619 = vpack.c.bf16 %v6601, %v6600
      %v6620 = vpack.c.bf16 %v6603, %v6602
      %6638 = vrot.lane.b32.xlu0 %v6604, 8
      %v6639 = vpop.permute.xlu0 %6638
      %6640 = vrot.lane.b32.xlu0 %v6605, 8
      %v6641 = vpop.permute.xlu0 %6640
      %6642 = vrot.lane.b32.xlu0 %v6606, 8
      %v6643 = vpop.permute.xlu0 %6642
      %6644 = vrot.lane.b32.xlu0 %v6607, 8
      %v6645 = vpop.permute.xlu0 %6644
      %6646 = vrot.lane.b32.xlu0 %v6608, 8
      %v6647 = vpop.permute.xlu0 %6646
      %6648 = vrot.lane.b32.xlu0 %v6609, 8
      %v6649 = vpop.permute.xlu0 %6648
      %6650 = vrot.lane.b32.xlu0 %v6610, 8
      %v6651 = vpop.permute.xlu0 %6650
      %6652 = vrot.lane.b32.xlu0 %v6611, 8
      %v6653 = vpop.permute.xlu0 %6652
      %6654 = vrot.lane.b32.xlu0 %v6612, 8
      %v6655 = vpop.permute.xlu0 %6654
      %6656 = vrot.lane.b32.xlu0 %v6613, 8
      %v6657 = vpop.permute.xlu0 %6656
      %6658 = vrot.lane.b32.xlu0 %v6614, 8
      %v6659 = vpop.permute.xlu0 %6658
      %6660 = vrot.lane.b32.xlu0 %v6615, 8
      %v6661 = vpop.permute.xlu0 %6660
      %6662 = vrot.lane.b32.xlu0 %v6616, 8
      %v6663 = vpop.permute.xlu0 %6662
      %6664 = vrot.lane.b32.xlu0 %v6617, 8
      %v6665 = vpop.permute.xlu0 %6664
      %6666 = vrot.lane.b32.xlu0 %v6618, 8
      %v6667 = vpop.permute.xlu0 %6666
      %6668 = vrot.lane.b32.xlu0 %v6619, 8
      %v6669 = vpop.permute.xlu0 %6668
      %6670 = vrot.lane.b32.xlu0 %v6620, 8
      %v6671 = vpop.permute.xlu0 %6670
      %vm6672 = vcmask 64512
      %v6675 = vsel %vm6672, %v5435, %v6639
      %v6679 = vsel %vm6672, %v5436, %v6641
      %v6683 = vsel %vm6672, %v5437, %v6643
      %v6687 = vsel %vm6672, %v5438, %v6645
      %v6691 = vsel %vm6672, %v5439, %v6647
      %v6695 = vsel %vm6672, %v5440, %v6649
      %v6699 = vsel %vm6672, %v5441, %v6651
      %v6703 = vsel %vm6672, %v5442, %v6653
      %v6707 = vsel %vm6672, %v5443, %v6655
      %v6711 = vsel %vm6672, %v5444, %v6657
      %v6715 = vsel %vm6672, %v5445, %v6659
      %v6719 = vsel %vm6672, %v5446, %v6661
      %v6723 = vsel %vm6672, %v5447, %v6663
      %v6727 = vsel %vm6672, %v5448, %v6665
      %v6731 = vsel %vm6672, %v5449, %v6667
      %v6735 = vsel %vm6672, %v5450, %v6669
      %v6739 = vsel %vm6672, %v5451, %v6671
      %v6741 = vld [vmem:[%s6] sm:$0xf]
      %v6742 = vld [vmem:[%s6 + $0x4] sm:$0xf]
      %v6743 = vld [vmem:[%s6 + $0x8] sm:$0xf]
      %v6744 = vld [vmem:[%s6 + $0xc] sm:$0xf]
      %v6745 = vld [vmem:[%s6 + $0x10] sm:$0xf]
      %v6746 = vld [vmem:[%s6 + $0x14] sm:$0xf]
      %v6747 = vld [vmem:[%s6 + $0x18] sm:$0xf]
      %v6748 = vld [vmem:[%s6 + $0x1c] sm:$0xf]
      %v6749 = vld [vmem:[%s6 + $0x20] sm:$0xf]
      %v6750 = vld [vmem:[%s6 + $0x24] sm:$0xf]
      %v6751 = vld [vmem:[%s6 + $0x28] sm:$0xf]
      %v6752 = vld [vmem:[%s6 + $0x2c] sm:$0xf]
      %v6753 = vld [vmem:[%s6 + $0x30] sm:$0xf]
      %v6754 = vld [vmem:[%s6 + $0x34] sm:$0xf]
      %v6755 = vld [vmem:[%s6 + $0x38] sm:$0xf]
      %v6756 = vld [vmem:[%s6 + $0x3c] sm:$0xf]
      %v6757 = vld [vmem:[%s6 + $0x40] sm:$0xf]
      %v6758 = vld [vmem:[%s6 + $0x44] sm:$0xf]
      %v6759 = vld [vmem:[%s6 + $0x48] sm:$0xf]
      %v6760 = vld [vmem:[%s6 + $0x4c] sm:$0xf]
      %v6761 = vld [vmem:[%s6 + $0x50] sm:$0xf]
      %v6762 = vld [vmem:[%s6 + $0x54] sm:$0xf]
      %v6763 = vld [vmem:[%s6 + $0x58] sm:$0xf]
      %v6764 = vld [vmem:[%s6 + $0x5c] sm:$0xf]
      %v6765 = vld [vmem:[%s6 + $0x60] sm:$0xf]
      %v6766 = vld [vmem:[%s6 + $0x64] sm:$0xf]
      %v6767 = vld [vmem:[%s6 + $0x68] sm:$0xf]
      %v6768 = vld [vmem:[%s6 + $0x6c] sm:$0xf]
      %v6769 = vld [vmem:[%s6 + $0x70] sm:$0xf]
      %v6770 = vld [vmem:[%s6 + $0x74] sm:$0xf]
      %v6771 = vld [vmem:[%s6 + $0x78] sm:$0xf]
      %v6772 = vld [vmem:[%s6 + $0x7c] sm:$0xf]
      %v6773 = vld [vmem:[%s6 + $0x80] sm:$0xf]
      %v6774 = vld [vmem:[%s6 + $0x84] sm:$0xf]
      %v6775 = vld [vmem:[%s7] sm:$0x1]
      %v6777 = vlaneseq
      %v6778 = vshrl.u32 %v6777, 7
      %v6779 = vsub.s32 0, %v6778
      %v6780 = vrot.slane %v6775, %v6779
      %6782 = vxpose.xlu0.c.b16.start [1/8] %v6675, 128
      %6783 = vxpose.xlu0.c.b16.cont [2/8] %v6679, 128
      %6784 = vxpose.xlu0.c.b16.cont [3/8] %v6683, 128
      %6785 = vxpose.xlu0.c.b16.cont [4/8] %v6687, 128
      %6786 = vxpose.xlu0.c.b16.cont [5/8] %v6691, 128
      %6787 = vxpose.xlu0.c.b16.cont [6/8] %v6695, 128
      %6788 = vxpose.xlu0.c.b16.cont [7/8] %v6699, 128
      %6789 = vxpose.xlu0.c.b16.end [8/8] %v6703, 128
      %v6790 = vpop.trf.xlu0
      %v6791 = vpop.trf.xlu0
      %v6792 = vpop.trf.xlu0
      %v6793 = vpop.trf.xlu0
      %v6794 = vpop.trf.xlu0
      %v6795 = vpop.trf.xlu0
      %v6796 = vpop.trf.xlu0
      %v6797 = vpop.trf.xlu0
      %6798 = vxpose.xlu0.c.b16.start [1/8] %v6707, 128
      %6799 = vxpose.xlu0.c.b16.cont [2/8] %v6711, 128
      %6800 = vxpose.xlu0.c.b16.cont [3/8] %v6715, 128
      %6801 = vxpose.xlu0.c.b16.cont [4/8] %v6719, 128
      %6802 = vxpose.xlu0.c.b16.cont [5/8] %v6723, 128
      %6803 = vxpose.xlu0.c.b16.cont [6/8] %v6727, 128
      %6804 = vxpose.xlu0.c.b16.cont [7/8] %v6731, 128
      %6805 = vxpose.xlu0.c.b16.end [8/8] %v6735, 128
      %v6806 = vpop.trf.xlu0
      %v6807 = vpop.trf.xlu0
      %v6808 = vpop.trf.xlu0
      %v6809 = vpop.trf.xlu0
      %v6810 = vpop.trf.xlu0
      %v6811 = vpop.trf.xlu0
      %v6812 = vpop.trf.xlu0
      %v6813 = vpop.trf.xlu0
      %6814 = vxpose.xlu0.c.b16.start [1/8] %v6739, 128
      %6815 = vxpose.xlu0.c.b16.cont [2/8] 0, 128
      %6816 = vxpose.xlu0.c.b16.cont [3/8] 0, 128
      %6817 = vxpose.xlu0.c.b16.cont [4/8] 0, 128
      %6818 = vxpose.xlu0.c.b16.cont [5/8] 0, 128
      %6819 = vxpose.xlu0.c.b16.cont [6/8] 0, 128
      %6820 = vxpose.xlu0.c.b16.cont [7/8] 0, 128
      %6821 = vxpose.xlu0.c.b16.end [8/8] 0, 128
      %v6822 = vpop.trf.xlu0
      %v6823 = vpop.trf.xlu0
      %v6824 = vpop.trf.xlu0
      %v6825 = vpop.trf.xlu0
      %v6826 = vpop.trf.xlu0
      %v6827 = vpop.trf.xlu0
      %v6828 = vpop.trf.xlu0
      %v6829 = vpop.trf.xlu0
      %v6864 = vunpack.c.l.b16 %v6741
      %v6865 = vunpack.c.l.b16 %v6742
      %v6866 = vunpack.c.l.b16 %v6743
      %v6867 = vunpack.c.l.b16 %v6744
      %v6868 = vunpack.c.l.b16 %v6745
      %v6869 = vunpack.c.l.b16 %v6746
      %v6870 = vunpack.c.l.b16 %v6747
      %v6871 = vunpack.c.l.b16 %v6748
      %v6872 = vunpack.c.l.b16 %v6749
      %v6873 = vunpack.c.l.b16 %v6750
      %v6874 = vunpack.c.l.b16 %v6751
      %v6875 = vunpack.c.l.b16 %v6752
      %v6876 = vunpack.c.l.b16 %v6753
      %v6877 = vunpack.c.l.b16 %v6754
      %v6878 = vunpack.c.l.b16 %v6755
      %v6879 = vunpack.c.l.b16 %v6756
      %v6880 = vunpack.c.l.b16 %v6757
      %v6881 = vunpack.c.l.b16 %v6758
      %v6882 = vunpack.c.l.b16 %v6759
      %v6883 = vunpack.c.l.b16 %v6760
      %v6884 = vunpack.c.l.b16 %v6761
      %v6885 = vunpack.c.l.b16 %v6762
      %v6886 = vunpack.c.l.b16 %v6763
      %v6887 = vunpack.c.l.b16 %v6764
      %v6888 = vunpack.c.l.b16 %v6765
      %v6889 = vunpack.c.l.b16 %v6766
      %v6890 = vunpack.c.l.b16 %v6767
      %v6891 = vunpack.c.l.b16 %v6768
      %v6892 = vunpack.c.l.b16 %v6769
      %v6893 = vunpack.c.l.b16 %v6770
      %v6894 = vunpack.c.l.b16 %v6771
      %v6895 = vunpack.c.l.b16 %v6772
      %v6896 = vunpack.c.l.b16 %v6773
      %v6897 = vunpack.c.l.b16 %v6774
      %v6898 = vpack.c.b16 %v6865, %v6864
      %v6899 = vpack.c.b16 %v6867, %v6866
      %v6900 = vpack.c.b16 %v6869, %v6868
      %v6901 = vpack.c.b16 %v6871, %v6870
      %v6902 = vpack.c.b16 %v6873, %v6872
      %v6903 = vpack.c.b16 %v6875, %v6874
      %v6904 = vpack.c.b16 %v6877, %v6876
      %v6905 = vpack.c.b16 %v6879, %v6878
      %v6906 = vpack.c.b16 %v6881, %v6880
      %v6907 = vpack.c.b16 %v6883, %v6882
      %v6908 = vpack.c.b16 %v6885, %v6884
      %v6909 = vpack.c.b16 %v6887, %v6886
      %v6910 = vpack.c.b16 %v6889, %v6888
      %v6911 = vpack.c.b16 %v6891, %v6890
      %v6912 = vpack.c.b16 %v6893, %v6892
      %v6913 = vpack.c.b16 %v6895, %v6894
      %v6914 = vpack.c.b16 %v6897, %v6896
      %v6933 = vsel %vm851, %v6822, 0
      %6935 = vmatprep.subr.bf16.mxu0 0
      %6936 = vmatpush1.bf16.msra.mxu0 %v6905
      %6937 = vmatprep.subr.bf16.mxu0 0
      %6938 = vmatpush1.bf16.msra.mxu0 %v6904
      %6939 = vmatprep.subr.bf16.mxu0 0
      %6940 = vmatpush1.bf16.msra.mxu0 %v6903
      %6941 = vmatprep.subr.bf16.mxu0 0
      %6942 = vmatpush1.bf16.msra.mxu0 %v6902
      %6943 = vmatprep.subr.bf16.mxu0 0
      %6944 = vmatpush1.bf16.msra.mxu0 %v6901
      %6945 = vmatprep.subr.bf16.mxu0 0
      %6946 = vmatpush1.bf16.msra.mxu0 %v6900
      %6947 = vmatprep.subr.bf16.mxu0 0
      %6948 = vmatpush1.bf16.msra.mxu0 %v6899
      %6949 = vmatprep.subr.bf16.mxu0 0
      %6950 = vmatpush1.bf16.msra.mxu0 %v6898
      %6951 = vmatprep.subr.bf16.mxu0 0
      %6952 = vmatpush2.bf16.msra.mxu0 %v6913
      %6953 = vmatprep.subr.bf16.mxu0 0
      %6954 = vmatpush2.bf16.msra.mxu0 %v6912
      %6955 = vmatprep.subr.bf16.mxu0 0
      %6956 = vmatpush2.bf16.msra.mxu0 %v6911
      %6957 = vmatprep.subr.bf16.mxu0 0
      %6958 = vmatpush2.bf16.msra.mxu0 %v6910
      %6959 = vmatprep.subr.bf16.mxu0 0
      %6960 = vmatpush2.bf16.msra.mxu0 %v6909
      %6961 = vmatprep.subr.bf16.mxu0 0
      %6962 = vmatpush2.bf16.msra.mxu0 %v6908
      %6963 = vmatprep.subr.bf16.mxu0 0
      %6964 = vmatpush2.bf16.msra.mxu0 %v6907
      %6965 = vmatprep.subr.bf16.mxu0 0
      %6966 = vmatpush2.bf16.msra.mxu0 %v6906
      %6967 = vmatprep.mubr.bf16.mxu0 %v6806
      %6968 = vmatmul.mubr.bf16.gmra.mxu0 %v6790
      %v6969 = vpop.f32.mrf.mxu0
      %v6970 = vadd.f32 %v6780, %v6969
      %v6971 = vpop.f32.mrf.mxu0
      %v6972 = vpop.f32.mrf.mxu0
      %v6973 = vadd.f32 %v6780, %v6972
      %v6974 = vpop.f32.mrf.mxu0
      %6975 = vdwg.mxu0
      %6976 = vmatprep.subr.bf16.mxu0 0
      %6977 = vmatpush1.bf16.msra.mxu0 0
      %6978 = vmatprep.subr.bf16.mxu0 0
      %6979 = vmatpush1.bf16.msra.mxu0 0
      %6980 = vmatprep.subr.bf16.mxu0 0
      %6981 = vmatpush1.bf16.msra.mxu0 0
      %6982 = vmatprep.subr.bf16.mxu0 0
      %6983 = vmatpush1.bf16.msra.mxu0 0
      %6984 = vmatprep.subr.bf16.mxu0 0
      %6985 = vmatpush1.bf16.msra.mxu0 0
      %6986 = vmatprep.subr.bf16.mxu0 0
      %6987 = vmatpush1.bf16.msra.mxu0 0
      %6988 = vmatprep.subr.bf16.mxu0 0
      %6989 = vmatpush1.bf16.msra.mxu0 0
      %6990 = vmatprep.subr.bf16.mxu0 0
      %6991 = vmatpush1.bf16.msra.mxu0 %v6914
      %6992 = vmatprep.subr.bf16.mxu0 0
      %6993 = vmatpush2.bf16.msra.mxu0 0
      %6994 = vmatprep.subr.bf16.mxu0 0
      %6995 = vmatpush2.bf16.msra.mxu0 0
      %6996 = vmatprep.subr.bf16.mxu0 0
      %6997 = vmatpush2.bf16.msra.mxu0 0
      %6998 = vmatprep.subr.bf16.mxu0 0
      %6999 = vmatpush2.bf16.msra.mxu0 0
      %7000 = vmatprep.subr.bf16.mxu0 0
      %7001 = vmatpush2.bf16.msra.mxu0 0
      %7002 = vmatprep.subr.bf16.mxu0 0
      %7003 = vmatpush2.bf16.msra.mxu0 0
      %7004 = vmatprep.subr.bf16.mxu0 0
      %7005 = vmatpush2.bf16.msra.mxu0 0
      %7006 = vmatprep.subr.bf16.mxu0 0
      %7007 = vmatpush2.bf16.msra.mxu0 0
      %7008 = vmatprep.mubr.bf16.mxu0 0
      %7009 = vmatmul.mubr.bf16.gmra.mxu0 %v6933
      %v7010 = vpop.f32.mrf.mxu0
      %v7011 = vadd.f32 %v6970, %v7010
      %v7012 = vpop.f32.mrf.mxu0
      %v7013 = vpop.f32.mrf.mxu0
      %v7014 = vadd.f32 %v6973, %v7013
      %v7015 = vpop.f32.mrf.mxu0
      %7016 = vdwg.mxu0
      %v7017 = vmax.f32 %v7011, 0.0
      %v7018 = vmax.f32 %v7014, 0.0
      %v7019 = vpack.c.bf16 %v7018, %v7017
      %v7020 = vld [vmem:[%s8] sm:$0xf]
      %v7021 = vld [vmem:[%s8 + $0x4] sm:$0xf]
      %v7022 = vld [vmem:[%s8 + $0x8] sm:$0xf]
      %v7023 = vld [vmem:[%s8 + $0xc] sm:$0xf]
      %v7024 = vld [vmem:[%s8 + $0x10] sm:$0xf]
      %v7025 = vld [vmem:[%s8 + $0x14] sm:$0xf]
      %v7026 = vld [vmem:[%s8 + $0x18] sm:$0xf]
      %v7027 = vld [vmem:[%s8 + $0x1c] sm:$0xf]
      %v7028 = vld [vmem:[%s8 + $0x20] sm:$0xf]
      %v7029 = vld [vmem:[%s8 + $0x24] sm:$0xf]
      %v7030 = vld [vmem:[%s8 + $0x28] sm:$0xf]
      %v7031 = vld [vmem:[%s8 + $0x2c] sm:$0xf]
      %v7032 = vld [vmem:[%s8 + $0x30] sm:$0xf]
      %v7033 = vld [vmem:[%s8 + $0x34] sm:$0xf]
      %v7034 = vld [vmem:[%s8 + $0x38] sm:$0xf]
      %v7035 = vld [vmem:[%s8 + $0x3c] sm:$0xf]
      %v7036 = vld [vmem:[%s9] sm:$0x1]
      %v7038 = vlaneseq
      %v7039 = vshrl.u32 %v7038, 7
      %v7040 = vsub.s32 0, %v7039
      %v7041 = vrot.slane %v7036, %v7040
      %v7059 = vunpack.c.l.b16 %v7020
      %v7060 = vunpack.c.l.b16 %v7021
      %v7061 = vunpack.c.l.b16 %v7022
      %v7062 = vunpack.c.l.b16 %v7023
      %v7063 = vunpack.c.l.b16 %v7024
      %v7064 = vunpack.c.l.b16 %v7025
      %v7065 = vunpack.c.l.b16 %v7026
      %v7066 = vunpack.c.l.b16 %v7027
      %v7067 = vunpack.c.l.b16 %v7028
      %v7068 = vunpack.c.l.b16 %v7029
      %v7069 = vunpack.c.l.b16 %v7030
      %v7070 = vunpack.c.l.b16 %v7031
      %v7071 = vunpack.c.l.b16 %v7032
      %v7072 = vunpack.c.l.b16 %v7033
      %v7073 = vunpack.c.l.b16 %v7034
      %v7074 = vunpack.c.l.b16 %v7035
      %v7075 = vpack.c.b16 %v7060, %v7059
      %v7076 = vpack.c.b16 %v7062, %v7061
      %v7077 = vpack.c.b16 %v7064, %v7063
      %v7078 = vpack.c.b16 %v7066, %v7065
      %v7079 = vpack.c.b16 %v7068, %v7067
      %v7080 = vpack.c.b16 %v7070, %v7069
      %v7081 = vpack.c.b16 %v7072, %v7071
      %v7082 = vpack.c.b16 %v7074, %v7073
      %7091 = vmatprep.subr.bf16.mxu0 0
      %7092 = vmatpush1.bf16.msra.mxu0 %v7082
      %7093 = vmatprep.subr.bf16.mxu0 0
      %7094 = vmatpush1.bf16.msra.mxu0 %v7081
      %7095 = vmatprep.subr.bf16.mxu0 0
      %7096 = vmatpush1.bf16.msra.mxu0 %v7080
      %7097 = vmatprep.subr.bf16.mxu0 0
      %7098 = vmatpush1.bf16.msra.mxu0 %v7079
      %7099 = vmatprep.subr.bf16.mxu0 0
      %7100 = vmatpush1.bf16.msra.mxu0 %v7078
      %7101 = vmatprep.subr.bf16.mxu0 0
      %7102 = vmatpush1.bf16.msra.mxu0 %v7077
      %7103 = vmatprep.subr.bf16.mxu0 0
      %7104 = vmatpush1.bf16.msra.mxu0 %v7076
      %7105 = vmatprep.subr.bf16.mxu0 0
      %7106 = vmatpush1.bf16.msra.mxu0 %v7075
      %7107 = vmatprep.subr.bf16.mxu0 0
      %7108 = vmatpush2.bf16.msra.mxu0 0
      %7109 = vmatprep.subr.bf16.mxu0 0
      %7110 = vmatpush2.bf16.msra.mxu0 0
      %7111 = vmatprep.subr.bf16.mxu0 0
      %7112 = vmatpush2.bf16.msra.mxu0 0
      %7113 = vmatprep.subr.bf16.mxu0 0
      %7114 = vmatpush2.bf16.msra.mxu0 0
      %7115 = vmatprep.subr.bf16.mxu0 0
      %7116 = vmatpush2.bf16.msra.mxu0 0
      %7117 = vmatprep.subr.bf16.mxu0 0
      %7118 = vmatpush2.bf16.msra.mxu0 0
      %7119 = vmatprep.subr.bf16.mxu0 0
      %7120 = vmatpush2.bf16.msra.mxu0 0
      %7121 = vmatprep.subr.bf16.mxu0 0
      %7122 = vmatpush2.bf16.msra.mxu0 0
      %7123 = vmatprep.mubr.bf16.mxu0 0
      %7124 = vmatmul.mubr.bf16.gmra.mxu0 %v7019
      %v7125 = vpop.f32.mrf.mxu0
      %v7126 = vadd.f32 %v7041, %v7125
      %v7127 = vpop.f32.mrf.mxu0
      %v7128 = vpop.f32.mrf.mxu0
      %v7129 = vadd.f32 %v7041, %v7128
      %v7130 = vpop.f32.mrf.mxu0
      %7131 = vdwg.mxu0
      %7132 = vst [vmem:[%s389] sm:$0xff] %v7126
      %7133 = vst [vmem:[%s389 + $0x8] sm:$0xff] %v7129
      %s7134 = smul.u32 2, %s21
      %p7135 = scmp.lt.s32.totalorder %s7134, 3
      %s7136 = scalar_select %p7135, %s7134, 3
      %s7137 = smul.addr %s7136, 8
      %s7138 = scalar_lea.vmem %s10, %s7137
      // Predicated region
      $region61: #{siamese_geo_cheby_forward.1} parent=59 // pred_check
        %p7139 = pneg %p259
      $region62: #{siamese_geo_cheby_forward.1} parent=59 // pred_check_branch
        %7141 = sbr.rel (%p7139) target = $region64
      $region63: #{siamese_geo_cheby_forward.1} parent=59 // pred_region
        %s7142 = smul.u32 2, %s21
      $region64: #{siamese_geo_cheby_forward.1} parent=59 // pred_fallthru
        _
    $region60: #{siamese_geo_cheby_forward.1} parent=5 // pred_fallthru
      _
    %p7143 = scmp.le.s32.totalorder 2, %s16
    // Predicated region
    $region65: #{siamese_geo_cheby_forward.1} parent=5 // pred_check
      %p7144 = pneg %p7143
    $region66: #{siamese_geo_cheby_forward.1} parent=5 // pred_check_branch
      %7146 = sbr.rel (%p7144) target = $region68
    $region67: #{siamese_geo_cheby_forward.1} parent=5 // pred_region
      %s7147 = ssub.s32 %s16, 2
      // Predicated region
      $region69: #{siamese_geo_cheby_forward.1} parent=67 // pred_check
        %p7148 = pneg %p265
      $region70: #{siamese_geo_cheby_forward.1} parent=67 // pred_check_branch
        %7150 = sbr.rel (%p7148) target = $region72
      $region71: #{siamese_geo_cheby_forward.1} parent=67 // pred_region
        %s7151 = smul.u32 2, %s22
        %p7152 = scmp.lt.s32.totalorder %s7151, 3
        %s7153 = scalar_select %p7152, %s7151, 3
        %s7154 = smul.addr %s7153, 8
        %s7155 = scalar_lea.vmem %s10, %s7154
      $region72: #{siamese_geo_cheby_forward.1} parent=67 // pred_fallthru
        _
    $region68: #{siamese_geo_cheby_forward.1} parent=5 // pred_fallthru
      _
  $region6: #{siamese_geo_cheby_forward.1} parent=0 // loop_footer
    %s20 = sadd.s32 1, %s16
  $region7: #{siamese_geo_cheby_forward.1} parent=0 // loop_footer_branch
    %15 = sbr.rel target = $region3
  $region8: #{siamese_geo_cheby_forward.1} parent=0 // loop_exit
    _

</llo_original>
